<compile_context>
chip_gen: v6e
topology: v6e:2x2x1
jax: 0.10.0
libtpu: 0.0.40
codegen_flags: <defaults>
</compile_context>

<pallas_src>
import numpy as np
import jax
import jax.numpy as jnp
from jax.experimental import pallas as pl
from jax.experimental.pallas import tpu as pltpu


def _round_up(x, m):
    return ((x + m - 1) // m) * m


def _find_max_stack_size(group_offsets, group_sizes, child, child_sizes, root_size, g=-1):
    # verbatim port of the PyTorch helper (mirrors module metadata; unused by the kernel)
    if g == -1:
        max_stack_size = 0
        for g in range(root_size + 1):
            stack_size = _find_max_stack_size(group_offsets, group_sizes, child, child_sizes, root_size, g=g)
            if stack_size > max_stack_size:
                max_stack_size = stack_size
        return max_stack_size
    max_stack_size = 1
    offset = group_offsets[g]
    size = group_sizes[g]
    for n in range(offset, offset + size):
        g = child[n]
        if g < 0:
            continue
        stack_size = child_sizes[n] + _find_max_stack_size(group_offsets, group_sizes, child, child_sizes, root_size, g=g)
        if stack_size > max_stack_size:
            max_stack_size = stack_size
    return max_stack_size


def _tpu_vmem_and_cores():
    """(physical VMEM bytes per core, TensorCores per chip) with safe fallbacks."""
    cap = 64 << 20          # smallest in the fleet (v7x) if we cannot query
    n_tc = 1
    try:
        info = pltpu.get_tpu_info()
        cap = int(getattr(info, "vmem_capacity_bytes", cap))
        n_tc = 0
        for attr in ("tensorcores_per_chip", "num_tensorcores", "cores_per_chip", "num_cores"):
            v = getattr(info, attr, None)
            if v:
                n_tc = int(v)
                break
        if not n_tc:
            # 64 MiB/core -> v7x (2 TCs/chip); 128 MiB -> v5e/v6e (1 TC/chip)
            n_tc = 2 if cap <= (64 << 20) else 1
    except Exception:
        pass
    return cap, max(1, n_tc)


def _make_kernel(c_pad, n_real, shifts, depth, threshold, append_max, collapse_pp):
    thr = np.float32(threshold)
    NEG = np.float32(-3.0e38)
    BIG = np.float32(c_pad + 1)
    TINY = np.float32(1e-30)
    max_lane = np.float32(n_real)          # spare padded lane that receives the row max

    def _split3_bf16(x):
        # lossless-to-~1ulp f32 -> 3 x bf16 split (equivalent to Precision.HIGH, 3 MXU passes)
        hi = x.astype(jnp.bfloat16)
        r1 = x - hi.astype(jnp.float32)
        mid = r1.astype(jnp.bfloat16)
        lo = (r1 - mid.astype(jnp.float32)).astype(jnp.bfloat16)
        return hi, mid, lo

    def kernel(*refs):
        if collapse_pp:
            conf_ref, obj_ref, meta_ref, anc_ref, cht_ref, out_ref = refs
            pgt_ref = None
        else:
            conf_ref, obj_ref, meta_ref, anc_ref, cht_ref, pgt_ref, out_ref = refs

        c = conf_ref[...].astype(jnp.float32)      # (TP, Cp) per-group softmax probabilities
        o = obj_ref[...].astype(jnp.float32)       # (TP, 1)  objectness
        gid = meta_ref[0:1, :]                     # (1, Cp) group id (-1 on padded lanes)
        leaf = meta_ref[1:2, :]                    # (1, Cp) node has no children
        dvec = meta_ref[2:3, :]                    # (1, Cp) 1-based depth (huge on padded lanes)
        root = meta_ref[3:4, :]                    # (1, Cp) node has no parent
        lane = meta_ref[4:5, :]                    # (1, Cp) lane index as float

        # ---- 1) first-argmax flag inside every contiguous softmax group ----------------
        # Segmented max/argmin over contiguous groups via masked log-step roll dilation:
        # O(TP*Cp*log(max_group_size)).  Masks are derived in-kernel from the rolled gid so
        # value/mask rolls always use the same roll convention.
        same_masks = []
        for s in shifts:
            for sh in (s, c_pad - s):              # both directions, positive shifts only
                same_masks.append((sh, pltpu.roll(gid, sh, axis=1) == gid))
        m = c
        for sh, same in same_masks:                # group max, broadcast to all members (exact)
            m = jnp.maximum(m, jnp.where(same, pltpu.roll(m, sh, axis=1), NEG))
        # tie-break: lowest index achieving the group max (matches the C traversal / np.argmax)
        f = jnp.where(c >= m, lane, BIG)
        for sh, same in same_masks:
            f = jnp.minimum(f, jnp.where(same, pltpu.roll(f, sh, axis=1), BIG))
        is_arg = jnp.where(lane == f, 1.0, 0.0)

        # ---- 2) hierarchical path probability pp(n) = obj * prod(conf over root->n) ----
        anc = anc_ref[...]                         # ancestor-or-self matrix, bf16 0/1
        if collapse_pp:
            # deep trees: one log-space ancestor collapse; 2-term bf16 hi/lo split (2 MXU passes)
            logc = jnp.log(jnp.maximum(c, TINY))
            hi = logc.astype(jnp.bfloat16)
            lo = (logc - hi.astype(jnp.float32)).astype(jnp.bfloat16)
            s = jnp.dot(hi, anc, preferred_element_type=jnp.float32)
            s = s + jnp.dot(lo, anc, preferred_element_type=jnp.float32)
            pp = o * jnp.exp(s)
        else:
            # shallow trees: one-hot parent gathers; 3-term bf16 split keeps the gather exact to
            # ~1 ulp f32 (threshold decisions bit-match the sequential reference product).
            pgt = pgt_ref[...]                     # pgt[m, n] = 1 iff m == parent(n), bf16
            ro = root * o                          # hoisted loop invariants (review)
            nr = 1.0 - root
            pp = c * o
            for _ in range(depth - 1):
                hi, mid, lo = _split3_bf16(pp)
                par = jnp.dot(hi, pgt, preferred_element_type=jnp.float32)
                par = par + jnp.dot(mid, pgt, preferred_element_type=jnp.float32)
                par = par + jnp.dot(lo, pgt, preferred_element_type=jnp.float32)
                pp = c * (ro + nr * par)

        # ---- 3) confident-path flag: node and every ancestor are argmax & above thr ----
        passed = is_arg * jnp.where(pp > thr, 1.0, 0.0)
        # count of confident ancestors-or-self == depth  <=>  whole path confident.
        # 0/1 operands are exact in bf16; MXU accumulates in f32 -> exact integer counts.
        cnt = jnp.dot(passed.astype(jnp.bfloat16), anc, preferred_element_type=jnp.float32)
        cf = jnp.where(cnt >= dvec - 0.5, 1.0, 0.0)   # padded lanes: dvec huge -> cf == 0 always

        # ---- 4) emit: leaf, or at least one child sub-group argmax fell below thr ------
        fail = is_arg - passed
        child_fail = jnp.dot(fail.astype(jnp.bfloat16), cht_ref[...],
                             preferred_element_type=jnp.float32)
        emit = cf * jnp.where(leaf + child_fail > 0.5, 1.0, 0.0)

        out = pp * emit
        if append_max:
            # fold the "max over nodes" channel into the spare padded lane C of the same
            # lane-dense slab (no narrow masked-store output, no wrapper concatenate).
            rowmax = jnp.max(out, axis=-1, keepdims=True)
            out = jnp.where(lane == max_lane, rowmax, out)
        out_ref[...] = out

    return kernel


class SoftmaxTreePredictionPallas:
    def __init__(self, group_offsets, group_sizes, child, child_sizes, root_size,
                 threshold=0.5, append_max=True, output_tree_path=False,
                 tile_positions=None, collapse_pp=None):
        # TODO(synk): output_tree_path=True (write probabilities along the whole path) not implemented
        assert not output_tree_path, "output_tree_path=True is not supported in this Pallas port"
        self.group_offsets = np.asarray(group_offsets, np.int32)
        self.group_sizes = np.asarray(group_sizes, np.int32)
        self.child = np.asarray(child, np.int32)
        self.child_sizes = np.asarray(child_sizes, np.int32)
        self.root_size = int(root_size)
        self.threshold = float(threshold)
        self.append_max = bool(append_max)
        self.tile_positions = None if tile_positions is None else int(tile_positions)

        C = int(self.group_offsets[-1] + self.group_sizes[-1])
        self.node_count = C
        self.group_count = len(self.group_offsets)
        assert len(self.child) == C and len(self.child_sizes) == C
        # the segmented argmax relies on groups tiling [0, C) contiguously in order
        # (which read_softmax_tree guarantees)
        assert int(self.group_offsets[0]) == 0
        for g in range(1, self.group_count):
            assert int(self.group_offsets[g]) == int(self.group_offsets[g - 1] + self.group_sizes[g - 1])
        self.stack_size = _find_max_stack_size(list(self.group_offsets), list(self.group_sizes),
                                               list(self.child), list(self.child_sizes), self.root_size)

        # lane-dense channels; reserve one extra lane for the appended max channel
        Cp = _round_up(C + (1 if self.append_max else 0), 128)
        self.c_pad = Cp

        # --- derive static tree tensors (host-side glue) ---
        parents = np.full(C, -1, np.int32)
        for n in range(C):
            cg = int(self.child[n])
            if cg < 0:
                continue
            for sg in range(int(self.child_sizes[n]) + 1):
                g = cg + sg
                off, sz = int(self.group_offsets[g]), int(self.group_sizes[g])
                parents[off:off + sz] = n
        self.parents = parents

        depth = np.zeros(C, np.int32)
        for n in range(C):
            d, p = 1, int(parents[n])
            while p >= 0:
                d += 1
                p = int(parents[p])
            depth[n] = d
        self.depth = int(depth.max()) if C else 1

        # packed (8, Cp) per-node metadata: gid / leaf / depth / root / lane index
        meta = np.zeros((8, Cp), np.float32)
        meta[0, :] = -1.0
        for g in range(self.group_count):
            off, sz = int(self.group_offsets[g]), int(self.group_sizes[g])
            meta[0, off:off + sz] = float(g)
        meta[1, :C] = (self.child < 0).astype(np.float32)
        meta[2, :] = float(Cp + 2)                 # padded lanes can never be "confident"
        meta[2, :C] = depth.astype(np.float32)
        meta[3, :C] = (parents < 0).astype(np.float32)
        meta[4, :] = np.arange(Cp, dtype=np.float32)

        # log-step dilation shifts covering the largest group
        max_gs = int(self.group_sizes.max()) if self.group_count else 1
        shifts, r = [], 1
        while r < max_gs:
            shifts.append(r)
            r *= 2
        self._shifts = tuple(shifts)

        # ancestor-or-self (A), parent one-hot (pgt), child->parent one-hot (cht) -- all bf16
        # (0/1 flag matmuls and one-hot gathers are exact in bf16 with f32 accumulation)
        A = np.zeros((Cp, Cp), np.float32)
        for n in range(C):
            p = n
            while p >= 0:
                A[p, n] = 1.0
                p = int(parents[p])
        pgt = np.zeros((Cp, Cp), np.float32)
        for n in range(C):
            if parents[n] >= 0:
                pgt[parents[n], n] = 1.0
        cht = np.ascontiguousarray(pgt.T)          # cht[m, n] = 1 iff n == parent(m)

        # exact parent-gather chain for shallow trees, log-space ancestor collapse for deep ones
        self._collapse_pp = (self.depth > 4) if collapse_pp is None else bool(collapse_pp)

        self._meta = jnp.asarray(meta)
        self._anc16 = jnp.asarray(A, dtype=jnp.bfloat16)
        self._cht16 = jnp.asarray(cht, dtype=jnp.bfloat16)
        self._pgt16 = None if self._collapse_pp else jnp.asarray(pgt, dtype=jnp.bfloat16)

        n_mats = 2 if self._collapse_pp else 3
        self._const_vmem_bytes = n_mats * Cp * Cp * 2 + 8 * Cp * 4
        # TODO(synk): trees with many thousands of nodes need the Cp x Cp matrices streamed
        # from HBM in 128-column slabs (they do not fit resident VMEM on v7x); not implemented.

        self._kernel = _make_kernel(Cp, C, self._shifts, self.depth, self.threshold,
                                    self.append_max, self._collapse_pp)
        self._fwd_cache = {}

    # ------------------------------------------------------------------ tiling
    def _choose_tile(self, P, conf_itemsize):
        Cp = self.c_pad
        cap, n_tc = _tpu_vmem_and_cores()
        budget = int(cap * 0.7)                    # generation-aware (128 MiB v5e/v6e, 64 MiB v7x)
        avail = max(budget - self._const_vmem_bytes, 2 << 20)
        # per-row VMEM bytes: double-buffered conf in + double-buffered f32 out slab
        # + ~18 live (row, Cp) f32 temporaries (conservative) + obj / misc
        per_row = Cp * (2 * conf_itemsize + 2 * 4 + 18 * 4) + 32
        tp = int(min(2048, avail // per_row, _round_up(P, 8)))
        if self.tile_positions:
            tp = min(tp, self.tile_positions)
        if n_tc >= 2 and P >= 32:
            # v7x: >= 4 grid steps so both TensorCores get work and each still pipelines
            tp = min(tp, _round_up(-(-P // 4), 8))
        tp = max(8, (tp // 8) * 8)
        est = self._const_vmem_bytes + tp * per_row
        vmem_limit = int(min(cap - (2 << 20), max(est + (8 << 20), 32 << 20)))
        return tp, vmem_limit

    # ------------------------------------------------------------------ build jitted forward
    def _build(self, conf_shape, conf_dtype, obj_shape, channels_last):
        C, Cp = self.node_count, self.c_pad
        if channels_last:
            N, H, W, Cin = conf_shape
        else:
            N, Cin, H, W = conf_shape
        assert Cin == C, "Channel count must match tree node count"
        P = N * H * W
        if obj_shape is not None:
            assert int(np.prod(obj_shape)) == P, "Invalid obj dimension"

        in_dtype = jnp.dtype(conf_dtype)
        if in_dtype not in (jnp.dtype(jnp.float32), jnp.dtype(jnp.bfloat16)):
            in_dtype = jnp.dtype(jnp.float32)

        tp, vmem_limit = self._choose_tile(P, in_dtype.itemsize)
        P_pad = _round_up(P, tp)
        Cout = C + 1 if self.append_max else C
        collapse = self._collapse_pp

        in_specs = [
            pl.BlockSpec((tp, Cp), lambda i: (i, 0)),                        # conf tile
            pl.BlockSpec((tp, 1), lambda i: (i, 0)),                         # obj tile
            pl.BlockSpec(memory_space=pltpu.MemorySpace.VMEM),               # meta (8, Cp)
            pl.BlockSpec(memory_space=pltpu.MemorySpace.VMEM),               # ancestor-or-self bf16
            pl.BlockSpec(memory_space=pltpu.MemorySpace.VMEM),               # child->parent bf16
        ]
        if not collapse:
            in_specs.append(pl.BlockSpec(memory_space=pltpu.MemorySpace.VMEM))  # parent one-hot bf16

        call = pl.pallas_call(
            self._kernel,
            out_shape=jax.ShapeDtypeStruct((P_pad, Cp), jnp.float32),
            grid=(P_pad // tp,),
            in_specs=in_specs,
            out_specs=pl.BlockSpec((tp, Cp), lambda i: (i, 0)),              # lane-dense, unmasked vst
            compiler_params=pltpu.CompilerParams(
                dimension_semantics=("parallel",),
                vmem_limit_bytes=vmem_limit),
        )

        meta, anc16, cht16, pgt16 = self._meta, self._anc16, self._cht16, self._pgt16

        def run(conf, obj=None):
            if channels_last:
                conf2d = conf.reshape(P, C)
            else:
                conf2d = jnp.transpose(conf, (0, 2, 3, 1)).reshape(P, C)
            conf2d = conf2d.astype(in_dtype)
            # zero-padded rows/lanes; padded rows keep obj == 0 -> nothing emitted there
            conf2d = jnp.pad(conf2d, ((0, P_pad - P), (0, Cp - C)))
            if obj is None:
                obj2d = jnp.ones((P_pad, 1), jnp.float32)
            else:
                obj2d = jnp.pad(obj.astype(jnp.float32).reshape(P, 1), ((0, P_pad - P), (0, 0)))
            args = (conf2d, obj2d, meta, anc16, cht16)
            if not collapse:
                args = args + (pgt16,)
            out2d = call(*args)
            out = out2d[:P, :Cout].reshape(N, H, W, Cout)
            if channels_last:
                return out
            return jnp.transpose(out, (0, 3, 1, 2))

        return jax.jit(run)

    # ------------------------------------------------------------------ forward
    def __call__(self, conf, obj=None, channels_last=False):
        # channels_last=True lets producers that already emit NHWC skip the extra
        # NCHW<->NHWC transpose round trip (pure HBM traffic for this kernel).
        key = (tuple(conf.shape), str(conf.dtype),
               None if obj is None else (tuple(obj.shape), str(obj.dtype)),
               bool(channels_last))
        fn = self._fwd_cache.get(key)
        if fn is None:
            fn = self._build(conf.shape, conf.dtype,
                             None if obj is None else tuple(obj.shape), bool(channels_last))
            self._fwd_cache[key] = fn
        if obj is None:
            return fn(conf)
        return fn(conf, obj)


def reference_softmax_tree_prediction(conf, obj, group_offsets, group_sizes, child, child_sizes,
                                      root_size, threshold, append_max):
    """Pure-Python stack-based traversal (mirrors the original smtpred_cpu loop)."""
    conf = np.asarray(conf, np.float32)
    N, C, H, W = conf.shape
    Cout = C + 1 if append_max else C
    out = np.zeros((N, Cout, H, W), np.float32)
    thr = np.float32(threshold)
    for n in range(N):
        for y in range(H):
            for x in range(W):
                o = np.float32(obj[n, y, x]) if obj is not None else np.float32(1.0)
                for g0 in range(root_size + 1):
                    stack = [(g0, o, -1)]
                    while stack:
                        g, parent_p, parent_argmax = stack.pop()
                        while True:
                            off, sz = int(group_offsets[g]), int(group_sizes[g])
                            seg = conf[n, off:off + sz, y, x]
                            j = int(np.argmax(seg))
                            node = off + j
                            p = np.float32(parent_p * np.float32(seg[j]))
                            if not (p > thr):
                                if parent_argmax >= 0:
                                    out[n, parent_argmax, y, x] = parent_p
                                    if append_max and parent_p > out[n, C, y, x]:
                                        out[n, C, y, x] = parent_p
                                break
                            nxt = int(child[node])
                            if nxt < 0:
                                out[n, node, y, x] = p
                                if append_max and p > out[n, C, y, x]:
                                    out[n, C, y, x] = p
                                break
                            for sg in range(1, int(child_sizes[node]) + 1):
                                stack.append((nxt + sg, p, node))
                            parent_p = p
                            parent_argmax = node
                            g = nxt
    return out


if __name__ == "__main__":
    # Synthetic softmax tree (13 nodes, 5 groups, max depth 3):
    #   group 0 (root):            nodes 0,1,2
    #   group 1 (children of 0):   nodes 3,4,5
    #   groups 2,3 (two child sub-groups of node 1): nodes 6,7 / 8,9
    #   group 4 (children of 3):   nodes 10,11,12
    group_offsets = [0, 3, 6, 8, 10]
    group_sizes = [3, 3, 2, 2, 3]
    child = [1, 2, -1, 4, -1, -1, -1, -1, -1, -1, -1, -1, -1]
    child_sizes = [0, 1, 0, 0, 0, 0, 0, 0, 0, 0, 0, 0, 0]
    root_size = 0

    module = SoftmaxTreePredictionPallas(group_offsets, group_sizes, child, child_sizes,
                                         root_size, threshold=0.5, append_max=True)

    N, H, W = 2, 16, 16
    C = module.node_count
    key = jax.random.PRNGKey(0)
    k1, k2 = jax.random.split(key)
    logits = 3.0 * jax.random.normal(k1, (N, C, H, W), jnp.float32)
    # per-group softmax over the channel axis (what the upstream SoftmaxTree layer produces)
    conf = jnp.concatenate(
        [jax.nn.softmax(logits[:, off:off + sz], axis=1)
         for off, sz in zip(group_offsets, group_sizes)], axis=1)
    obj = jax.random.uniform(k2, (N, H, W), jnp.float32)

    out = jax.block_until_ready(module(conf, obj))
    assert out.shape == (N, C + 1, H, W)

    ref = reference_softmax_tree_prediction(np.asarray(conf), np.asarray(obj),
                                            group_offsets, group_sizes, child, child_sizes,
                                            root_size, module.threshold, module.append_max)
    np.testing.assert_allclose(np.asarray(out), ref, rtol=1e-5, atol=1e-5)

    # channels_last fast path (skips the NCHW<->NHWC wrapper transposes) must match.
    out_cl = jax.block_until_ready(module(jnp.transpose(conf, (0, 2, 3, 1)), obj, channels_last=True))
    np.testing.assert_allclose(np.asarray(jnp.transpose(out_cl, (0, 3, 1, 2))), ref,
                               rtol=1e-5, atol=1e-5)

    # Deep-tree (collapsed, log-space) pp path: intentionally approximate (log/exp + bf16 hi/lo),
    # so rare threshold-boundary flips vs. the sequential reference are possible; check that the
    # overwhelming majority of output elements match.
    module_c = SoftmaxTreePredictionPallas(group_offsets, group_sizes, child, child_sizes,
                                           root_size, threshold=0.5, append_max=True,
                                           collapse_pp=True)
    out_c = np.asarray(jax.block_until_ready(module_c(conf, obj)))
    close = np.isclose(out_c, ref, rtol=1e-3, atol=1e-3)
    assert close.mean() >= 0.995, f"collapsed-pp path mismatch fraction {1.0 - close.mean():.5f}"

    print("KERNEL_OK")
</pallas_src>

<mosaic_0001>
module attributes {stable_mosaic.version = 11 : i64} {
  func.func @kernel(%arg0: i32, %arg1: memref<512x128xf32, #tpu.memory_space<vmem>>, %arg2: memref<512x1xf32, #tpu.memory_space<vmem>>, %arg3: memref<8x128xf32, #tpu.memory_space<vmem>>, %arg4: memref<128x128xbf16, #tpu.memory_space<vmem>>, %arg5: memref<128x128xbf16, #tpu.memory_space<vmem>>, %arg6: memref<128x128xbf16, #tpu.memory_space<vmem>>, %arg7: memref<512x128xf32, #tpu.memory_space<vmem>>) attributes {dimension_semantics = [#tpu.dimension_semantics<parallel>], iteration_bounds = array<i64: 1>, scalar_prefetch = 0 : i64, scratch_operands = 0 : i64, tpu.core_type = #tpu.core_type<tc>, window_params = [{transform_indices = @transform_0, window_bounds = array<i64: 512, 128>}, {transform_indices = @transform_1, window_bounds = array<i64: 512, 1>}, {pipeline_mode = #tpu.pipeline_mode<synchronous>, transform_indices = @transform_2, window_bounds = array<i64: 8, 128>}, {pipeline_mode = #tpu.pipeline_mode<synchronous>, transform_indices = @transform_3, window_bounds = array<i64: 128, 128>}, {pipeline_mode = #tpu.pipeline_mode<synchronous>, transform_indices = @transform_4, window_bounds = array<i64: 128, 128>}, {pipeline_mode = #tpu.pipeline_mode<synchronous>, transform_indices = @transform_5, window_bounds = array<i64: 128, 128>}, {transform_indices = @transform_6, window_bounds = array<i64: 512, 128>}]} {
    %c0 = arith.constant 0 : index
    %c0_0 = arith.constant 0 : index
    %0 = vector.load %arg1[%c0, %c0_0] : memref<512x128xf32, #tpu.memory_space<vmem>>, vector<512x128xf32>
    %c0_1 = arith.constant 0 : index
    %c0_2 = arith.constant 0 : index
    %1 = vector.load %arg2[%c0_1, %c0_2] : memref<512x1xf32, #tpu.memory_space<vmem>>, vector<512x1xf32>
    %c0_3 = arith.constant 0 : index
    %c0_4 = arith.constant 0 : index
    %2 = vector.load %arg3[%c0_3, %c0_4] : memref<8x128xf32, #tpu.memory_space<vmem>>, vector<1x128xf32>
    %c1 = arith.constant 1 : index
    %c0_5 = arith.constant 0 : index
    %3 = vector.load %arg3[%c1, %c0_5] : memref<8x128xf32, #tpu.memory_space<vmem>>, vector<1x128xf32>
    %c2 = arith.constant 2 : index
    %c0_6 = arith.constant 0 : index
    %4 = vector.load %arg3[%c2, %c0_6] : memref<8x128xf32, #tpu.memory_space<vmem>>, vector<1x128xf32>
    %c3 = arith.constant 3 : index
    %c0_7 = arith.constant 0 : index
    %5 = vector.load %arg3[%c3, %c0_7] : memref<8x128xf32, #tpu.memory_space<vmem>>, vector<1x128xf32>
    %c4 = arith.constant 4 : index
    %c0_8 = arith.constant 0 : index
    %6 = vector.load %arg3[%c4, %c0_8] : memref<8x128xf32, #tpu.memory_space<vmem>>, vector<1x128xf32>
    %c1_i32 = arith.constant 1 : i32
    %7 = tpu.dynamic_rotate %2 by %c1_i32 dim 1 : vector<1x128xf32>, i32 -> vector<1x128xf32>
    %8 = arith.cmpf oeq, %7, %2 : vector<1x128xf32>
    %c127_i32 = arith.constant 127 : i32
    %9 = tpu.dynamic_rotate %2 by %c127_i32 dim 1 : vector<1x128xf32>, i32 -> vector<1x128xf32>
    %10 = arith.cmpf oeq, %9, %2 : vector<1x128xf32>
    %c2_i32 = arith.constant 2 : i32
    %11 = tpu.dynamic_rotate %2 by %c2_i32 dim 1 : vector<1x128xf32>, i32 -> vector<1x128xf32>
    %12 = arith.cmpf oeq, %11, %2 : vector<1x128xf32>
    %c126_i32 = arith.constant 126 : i32
    %13 = tpu.dynamic_rotate %2 by %c126_i32 dim 1 : vector<1x128xf32>, i32 -> vector<1x128xf32>
    %14 = arith.cmpf oeq, %13, %2 : vector<1x128xf32>
    %c1_i32_9 = arith.constant 1 : i32
    %15 = tpu.dynamic_rotate %0 by %c1_i32_9 dim 1 : vector<512x128xf32>, i32 -> vector<512x128xf32>
    %cst = arith.constant -3.000000e+38 : f32
    %16 = vector.shape_cast %8 : vector<1x128xi1> to vector<1x128xi1>
    %17 = vector.broadcast %16 : vector<1x128xi1> to vector<512x128xi1>
    %18 = vector.broadcast %cst : f32 to vector<512x128xf32>
    %19 = arith.select %17, %15, %18 : vector<512x128xi1>, vector<512x128xf32>
    %20 = arith.maximumf %0, %19 : vector<512x128xf32>
    %c127_i32_10 = arith.constant 127 : i32
    %21 = tpu.dynamic_rotate %20 by %c127_i32_10 dim 1 : vector<512x128xf32>, i32 -> vector<512x128xf32>
    %cst_11 = arith.constant -3.000000e+38 : f32
    %22 = vector.shape_cast %10 : vector<1x128xi1> to vector<1x128xi1>
    %23 = vector.broadcast %22 : vector<1x128xi1> to vector<512x128xi1>
    %24 = vector.broadcast %cst_11 : f32 to vector<512x128xf32>
    %25 = arith.select %23, %21, %24 : vector<512x128xi1>, vector<512x128xf32>
    %26 = arith.maximumf %20, %25 : vector<512x128xf32>
    %c2_i32_12 = arith.constant 2 : i32
    %27 = tpu.dynamic_rotate %26 by %c2_i32_12 dim 1 : vector<512x128xf32>, i32 -> vector<512x128xf32>
    %cst_13 = arith.constant -3.000000e+38 : f32
    %28 = vector.shape_cast %12 : vector<1x128xi1> to vector<1x128xi1>
    %29 = vector.broadcast %28 : vector<1x128xi1> to vector<512x128xi1>
    %30 = vector.broadcast %cst_13 : f32 to vector<512x128xf32>
    %31 = arith.select %29, %27, %30 : vector<512x128xi1>, vector<512x128xf32>
    %32 = arith.maximumf %26, %31 : vector<512x128xf32>
    %c126_i32_14 = arith.constant 126 : i32
    %33 = tpu.dynamic_rotate %32 by %c126_i32_14 dim 1 : vector<512x128xf32>, i32 -> vector<512x128xf32>
    %cst_15 = arith.constant -3.000000e+38 : f32
    %34 = vector.shape_cast %14 : vector<1x128xi1> to vector<1x128xi1>
    %35 = vector.broadcast %34 : vector<1x128xi1> to vector<512x128xi1>
    %36 = vector.broadcast %cst_15 : f32 to vector<512x128xf32>
    %37 = arith.select %35, %33, %36 : vector<512x128xi1>, vector<512x128xf32>
    %38 = arith.maximumf %32, %37 : vector<512x128xf32>
    %39 = arith.cmpf oge, %0, %38 : vector<512x128xf32>
    %cst_16 = arith.constant 1.290000e+02 : f32
    %40 = vector.shape_cast %6 : vector<1x128xf32> to vector<1x128xf32>
    %41 = vector.broadcast %40 : vector<1x128xf32> to vector<512x128xf32>
    %42 = vector.broadcast %cst_16 : f32 to vector<512x128xf32>
    %43 = arith.select %39, %41, %42 : vector<512x128xi1>, vector<512x128xf32>
    %c1_i32_17 = arith.constant 1 : i32
    %44 = tpu.dynamic_rotate %43 by %c1_i32_17 dim 1 : vector<512x128xf32>, i32 -> vector<512x128xf32>
    %cst_18 = arith.constant 1.290000e+02 : f32
    %45 = vector.shape_cast %8 : vector<1x128xi1> to vector<1x128xi1>
    %46 = vector.broadcast %45 : vector<1x128xi1> to vector<512x128xi1>
    %47 = vector.broadcast %cst_18 : f32 to vector<512x128xf32>
    %48 = arith.select %46, %44, %47 : vector<512x128xi1>, vector<512x128xf32>
    %49 = arith.minimumf %43, %48 : vector<512x128xf32>
    %c127_i32_19 = arith.constant 127 : i32
    %50 = tpu.dynamic_rotate %49 by %c127_i32_19 dim 1 : vector<512x128xf32>, i32 -> vector<512x128xf32>
    %cst_20 = arith.constant 1.290000e+02 : f32
    %51 = vector.shape_cast %10 : vector<1x128xi1> to vector<1x128xi1>
    %52 = vector.broadcast %51 : vector<1x128xi1> to vector<512x128xi1>
    %53 = vector.broadcast %cst_20 : f32 to vector<512x128xf32>
    %54 = arith.select %52, %50, %53 : vector<512x128xi1>, vector<512x128xf32>
    %55 = arith.minimumf %49, %54 : vector<512x128xf32>
    %c2_i32_21 = arith.constant 2 : i32
    %56 = tpu.dynamic_rotate %55 by %c2_i32_21 dim 1 : vector<512x128xf32>, i32 -> vector<512x128xf32>
    %cst_22 = arith.constant 1.290000e+02 : f32
    %57 = vector.shape_cast %12 : vector<1x128xi1> to vector<1x128xi1>
    %58 = vector.broadcast %57 : vector<1x128xi1> to vector<512x128xi1>
    %59 = vector.broadcast %cst_22 : f32 to vector<512x128xf32>
    %60 = arith.select %58, %56, %59 : vector<512x128xi1>, vector<512x128xf32>
    %61 = arith.minimumf %55, %60 : vector<512x128xf32>
    %c126_i32_23 = arith.constant 126 : i32
    %62 = tpu.dynamic_rotate %61 by %c126_i32_23 dim 1 : vector<512x128xf32>, i32 -> vector<512x128xf32>
    %cst_24 = arith.constant 1.290000e+02 : f32
    %63 = vector.shape_cast %14 : vector<1x128xi1> to vector<1x128xi1>
    %64 = vector.broadcast %63 : vector<1x128xi1> to vector<512x128xi1>
    %65 = vector.broadcast %cst_24 : f32 to vector<512x128xf32>
    %66 = arith.select %64, %62, %65 : vector<512x128xi1>, vector<512x128xf32>
    %67 = arith.minimumf %61, %66 : vector<512x128xf32>
    %68 = vector.broadcast %6 : vector<1x128xf32> to vector<512x128xf32>
    %69 = arith.cmpf oeq, %68, %67 : vector<512x128xf32>
    %cst_25 = arith.constant 1.000000e+00 : f32
    %cst_26 = arith.constant 0.000000e+00 : f32
    %70 = vector.broadcast %cst_25 : f32 to vector<512x128xf32>
    %71 = vector.broadcast %cst_26 : f32 to vector<512x128xf32>
    %72 = arith.select %69, %70, %71 : vector<512x128xi1>, vector<512x128xf32>
    %c0_27 = arith.constant 0 : index
    %c0_28 = arith.constant 0 : index
    %73 = vector.load %arg4[%c0_27, %c0_28] : memref<128x128xbf16, #tpu.memory_space<vmem>>, vector<128x128xbf16>
    %c0_29 = arith.constant 0 : index
    %c0_30 = arith.constant 0 : index
    %74 = vector.load %arg6[%c0_29, %c0_30] : memref<128x128xbf16, #tpu.memory_space<vmem>>, vector<128x128xbf16>
    %75 = vector.broadcast %5 : vector<1x128xf32> to vector<512x128xf32>
    %76 = vector.broadcast %1 : vector<512x1xf32> to vector<512x128xf32>
    %77 = arith.mulf %75, %76 : vector<512x128xf32>
    %cst_31 = arith.constant 1.000000e+00 : f32
    %78 = vector.broadcast %cst_31 : f32 to vector<1x128xf32>
    %79 = arith.subf %78, %5 : vector<1x128xf32>
    %80 = vector.broadcast %1 : vector<512x1xf32> to vector<512x128xf32>
    %81 = arith.mulf %0, %80 : vector<512x128xf32>
    %82 = arith.truncf %81 : vector<512x128xf32> to vector<512x128xbf16>
    %83 = arith.extf %82 : vector<512x128xbf16> to vector<512x128xf32>
    %84 = arith.subf %81, %83 : vector<512x128xf32>
    %85 = arith.truncf %84 : vector<512x128xf32> to vector<512x128xbf16>
    %86 = arith.extf %85 : vector<512x128xbf16> to vector<512x128xf32>
    %87 = arith.subf %84, %86 : vector<512x128xf32>
    %88 = arith.truncf %87 : vector<512x128xf32> to vector<512x128xbf16>
    %cst_32 = arith.constant dense<0.000000e+00> : vector<512x128xf32>
    %89 = tpu.matmul %82, %74, %cst_32 {dimension_numbers = #tpu.dot_dimension_numbers<[1], [0], [0], [1], [0, 0, 1, 1], [], []>} : vector<512x128xbf16>, vector<128x128xbf16>, vector<512x128xf32> -> vector<512x128xf32>
    %cst_33 = arith.constant dense<0.000000e+00> : vector<512x128xf32>
    %90 = tpu.matmul %85, %74, %cst_33 {dimension_numbers = #tpu.dot_dimension_numbers<[1], [0], [0], [1], [0, 0, 1, 1], [], []>} : vector<512x128xbf16>, vector<128x128xbf16>, vector<512x128xf32> -> vector<512x128xf32>
    %91 = arith.addf %89, %90 : vector<512x128xf32>
    %cst_34 = arith.constant dense<0.000000e+00> : vector<512x128xf32>
    %92 = tpu.matmul %88, %74, %cst_34 {dimension_numbers = #tpu.dot_dimension_numbers<[1], [0], [0], [1], [0, 0, 1, 1], [], []>} : vector<512x128xbf16>, vector<128x128xbf16>, vector<512x128xf32> -> vector<512x128xf32>
    %93 = arith.addf %91, %92 : vector<512x128xf32>
    %94 = vector.broadcast %79 : vector<1x128xf32> to vector<512x128xf32>
    %95 = arith.mulf %94, %93 : vector<512x128xf32>
    %96 = arith.addf %77, %95 : vector<512x128xf32>
    %97 = arith.mulf %0, %96 : vector<512x128xf32>
    %98 = arith.truncf %97 : vector<512x128xf32> to vector<512x128xbf16>
    %99 = arith.extf %98 : vector<512x128xbf16> to vector<512x128xf32>
    %100 = arith.subf %97, %99 : vector<512x128xf32>
    %101 = arith.truncf %100 : vector<512x128xf32> to vector<512x128xbf16>
    %102 = arith.extf %101 : vector<512x128xbf16> to vector<512x128xf32>
    %103 = arith.subf %100, %102 : vector<512x128xf32>
    %104 = arith.truncf %103 : vector<512x128xf32> to vector<512x128xbf16>
    %cst_35 = arith.constant dense<0.000000e+00> : vector<512x128xf32>
    %105 = tpu.matmul %98, %74, %cst_35 {dimension_numbers = #tpu.dot_dimension_numbers<[1], [0], [0], [1], [0, 0, 1, 1], [], []>} : vector<512x128xbf16>, vector<128x128xbf16>, vector<512x128xf32> -> vector<512x128xf32>
    %cst_36 = arith.constant dense<0.000000e+00> : vector<512x128xf32>
    %106 = tpu.matmul %101, %74, %cst_36 {dimension_numbers = #tpu.dot_dimension_numbers<[1], [0], [0], [1], [0, 0, 1, 1], [], []>} : vector<512x128xbf16>, vector<128x128xbf16>, vector<512x128xf32> -> vector<512x128xf32>
    %107 = arith.addf %105, %106 : vector<512x128xf32>
    %cst_37 = arith.constant dense<0.000000e+00> : vector<512x128xf32>
    %108 = tpu.matmul %104, %74, %cst_37 {dimension_numbers = #tpu.dot_dimension_numbers<[1], [0], [0], [1], [0, 0, 1, 1], [], []>} : vector<512x128xbf16>, vector<128x128xbf16>, vector<512x128xf32> -> vector<512x128xf32>
    %109 = arith.addf %107, %108 : vector<512x128xf32>
    %110 = vector.broadcast %79 : vector<1x128xf32> to vector<512x128xf32>
    %111 = arith.mulf %110, %109 : vector<512x128xf32>
    %112 = arith.addf %77, %111 : vector<512x128xf32>
    %113 = arith.mulf %0, %112 : vector<512x128xf32>
    %cst_38 = arith.constant 5.000000e-01 : f32
    %114 = vector.broadcast %cst_38 : f32 to vector<512x128xf32>
    %115 = arith.cmpf ogt, %113, %114 : vector<512x128xf32>
    %cst_39 = arith.constant 1.000000e+00 : f32
    %cst_40 = arith.constant 0.000000e+00 : f32
    %116 = vector.broadcast %cst_39 : f32 to vector<512x128xf32>
    %117 = vector.broadcast %cst_40 : f32 to vector<512x128xf32>
    %118 = arith.select %115, %116, %117 : vector<512x128xi1>, vector<512x128xf32>
    %119 = arith.mulf %72, %118 : vector<512x128xf32>
    %120 = arith.truncf %119 : vector<512x128xf32> to vector<512x128xbf16>
    %cst_41 = arith.constant dense<0.000000e+00> : vector<512x128xf32>
    %121 = tpu.matmul %120, %73, %cst_41 {dimension_numbers = #tpu.dot_dimension_numbers<[1], [0], [0], [1], [0, 0, 1, 1], [], []>} : vector<512x128xbf16>, vector<128x128xbf16>, vector<512x128xf32> -> vector<512x128xf32>
    %cst_42 = arith.constant 5.000000e-01 : f32
    %122 = vector.broadcast %cst_42 : f32 to vector<1x128xf32>
    %123 = arith.subf %4, %122 : vector<1x128xf32>
    %124 = vector.broadcast %123 : vector<1x128xf32> to vector<512x128xf32>
    %125 = arith.cmpf oge, %121, %124 : vector<512x128xf32>
    %cst_43 = arith.constant 1.000000e+00 : f32
    %cst_44 = arith.constant 0.000000e+00 : f32
    %126 = vector.broadcast %cst_43 : f32 to vector<512x128xf32>
    %127 = vector.broadcast %cst_44 : f32 to vector<512x128xf32>
    %128 = arith.select %125, %126, %127 : vector<512x128xi1>, vector<512x128xf32>
    %129 = arith.subf %72, %119 : vector<512x128xf32>
    %130 = arith.truncf %129 : vector<512x128xf32> to vector<512x128xbf16>
    %c0_45 = arith.constant 0 : index
    %c0_46 = arith.constant 0 : index
    %131 = vector.load %arg5[%c0_45, %c0_46] : memref<128x128xbf16, #tpu.memory_space<vmem>>, vector<128x128xbf16>
    %cst_47 = arith.constant dense<0.000000e+00> : vector<512x128xf32>
    %132 = tpu.matmul %130, %131, %cst_47 {dimension_numbers = #tpu.dot_dimension_numbers<[1], [0], [0], [1], [0, 0, 1, 1], [], []>} : vector<512x128xbf16>, vector<128x128xbf16>, vector<512x128xf32> -> vector<512x128xf32>
    %133 = vector.broadcast %3 : vector<1x128xf32> to vector<512x128xf32>
    %134 = arith.addf %133, %132 : vector<512x128xf32>
    %cst_48 = arith.constant 5.000000e-01 : f32
    %135 = vector.broadcast %cst_48 : f32 to vector<512x128xf32>
    %136 = arith.cmpf ogt, %134, %135 : vector<512x128xf32>
    %cst_49 = arith.constant 1.000000e+00 : f32
    %cst_50 = arith.constant 0.000000e+00 : f32
    %137 = vector.broadcast %cst_49 : f32 to vector<512x128xf32>
    %138 = vector.broadcast %cst_50 : f32 to vector<512x128xf32>
    %139 = arith.select %136, %137, %138 : vector<512x128xi1>, vector<512x128xf32>
    %140 = arith.mulf %128, %139 : vector<512x128xf32>
    %141 = arith.mulf %113, %140 : vector<512x128xf32>
    %cst_51 = arith.constant dense<0xFF800000> : vector<512xf32>
    %142 = vector.multi_reduction <maximumf>, %141, %cst_51 [1] : vector<512x128xf32> to vector<512xf32>
    %143 = vector.shape_cast %142 : vector<512xf32> to vector<512x1xf32>
    %cst_52 = arith.constant 1.300000e+01 : f32
    %144 = vector.broadcast %cst_52 : f32 to vector<1x128xf32>
    %145 = arith.cmpf oeq, %6, %144 : vector<1x128xf32>
    %146 = vector.shape_cast %145 : vector<1x128xi1> to vector<1x128xi1>
    %147 = vector.broadcast %146 : vector<1x128xi1> to vector<512x128xi1>
    %148 = vector.shape_cast %143 : vector<512x1xf32> to vector<512x1xf32>
    %149 = vector.broadcast %148 : vector<512x1xf32> to vector<512x128xf32>
    %150 = arith.select %147, %149, %141 : vector<512x128xi1>, vector<512x128xf32>
    %c0_53 = arith.constant 0 : index
    %c0_54 = arith.constant 0 : index
    %151 = vector.load %arg7[%c0_53, %c0_54] : memref<512x128xf32, #tpu.memory_space<vmem>>, vector<512x128xf32>
    tpu.vector_store %arg7[%c0_53, %c0_54], %150 {strides = array<i32>} : memref<512x128xf32, #tpu.memory_space<vmem>>, vector<512x128xf32>,
    return
  }
  func.func @transform_0(%arg0: i32) -> (i32, i32) {
    %c0_i32 = arith.constant 0 : i32
    %c0_i32_0 = arith.constant 0 : i32
    return %arg0, %c0_i32 : i32, i32
  }
  func.func @transform_1(%arg0: i32) -> (i32, i32) {
    %c0_i32 = arith.constant 0 : i32
    %c0_i32_0 = arith.constant 0 : i32
    return %arg0, %c0_i32 : i32, i32
  }
  func.func @transform_2(%arg0: i32) -> (i32, i32) {
    %c0_i32 = arith.constant 0 : i32
    %c0_i32_0 = arith.constant 0 : i32
    %c0_i32_1 = arith.constant 0 : i32
    return %c0_i32, %c0_i32_0 : i32, i32
  }
  func.func @transform_3(%arg0: i32) -> (i32, i32) {
    %c0_i32 = arith.constant 0 : i32
    %c0_i32_0 = arith.constant 0 : i32
    %c0_i32_1 = arith.constant 0 : i32
    return %c0_i32, %c0_i32_0 : i32, i32
  }
  func.func @transform_4(%arg0: i32) -> (i32, i32) {
    %c0_i32 = arith.constant 0 : i32
    %c0_i32_0 = arith.constant 0 : i32
    %c0_i32_1 = arith.constant 0 : i32
    return %c0_i32, %c0_i32_0 : i32, i32
  }
  func.func @transform_5(%arg0: i32) -> (i32, i32) {
    %c0_i32 = arith.constant 0 : i32
    %c0_i32_0 = arith.constant 0 : i32
    %c0_i32_1 = arith.constant 0 : i32
    return %c0_i32, %c0_i32_0 : i32, i32
  }
  func.func @transform_6(%arg0: i32) -> (i32, i32) {
    %c0_i32 = arith.constant 0 : i32
    %c0_i32_0 = arith.constant 0 : i32
    return %arg0, %c0_i32 : i32, i32
  }
}

</mosaic_0001>

<llo_original>
// kernel: run.1
$region0: #{run.1}
  #allocation0 [shape = 'u32[]', space=smem, size = 0x4, offset = 0x4, fixed_abs, tag = 'smem constant byte address 0x4 - core index']
  #allocation1 [shape = 'u32[144,128]{1,0:T(1,128)}', space=vmem, size = 0x12000, scoped, tag = 'internal scratch']
  %s0 = inlined_call_operand.vmem [shape: f32[512,128], index: 0, kind: input, shape index: {}]
  %s1 = inlined_call_operand.vmem [shape: f32[512,1], index: 1, kind: input, shape index: {}]
  %s2 = inlined_call_operand.vmem [shape: f32[8,128], index: 2, kind: input, shape index: {}]
  %s3 = inlined_call_operand.vmem [shape: bf16[128,128], index: 3, kind: input, shape index: {}]
  %s4 = inlined_call_operand.vmem [shape: bf16[128,128], index: 4, kind: input, shape index: {}]
  %s5 = inlined_call_operand.vmem [shape: bf16[128,128], index: 5, kind: input, shape index: {}]
  %s6 = inlined_call_operand.vmem [shape: f32[512,128], index: 6, kind: output, shape index: {}]
  %s7 = sld [smem:[#allocation0]]
  $region34: #{run.1} parent=0
    _
  %s9 = ssub.s32 1, %s7
  %s10 = scalar_select 0, %s9, %s7
  // Predicated region
  $region2: #{run.1} parent=0 // pred_check
    _
  $region3: #{run.1} parent=0 // pred_check_branch
    %12 = sbr.rel (0) target = $region5
  $region4: #{run.1} parent=0 // pred_region
    _
  $region5: #{run.1} parent=0 // pred_fallthru
    _
  // Predicated region
  $region6: #{run.1} parent=0 // pred_check
    _
  $region7: #{run.1} parent=0 // pred_check_branch
    %14 = sbr.rel (0) target = $region9
  $region8: #{run.1} parent=0 // pred_region
    _
  $region9: #{run.1} parent=0 // pred_fallthru
    _
  // Predicated region
  $region10: #{run.1} parent=0 // pred_check
    _
  $region11: #{run.1} parent=0 // pred_check_branch
    %16 = sbr.rel (0) target = $region13
  $region12: #{run.1} parent=0 // pred_region
    _
  $region13: #{run.1} parent=0 // pred_fallthru
    _
  // Predicated region
  $region14: #{run.1} parent=0 // pred_check
    _
  $region15: #{run.1} parent=0 // pred_check_branch
    %18 = sbr.rel (0) target = $region17
  $region16: #{run.1} parent=0 // pred_region
    _
  $region17: #{run.1} parent=0 // pred_fallthru
    _
  // Predicated region
  $region18: #{run.1} parent=0 // pred_check
    _
  $region19: #{run.1} parent=0 // pred_check_branch
    %20 = sbr.rel (0) target = $region21
  $region20: #{run.1} parent=0 // pred_region
    _
  $region21: #{run.1} parent=0 // pred_fallthru
    _
  // Predicated region
  $region22: #{run.1} parent=0 // pred_check
    _
  $region23: #{run.1} parent=0 // pred_check_branch
    %22 = sbr.rel (0) target = $region25
  $region24: #{run.1} parent=0 // pred_region
    _
  $region25: #{run.1} parent=0 // pred_fallthru
    _
  %v24 = vld [vmem:[%s0] sm:$0xff]
  %v25 = vld [vmem:[%s0 + $0x8] sm:$0xff]
  %v26 = vld [vmem:[%s0 + $0x10] sm:$0xff]
  %v27 = vld [vmem:[%s0 + $0x18] sm:$0xff]
  %v28 = vld [vmem:[%s0 + $0x20] sm:$0xff]
  %v29 = vld [vmem:[%s0 + $0x28] sm:$0xff]
  %v30 = vld [vmem:[%s0 + $0x30] sm:$0xff]
  %v31 = vld [vmem:[%s0 + $0x38] sm:$0xff]
  %v32 = vld [vmem:[%s0 + $0x40] sm:$0xff]
  %v33 = vld [vmem:[%s0 + $0x48] sm:$0xff]
  %v34 = vld [vmem:[%s0 + $0x50] sm:$0xff]
  %v35 = vld [vmem:[%s0 + $0x58] sm:$0xff]
  %v36 = vld [vmem:[%s0 + $0x60] sm:$0xff]
  %v37 = vld [vmem:[%s0 + $0x68] sm:$0xff]
  %v38 = vld [vmem:[%s0 + $0x70] sm:$0xff]
  %v39 = vld [vmem:[%s0 + $0x78] sm:$0xff]
  %v40 = vld [vmem:[%s0 + $0x80] sm:$0xff]
  %v41 = vld [vmem:[%s0 + $0x88] sm:$0xff]
  %v42 = vld [vmem:[%s0 + $0x90] sm:$0xff]
  %v43 = vld [vmem:[%s0 + $0x98] sm:$0xff]
  %v44 = vld [vmem:[%s0 + $0xa0] sm:$0xff]
  %v45 = vld [vmem:[%s0 + $0xa8] sm:$0xff]
  %v46 = vld [vmem:[%s0 + $0xb0] sm:$0xff]
  %v47 = vld [vmem:[%s0 + $0xb8] sm:$0xff]
  %v48 = vld [vmem:[%s0 + $0xc0] sm:$0xff]
  %v49 = vld [vmem:[%s0 + $0xc8] sm:$0xff]
  %v50 = vld [vmem:[%s0 + $0xd0] sm:$0xff]
  %v51 = vld [vmem:[%s0 + $0xd8] sm:$0xff]
  %v52 = vld [vmem:[%s0 + $0xe0] sm:$0xff]
  %v53 = vld [vmem:[%s0 + $0xe8] sm:$0xff]
  %v54 = vld [vmem:[%s0 + $0xf0] sm:$0xff]
  %v55 = vld [vmem:[%s0 + $0xf8] sm:$0xff]
  %v56 = vld [vmem:[%s0 + $0x100] sm:$0xff]
  %v57 = vld [vmem:[%s0 + $0x108] sm:$0xff]
  %v58 = vld [vmem:[%s0 + $0x110] sm:$0xff]
  %v59 = vld [vmem:[%s0 + $0x118] sm:$0xff]
  %v60 = vld [vmem:[%s0 + $0x120] sm:$0xff]
  %v61 = vld [vmem:[%s0 + $0x128] sm:$0xff]
  %v62 = vld [vmem:[%s0 + $0x130] sm:$0xff]
  %v63 = vld [vmem:[%s0 + $0x138] sm:$0xff]
  %v64 = vld [vmem:[%s0 + $0x140] sm:$0xff]
  %v65 = vld [vmem:[%s0 + $0x148] sm:$0xff]
  %v66 = vld [vmem:[%s0 + $0x150] sm:$0xff]
  %v67 = vld [vmem:[%s0 + $0x158] sm:$0xff]
  %v68 = vld [vmem:[%s0 + $0x160] sm:$0xff]
  %v69 = vld [vmem:[%s0 + $0x168] sm:$0xff]
  %v70 = vld [vmem:[%s0 + $0x170] sm:$0xff]
  %v71 = vld [vmem:[%s0 + $0x178] sm:$0xff]
  %v72 = vld [vmem:[%s0 + $0x180] sm:$0xff]
  %v73 = vld [vmem:[%s0 + $0x188] sm:$0xff]
  %v74 = vld [vmem:[%s0 + $0x190] sm:$0xff]
  %v75 = vld [vmem:[%s0 + $0x198] sm:$0xff]
  %v76 = vld [vmem:[%s0 + $0x1a0] sm:$0xff]
  %v77 = vld [vmem:[%s0 + $0x1a8] sm:$0xff]
  %v78 = vld [vmem:[%s0 + $0x1b0] sm:$0xff]
  %v79 = vld [vmem:[%s0 + $0x1b8] sm:$0xff]
  %v80 = vld [vmem:[%s0 + $0x1c0] sm:$0xff]
  %v81 = vld [vmem:[%s0 + $0x1c8] sm:$0xff]
  %v82 = vld [vmem:[%s0 + $0x1d0] sm:$0xff]
  %v83 = vld [vmem:[%s0 + $0x1d8] sm:$0xff]
  %v84 = vld [vmem:[%s0 + $0x1e0] sm:$0xff]
  %v85 = vld [vmem:[%s0 + $0x1e8] sm:$0xff]
  %v86 = vld [vmem:[%s0 + $0x1f0] sm:$0xff]
  %v87 = vld [vmem:[%s0 + $0x1f8] sm:$0xff]
  %v88 = vld [vmem:[%s1] sm:$0xff]
  %v89 = vld [vmem:[%s1 + $0x8] sm:$0xff]
  %v90 = vld [vmem:[%s1 + $0x10] sm:$0xff]
  %v91 = vld [vmem:[%s1 + $0x18] sm:$0xff]
  %v92 = vld [vmem:[%s1 + $0x20] sm:$0xff]
  %v93 = vld [vmem:[%s1 + $0x28] sm:$0xff]
  %v94 = vld [vmem:[%s1 + $0x30] sm:$0xff]
  %v95 = vld [vmem:[%s1 + $0x38] sm:$0xff]
  %v96 = vld [vmem:[%s1 + $0x40] sm:$0xff]
  %v97 = vld [vmem:[%s1 + $0x48] sm:$0xff]
  %v98 = vld [vmem:[%s1 + $0x50] sm:$0xff]
  %v99 = vld [vmem:[%s1 + $0x58] sm:$0xff]
  %v100 = vld [vmem:[%s1 + $0x60] sm:$0xff]
  %v101 = vld [vmem:[%s1 + $0x68] sm:$0xff]
  %v102 = vld [vmem:[%s1 + $0x70] sm:$0xff]
  %v103 = vld [vmem:[%s1 + $0x78] sm:$0xff]
  %v104 = vld [vmem:[%s1 + $0x80] sm:$0xff]
  %v105 = vld [vmem:[%s1 + $0x88] sm:$0xff]
  %v106 = vld [vmem:[%s1 + $0x90] sm:$0xff]
  %v107 = vld [vmem:[%s1 + $0x98] sm:$0xff]
  %v108 = vld [vmem:[%s1 + $0xa0] sm:$0xff]
  %v109 = vld [vmem:[%s1 + $0xa8] sm:$0xff]
  %v110 = vld [vmem:[%s1 + $0xb0] sm:$0xff]
  %v111 = vld [vmem:[%s1 + $0xb8] sm:$0xff]
  %v112 = vld [vmem:[%s1 + $0xc0] sm:$0xff]
  %v113 = vld [vmem:[%s1 + $0xc8] sm:$0xff]
  %v114 = vld [vmem:[%s1 + $0xd0] sm:$0xff]
  %v115 = vld [vmem:[%s1 + $0xd8] sm:$0xff]
  %v116 = vld [vmem:[%s1 + $0xe0] sm:$0xff]
  %v117 = vld [vmem:[%s1 + $0xe8] sm:$0xff]
  %v118 = vld [vmem:[%s1 + $0xf0] sm:$0xff]
  %v119 = vld [vmem:[%s1 + $0xf8] sm:$0xff]
  %v120 = vld [vmem:[%s1 + $0x100] sm:$0xff]
  %v121 = vld [vmem:[%s1 + $0x108] sm:$0xff]
  %v122 = vld [vmem:[%s1 + $0x110] sm:$0xff]
  %v123 = vld [vmem:[%s1 + $0x118] sm:$0xff]
  %v124 = vld [vmem:[%s1 + $0x120] sm:$0xff]
  %v125 = vld [vmem:[%s1 + $0x128] sm:$0xff]
  %v126 = vld [vmem:[%s1 + $0x130] sm:$0xff]
  %v127 = vld [vmem:[%s1 + $0x138] sm:$0xff]
  %v128 = vld [vmem:[%s1 + $0x140] sm:$0xff]
  %v129 = vld [vmem:[%s1 + $0x148] sm:$0xff]
  %v130 = vld [vmem:[%s1 + $0x150] sm:$0xff]
  %v131 = vld [vmem:[%s1 + $0x158] sm:$0xff]
  %v132 = vld [vmem:[%s1 + $0x160] sm:$0xff]
  %v133 = vld [vmem:[%s1 + $0x168] sm:$0xff]
  %v134 = vld [vmem:[%s1 + $0x170] sm:$0xff]
  %v135 = vld [vmem:[%s1 + $0x178] sm:$0xff]
  %v136 = vld [vmem:[%s1 + $0x180] sm:$0xff]
  %v137 = vld [vmem:[%s1 + $0x188] sm:$0xff]
  %v138 = vld [vmem:[%s1 + $0x190] sm:$0xff]
  %v139 = vld [vmem:[%s1 + $0x198] sm:$0xff]
  %v140 = vld [vmem:[%s1 + $0x1a0] sm:$0xff]
  %v141 = vld [vmem:[%s1 + $0x1a8] sm:$0xff]
  %v142 = vld [vmem:[%s1 + $0x1b0] sm:$0xff]
  %v143 = vld [vmem:[%s1 + $0x1b8] sm:$0xff]
  %v144 = vld [vmem:[%s1 + $0x1c0] sm:$0xff]
  %v145 = vld [vmem:[%s1 + $0x1c8] sm:$0xff]
  %v146 = vld [vmem:[%s1 + $0x1d0] sm:$0xff]
  %v147 = vld [vmem:[%s1 + $0x1d8] sm:$0xff]
  %v148 = vld [vmem:[%s1 + $0x1e0] sm:$0xff]
  %v149 = vld [vmem:[%s1 + $0x1e8] sm:$0xff]
  %v150 = vld [vmem:[%s1 + $0x1f0] sm:$0xff]
  %v151 = vld [vmem:[%s1 + $0x1f8] sm:$0xff]
  %v152 = vld [vmem:[%s2] sm:$0x1]
  %v153 = vld [vmem:[%s2 + $0x1] sm:$0x1]
  %v154 = vld [vmem:[%s2 + $0x2] sm:$0x1]
  %v155 = vld [vmem:[%s2 + $0x3] sm:$0x1]
  %v156 = vld [vmem:[%s2 + $0x4] sm:$0x1]
  %157 = vrot.lane.b32.xlu0 %v152, 1
  %v158 = vpop.permute.xlu0 %157
  %vm159 = vcmp.eq.f32.partialorder %v158, %v152
  %160 = vrot.lane.b32.xlu0 %v152, 127
  %v161 = vpop.permute.xlu0 %160
  %vm162 = vcmp.eq.f32.partialorder %v161, %v152
  %163 = vrot.lane.b32.xlu0 %v152, 2
  %v164 = vpop.permute.xlu0 %163
  %vm165 = vcmp.eq.f32.partialorder %v164, %v152
  %166 = vrot.lane.b32.xlu0 %v152, 126
  %v167 = vpop.permute.xlu0 %166
  %vm168 = vcmp.eq.f32.partialorder %v167, %v152
  %169 = vrot.lane.b32.xlu0 %v24, 1
  %v170 = vpop.permute.xlu0 %169
  %171 = vrot.lane.b32.xlu0 %v25, 1
  %v172 = vpop.permute.xlu0 %171
  %173 = vrot.lane.b32.xlu0 %v26, 1
  %v174 = vpop.permute.xlu0 %173
  %175 = vrot.lane.b32.xlu0 %v27, 1
  %v176 = vpop.permute.xlu0 %175
  %177 = vrot.lane.b32.xlu0 %v28, 1
  %v178 = vpop.permute.xlu0 %177
  %179 = vrot.lane.b32.xlu0 %v29, 1
  %v180 = vpop.permute.xlu0 %179
  %181 = vrot.lane.b32.xlu0 %v30, 1
  %v182 = vpop.permute.xlu0 %181
  %183 = vrot.lane.b32.xlu0 %v31, 1
  %v184 = vpop.permute.xlu0 %183
  %185 = vrot.lane.b32.xlu0 %v32, 1
  %v186 = vpop.permute.xlu0 %185
  %187 = vrot.lane.b32.xlu0 %v33, 1
  %v188 = vpop.permute.xlu0 %187
  %189 = vrot.lane.b32.xlu0 %v34, 1
  %v190 = vpop.permute.xlu0 %189
  %191 = vrot.lane.b32.xlu0 %v35, 1
  %v192 = vpop.permute.xlu0 %191
  %193 = vrot.lane.b32.xlu0 %v36, 1
  %v194 = vpop.permute.xlu0 %193
  %195 = vrot.lane.b32.xlu0 %v37, 1
  %v196 = vpop.permute.xlu0 %195
  %197 = vrot.lane.b32.xlu0 %v38, 1
  %v198 = vpop.permute.xlu0 %197
  %199 = vrot.lane.b32.xlu0 %v39, 1
  %v200 = vpop.permute.xlu0 %199
  %201 = vrot.lane.b32.xlu0 %v40, 1
  %v202 = vpop.permute.xlu0 %201
  %203 = vrot.lane.b32.xlu0 %v41, 1
  %v204 = vpop.permute.xlu0 %203
  %205 = vrot.lane.b32.xlu0 %v42, 1
  %v206 = vpop.permute.xlu0 %205
  %207 = vrot.lane.b32.xlu0 %v43, 1
  %v208 = vpop.permute.xlu0 %207
  %209 = vrot.lane.b32.xlu0 %v44, 1
  %v210 = vpop.permute.xlu0 %209
  %211 = vrot.lane.b32.xlu0 %v45, 1
  %v212 = vpop.permute.xlu0 %211
  %213 = vrot.lane.b32.xlu0 %v46, 1
  %v214 = vpop.permute.xlu0 %213
  %215 = vrot.lane.b32.xlu0 %v47, 1
  %v216 = vpop.permute.xlu0 %215
  %217 = vrot.lane.b32.xlu0 %v48, 1
  %v218 = vpop.permute.xlu0 %217
  %219 = vrot.lane.b32.xlu0 %v49, 1
  %v220 = vpop.permute.xlu0 %219
  %221 = vrot.lane.b32.xlu0 %v50, 1
  %v222 = vpop.permute.xlu0 %221
  %223 = vrot.lane.b32.xlu0 %v51, 1
  %v224 = vpop.permute.xlu0 %223
  %225 = vrot.lane.b32.xlu0 %v52, 1
  %v226 = vpop.permute.xlu0 %225
  %227 = vrot.lane.b32.xlu0 %v53, 1
  %v228 = vpop.permute.xlu0 %227
  %229 = vrot.lane.b32.xlu0 %v54, 1
  %v230 = vpop.permute.xlu0 %229
  %231 = vrot.lane.b32.xlu0 %v55, 1
  %v232 = vpop.permute.xlu0 %231
  %233 = vrot.lane.b32.xlu0 %v56, 1
  %v234 = vpop.permute.xlu0 %233
  %235 = vrot.lane.b32.xlu0 %v57, 1
  %v236 = vpop.permute.xlu0 %235
  %237 = vrot.lane.b32.xlu0 %v58, 1
  %v238 = vpop.permute.xlu0 %237
  %239 = vrot.lane.b32.xlu0 %v59, 1
  %v240 = vpop.permute.xlu0 %239
  %241 = vrot.lane.b32.xlu0 %v60, 1
  %v242 = vpop.permute.xlu0 %241
  %243 = vrot.lane.b32.xlu0 %v61, 1
  %v244 = vpop.permute.xlu0 %243
  %245 = vrot.lane.b32.xlu0 %v62, 1
  %v246 = vpop.permute.xlu0 %245
  %247 = vrot.lane.b32.xlu0 %v63, 1
  %v248 = vpop.permute.xlu0 %247
  %249 = vrot.lane.b32.xlu0 %v64, 1
  %v250 = vpop.permute.xlu0 %249
  %251 = vrot.lane.b32.xlu0 %v65, 1
  %v252 = vpop.permute.xlu0 %251
  %253 = vrot.lane.b32.xlu0 %v66, 1
  %v254 = vpop.permute.xlu0 %253
  %255 = vrot.lane.b32.xlu0 %v67, 1
  %v256 = vpop.permute.xlu0 %255
  %257 = vrot.lane.b32.xlu0 %v68, 1
  %v258 = vpop.permute.xlu0 %257
  %259 = vrot.lane.b32.xlu0 %v69, 1
  %v260 = vpop.permute.xlu0 %259
  %261 = vrot.lane.b32.xlu0 %v70, 1
  %v262 = vpop.permute.xlu0 %261
  %263 = vrot.lane.b32.xlu0 %v71, 1
  %v264 = vpop.permute.xlu0 %263
  %265 = vrot.lane.b32.xlu0 %v72, 1
  %v266 = vpop.permute.xlu0 %265
  %267 = vrot.lane.b32.xlu0 %v73, 1
  %v268 = vpop.permute.xlu0 %267
  %269 = vrot.lane.b32.xlu0 %v74, 1
  %v270 = vpop.permute.xlu0 %269
  %271 = vrot.lane.b32.xlu0 %v75, 1
  %v272 = vpop.permute.xlu0 %271
  %273 = vrot.lane.b32.xlu0 %v76, 1
  %v274 = vpop.permute.xlu0 %273
  %275 = vrot.lane.b32.xlu0 %v77, 1
  %v276 = vpop.permute.xlu0 %275
  %277 = vrot.lane.b32.xlu0 %v78, 1
  %v278 = vpop.permute.xlu0 %277
  %279 = vrot.lane.b32.xlu0 %v79, 1
  %v280 = vpop.permute.xlu0 %279
  %281 = vrot.lane.b32.xlu0 %v80, 1
  %v282 = vpop.permute.xlu0 %281
  %283 = vrot.lane.b32.xlu0 %v81, 1
  %v284 = vpop.permute.xlu0 %283
  %285 = vrot.lane.b32.xlu0 %v82, 1
  %v286 = vpop.permute.xlu0 %285
  %287 = vrot.lane.b32.xlu0 %v83, 1
  %v288 = vpop.permute.xlu0 %287
  %289 = vrot.lane.b32.xlu0 %v84, 1
  %v290 = vpop.permute.xlu0 %289
  %291 = vrot.lane.b32.xlu0 %v85, 1
  %v292 = vpop.permute.xlu0 %291
  %293 = vrot.lane.b32.xlu0 %v86, 1
  %v294 = vpop.permute.xlu0 %293
  %295 = vrot.lane.b32.xlu0 %v87, 1
  %v296 = vpop.permute.xlu0 %295
  %v297 = vsel %vm159, 1, 0
  %v298 = vlaneseq
  %v299 = vshrl.u32 %v298, 7
  %v300 = vsub.s32 0, %v299
  %v301 = vrot.slane %v297, %v300
  %vm302 = vcmp.eq.s32.totalorder %v301, 1
  %v303 = vsel %vm302, %v170, -3e+38
  %v304 = vsel %vm302, %v172, -3e+38
  %v305 = vsel %vm302, %v174, -3e+38
  %v306 = vsel %vm302, %v176, -3e+38
  %v307 = vsel %vm302, %v178, -3e+38
  %v308 = vsel %vm302, %v180, -3e+38
  %v309 = vsel %vm302, %v182, -3e+38
  %v310 = vsel %vm302, %v184, -3e+38
  %v311 = vsel %vm302, %v186, -3e+38
  %v312 = vsel %vm302, %v188, -3e+38
  %v313 = vsel %vm302, %v190, -3e+38
  %v314 = vsel %vm302, %v192, -3e+38
  %v315 = vsel %vm302, %v194, -3e+38
  %v316 = vsel %vm302, %v196, -3e+38
  %v317 = vsel %vm302, %v198, -3e+38
  %v318 = vsel %vm302, %v200, -3e+38
  %v319 = vsel %vm302, %v202, -3e+38
  %v320 = vsel %vm302, %v204, -3e+38
  %v321 = vsel %vm302, %v206, -3e+38
  %v322 = vsel %vm302, %v208, -3e+38
  %v323 = vsel %vm302, %v210, -3e+38
  %v324 = vsel %vm302, %v212, -3e+38
  %v325 = vsel %vm302, %v214, -3e+38
  %v326 = vsel %vm302, %v216, -3e+38
  %v327 = vsel %vm302, %v218, -3e+38
  %v328 = vsel %vm302, %v220, -3e+38
  %v329 = vsel %vm302, %v222, -3e+38
  %v330 = vsel %vm302, %v224, -3e+38
  %v331 = vsel %vm302, %v226, -3e+38
  %v332 = vsel %vm302, %v228, -3e+38
  %v333 = vsel %vm302, %v230, -3e+38
  %v334 = vsel %vm302, %v232, -3e+38
  %v335 = vsel %vm302, %v234, -3e+38
  %v336 = vsel %vm302, %v236, -3e+38
  %v337 = vsel %vm302, %v238, -3e+38
  %v338 = vsel %vm302, %v240, -3e+38
  %v339 = vsel %vm302, %v242, -3e+38
  %v340 = vsel %vm302, %v244, -3e+38
  %v341 = vsel %vm302, %v246, -3e+38
  %v342 = vsel %vm302, %v248, -3e+38
  %v343 = vsel %vm302, %v250, -3e+38
  %v344 = vsel %vm302, %v252, -3e+38
  %v345 = vsel %vm302, %v254, -3e+38
  %v346 = vsel %vm302, %v256, -3e+38
  %v347 = vsel %vm302, %v258, -3e+38
  %v348 = vsel %vm302, %v260, -3e+38
  %v349 = vsel %vm302, %v262, -3e+38
  %v350 = vsel %vm302, %v264, -3e+38
  %v351 = vsel %vm302, %v266, -3e+38
  %v352 = vsel %vm302, %v268, -3e+38
  %v353 = vsel %vm302, %v270, -3e+38
  %v354 = vsel %vm302, %v272, -3e+38
  %v355 = vsel %vm302, %v274, -3e+38
  %v356 = vsel %vm302, %v276, -3e+38
  %v357 = vsel %vm302, %v278, -3e+38
  %v358 = vsel %vm302, %v280, -3e+38
  %v359 = vsel %vm302, %v282, -3e+38
  %v360 = vsel %vm302, %v284, -3e+38
  %v361 = vsel %vm302, %v286, -3e+38
  %v362 = vsel %vm302, %v288, -3e+38
  %v363 = vsel %vm302, %v290, -3e+38
  %v364 = vsel %vm302, %v292, -3e+38
  %v365 = vsel %vm302, %v294, -3e+38
  %v366 = vsel %vm302, %v296, -3e+38
  %v367 = vmax.f32 %v24, %v303
  %v368 = vmax.f32 %v25, %v304
  %v369 = vmax.f32 %v26, %v305
  %v370 = vmax.f32 %v27, %v306
  %v371 = vmax.f32 %v28, %v307
  %v372 = vmax.f32 %v29, %v308
  %v373 = vmax.f32 %v30, %v309
  %v374 = vmax.f32 %v31, %v310
  %v375 = vmax.f32 %v32, %v311
  %v376 = vmax.f32 %v33, %v312
  %v377 = vmax.f32 %v34, %v313
  %v378 = vmax.f32 %v35, %v314
  %v379 = vmax.f32 %v36, %v315
  %v380 = vmax.f32 %v37, %v316
  %v381 = vmax.f32 %v38, %v317
  %v382 = vmax.f32 %v39, %v318
  %v383 = vmax.f32 %v40, %v319
  %v384 = vmax.f32 %v41, %v320
  %v385 = vmax.f32 %v42, %v321
  %v386 = vmax.f32 %v43, %v322
  %v387 = vmax.f32 %v44, %v323
  %v388 = vmax.f32 %v45, %v324
  %v389 = vmax.f32 %v46, %v325
  %v390 = vmax.f32 %v47, %v326
  %v391 = vmax.f32 %v48, %v327
  %v392 = vmax.f32 %v49, %v328
  %v393 = vmax.f32 %v50, %v329
  %v394 = vmax.f32 %v51, %v330
  %v395 = vmax.f32 %v52, %v331
  %v396 = vmax.f32 %v53, %v332
  %v397 = vmax.f32 %v54, %v333
  %v398 = vmax.f32 %v55, %v334
  %v399 = vmax.f32 %v56, %v335
  %v400 = vmax.f32 %v57, %v336
  %v401 = vmax.f32 %v58, %v337
  %v402 = vmax.f32 %v59, %v338
  %v403 = vmax.f32 %v60, %v339
  %v404 = vmax.f32 %v61, %v340
  %v405 = vmax.f32 %v62, %v341
  %v406 = vmax.f32 %v63, %v342
  %v407 = vmax.f32 %v64, %v343
  %v408 = vmax.f32 %v65, %v344
  %v409 = vmax.f32 %v66, %v345
  %v410 = vmax.f32 %v67, %v346
  %v411 = vmax.f32 %v68, %v347
  %v412 = vmax.f32 %v69, %v348
  %v413 = vmax.f32 %v70, %v349
  %v414 = vmax.f32 %v71, %v350
  %v415 = vmax.f32 %v72, %v351
  %v416 = vmax.f32 %v73, %v352
  %v417 = vmax.f32 %v74, %v353
  %v418 = vmax.f32 %v75, %v354
  %v419 = vmax.f32 %v76, %v355
  %v420 = vmax.f32 %v77, %v356
  %v421 = vmax.f32 %v78, %v357
  %v422 = vmax.f32 %v79, %v358
  %v423 = vmax.f32 %v80, %v359
  %v424 = vmax.f32 %v81, %v360
  %v425 = vmax.f32 %v82, %v361
  %v426 = vmax.f32 %v83, %v362
  %v427 = vmax.f32 %v84, %v363
  %v428 = vmax.f32 %v85, %v364
  %v429 = vmax.f32 %v86, %v365
  %v430 = vmax.f32 %v87, %v366
  %431 = vrot.lane.b32.xlu0 %v367, 127
  %v432 = vpop.permute.xlu0 %431
  %433 = vrot.lane.b32.xlu0 %v368, 127
  %v434 = vpop.permute.xlu0 %433
  %435 = vrot.lane.b32.xlu0 %v369, 127
  %v436 = vpop.permute.xlu0 %435
  %437 = vrot.lane.b32.xlu0 %v370, 127
  %v438 = vpop.permute.xlu0 %437
  %439 = vrot.lane.b32.xlu0 %v371, 127
  %v440 = vpop.permute.xlu0 %439
  %441 = vrot.lane.b32.xlu0 %v372, 127
  %v442 = vpop.permute.xlu0 %441
  %443 = vrot.lane.b32.xlu0 %v373, 127
  %v444 = vpop.permute.xlu0 %443
  %445 = vrot.lane.b32.xlu0 %v374, 127
  %v446 = vpop.permute.xlu0 %445
  %447 = vrot.lane.b32.xlu0 %v375, 127
  %v448 = vpop.permute.xlu0 %447
  %449 = vrot.lane.b32.xlu0 %v376, 127
  %v450 = vpop.permute.xlu0 %449
  %451 = vrot.lane.b32.xlu0 %v377, 127
  %v452 = vpop.permute.xlu0 %451
  %453 = vrot.lane.b32.xlu0 %v378, 127
  %v454 = vpop.permute.xlu0 %453
  %455 = vrot.lane.b32.xlu0 %v379, 127
  %v456 = vpop.permute.xlu0 %455
  %457 = vrot.lane.b32.xlu0 %v380, 127
  %v458 = vpop.permute.xlu0 %457
  %459 = vrot.lane.b32.xlu0 %v381, 127
  %v460 = vpop.permute.xlu0 %459
  %461 = vrot.lane.b32.xlu0 %v382, 127
  %v462 = vpop.permute.xlu0 %461
  %463 = vrot.lane.b32.xlu0 %v383, 127
  %v464 = vpop.permute.xlu0 %463
  %465 = vrot.lane.b32.xlu0 %v384, 127
  %v466 = vpop.permute.xlu0 %465
  %467 = vrot.lane.b32.xlu0 %v385, 127
  %v468 = vpop.permute.xlu0 %467
  %469 = vrot.lane.b32.xlu0 %v386, 127
  %v470 = vpop.permute.xlu0 %469
  %471 = vrot.lane.b32.xlu0 %v387, 127
  %v472 = vpop.permute.xlu0 %471
  %473 = vrot.lane.b32.xlu0 %v388, 127
  %v474 = vpop.permute.xlu0 %473
  %475 = vrot.lane.b32.xlu0 %v389, 127
  %v476 = vpop.permute.xlu0 %475
  %477 = vrot.lane.b32.xlu0 %v390, 127
  %v478 = vpop.permute.xlu0 %477
  %479 = vrot.lane.b32.xlu0 %v391, 127
  %v480 = vpop.permute.xlu0 %479
  %481 = vrot.lane.b32.xlu0 %v392, 127
  %v482 = vpop.permute.xlu0 %481
  %483 = vrot.lane.b32.xlu0 %v393, 127
  %v484 = vpop.permute.xlu0 %483
  %485 = vrot.lane.b32.xlu0 %v394, 127
  %v486 = vpop.permute.xlu0 %485
  %487 = vrot.lane.b32.xlu0 %v395, 127
  %v488 = vpop.permute.xlu0 %487
  %489 = vrot.lane.b32.xlu0 %v396, 127
  %v490 = vpop.permute.xlu0 %489
  %491 = vrot.lane.b32.xlu0 %v397, 127
  %v492 = vpop.permute.xlu0 %491
  %493 = vrot.lane.b32.xlu0 %v398, 127
  %v494 = vpop.permute.xlu0 %493
  %495 = vrot.lane.b32.xlu0 %v399, 127
  %v496 = vpop.permute.xlu0 %495
  %497 = vrot.lane.b32.xlu0 %v400, 127
  %v498 = vpop.permute.xlu0 %497
  %499 = vrot.lane.b32.xlu0 %v401, 127
  %v500 = vpop.permute.xlu0 %499
  %501 = vrot.lane.b32.xlu0 %v402, 127
  %v502 = vpop.permute.xlu0 %501
  %503 = vrot.lane.b32.xlu0 %v403, 127
  %v504 = vpop.permute.xlu0 %503
  %505 = vrot.lane.b32.xlu0 %v404, 127
  %v506 = vpop.permute.xlu0 %505
  %507 = vrot.lane.b32.xlu0 %v405, 127
  %v508 = vpop.permute.xlu0 %507
  %509 = vrot.lane.b32.xlu0 %v406, 127
  %v510 = vpop.permute.xlu0 %509
  %511 = vrot.lane.b32.xlu0 %v407, 127
  %v512 = vpop.permute.xlu0 %511
  %513 = vrot.lane.b32.xlu0 %v408, 127
  %v514 = vpop.permute.xlu0 %513
  %515 = vrot.lane.b32.xlu0 %v409, 127
  %v516 = vpop.permute.xlu0 %515
  %517 = vrot.lane.b32.xlu0 %v410, 127
  %v518 = vpop.permute.xlu0 %517
  %519 = vrot.lane.b32.xlu0 %v411, 127
  %v520 = vpop.permute.xlu0 %519
  %521 = vrot.lane.b32.xlu0 %v412, 127
  %v522 = vpop.permute.xlu0 %521
  %523 = vrot.lane.b32.xlu0 %v413, 127
  %v524 = vpop.permute.xlu0 %523
  %525 = vrot.lane.b32.xlu0 %v414, 127
  %v526 = vpop.permute.xlu0 %525
  %527 = vrot.lane.b32.xlu0 %v415, 127
  %v528 = vpop.permute.xlu0 %527
  %529 = vrot.lane.b32.xlu0 %v416, 127
  %v530 = vpop.permute.xlu0 %529
  %531 = vrot.lane.b32.xlu0 %v417, 127
  %v532 = vpop.permute.xlu0 %531
  %533 = vrot.lane.b32.xlu0 %v418, 127
  %v534 = vpop.permute.xlu0 %533
  %535 = vrot.lane.b32.xlu0 %v419, 127
  %v536 = vpop.permute.xlu0 %535
  %537 = vrot.lane.b32.xlu0 %v420, 127
  %v538 = vpop.permute.xlu0 %537
  %539 = vrot.lane.b32.xlu0 %v421, 127
  %v540 = vpop.permute.xlu0 %539
  %541 = vrot.lane.b32.xlu0 %v422, 127
  %v542 = vpop.permute.xlu0 %541
  %543 = vrot.lane.b32.xlu0 %v423, 127
  %v544 = vpop.permute.xlu0 %543
  %545 = vrot.lane.b32.xlu0 %v424, 127
  %v546 = vpop.permute.xlu0 %545
  %547 = vrot.lane.b32.xlu0 %v425, 127
  %v548 = vpop.permute.xlu0 %547
  %549 = vrot.lane.b32.xlu0 %v426, 127
  %v550 = vpop.permute.xlu0 %549
  %551 = vrot.lane.b32.xlu0 %v427, 127
  %v552 = vpop.permute.xlu0 %551
  %553 = vrot.lane.b32.xlu0 %v428, 127
  %v554 = vpop.permute.xlu0 %553
  %555 = vrot.lane.b32.xlu0 %v429, 127
  %v556 = vpop.permute.xlu0 %555
  %557 = vrot.lane.b32.xlu0 %v430, 127
  %v558 = vpop.permute.xlu0 %557
  %v559 = vsel %vm162, 1, 0
  %v560 = vlaneseq
  %v561 = vshrl.u32 %v560, 7
  %v562 = vsub.s32 0, %v561
  %v563 = vrot.slane %v559, %v562
  %vm564 = vcmp.eq.s32.totalorder %v563, 1
  %v565 = vsel %vm564, %v432, -3e+38
  %v566 = vsel %vm564, %v434, -3e+38
  %v567 = vsel %vm564, %v436, -3e+38
  %v568 = vsel %vm564, %v438, -3e+38
  %v569 = vsel %vm564, %v440, -3e+38
  %v570 = vsel %vm564, %v442, -3e+38
  %v571 = vsel %vm564, %v444, -3e+38
  %v572 = vsel %vm564, %v446, -3e+38
  %v573 = vsel %vm564, %v448, -3e+38
  %v574 = vsel %vm564, %v450, -3e+38
  %v575 = vsel %vm564, %v452, -3e+38
  %v576 = vsel %vm564, %v454, -3e+38
  %v577 = vsel %vm564, %v456, -3e+38
  %v578 = vsel %vm564, %v458, -3e+38
  %v579 = vsel %vm564, %v460, -3e+38
  %v580 = vsel %vm564, %v462, -3e+38
  %v581 = vsel %vm564, %v464, -3e+38
  %v582 = vsel %vm564, %v466, -3e+38
  %v583 = vsel %vm564, %v468, -3e+38
  %v584 = vsel %vm564, %v470, -3e+38
  %v585 = vsel %vm564, %v472, -3e+38
  %v586 = vsel %vm564, %v474, -3e+38
  %v587 = vsel %vm564, %v476, -3e+38
  %v588 = vsel %vm564, %v478, -3e+38
  %v589 = vsel %vm564, %v480, -3e+38
  %v590 = vsel %vm564, %v482, -3e+38
  %v591 = vsel %vm564, %v484, -3e+38
  %v592 = vsel %vm564, %v486, -3e+38
  %v593 = vsel %vm564, %v488, -3e+38
  %v594 = vsel %vm564, %v490, -3e+38
  %v595 = vsel %vm564, %v492, -3e+38
  %v596 = vsel %vm564, %v494, -3e+38
  %v597 = vsel %vm564, %v496, -3e+38
  %v598 = vsel %vm564, %v498, -3e+38
  %v599 = vsel %vm564, %v500, -3e+38
  %v600 = vsel %vm564, %v502, -3e+38
  %v601 = vsel %vm564, %v504, -3e+38
  %v602 = vsel %vm564, %v506, -3e+38
  %v603 = vsel %vm564, %v508, -3e+38
  %v604 = vsel %vm564, %v510, -3e+38
  %v605 = vsel %vm564, %v512, -3e+38
  %v606 = vsel %vm564, %v514, -3e+38
  %v607 = vsel %vm564, %v516, -3e+38
  %v608 = vsel %vm564, %v518, -3e+38
  %v609 = vsel %vm564, %v520, -3e+38
  %v610 = vsel %vm564, %v522, -3e+38
  %v611 = vsel %vm564, %v524, -3e+38
  %v612 = vsel %vm564, %v526, -3e+38
  %v613 = vsel %vm564, %v528, -3e+38
  %v614 = vsel %vm564, %v530, -3e+38
  %v615 = vsel %vm564, %v532, -3e+38
  %v616 = vsel %vm564, %v534, -3e+38
  %v617 = vsel %vm564, %v536, -3e+38
  %v618 = vsel %vm564, %v538, -3e+38
  %v619 = vsel %vm564, %v540, -3e+38
  %v620 = vsel %vm564, %v542, -3e+38
  %v621 = vsel %vm564, %v544, -3e+38
  %v622 = vsel %vm564, %v546, -3e+38
  %v623 = vsel %vm564, %v548, -3e+38
  %v624 = vsel %vm564, %v550, -3e+38
  %v625 = vsel %vm564, %v552, -3e+38
  %v626 = vsel %vm564, %v554, -3e+38
  %v627 = vsel %vm564, %v556, -3e+38
  %v628 = vsel %vm564, %v558, -3e+38
  %v629 = vmax.f32 %v367, %v565
  %v630 = vmax.f32 %v368, %v566
  %v631 = vmax.f32 %v369, %v567
  %v632 = vmax.f32 %v370, %v568
  %v633 = vmax.f32 %v371, %v569
  %v634 = vmax.f32 %v372, %v570
  %v635 = vmax.f32 %v373, %v571
  %v636 = vmax.f32 %v374, %v572
  %v637 = vmax.f32 %v375, %v573
  %v638 = vmax.f32 %v376, %v574
  %v639 = vmax.f32 %v377, %v575
  %v640 = vmax.f32 %v378, %v576
  %v641 = vmax.f32 %v379, %v577
  %v642 = vmax.f32 %v380, %v578
  %v643 = vmax.f32 %v381, %v579
  %v644 = vmax.f32 %v382, %v580
  %v645 = vmax.f32 %v383, %v581
  %v646 = vmax.f32 %v384, %v582
  %v647 = vmax.f32 %v385, %v583
  %v648 = vmax.f32 %v386, %v584
  %v649 = vmax.f32 %v387, %v585
  %v650 = vmax.f32 %v388, %v586
  %v651 = vmax.f32 %v389, %v587
  %v652 = vmax.f32 %v390, %v588
  %v653 = vmax.f32 %v391, %v589
  %v654 = vmax.f32 %v392, %v590
  %v655 = vmax.f32 %v393, %v591
  %v656 = vmax.f32 %v394, %v592
  %v657 = vmax.f32 %v395, %v593
  %v658 = vmax.f32 %v396, %v594
  %v659 = vmax.f32 %v397, %v595
  %v660 = vmax.f32 %v398, %v596
  %v661 = vmax.f32 %v399, %v597
  %v662 = vmax.f32 %v400, %v598
  %v663 = vmax.f32 %v401, %v599
  %v664 = vmax.f32 %v402, %v600
  %v665 = vmax.f32 %v403, %v601
  %v666 = vmax.f32 %v404, %v602
  %v667 = vmax.f32 %v405, %v603
  %v668 = vmax.f32 %v406, %v604
  %v669 = vmax.f32 %v407, %v605
  %v670 = vmax.f32 %v408, %v606
  %v671 = vmax.f32 %v409, %v607
  %v672 = vmax.f32 %v410, %v608
  %v673 = vmax.f32 %v411, %v609
  %v674 = vmax.f32 %v412, %v610
  %v675 = vmax.f32 %v413, %v611
  %v676 = vmax.f32 %v414, %v612
  %v677 = vmax.f32 %v415, %v613
  %v678 = vmax.f32 %v416, %v614
  %v679 = vmax.f32 %v417, %v615
  %v680 = vmax.f32 %v418, %v616
  %v681 = vmax.f32 %v419, %v617
  %v682 = vmax.f32 %v420, %v618
  %v683 = vmax.f32 %v421, %v619
  %v684 = vmax.f32 %v422, %v620
  %v685 = vmax.f32 %v423, %v621
  %v686 = vmax.f32 %v424, %v622
  %v687 = vmax.f32 %v425, %v623
  %v688 = vmax.f32 %v426, %v624
  %v689 = vmax.f32 %v427, %v625
  %v690 = vmax.f32 %v428, %v626
  %v691 = vmax.f32 %v429, %v627
  %v692 = vmax.f32 %v430, %v628
  %693 = vrot.lane.b32.xlu0 %v629, 2
  %v694 = vpop.permute.xlu0 %693
  %695 = vrot.lane.b32.xlu0 %v630, 2
  %v696 = vpop.permute.xlu0 %695
  %697 = vrot.lane.b32.xlu0 %v631, 2
  %v698 = vpop.permute.xlu0 %697
  %699 = vrot.lane.b32.xlu0 %v632, 2
  %v700 = vpop.permute.xlu0 %699
  %701 = vrot.lane.b32.xlu0 %v633, 2
  %v702 = vpop.permute.xlu0 %701
  %703 = vrot.lane.b32.xlu0 %v634, 2
  %v704 = vpop.permute.xlu0 %703
  %705 = vrot.lane.b32.xlu0 %v635, 2
  %v706 = vpop.permute.xlu0 %705
  %707 = vrot.lane.b32.xlu0 %v636, 2
  %v708 = vpop.permute.xlu0 %707
  %709 = vrot.lane.b32.xlu0 %v637, 2
  %v710 = vpop.permute.xlu0 %709
  %711 = vrot.lane.b32.xlu0 %v638, 2
  %v712 = vpop.permute.xlu0 %711
  %713 = vrot.lane.b32.xlu0 %v639, 2
  %v714 = vpop.permute.xlu0 %713
  %715 = vrot.lane.b32.xlu0 %v640, 2
  %v716 = vpop.permute.xlu0 %715
  %717 = vrot.lane.b32.xlu0 %v641, 2
  %v718 = vpop.permute.xlu0 %717
  %719 = vrot.lane.b32.xlu0 %v642, 2
  %v720 = vpop.permute.xlu0 %719
  %721 = vrot.lane.b32.xlu0 %v643, 2
  %v722 = vpop.permute.xlu0 %721
  %723 = vrot.lane.b32.xlu0 %v644, 2
  %v724 = vpop.permute.xlu0 %723
  %725 = vrot.lane.b32.xlu0 %v645, 2
  %v726 = vpop.permute.xlu0 %725
  %727 = vrot.lane.b32.xlu0 %v646, 2
  %v728 = vpop.permute.xlu0 %727
  %729 = vrot.lane.b32.xlu0 %v647, 2
  %v730 = vpop.permute.xlu0 %729
  %731 = vrot.lane.b32.xlu0 %v648, 2
  %v732 = vpop.permute.xlu0 %731
  %733 = vrot.lane.b32.xlu0 %v649, 2
  %v734 = vpop.permute.xlu0 %733
  %735 = vrot.lane.b32.xlu0 %v650, 2
  %v736 = vpop.permute.xlu0 %735
  %737 = vrot.lane.b32.xlu0 %v651, 2
  %v738 = vpop.permute.xlu0 %737
  %739 = vrot.lane.b32.xlu0 %v652, 2
  %v740 = vpop.permute.xlu0 %739
  %741 = vrot.lane.b32.xlu0 %v653, 2
  %v742 = vpop.permute.xlu0 %741
  %743 = vrot.lane.b32.xlu0 %v654, 2
  %v744 = vpop.permute.xlu0 %743
  %745 = vrot.lane.b32.xlu0 %v655, 2
  %v746 = vpop.permute.xlu0 %745
  %747 = vrot.lane.b32.xlu0 %v656, 2
  %v748 = vpop.permute.xlu0 %747
  %749 = vrot.lane.b32.xlu0 %v657, 2
  %v750 = vpop.permute.xlu0 %749
  %751 = vrot.lane.b32.xlu0 %v658, 2
  %v752 = vpop.permute.xlu0 %751
  %753 = vrot.lane.b32.xlu0 %v659, 2
  %v754 = vpop.permute.xlu0 %753
  %755 = vrot.lane.b32.xlu0 %v660, 2
  %v756 = vpop.permute.xlu0 %755
  %757 = vrot.lane.b32.xlu0 %v661, 2
  %v758 = vpop.permute.xlu0 %757
  %759 = vrot.lane.b32.xlu0 %v662, 2
  %v760 = vpop.permute.xlu0 %759
  %761 = vrot.lane.b32.xlu0 %v663, 2
  %v762 = vpop.permute.xlu0 %761
  %763 = vrot.lane.b32.xlu0 %v664, 2
  %v764 = vpop.permute.xlu0 %763
  %765 = vrot.lane.b32.xlu0 %v665, 2
  %v766 = vpop.permute.xlu0 %765
  %767 = vrot.lane.b32.xlu0 %v666, 2
  %v768 = vpop.permute.xlu0 %767
  %769 = vrot.lane.b32.xlu0 %v667, 2
  %v770 = vpop.permute.xlu0 %769
  %771 = vrot.lane.b32.xlu0 %v668, 2
  %v772 = vpop.permute.xlu0 %771
  %773 = vrot.lane.b32.xlu0 %v669, 2
  %v774 = vpop.permute.xlu0 %773
  %775 = vrot.lane.b32.xlu0 %v670, 2
  %v776 = vpop.permute.xlu0 %775
  %777 = vrot.lane.b32.xlu0 %v671, 2
  %v778 = vpop.permute.xlu0 %777
  %779 = vrot.lane.b32.xlu0 %v672, 2
  %v780 = vpop.permute.xlu0 %779
  %781 = vrot.lane.b32.xlu0 %v673, 2
  %v782 = vpop.permute.xlu0 %781
  %783 = vrot.lane.b32.xlu0 %v674, 2
  %v784 = vpop.permute.xlu0 %783
  %785 = vrot.lane.b32.xlu0 %v675, 2
  %v786 = vpop.permute.xlu0 %785
  %787 = vrot.lane.b32.xlu0 %v676, 2
  %v788 = vpop.permute.xlu0 %787
  %789 = vrot.lane.b32.xlu0 %v677, 2
  %v790 = vpop.permute.xlu0 %789
  %791 = vrot.lane.b32.xlu0 %v678, 2
  %v792 = vpop.permute.xlu0 %791
  %793 = vrot.lane.b32.xlu0 %v679, 2
  %v794 = vpop.permute.xlu0 %793
  %795 = vrot.lane.b32.xlu0 %v680, 2
  %v796 = vpop.permute.xlu0 %795
  %797 = vrot.lane.b32.xlu0 %v681, 2
  %v798 = vpop.permute.xlu0 %797
  %799 = vrot.lane.b32.xlu0 %v682, 2
  %v800 = vpop.permute.xlu0 %799
  %801 = vrot.lane.b32.xlu0 %v683, 2
  %v802 = vpop.permute.xlu0 %801
  %803 = vrot.lane.b32.xlu0 %v684, 2
  %v804 = vpop.permute.xlu0 %803
  %805 = vrot.lane.b32.xlu0 %v685, 2
  %v806 = vpop.permute.xlu0 %805
  %807 = vrot.lane.b32.xlu0 %v686, 2
  %v808 = vpop.permute.xlu0 %807
  %809 = vrot.lane.b32.xlu0 %v687, 2
  %v810 = vpop.permute.xlu0 %809
  %811 = vrot.lane.b32.xlu0 %v688, 2
  %v812 = vpop.permute.xlu0 %811
  %813 = vrot.lane.b32.xlu0 %v689, 2
  %v814 = vpop.permute.xlu0 %813
  %815 = vrot.lane.b32.xlu0 %v690, 2
  %v816 = vpop.permute.xlu0 %815
  %817 = vrot.lane.b32.xlu0 %v691, 2
  %v818 = vpop.permute.xlu0 %817
  %819 = vrot.lane.b32.xlu0 %v692, 2
  %v820 = vpop.permute.xlu0 %819
  %v821 = vsel %vm165, 1, 0
  %v822 = vlaneseq
  %v823 = vshrl.u32 %v822, 7
  %v824 = vsub.s32 0, %v823
  %v825 = vrot.slane %v821, %v824
  %vm826 = vcmp.eq.s32.totalorder %v825, 1
  %v827 = vsel %vm826, %v694, -3e+38
  %v828 = vsel %vm826, %v696, -3e+38
  %v829 = vsel %vm826, %v698, -3e+38
  %v830 = vsel %vm826, %v700, -3e+38
  %v831 = vsel %vm826, %v702, -3e+38
  %v832 = vsel %vm826, %v704, -3e+38
  %v833 = vsel %vm826, %v706, -3e+38
  %v834 = vsel %vm826, %v708, -3e+38
  %v835 = vsel %vm826, %v710, -3e+38
  %v836 = vsel %vm826, %v712, -3e+38
  %v837 = vsel %vm826, %v714, -3e+38
  %v838 = vsel %vm826, %v716, -3e+38
  %v839 = vsel %vm826, %v718, -3e+38
  %v840 = vsel %vm826, %v720, -3e+38
  %v841 = vsel %vm826, %v722, -3e+38
  %v842 = vsel %vm826, %v724, -3e+38
  %v843 = vsel %vm826, %v726, -3e+38
  %v844 = vsel %vm826, %v728, -3e+38
  %v845 = vsel %vm826, %v730, -3e+38
  %v846 = vsel %vm826, %v732, -3e+38
  %v847 = vsel %vm826, %v734, -3e+38
  %v848 = vsel %vm826, %v736, -3e+38
  %v849 = vsel %vm826, %v738, -3e+38
  %v850 = vsel %vm826, %v740, -3e+38
  %v851 = vsel %vm826, %v742, -3e+38
  %v852 = vsel %vm826, %v744, -3e+38
  %v853 = vsel %vm826, %v746, -3e+38
  %v854 = vsel %vm826, %v748, -3e+38
  %v855 = vsel %vm826, %v750, -3e+38
  %v856 = vsel %vm826, %v752, -3e+38
  %v857 = vsel %vm826, %v754, -3e+38
  %v858 = vsel %vm826, %v756, -3e+38
  %v859 = vsel %vm826, %v758, -3e+38
  %v860 = vsel %vm826, %v760, -3e+38
  %v861 = vsel %vm826, %v762, -3e+38
  %v862 = vsel %vm826, %v764, -3e+38
  %v863 = vsel %vm826, %v766, -3e+38
  %v864 = vsel %vm826, %v768, -3e+38
  %v865 = vsel %vm826, %v770, -3e+38
  %v866 = vsel %vm826, %v772, -3e+38
  %v867 = vsel %vm826, %v774, -3e+38
  %v868 = vsel %vm826, %v776, -3e+38
  %v869 = vsel %vm826, %v778, -3e+38
  %v870 = vsel %vm826, %v780, -3e+38
  %v871 = vsel %vm826, %v782, -3e+38
  %v872 = vsel %vm826, %v784, -3e+38
  %v873 = vsel %vm826, %v786, -3e+38
  %v874 = vsel %vm826, %v788, -3e+38
  %v875 = vsel %vm826, %v790, -3e+38
  %v876 = vsel %vm826, %v792, -3e+38
  %v877 = vsel %vm826, %v794, -3e+38
  %v878 = vsel %vm826, %v796, -3e+38
  %v879 = vsel %vm826, %v798, -3e+38
  %v880 = vsel %vm826, %v800, -3e+38
  %v881 = vsel %vm826, %v802, -3e+38
  %v882 = vsel %vm826, %v804, -3e+38
  %v883 = vsel %vm826, %v806, -3e+38
  %v884 = vsel %vm826, %v808, -3e+38
  %v885 = vsel %vm826, %v810, -3e+38
  %v886 = vsel %vm826, %v812, -3e+38
  %v887 = vsel %vm826, %v814, -3e+38
  %v888 = vsel %vm826, %v816, -3e+38
  %v889 = vsel %vm826, %v818, -3e+38
  %v890 = vsel %vm826, %v820, -3e+38
  %v891 = vmax.f32 %v629, %v827
  %v892 = vmax.f32 %v630, %v828
  %v893 = vmax.f32 %v631, %v829
  %v894 = vmax.f32 %v632, %v830
  %v895 = vmax.f32 %v633, %v831
  %v896 = vmax.f32 %v634, %v832
  %v897 = vmax.f32 %v635, %v833
  %v898 = vmax.f32 %v636, %v834
  %v899 = vmax.f32 %v637, %v835
  %v900 = vmax.f32 %v638, %v836
  %v901 = vmax.f32 %v639, %v837
  %v902 = vmax.f32 %v640, %v838
  %v903 = vmax.f32 %v641, %v839
  %v904 = vmax.f32 %v642, %v840
  %v905 = vmax.f32 %v643, %v841
  %v906 = vmax.f32 %v644, %v842
  %v907 = vmax.f32 %v645, %v843
  %v908 = vmax.f32 %v646, %v844
  %v909 = vmax.f32 %v647, %v845
  %v910 = vmax.f32 %v648, %v846
  %v911 = vmax.f32 %v649, %v847
  %v912 = vmax.f32 %v650, %v848
  %v913 = vmax.f32 %v651, %v849
  %v914 = vmax.f32 %v652, %v850
  %v915 = vmax.f32 %v653, %v851
  %v916 = vmax.f32 %v654, %v852
  %v917 = vmax.f32 %v655, %v853
  %v918 = vmax.f32 %v656, %v854
  %v919 = vmax.f32 %v657, %v855
  %v920 = vmax.f32 %v658, %v856
  %v921 = vmax.f32 %v659, %v857
  %v922 = vmax.f32 %v660, %v858
  %v923 = vmax.f32 %v661, %v859
  %v924 = vmax.f32 %v662, %v860
  %v925 = vmax.f32 %v663, %v861
  %v926 = vmax.f32 %v664, %v862
  %v927 = vmax.f32 %v665, %v863
  %v928 = vmax.f32 %v666, %v864
  %v929 = vmax.f32 %v667, %v865
  %v930 = vmax.f32 %v668, %v866
  %v931 = vmax.f32 %v669, %v867
  %v932 = vmax.f32 %v670, %v868
  %v933 = vmax.f32 %v671, %v869
  %v934 = vmax.f32 %v672, %v870
  %v935 = vmax.f32 %v673, %v871
  %v936 = vmax.f32 %v674, %v872
  %v937 = vmax.f32 %v675, %v873
  %v938 = vmax.f32 %v676, %v874
  %v939 = vmax.f32 %v677, %v875
  %v940 = vmax.f32 %v678, %v876
  %v941 = vmax.f32 %v679, %v877
  %v942 = vmax.f32 %v680, %v878
  %v943 = vmax.f32 %v681, %v879
  %v944 = vmax.f32 %v682, %v880
  %v945 = vmax.f32 %v683, %v881
  %v946 = vmax.f32 %v684, %v882
  %v947 = vmax.f32 %v685, %v883
  %v948 = vmax.f32 %v686, %v884
  %v949 = vmax.f32 %v687, %v885
  %v950 = vmax.f32 %v688, %v886
  %v951 = vmax.f32 %v689, %v887
  %v952 = vmax.f32 %v690, %v888
  %v953 = vmax.f32 %v691, %v889
  %v954 = vmax.f32 %v692, %v890
  %955 = vrot.lane.b32.xlu0 %v891, 126
  %v956 = vpop.permute.xlu0 %955
  %957 = vrot.lane.b32.xlu0 %v892, 126
  %v958 = vpop.permute.xlu0 %957
  %959 = vrot.lane.b32.xlu0 %v893, 126
  %v960 = vpop.permute.xlu0 %959
  %961 = vrot.lane.b32.xlu0 %v894, 126
  %v962 = vpop.permute.xlu0 %961
  %963 = vrot.lane.b32.xlu0 %v895, 126
  %v964 = vpop.permute.xlu0 %963
  %965 = vrot.lane.b32.xlu0 %v896, 126
  %v966 = vpop.permute.xlu0 %965
  %967 = vrot.lane.b32.xlu0 %v897, 126
  %v968 = vpop.permute.xlu0 %967
  %969 = vrot.lane.b32.xlu0 %v898, 126
  %v970 = vpop.permute.xlu0 %969
  %971 = vrot.lane.b32.xlu0 %v899, 126
  %v972 = vpop.permute.xlu0 %971
  %973 = vrot.lane.b32.xlu0 %v900, 126
  %v974 = vpop.permute.xlu0 %973
  %975 = vrot.lane.b32.xlu0 %v901, 126
  %v976 = vpop.permute.xlu0 %975
  %977 = vrot.lane.b32.xlu0 %v902, 126
  %v978 = vpop.permute.xlu0 %977
  %979 = vrot.lane.b32.xlu0 %v903, 126
  %v980 = vpop.permute.xlu0 %979
  %981 = vrot.lane.b32.xlu0 %v904, 126
  %v982 = vpop.permute.xlu0 %981
  %983 = vrot.lane.b32.xlu0 %v905, 126
  %v984 = vpop.permute.xlu0 %983
  %985 = vrot.lane.b32.xlu0 %v906, 126
  %v986 = vpop.permute.xlu0 %985
  %987 = vrot.lane.b32.xlu0 %v907, 126
  %v988 = vpop.permute.xlu0 %987
  %989 = vrot.lane.b32.xlu0 %v908, 126
  %v990 = vpop.permute.xlu0 %989
  %991 = vrot.lane.b32.xlu0 %v909, 126
  %v992 = vpop.permute.xlu0 %991
  %993 = vrot.lane.b32.xlu0 %v910, 126
  %v994 = vpop.permute.xlu0 %993
  %995 = vrot.lane.b32.xlu0 %v911, 126
  %v996 = vpop.permute.xlu0 %995
  %997 = vrot.lane.b32.xlu0 %v912, 126
  %v998 = vpop.permute.xlu0 %997
  %999 = vrot.lane.b32.xlu0 %v913, 126
  %v1000 = vpop.permute.xlu0 %999
  %1001 = vrot.lane.b32.xlu0 %v914, 126
  %v1002 = vpop.permute.xlu0 %1001
  %1003 = vrot.lane.b32.xlu0 %v915, 126
  %v1004 = vpop.permute.xlu0 %1003
  %1005 = vrot.lane.b32.xlu0 %v916, 126
  %v1006 = vpop.permute.xlu0 %1005
  %1007 = vrot.lane.b32.xlu0 %v917, 126
  %v1008 = vpop.permute.xlu0 %1007
  %1009 = vrot.lane.b32.xlu0 %v918, 126
  %v1010 = vpop.permute.xlu0 %1009
  %1011 = vrot.lane.b32.xlu0 %v919, 126
  %v1012 = vpop.permute.xlu0 %1011
  %1013 = vrot.lane.b32.xlu0 %v920, 126
  %v1014 = vpop.permute.xlu0 %1013
  %1015 = vrot.lane.b32.xlu0 %v921, 126
  %v1016 = vpop.permute.xlu0 %1015
  %1017 = vrot.lane.b32.xlu0 %v922, 126
  %v1018 = vpop.permute.xlu0 %1017
  %1019 = vrot.lane.b32.xlu0 %v923, 126
  %v1020 = vpop.permute.xlu0 %1019
  %1021 = vrot.lane.b32.xlu0 %v924, 126
  %v1022 = vpop.permute.xlu0 %1021
  %1023 = vrot.lane.b32.xlu0 %v925, 126
  %v1024 = vpop.permute.xlu0 %1023
  %1025 = vrot.lane.b32.xlu0 %v926, 126
  %v1026 = vpop.permute.xlu0 %1025
  %1027 = vrot.lane.b32.xlu0 %v927, 126
  %v1028 = vpop.permute.xlu0 %1027
  %1029 = vrot.lane.b32.xlu0 %v928, 126
  %v1030 = vpop.permute.xlu0 %1029
  %1031 = vrot.lane.b32.xlu0 %v929, 126
  %v1032 = vpop.permute.xlu0 %1031
  %1033 = vrot.lane.b32.xlu0 %v930, 126
  %v1034 = vpop.permute.xlu0 %1033
  %1035 = vrot.lane.b32.xlu0 %v931, 126
  %v1036 = vpop.permute.xlu0 %1035
  %1037 = vrot.lane.b32.xlu0 %v932, 126
  %v1038 = vpop.permute.xlu0 %1037
  %1039 = vrot.lane.b32.xlu0 %v933, 126
  %v1040 = vpop.permute.xlu0 %1039
  %1041 = vrot.lane.b32.xlu0 %v934, 126
  %v1042 = vpop.permute.xlu0 %1041
  %1043 = vrot.lane.b32.xlu0 %v935, 126
  %v1044 = vpop.permute.xlu0 %1043
  %1045 = vrot.lane.b32.xlu0 %v936, 126
  %v1046 = vpop.permute.xlu0 %1045
  %1047 = vrot.lane.b32.xlu0 %v937, 126
  %v1048 = vpop.permute.xlu0 %1047
  %1049 = vrot.lane.b32.xlu0 %v938, 126
  %v1050 = vpop.permute.xlu0 %1049
  %1051 = vrot.lane.b32.xlu0 %v939, 126
  %v1052 = vpop.permute.xlu0 %1051
  %1053 = vrot.lane.b32.xlu0 %v940, 126
  %v1054 = vpop.permute.xlu0 %1053
  %1055 = vrot.lane.b32.xlu0 %v941, 126
  %v1056 = vpop.permute.xlu0 %1055
  %1057 = vrot.lane.b32.xlu0 %v942, 126
  %v1058 = vpop.permute.xlu0 %1057
  %1059 = vrot.lane.b32.xlu0 %v943, 126
  %v1060 = vpop.permute.xlu0 %1059
  %1061 = vrot.lane.b32.xlu0 %v944, 126
  %v1062 = vpop.permute.xlu0 %1061
  %1063 = vrot.lane.b32.xlu0 %v945, 126
  %v1064 = vpop.permute.xlu0 %1063
  %1065 = vrot.lane.b32.xlu0 %v946, 126
  %v1066 = vpop.permute.xlu0 %1065
  %1067 = vrot.lane.b32.xlu0 %v947, 126
  %v1068 = vpop.permute.xlu0 %1067
  %1069 = vrot.lane.b32.xlu0 %v948, 126
  %v1070 = vpop.permute.xlu0 %1069
  %1071 = vrot.lane.b32.xlu0 %v949, 126
  %v1072 = vpop.permute.xlu0 %1071
  %1073 = vrot.lane.b32.xlu0 %v950, 126
  %v1074 = vpop.permute.xlu0 %1073
  %1075 = vrot.lane.b32.xlu0 %v951, 126
  %v1076 = vpop.permute.xlu0 %1075
  %1077 = vrot.lane.b32.xlu0 %v952, 126
  %v1078 = vpop.permute.xlu0 %1077
  %1079 = vrot.lane.b32.xlu0 %v953, 126
  %v1080 = vpop.permute.xlu0 %1079
  %1081 = vrot.lane.b32.xlu0 %v954, 126
  %v1082 = vpop.permute.xlu0 %1081
  %v1083 = vsel %vm168, 1, 0
  %v1084 = vlaneseq
  %v1085 = vshrl.u32 %v1084, 7
  %v1086 = vsub.s32 0, %v1085
  %v1087 = vrot.slane %v1083, %v1086
  %vm1088 = vcmp.eq.s32.totalorder %v1087, 1
  %v1089 = vsel %vm1088, %v956, -3e+38
  %v1090 = vsel %vm1088, %v958, -3e+38
  %v1091 = vsel %vm1088, %v960, -3e+38
  %v1092 = vsel %vm1088, %v962, -3e+38
  %v1093 = vsel %vm1088, %v964, -3e+38
  %v1094 = vsel %vm1088, %v966, -3e+38
  %v1095 = vsel %vm1088, %v968, -3e+38
  %v1096 = vsel %vm1088, %v970, -3e+38
  %v1097 = vsel %vm1088, %v972, -3e+38
  %v1098 = vsel %vm1088, %v974, -3e+38
  %v1099 = vsel %vm1088, %v976, -3e+38
  %v1100 = vsel %vm1088, %v978, -3e+38
  %v1101 = vsel %vm1088, %v980, -3e+38
  %v1102 = vsel %vm1088, %v982, -3e+38
  %v1103 = vsel %vm1088, %v984, -3e+38
  %v1104 = vsel %vm1088, %v986, -3e+38
  %v1105 = vsel %vm1088, %v988, -3e+38
  %v1106 = vsel %vm1088, %v990, -3e+38
  %v1107 = vsel %vm1088, %v992, -3e+38
  %v1108 = vsel %vm1088, %v994, -3e+38
  %v1109 = vsel %vm1088, %v996, -3e+38
  %v1110 = vsel %vm1088, %v998, -3e+38
  %v1111 = vsel %vm1088, %v1000, -3e+38
  %v1112 = vsel %vm1088, %v1002, -3e+38
  %v1113 = vsel %vm1088, %v1004, -3e+38
  %v1114 = vsel %vm1088, %v1006, -3e+38
  %v1115 = vsel %vm1088, %v1008, -3e+38
  %v1116 = vsel %vm1088, %v1010, -3e+38
  %v1117 = vsel %vm1088, %v1012, -3e+38
  %v1118 = vsel %vm1088, %v1014, -3e+38
  %v1119 = vsel %vm1088, %v1016, -3e+38
  %v1120 = vsel %vm1088, %v1018, -3e+38
  %v1121 = vsel %vm1088, %v1020, -3e+38
  %v1122 = vsel %vm1088, %v1022, -3e+38
  %v1123 = vsel %vm1088, %v1024, -3e+38
  %v1124 = vsel %vm1088, %v1026, -3e+38
  %v1125 = vsel %vm1088, %v1028, -3e+38
  %v1126 = vsel %vm1088, %v1030, -3e+38
  %v1127 = vsel %vm1088, %v1032, -3e+38
  %v1128 = vsel %vm1088, %v1034, -3e+38
  %v1129 = vsel %vm1088, %v1036, -3e+38
  %v1130 = vsel %vm1088, %v1038, -3e+38
  %v1131 = vsel %vm1088, %v1040, -3e+38
  %v1132 = vsel %vm1088, %v1042, -3e+38
  %v1133 = vsel %vm1088, %v1044, -3e+38
  %v1134 = vsel %vm1088, %v1046, -3e+38
  %v1135 = vsel %vm1088, %v1048, -3e+38
  %v1136 = vsel %vm1088, %v1050, -3e+38
  %v1137 = vsel %vm1088, %v1052, -3e+38
  %v1138 = vsel %vm1088, %v1054, -3e+38
  %v1139 = vsel %vm1088, %v1056, -3e+38
  %v1140 = vsel %vm1088, %v1058, -3e+38
  %v1141 = vsel %vm1088, %v1060, -3e+38
  %v1142 = vsel %vm1088, %v1062, -3e+38
  %v1143 = vsel %vm1088, %v1064, -3e+38
  %v1144 = vsel %vm1088, %v1066, -3e+38
  %v1145 = vsel %vm1088, %v1068, -3e+38
  %v1146 = vsel %vm1088, %v1070, -3e+38
  %v1147 = vsel %vm1088, %v1072, -3e+38
  %v1148 = vsel %vm1088, %v1074, -3e+38
  %v1149 = vsel %vm1088, %v1076, -3e+38
  %v1150 = vsel %vm1088, %v1078, -3e+38
  %v1151 = vsel %vm1088, %v1080, -3e+38
  %v1152 = vsel %vm1088, %v1082, -3e+38
  %v1153 = vmax.f32 %v891, %v1089
  %v1154 = vmax.f32 %v892, %v1090
  %v1155 = vmax.f32 %v893, %v1091
  %v1156 = vmax.f32 %v894, %v1092
  %v1157 = vmax.f32 %v895, %v1093
  %v1158 = vmax.f32 %v896, %v1094
  %v1159 = vmax.f32 %v897, %v1095
  %v1160 = vmax.f32 %v898, %v1096
  %v1161 = vmax.f32 %v899, %v1097
  %v1162 = vmax.f32 %v900, %v1098
  %v1163 = vmax.f32 %v901, %v1099
  %v1164 = vmax.f32 %v902, %v1100
  %v1165 = vmax.f32 %v903, %v1101
  %v1166 = vmax.f32 %v904, %v1102
  %v1167 = vmax.f32 %v905, %v1103
  %v1168 = vmax.f32 %v906, %v1104
  %v1169 = vmax.f32 %v907, %v1105
  %v1170 = vmax.f32 %v908, %v1106
  %v1171 = vmax.f32 %v909, %v1107
  %v1172 = vmax.f32 %v910, %v1108
  %v1173 = vmax.f32 %v911, %v1109
  %v1174 = vmax.f32 %v912, %v1110
  %v1175 = vmax.f32 %v913, %v1111
  %v1176 = vmax.f32 %v914, %v1112
  %v1177 = vmax.f32 %v915, %v1113
  %v1178 = vmax.f32 %v916, %v1114
  %v1179 = vmax.f32 %v917, %v1115
  %v1180 = vmax.f32 %v918, %v1116
  %v1181 = vmax.f32 %v919, %v1117
  %v1182 = vmax.f32 %v920, %v1118
  %v1183 = vmax.f32 %v921, %v1119
  %v1184 = vmax.f32 %v922, %v1120
  %v1185 = vmax.f32 %v923, %v1121
  %v1186 = vmax.f32 %v924, %v1122
  %v1187 = vmax.f32 %v925, %v1123
  %v1188 = vmax.f32 %v926, %v1124
  %v1189 = vmax.f32 %v927, %v1125
  %v1190 = vmax.f32 %v928, %v1126
  %v1191 = vmax.f32 %v929, %v1127
  %v1192 = vmax.f32 %v930, %v1128
  %v1193 = vmax.f32 %v931, %v1129
  %v1194 = vmax.f32 %v932, %v1130
  %v1195 = vmax.f32 %v933, %v1131
  %v1196 = vmax.f32 %v934, %v1132
  %v1197 = vmax.f32 %v935, %v1133
  %v1198 = vmax.f32 %v936, %v1134
  %v1199 = vmax.f32 %v937, %v1135
  %v1200 = vmax.f32 %v938, %v1136
  %v1201 = vmax.f32 %v939, %v1137
  %v1202 = vmax.f32 %v940, %v1138
  %v1203 = vmax.f32 %v941, %v1139
  %v1204 = vmax.f32 %v942, %v1140
  %v1205 = vmax.f32 %v943, %v1141
  %v1206 = vmax.f32 %v944, %v1142
  %v1207 = vmax.f32 %v945, %v1143
  %v1208 = vmax.f32 %v946, %v1144
  %v1209 = vmax.f32 %v947, %v1145
  %v1210 = vmax.f32 %v948, %v1146
  %v1211 = vmax.f32 %v949, %v1147
  %v1212 = vmax.f32 %v950, %v1148
  %v1213 = vmax.f32 %v951, %v1149
  %v1214 = vmax.f32 %v952, %v1150
  %v1215 = vmax.f32 %v953, %v1151
  %v1216 = vmax.f32 %v954, %v1152
  %vm1217 = vcmp.ge.f32.partialorder %v24, %v1153
  %vm1218 = vcmp.ge.f32.partialorder %v25, %v1154
  %vm1219 = vcmp.ge.f32.partialorder %v26, %v1155
  %vm1220 = vcmp.ge.f32.partialorder %v27, %v1156
  %vm1221 = vcmp.ge.f32.partialorder %v28, %v1157
  %vm1222 = vcmp.ge.f32.partialorder %v29, %v1158
  %vm1223 = vcmp.ge.f32.partialorder %v30, %v1159
  %vm1224 = vcmp.ge.f32.partialorder %v31, %v1160
  %vm1225 = vcmp.ge.f32.partialorder %v32, %v1161
  %vm1226 = vcmp.ge.f32.partialorder %v33, %v1162
  %vm1227 = vcmp.ge.f32.partialorder %v34, %v1163
  %vm1228 = vcmp.ge.f32.partialorder %v35, %v1164
  %vm1229 = vcmp.ge.f32.partialorder %v36, %v1165
  %vm1230 = vcmp.ge.f32.partialorder %v37, %v1166
  %vm1231 = vcmp.ge.f32.partialorder %v38, %v1167
  %vm1232 = vcmp.ge.f32.partialorder %v39, %v1168
  %vm1233 = vcmp.ge.f32.partialorder %v40, %v1169
  %vm1234 = vcmp.ge.f32.partialorder %v41, %v1170
  %vm1235 = vcmp.ge.f32.partialorder %v42, %v1171
  %vm1236 = vcmp.ge.f32.partialorder %v43, %v1172
  %vm1237 = vcmp.ge.f32.partialorder %v44, %v1173
  %vm1238 = vcmp.ge.f32.partialorder %v45, %v1174
  %vm1239 = vcmp.ge.f32.partialorder %v46, %v1175
  %vm1240 = vcmp.ge.f32.partialorder %v47, %v1176
  %vm1241 = vcmp.ge.f32.partialorder %v48, %v1177
  %vm1242 = vcmp.ge.f32.partialorder %v49, %v1178
  %vm1243 = vcmp.ge.f32.partialorder %v50, %v1179
  %vm1244 = vcmp.ge.f32.partialorder %v51, %v1180
  %vm1245 = vcmp.ge.f32.partialorder %v52, %v1181
  %vm1246 = vcmp.ge.f32.partialorder %v53, %v1182
  %vm1247 = vcmp.ge.f32.partialorder %v54, %v1183
  %vm1248 = vcmp.ge.f32.partialorder %v55, %v1184
  %vm1249 = vcmp.ge.f32.partialorder %v56, %v1185
  %vm1250 = vcmp.ge.f32.partialorder %v57, %v1186
  %vm1251 = vcmp.ge.f32.partialorder %v58, %v1187
  %vm1252 = vcmp.ge.f32.partialorder %v59, %v1188
  %vm1253 = vcmp.ge.f32.partialorder %v60, %v1189
  %vm1254 = vcmp.ge.f32.partialorder %v61, %v1190
  %vm1255 = vcmp.ge.f32.partialorder %v62, %v1191
  %vm1256 = vcmp.ge.f32.partialorder %v63, %v1192
  %vm1257 = vcmp.ge.f32.partialorder %v64, %v1193
  %vm1258 = vcmp.ge.f32.partialorder %v65, %v1194
  %vm1259 = vcmp.ge.f32.partialorder %v66, %v1195
  %vm1260 = vcmp.ge.f32.partialorder %v67, %v1196
  %vm1261 = vcmp.ge.f32.partialorder %v68, %v1197
  %vm1262 = vcmp.ge.f32.partialorder %v69, %v1198
  %vm1263 = vcmp.ge.f32.partialorder %v70, %v1199
  %vm1264 = vcmp.ge.f32.partialorder %v71, %v1200
  %vm1265 = vcmp.ge.f32.partialorder %v72, %v1201
  %vm1266 = vcmp.ge.f32.partialorder %v73, %v1202
  %vm1267 = vcmp.ge.f32.partialorder %v74, %v1203
  %vm1268 = vcmp.ge.f32.partialorder %v75, %v1204
  %vm1269 = vcmp.ge.f32.partialorder %v76, %v1205
  %vm1270 = vcmp.ge.f32.partialorder %v77, %v1206
  %vm1271 = vcmp.ge.f32.partialorder %v78, %v1207
  %vm1272 = vcmp.ge.f32.partialorder %v79, %v1208
  %vm1273 = vcmp.ge.f32.partialorder %v80, %v1209
  %vm1274 = vcmp.ge.f32.partialorder %v81, %v1210
  %vm1275 = vcmp.ge.f32.partialorder %v82, %v1211
  %vm1276 = vcmp.ge.f32.partialorder %v83, %v1212
  %vm1277 = vcmp.ge.f32.partialorder %v84, %v1213
  %vm1278 = vcmp.ge.f32.partialorder %v85, %v1214
  %vm1279 = vcmp.ge.f32.partialorder %v86, %v1215
  %vm1280 = vcmp.ge.f32.partialorder %v87, %v1216
  %v1281 = vlaneseq
  %v1282 = vshrl.u32 %v1281, 7
  %v1283 = vsub.s32 0, %v1282
  %v1284 = vrot.slane %v156, %v1283
  %v1285 = vsel %vm1217, %v1284, 129.0
  %v1286 = vsel %vm1218, %v1284, 129.0
  %v1287 = vsel %vm1219, %v1284, 129.0
  %v1288 = vsel %vm1220, %v1284, 129.0
  %v1289 = vsel %vm1221, %v1284, 129.0
  %v1290 = vsel %vm1222, %v1284, 129.0
  %v1291 = vsel %vm1223, %v1284, 129.0
  %v1292 = vsel %vm1224, %v1284, 129.0
  %v1293 = vsel %vm1225, %v1284, 129.0
  %v1294 = vsel %vm1226, %v1284, 129.0
  %v1295 = vsel %vm1227, %v1284, 129.0
  %v1296 = vsel %vm1228, %v1284, 129.0
  %v1297 = vsel %vm1229, %v1284, 129.0
  %v1298 = vsel %vm1230, %v1284, 129.0
  %v1299 = vsel %vm1231, %v1284, 129.0
  %v1300 = vsel %vm1232, %v1284, 129.0
  %v1301 = vsel %vm1233, %v1284, 129.0
  %v1302 = vsel %vm1234, %v1284, 129.0
  %v1303 = vsel %vm1235, %v1284, 129.0
  %v1304 = vsel %vm1236, %v1284, 129.0
  %v1305 = vsel %vm1237, %v1284, 129.0
  %v1306 = vsel %vm1238, %v1284, 129.0
  %v1307 = vsel %vm1239, %v1284, 129.0
  %v1308 = vsel %vm1240, %v1284, 129.0
  %v1309 = vsel %vm1241, %v1284, 129.0
  %v1310 = vsel %vm1242, %v1284, 129.0
  %v1311 = vsel %vm1243, %v1284, 129.0
  %v1312 = vsel %vm1244, %v1284, 129.0
  %v1313 = vsel %vm1245, %v1284, 129.0
  %v1314 = vsel %vm1246, %v1284, 129.0
  %v1315 = vsel %vm1247, %v1284, 129.0
  %v1316 = vsel %vm1248, %v1284, 129.0
  %v1317 = vsel %vm1249, %v1284, 129.0
  %v1318 = vsel %vm1250, %v1284, 129.0
  %v1319 = vsel %vm1251, %v1284, 129.0
  %v1320 = vsel %vm1252, %v1284, 129.0
  %v1321 = vsel %vm1253, %v1284, 129.0
  %v1322 = vsel %vm1254, %v1284, 129.0
  %v1323 = vsel %vm1255, %v1284, 129.0
  %v1324 = vsel %vm1256, %v1284, 129.0
  %v1325 = vsel %vm1257, %v1284, 129.0
  %v1326 = vsel %vm1258, %v1284, 129.0
  %v1327 = vsel %vm1259, %v1284, 129.0
  %v1328 = vsel %vm1260, %v1284, 129.0
  %v1329 = vsel %vm1261, %v1284, 129.0
  %v1330 = vsel %vm1262, %v1284, 129.0
  %v1331 = vsel %vm1263, %v1284, 129.0
  %v1332 = vsel %vm1264, %v1284, 129.0
  %v1333 = vsel %vm1265, %v1284, 129.0
  %v1334 = vsel %vm1266, %v1284, 129.0
  %v1335 = vsel %vm1267, %v1284, 129.0
  %v1336 = vsel %vm1268, %v1284, 129.0
  %v1337 = vsel %vm1269, %v1284, 129.0
  %v1338 = vsel %vm1270, %v1284, 129.0
  %v1339 = vsel %vm1271, %v1284, 129.0
  %v1340 = vsel %vm1272, %v1284, 129.0
  %v1341 = vsel %vm1273, %v1284, 129.0
  %v1342 = vsel %vm1274, %v1284, 129.0
  %v1343 = vsel %vm1275, %v1284, 129.0
  %v1344 = vsel %vm1276, %v1284, 129.0
  %v1345 = vsel %vm1277, %v1284, 129.0
  %v1346 = vsel %vm1278, %v1284, 129.0
  %v1347 = vsel %vm1279, %v1284, 129.0
  %v1348 = vsel %vm1280, %v1284, 129.0
  %1349 = vrot.lane.b32.xlu0 %v1285, 1
  %v1350 = vpop.permute.xlu0 %1349
  %1351 = vrot.lane.b32.xlu0 %v1286, 1
  %v1352 = vpop.permute.xlu0 %1351
  %1353 = vrot.lane.b32.xlu0 %v1287, 1
  %v1354 = vpop.permute.xlu0 %1353
  %1355 = vrot.lane.b32.xlu0 %v1288, 1
  %v1356 = vpop.permute.xlu0 %1355
  %1357 = vrot.lane.b32.xlu0 %v1289, 1
  %v1358 = vpop.permute.xlu0 %1357
  %1359 = vrot.lane.b32.xlu0 %v1290, 1
  %v1360 = vpop.permute.xlu0 %1359
  %1361 = vrot.lane.b32.xlu0 %v1291, 1
  %v1362 = vpop.permute.xlu0 %1361
  %1363 = vrot.lane.b32.xlu0 %v1292, 1
  %v1364 = vpop.permute.xlu0 %1363
  %1365 = vrot.lane.b32.xlu0 %v1293, 1
  %v1366 = vpop.permute.xlu0 %1365
  %1367 = vrot.lane.b32.xlu0 %v1294, 1
  %v1368 = vpop.permute.xlu0 %1367
  %1369 = vrot.lane.b32.xlu0 %v1295, 1
  %v1370 = vpop.permute.xlu0 %1369
  %1371 = vrot.lane.b32.xlu0 %v1296, 1
  %v1372 = vpop.permute.xlu0 %1371
  %1373 = vrot.lane.b32.xlu0 %v1297, 1
  %v1374 = vpop.permute.xlu0 %1373
  %1375 = vrot.lane.b32.xlu0 %v1298, 1
  %v1376 = vpop.permute.xlu0 %1375
  %1377 = vrot.lane.b32.xlu0 %v1299, 1
  %v1378 = vpop.permute.xlu0 %1377
  %1379 = vrot.lane.b32.xlu0 %v1300, 1
  %v1380 = vpop.permute.xlu0 %1379
  %1381 = vrot.lane.b32.xlu0 %v1301, 1
  %v1382 = vpop.permute.xlu0 %1381
  %1383 = vrot.lane.b32.xlu0 %v1302, 1
  %v1384 = vpop.permute.xlu0 %1383
  %1385 = vrot.lane.b32.xlu0 %v1303, 1
  %v1386 = vpop.permute.xlu0 %1385
  %1387 = vrot.lane.b32.xlu0 %v1304, 1
  %v1388 = vpop.permute.xlu0 %1387
  %1389 = vrot.lane.b32.xlu0 %v1305, 1
  %v1390 = vpop.permute.xlu0 %1389
  %1391 = vrot.lane.b32.xlu0 %v1306, 1
  %v1392 = vpop.permute.xlu0 %1391
  %1393 = vrot.lane.b32.xlu0 %v1307, 1
  %v1394 = vpop.permute.xlu0 %1393
  %1395 = vrot.lane.b32.xlu0 %v1308, 1
  %v1396 = vpop.permute.xlu0 %1395
  %1397 = vrot.lane.b32.xlu0 %v1309, 1
  %v1398 = vpop.permute.xlu0 %1397
  %1399 = vrot.lane.b32.xlu0 %v1310, 1
  %v1400 = vpop.permute.xlu0 %1399
  %1401 = vrot.lane.b32.xlu0 %v1311, 1
  %v1402 = vpop.permute.xlu0 %1401
  %1403 = vrot.lane.b32.xlu0 %v1312, 1
  %v1404 = vpop.permute.xlu0 %1403
  %1405 = vrot.lane.b32.xlu0 %v1313, 1
  %v1406 = vpop.permute.xlu0 %1405
  %1407 = vrot.lane.b32.xlu0 %v1314, 1
  %v1408 = vpop.permute.xlu0 %1407
  %1409 = vrot.lane.b32.xlu0 %v1315, 1
  %v1410 = vpop.permute.xlu0 %1409
  %1411 = vrot.lane.b32.xlu0 %v1316, 1
  %v1412 = vpop.permute.xlu0 %1411
  %1413 = vrot.lane.b32.xlu0 %v1317, 1
  %v1414 = vpop.permute.xlu0 %1413
  %1415 = vrot.lane.b32.xlu0 %v1318, 1
  %v1416 = vpop.permute.xlu0 %1415
  %1417 = vrot.lane.b32.xlu0 %v1319, 1
  %v1418 = vpop.permute.xlu0 %1417
  %1419 = vrot.lane.b32.xlu0 %v1320, 1
  %v1420 = vpop.permute.xlu0 %1419
  %1421 = vrot.lane.b32.xlu0 %v1321, 1
  %v1422 = vpop.permute.xlu0 %1421
  %1423 = vrot.lane.b32.xlu0 %v1322, 1
  %v1424 = vpop.permute.xlu0 %1423
  %1425 = vrot.lane.b32.xlu0 %v1323, 1
  %v1426 = vpop.permute.xlu0 %1425
  %1427 = vrot.lane.b32.xlu0 %v1324, 1
  %v1428 = vpop.permute.xlu0 %1427
  %1429 = vrot.lane.b32.xlu0 %v1325, 1
  %v1430 = vpop.permute.xlu0 %1429
  %1431 = vrot.lane.b32.xlu0 %v1326, 1
  %v1432 = vpop.permute.xlu0 %1431
  %1433 = vrot.lane.b32.xlu0 %v1327, 1
  %v1434 = vpop.permute.xlu0 %1433
  %1435 = vrot.lane.b32.xlu0 %v1328, 1
  %v1436 = vpop.permute.xlu0 %1435
  %1437 = vrot.lane.b32.xlu0 %v1329, 1
  %v1438 = vpop.permute.xlu0 %1437
  %1439 = vrot.lane.b32.xlu0 %v1330, 1
  %v1440 = vpop.permute.xlu0 %1439
  %1441 = vrot.lane.b32.xlu0 %v1331, 1
  %v1442 = vpop.permute.xlu0 %1441
  %1443 = vrot.lane.b32.xlu0 %v1332, 1
  %v1444 = vpop.permute.xlu0 %1443
  %1445 = vrot.lane.b32.xlu0 %v1333, 1
  %v1446 = vpop.permute.xlu0 %1445
  %1447 = vrot.lane.b32.xlu0 %v1334, 1
  %v1448 = vpop.permute.xlu0 %1447
  %1449 = vrot.lane.b32.xlu0 %v1335, 1
  %v1450 = vpop.permute.xlu0 %1449
  %1451 = vrot.lane.b32.xlu0 %v1336, 1
  %v1452 = vpop.permute.xlu0 %1451
  %1453 = vrot.lane.b32.xlu0 %v1337, 1
  %v1454 = vpop.permute.xlu0 %1453
  %1455 = vrot.lane.b32.xlu0 %v1338, 1
  %v1456 = vpop.permute.xlu0 %1455
  %1457 = vrot.lane.b32.xlu0 %v1339, 1
  %v1458 = vpop.permute.xlu0 %1457
  %1459 = vrot.lane.b32.xlu0 %v1340, 1
  %v1460 = vpop.permute.xlu0 %1459
  %1461 = vrot.lane.b32.xlu0 %v1341, 1
  %v1462 = vpop.permute.xlu0 %1461
  %1463 = vrot.lane.b32.xlu0 %v1342, 1
  %v1464 = vpop.permute.xlu0 %1463
  %1465 = vrot.lane.b32.xlu0 %v1343, 1
  %v1466 = vpop.permute.xlu0 %1465
  %1467 = vrot.lane.b32.xlu0 %v1344, 1
  %v1468 = vpop.permute.xlu0 %1467
  %1469 = vrot.lane.b32.xlu0 %v1345, 1
  %v1470 = vpop.permute.xlu0 %1469
  %1471 = vrot.lane.b32.xlu0 %v1346, 1
  %v1472 = vpop.permute.xlu0 %1471
  %1473 = vrot.lane.b32.xlu0 %v1347, 1
  %v1474 = vpop.permute.xlu0 %1473
  %1475 = vrot.lane.b32.xlu0 %v1348, 1
  %v1476 = vpop.permute.xlu0 %1475
  %v1477 = vsel %vm302, %v1350, 129.0
  %v1478 = vsel %vm302, %v1352, 129.0
  %v1479 = vsel %vm302, %v1354, 129.0
  %v1480 = vsel %vm302, %v1356, 129.0
  %v1481 = vsel %vm302, %v1358, 129.0
  %v1482 = vsel %vm302, %v1360, 129.0
  %v1483 = vsel %vm302, %v1362, 129.0
  %v1484 = vsel %vm302, %v1364, 129.0
  %v1485 = vsel %vm302, %v1366, 129.0
  %v1486 = vsel %vm302, %v1368, 129.0
  %v1487 = vsel %vm302, %v1370, 129.0
  %v1488 = vsel %vm302, %v1372, 129.0
  %v1489 = vsel %vm302, %v1374, 129.0
  %v1490 = vsel %vm302, %v1376, 129.0
  %v1491 = vsel %vm302, %v1378, 129.0
  %v1492 = vsel %vm302, %v1380, 129.0
  %v1493 = vsel %vm302, %v1382, 129.0
  %v1494 = vsel %vm302, %v1384, 129.0
  %v1495 = vsel %vm302, %v1386, 129.0
  %v1496 = vsel %vm302, %v1388, 129.0
  %v1497 = vsel %vm302, %v1390, 129.0
  %v1498 = vsel %vm302, %v1392, 129.0
  %v1499 = vsel %vm302, %v1394, 129.0
  %v1500 = vsel %vm302, %v1396, 129.0
  %v1501 = vsel %vm302, %v1398, 129.0
  %v1502 = vsel %vm302, %v1400, 129.0
  %v1503 = vsel %vm302, %v1402, 129.0
  %v1504 = vsel %vm302, %v1404, 129.0
  %v1505 = vsel %vm302, %v1406, 129.0
  %v1506 = vsel %vm302, %v1408, 129.0
  %v1507 = vsel %vm302, %v1410, 129.0
  %v1508 = vsel %vm302, %v1412, 129.0
  %v1509 = vsel %vm302, %v1414, 129.0
  %v1510 = vsel %vm302, %v1416, 129.0
  %v1511 = vsel %vm302, %v1418, 129.0
  %v1512 = vsel %vm302, %v1420, 129.0
  %v1513 = vsel %vm302, %v1422, 129.0
  %v1514 = vsel %vm302, %v1424, 129.0
  %v1515 = vsel %vm302, %v1426, 129.0
  %v1516 = vsel %vm302, %v1428, 129.0
  %v1517 = vsel %vm302, %v1430, 129.0
  %v1518 = vsel %vm302, %v1432, 129.0
  %v1519 = vsel %vm302, %v1434, 129.0
  %v1520 = vsel %vm302, %v1436, 129.0
  %v1521 = vsel %vm302, %v1438, 129.0
  %v1522 = vsel %vm302, %v1440, 129.0
  %v1523 = vsel %vm302, %v1442, 129.0
  %v1524 = vsel %vm302, %v1444, 129.0
  %v1525 = vsel %vm302, %v1446, 129.0
  %v1526 = vsel %vm302, %v1448, 129.0
  %v1527 = vsel %vm302, %v1450, 129.0
  %v1528 = vsel %vm302, %v1452, 129.0
  %v1529 = vsel %vm302, %v1454, 129.0
  %v1530 = vsel %vm302, %v1456, 129.0
  %v1531 = vsel %vm302, %v1458, 129.0
  %v1532 = vsel %vm302, %v1460, 129.0
  %v1533 = vsel %vm302, %v1462, 129.0
  %v1534 = vsel %vm302, %v1464, 129.0
  %v1535 = vsel %vm302, %v1466, 129.0
  %v1536 = vsel %vm302, %v1468, 129.0
  %v1537 = vsel %vm302, %v1470, 129.0
  %v1538 = vsel %vm302, %v1472, 129.0
  %v1539 = vsel %vm302, %v1474, 129.0
  %v1540 = vsel %vm302, %v1476, 129.0
  %v1541 = vmin.f32 %v1285, %v1477
  %v1542 = vmin.f32 %v1286, %v1478
  %v1543 = vmin.f32 %v1287, %v1479
  %v1544 = vmin.f32 %v1288, %v1480
  %v1545 = vmin.f32 %v1289, %v1481
  %v1546 = vmin.f32 %v1290, %v1482
  %v1547 = vmin.f32 %v1291, %v1483
  %v1548 = vmin.f32 %v1292, %v1484
  %v1549 = vmin.f32 %v1293, %v1485
  %v1550 = vmin.f32 %v1294, %v1486
  %v1551 = vmin.f32 %v1295, %v1487
  %v1552 = vmin.f32 %v1296, %v1488
  %v1553 = vmin.f32 %v1297, %v1489
  %v1554 = vmin.f32 %v1298, %v1490
  %v1555 = vmin.f32 %v1299, %v1491
  %v1556 = vmin.f32 %v1300, %v1492
  %v1557 = vmin.f32 %v1301, %v1493
  %v1558 = vmin.f32 %v1302, %v1494
  %v1559 = vmin.f32 %v1303, %v1495
  %v1560 = vmin.f32 %v1304, %v1496
  %v1561 = vmin.f32 %v1305, %v1497
  %v1562 = vmin.f32 %v1306, %v1498
  %v1563 = vmin.f32 %v1307, %v1499
  %v1564 = vmin.f32 %v1308, %v1500
  %v1565 = vmin.f32 %v1309, %v1501
  %v1566 = vmin.f32 %v1310, %v1502
  %v1567 = vmin.f32 %v1311, %v1503
  %v1568 = vmin.f32 %v1312, %v1504
  %v1569 = vmin.f32 %v1313, %v1505
  %v1570 = vmin.f32 %v1314, %v1506
  %v1571 = vmin.f32 %v1315, %v1507
  %v1572 = vmin.f32 %v1316, %v1508
  %v1573 = vmin.f32 %v1317, %v1509
  %v1574 = vmin.f32 %v1318, %v1510
  %v1575 = vmin.f32 %v1319, %v1511
  %v1576 = vmin.f32 %v1320, %v1512
  %v1577 = vmin.f32 %v1321, %v1513
  %v1578 = vmin.f32 %v1322, %v1514
  %v1579 = vmin.f32 %v1323, %v1515
  %v1580 = vmin.f32 %v1324, %v1516
  %v1581 = vmin.f32 %v1325, %v1517
  %v1582 = vmin.f32 %v1326, %v1518
  %v1583 = vmin.f32 %v1327, %v1519
  %v1584 = vmin.f32 %v1328, %v1520
  %v1585 = vmin.f32 %v1329, %v1521
  %v1586 = vmin.f32 %v1330, %v1522
  %v1587 = vmin.f32 %v1331, %v1523
  %v1588 = vmin.f32 %v1332, %v1524
  %v1589 = vmin.f32 %v1333, %v1525
  %v1590 = vmin.f32 %v1334, %v1526
  %v1591 = vmin.f32 %v1335, %v1527
  %v1592 = vmin.f32 %v1336, %v1528
  %v1593 = vmin.f32 %v1337, %v1529
  %v1594 = vmin.f32 %v1338, %v1530
  %v1595 = vmin.f32 %v1339, %v1531
  %v1596 = vmin.f32 %v1340, %v1532
  %v1597 = vmin.f32 %v1341, %v1533
  %v1598 = vmin.f32 %v1342, %v1534
  %v1599 = vmin.f32 %v1343, %v1535
  %v1600 = vmin.f32 %v1344, %v1536
  %v1601 = vmin.f32 %v1345, %v1537
  %v1602 = vmin.f32 %v1346, %v1538
  %v1603 = vmin.f32 %v1347, %v1539
  %v1604 = vmin.f32 %v1348, %v1540
  %1605 = vrot.lane.b32.xlu0 %v1541, 127
  %v1606 = vpop.permute.xlu0 %1605
  %1607 = vrot.lane.b32.xlu0 %v1542, 127
  %v1608 = vpop.permute.xlu0 %1607
  %1609 = vrot.lane.b32.xlu0 %v1543, 127
  %v1610 = vpop.permute.xlu0 %1609
  %1611 = vrot.lane.b32.xlu0 %v1544, 127
  %v1612 = vpop.permute.xlu0 %1611
  %1613 = vrot.lane.b32.xlu0 %v1545, 127
  %v1614 = vpop.permute.xlu0 %1613
  %1615 = vrot.lane.b32.xlu0 %v1546, 127
  %v1616 = vpop.permute.xlu0 %1615
  %1617 = vrot.lane.b32.xlu0 %v1547, 127
  %v1618 = vpop.permute.xlu0 %1617
  %1619 = vrot.lane.b32.xlu0 %v1548, 127
  %v1620 = vpop.permute.xlu0 %1619
  %1621 = vrot.lane.b32.xlu0 %v1549, 127
  %v1622 = vpop.permute.xlu0 %1621
  %1623 = vrot.lane.b32.xlu0 %v1550, 127
  %v1624 = vpop.permute.xlu0 %1623
  %1625 = vrot.lane.b32.xlu0 %v1551, 127
  %v1626 = vpop.permute.xlu0 %1625
  %1627 = vrot.lane.b32.xlu0 %v1552, 127
  %v1628 = vpop.permute.xlu0 %1627
  %1629 = vrot.lane.b32.xlu0 %v1553, 127
  %v1630 = vpop.permute.xlu0 %1629
  %1631 = vrot.lane.b32.xlu0 %v1554, 127
  %v1632 = vpop.permute.xlu0 %1631
  %1633 = vrot.lane.b32.xlu0 %v1555, 127
  %v1634 = vpop.permute.xlu0 %1633
  %1635 = vrot.lane.b32.xlu0 %v1556, 127
  %v1636 = vpop.permute.xlu0 %1635
  %1637 = vrot.lane.b32.xlu0 %v1557, 127
  %v1638 = vpop.permute.xlu0 %1637
  %1639 = vrot.lane.b32.xlu0 %v1558, 127
  %v1640 = vpop.permute.xlu0 %1639
  %1641 = vrot.lane.b32.xlu0 %v1559, 127
  %v1642 = vpop.permute.xlu0 %1641
  %1643 = vrot.lane.b32.xlu0 %v1560, 127
  %v1644 = vpop.permute.xlu0 %1643
  %1645 = vrot.lane.b32.xlu0 %v1561, 127
  %v1646 = vpop.permute.xlu0 %1645
  %1647 = vrot.lane.b32.xlu0 %v1562, 127
  %v1648 = vpop.permute.xlu0 %1647
  %1649 = vrot.lane.b32.xlu0 %v1563, 127
  %v1650 = vpop.permute.xlu0 %1649
  %1651 = vrot.lane.b32.xlu0 %v1564, 127
  %v1652 = vpop.permute.xlu0 %1651
  %1653 = vrot.lane.b32.xlu0 %v1565, 127
  %v1654 = vpop.permute.xlu0 %1653
  %1655 = vrot.lane.b32.xlu0 %v1566, 127
  %v1656 = vpop.permute.xlu0 %1655
  %1657 = vrot.lane.b32.xlu0 %v1567, 127
  %v1658 = vpop.permute.xlu0 %1657
  %1659 = vrot.lane.b32.xlu0 %v1568, 127
  %v1660 = vpop.permute.xlu0 %1659
  %1661 = vrot.lane.b32.xlu0 %v1569, 127
  %v1662 = vpop.permute.xlu0 %1661
  %1663 = vrot.lane.b32.xlu0 %v1570, 127
  %v1664 = vpop.permute.xlu0 %1663
  %1665 = vrot.lane.b32.xlu0 %v1571, 127
  %v1666 = vpop.permute.xlu0 %1665
  %1667 = vrot.lane.b32.xlu0 %v1572, 127
  %v1668 = vpop.permute.xlu0 %1667
  %1669 = vrot.lane.b32.xlu0 %v1573, 127
  %v1670 = vpop.permute.xlu0 %1669
  %1671 = vrot.lane.b32.xlu0 %v1574, 127
  %v1672 = vpop.permute.xlu0 %1671
  %1673 = vrot.lane.b32.xlu0 %v1575, 127
  %v1674 = vpop.permute.xlu0 %1673
  %1675 = vrot.lane.b32.xlu0 %v1576, 127
  %v1676 = vpop.permute.xlu0 %1675
  %1677 = vrot.lane.b32.xlu0 %v1577, 127
  %v1678 = vpop.permute.xlu0 %1677
  %1679 = vrot.lane.b32.xlu0 %v1578, 127
  %v1680 = vpop.permute.xlu0 %1679
  %1681 = vrot.lane.b32.xlu0 %v1579, 127
  %v1682 = vpop.permute.xlu0 %1681
  %1683 = vrot.lane.b32.xlu0 %v1580, 127
  %v1684 = vpop.permute.xlu0 %1683
  %1685 = vrot.lane.b32.xlu0 %v1581, 127
  %v1686 = vpop.permute.xlu0 %1685
  %1687 = vrot.lane.b32.xlu0 %v1582, 127
  %v1688 = vpop.permute.xlu0 %1687
  %1689 = vrot.lane.b32.xlu0 %v1583, 127
  %v1690 = vpop.permute.xlu0 %1689
  %1691 = vrot.lane.b32.xlu0 %v1584, 127
  %v1692 = vpop.permute.xlu0 %1691
  %1693 = vrot.lane.b32.xlu0 %v1585, 127
  %v1694 = vpop.permute.xlu0 %1693
  %1695 = vrot.lane.b32.xlu0 %v1586, 127
  %v1696 = vpop.permute.xlu0 %1695
  %1697 = vrot.lane.b32.xlu0 %v1587, 127
  %v1698 = vpop.permute.xlu0 %1697
  %1699 = vrot.lane.b32.xlu0 %v1588, 127
  %v1700 = vpop.permute.xlu0 %1699
  %1701 = vrot.lane.b32.xlu0 %v1589, 127
  %v1702 = vpop.permute.xlu0 %1701
  %1703 = vrot.lane.b32.xlu0 %v1590, 127
  %v1704 = vpop.permute.xlu0 %1703
  %1705 = vrot.lane.b32.xlu0 %v1591, 127
  %v1706 = vpop.permute.xlu0 %1705
  %1707 = vrot.lane.b32.xlu0 %v1592, 127
  %v1708 = vpop.permute.xlu0 %1707
  %1709 = vrot.lane.b32.xlu0 %v1593, 127
  %v1710 = vpop.permute.xlu0 %1709
  %1711 = vrot.lane.b32.xlu0 %v1594, 127
  %v1712 = vpop.permute.xlu0 %1711
  %1713 = vrot.lane.b32.xlu0 %v1595, 127
  %v1714 = vpop.permute.xlu0 %1713
  %1715 = vrot.lane.b32.xlu0 %v1596, 127
  %v1716 = vpop.permute.xlu0 %1715
  %1717 = vrot.lane.b32.xlu0 %v1597, 127
  %v1718 = vpop.permute.xlu0 %1717
  %1719 = vrot.lane.b32.xlu0 %v1598, 127
  %v1720 = vpop.permute.xlu0 %1719
  %1721 = vrot.lane.b32.xlu0 %v1599, 127
  %v1722 = vpop.permute.xlu0 %1721
  %1723 = vrot.lane.b32.xlu0 %v1600, 127
  %v1724 = vpop.permute.xlu0 %1723
  %1725 = vrot.lane.b32.xlu0 %v1601, 127
  %v1726 = vpop.permute.xlu0 %1725
  %1727 = vrot.lane.b32.xlu0 %v1602, 127
  %v1728 = vpop.permute.xlu0 %1727
  %1729 = vrot.lane.b32.xlu0 %v1603, 127
  %v1730 = vpop.permute.xlu0 %1729
  %1731 = vrot.lane.b32.xlu0 %v1604, 127
  %v1732 = vpop.permute.xlu0 %1731
  %v1733 = vsel %vm564, %v1606, 129.0
  %v1734 = vsel %vm564, %v1608, 129.0
  %v1735 = vsel %vm564, %v1610, 129.0
  %v1736 = vsel %vm564, %v1612, 129.0
  %v1737 = vsel %vm564, %v1614, 129.0
  %v1738 = vsel %vm564, %v1616, 129.0
  %v1739 = vsel %vm564, %v1618, 129.0
  %v1740 = vsel %vm564, %v1620, 129.0
  %v1741 = vsel %vm564, %v1622, 129.0
  %v1742 = vsel %vm564, %v1624, 129.0
  %v1743 = vsel %vm564, %v1626, 129.0
  %v1744 = vsel %vm564, %v1628, 129.0
  %v1745 = vsel %vm564, %v1630, 129.0
  %v1746 = vsel %vm564, %v1632, 129.0
  %v1747 = vsel %vm564, %v1634, 129.0
  %v1748 = vsel %vm564, %v1636, 129.0
  %v1749 = vsel %vm564, %v1638, 129.0
  %v1750 = vsel %vm564, %v1640, 129.0
  %v1751 = vsel %vm564, %v1642, 129.0
  %v1752 = vsel %vm564, %v1644, 129.0
  %v1753 = vsel %vm564, %v1646, 129.0
  %v1754 = vsel %vm564, %v1648, 129.0
  %v1755 = vsel %vm564, %v1650, 129.0
  %v1756 = vsel %vm564, %v1652, 129.0
  %v1757 = vsel %vm564, %v1654, 129.0
  %v1758 = vsel %vm564, %v1656, 129.0
  %v1759 = vsel %vm564, %v1658, 129.0
  %v1760 = vsel %vm564, %v1660, 129.0
  %v1761 = vsel %vm564, %v1662, 129.0
  %v1762 = vsel %vm564, %v1664, 129.0
  %v1763 = vsel %vm564, %v1666, 129.0
  %v1764 = vsel %vm564, %v1668, 129.0
  %v1765 = vsel %vm564, %v1670, 129.0
  %v1766 = vsel %vm564, %v1672, 129.0
  %v1767 = vsel %vm564, %v1674, 129.0
  %v1768 = vsel %vm564, %v1676, 129.0
  %v1769 = vsel %vm564, %v1678, 129.0
  %v1770 = vsel %vm564, %v1680, 129.0
  %v1771 = vsel %vm564, %v1682, 129.0
  %v1772 = vsel %vm564, %v1684, 129.0
  %v1773 = vsel %vm564, %v1686, 129.0
  %v1774 = vsel %vm564, %v1688, 129.0
  %v1775 = vsel %vm564, %v1690, 129.0
  %v1776 = vsel %vm564, %v1692, 129.0
  %v1777 = vsel %vm564, %v1694, 129.0
  %v1778 = vsel %vm564, %v1696, 129.0
  %v1779 = vsel %vm564, %v1698, 129.0
  %v1780 = vsel %vm564, %v1700, 129.0
  %v1781 = vsel %vm564, %v1702, 129.0
  %v1782 = vsel %vm564, %v1704, 129.0
  %v1783 = vsel %vm564, %v1706, 129.0
  %v1784 = vsel %vm564, %v1708, 129.0
  %v1785 = vsel %vm564, %v1710, 129.0
  %v1786 = vsel %vm564, %v1712, 129.0
  %v1787 = vsel %vm564, %v1714, 129.0
  %v1788 = vsel %vm564, %v1716, 129.0
  %v1789 = vsel %vm564, %v1718, 129.0
  %v1790 = vsel %vm564, %v1720, 129.0
  %v1791 = vsel %vm564, %v1722, 129.0
  %v1792 = vsel %vm564, %v1724, 129.0
  %v1793 = vsel %vm564, %v1726, 129.0
  %v1794 = vsel %vm564, %v1728, 129.0
  %v1795 = vsel %vm564, %v1730, 129.0
  %v1796 = vsel %vm564, %v1732, 129.0
  %v1797 = vmin.f32 %v1541, %v1733
  %v1798 = vmin.f32 %v1542, %v1734
  %v1799 = vmin.f32 %v1543, %v1735
  %v1800 = vmin.f32 %v1544, %v1736
  %v1801 = vmin.f32 %v1545, %v1737
  %v1802 = vmin.f32 %v1546, %v1738
  %v1803 = vmin.f32 %v1547, %v1739
  %v1804 = vmin.f32 %v1548, %v1740
  %v1805 = vmin.f32 %v1549, %v1741
  %v1806 = vmin.f32 %v1550, %v1742
  %v1807 = vmin.f32 %v1551, %v1743
  %v1808 = vmin.f32 %v1552, %v1744
  %v1809 = vmin.f32 %v1553, %v1745
  %v1810 = vmin.f32 %v1554, %v1746
  %v1811 = vmin.f32 %v1555, %v1747
  %v1812 = vmin.f32 %v1556, %v1748
  %v1813 = vmin.f32 %v1557, %v1749
  %v1814 = vmin.f32 %v1558, %v1750
  %v1815 = vmin.f32 %v1559, %v1751
  %v1816 = vmin.f32 %v1560, %v1752
  %v1817 = vmin.f32 %v1561, %v1753
  %v1818 = vmin.f32 %v1562, %v1754
  %v1819 = vmin.f32 %v1563, %v1755
  %v1820 = vmin.f32 %v1564, %v1756
  %v1821 = vmin.f32 %v1565, %v1757
  %v1822 = vmin.f32 %v1566, %v1758
  %v1823 = vmin.f32 %v1567, %v1759
  %v1824 = vmin.f32 %v1568, %v1760
  %v1825 = vmin.f32 %v1569, %v1761
  %v1826 = vmin.f32 %v1570, %v1762
  %v1827 = vmin.f32 %v1571, %v1763
  %v1828 = vmin.f32 %v1572, %v1764
  %v1829 = vmin.f32 %v1573, %v1765
  %v1830 = vmin.f32 %v1574, %v1766
  %v1831 = vmin.f32 %v1575, %v1767
  %v1832 = vmin.f32 %v1576, %v1768
  %v1833 = vmin.f32 %v1577, %v1769
  %v1834 = vmin.f32 %v1578, %v1770
  %v1835 = vmin.f32 %v1579, %v1771
  %v1836 = vmin.f32 %v1580, %v1772
  %v1837 = vmin.f32 %v1581, %v1773
  %v1838 = vmin.f32 %v1582, %v1774
  %v1839 = vmin.f32 %v1583, %v1775
  %v1840 = vmin.f32 %v1584, %v1776
  %v1841 = vmin.f32 %v1585, %v1777
  %v1842 = vmin.f32 %v1586, %v1778
  %v1843 = vmin.f32 %v1587, %v1779
  %v1844 = vmin.f32 %v1588, %v1780
  %v1845 = vmin.f32 %v1589, %v1781
  %v1846 = vmin.f32 %v1590, %v1782
  %v1847 = vmin.f32 %v1591, %v1783
  %v1848 = vmin.f32 %v1592, %v1784
  %v1849 = vmin.f32 %v1593, %v1785
  %v1850 = vmin.f32 %v1594, %v1786
  %v1851 = vmin.f32 %v1595, %v1787
  %v1852 = vmin.f32 %v1596, %v1788
  %v1853 = vmin.f32 %v1597, %v1789
  %v1854 = vmin.f32 %v1598, %v1790
  %v1855 = vmin.f32 %v1599, %v1791
  %v1856 = vmin.f32 %v1600, %v1792
  %v1857 = vmin.f32 %v1601, %v1793
  %v1858 = vmin.f32 %v1602, %v1794
  %v1859 = vmin.f32 %v1603, %v1795
  %v1860 = vmin.f32 %v1604, %v1796
  %1861 = vrot.lane.b32.xlu0 %v1797, 2
  %v1862 = vpop.permute.xlu0 %1861
  %1863 = vrot.lane.b32.xlu0 %v1798, 2
  %v1864 = vpop.permute.xlu0 %1863
  %1865 = vrot.lane.b32.xlu0 %v1799, 2
  %v1866 = vpop.permute.xlu0 %1865
  %1867 = vrot.lane.b32.xlu0 %v1800, 2
  %v1868 = vpop.permute.xlu0 %1867
  %1869 = vrot.lane.b32.xlu0 %v1801, 2
  %v1870 = vpop.permute.xlu0 %1869
  %1871 = vrot.lane.b32.xlu0 %v1802, 2
  %v1872 = vpop.permute.xlu0 %1871
  %1873 = vrot.lane.b32.xlu0 %v1803, 2
  %v1874 = vpop.permute.xlu0 %1873
  %1875 = vrot.lane.b32.xlu0 %v1804, 2
  %v1876 = vpop.permute.xlu0 %1875
  %1877 = vrot.lane.b32.xlu0 %v1805, 2
  %v1878 = vpop.permute.xlu0 %1877
  %1879 = vrot.lane.b32.xlu0 %v1806, 2
  %v1880 = vpop.permute.xlu0 %1879
  %1881 = vrot.lane.b32.xlu0 %v1807, 2
  %v1882 = vpop.permute.xlu0 %1881
  %1883 = vrot.lane.b32.xlu0 %v1808, 2
  %v1884 = vpop.permute.xlu0 %1883
  %1885 = vrot.lane.b32.xlu0 %v1809, 2
  %v1886 = vpop.permute.xlu0 %1885
  %1887 = vrot.lane.b32.xlu0 %v1810, 2
  %v1888 = vpop.permute.xlu0 %1887
  %1889 = vrot.lane.b32.xlu0 %v1811, 2
  %v1890 = vpop.permute.xlu0 %1889
  %1891 = vrot.lane.b32.xlu0 %v1812, 2
  %v1892 = vpop.permute.xlu0 %1891
  %1893 = vrot.lane.b32.xlu0 %v1813, 2
  %v1894 = vpop.permute.xlu0 %1893
  %1895 = vrot.lane.b32.xlu0 %v1814, 2
  %v1896 = vpop.permute.xlu0 %1895
  %1897 = vrot.lane.b32.xlu0 %v1815, 2
  %v1898 = vpop.permute.xlu0 %1897
  %1899 = vrot.lane.b32.xlu0 %v1816, 2
  %v1900 = vpop.permute.xlu0 %1899
  %1901 = vrot.lane.b32.xlu0 %v1817, 2
  %v1902 = vpop.permute.xlu0 %1901
  %1903 = vrot.lane.b32.xlu0 %v1818, 2
  %v1904 = vpop.permute.xlu0 %1903
  %1905 = vrot.lane.b32.xlu0 %v1819, 2
  %v1906 = vpop.permute.xlu0 %1905
  %1907 = vrot.lane.b32.xlu0 %v1820, 2
  %v1908 = vpop.permute.xlu0 %1907
  %1909 = vrot.lane.b32.xlu0 %v1821, 2
  %v1910 = vpop.permute.xlu0 %1909
  %1911 = vrot.lane.b32.xlu0 %v1822, 2
  %v1912 = vpop.permute.xlu0 %1911
  %1913 = vrot.lane.b32.xlu0 %v1823, 2
  %v1914 = vpop.permute.xlu0 %1913
  %1915 = vrot.lane.b32.xlu0 %v1824, 2
  %v1916 = vpop.permute.xlu0 %1915
  %1917 = vrot.lane.b32.xlu0 %v1825, 2
  %v1918 = vpop.permute.xlu0 %1917
  %1919 = vrot.lane.b32.xlu0 %v1826, 2
  %v1920 = vpop.permute.xlu0 %1919
  %1921 = vrot.lane.b32.xlu0 %v1827, 2
  %v1922 = vpop.permute.xlu0 %1921
  %1923 = vrot.lane.b32.xlu0 %v1828, 2
  %v1924 = vpop.permute.xlu0 %1923
  %1925 = vrot.lane.b32.xlu0 %v1829, 2
  %v1926 = vpop.permute.xlu0 %1925
  %1927 = vrot.lane.b32.xlu0 %v1830, 2
  %v1928 = vpop.permute.xlu0 %1927
  %1929 = vrot.lane.b32.xlu0 %v1831, 2
  %v1930 = vpop.permute.xlu0 %1929
  %1931 = vrot.lane.b32.xlu0 %v1832, 2
  %v1932 = vpop.permute.xlu0 %1931
  %1933 = vrot.lane.b32.xlu0 %v1833, 2
  %v1934 = vpop.permute.xlu0 %1933
  %1935 = vrot.lane.b32.xlu0 %v1834, 2
  %v1936 = vpop.permute.xlu0 %1935
  %1937 = vrot.lane.b32.xlu0 %v1835, 2
  %v1938 = vpop.permute.xlu0 %1937
  %1939 = vrot.lane.b32.xlu0 %v1836, 2
  %v1940 = vpop.permute.xlu0 %1939
  %1941 = vrot.lane.b32.xlu0 %v1837, 2
  %v1942 = vpop.permute.xlu0 %1941
  %1943 = vrot.lane.b32.xlu0 %v1838, 2
  %v1944 = vpop.permute.xlu0 %1943
  %1945 = vrot.lane.b32.xlu0 %v1839, 2
  %v1946 = vpop.permute.xlu0 %1945
  %1947 = vrot.lane.b32.xlu0 %v1840, 2
  %v1948 = vpop.permute.xlu0 %1947
  %1949 = vrot.lane.b32.xlu0 %v1841, 2
  %v1950 = vpop.permute.xlu0 %1949
  %1951 = vrot.lane.b32.xlu0 %v1842, 2
  %v1952 = vpop.permute.xlu0 %1951
  %1953 = vrot.lane.b32.xlu0 %v1843, 2
  %v1954 = vpop.permute.xlu0 %1953
  %1955 = vrot.lane.b32.xlu0 %v1844, 2
  %v1956 = vpop.permute.xlu0 %1955
  %1957 = vrot.lane.b32.xlu0 %v1845, 2
  %v1958 = vpop.permute.xlu0 %1957
  %1959 = vrot.lane.b32.xlu0 %v1846, 2
  %v1960 = vpop.permute.xlu0 %1959
  %1961 = vrot.lane.b32.xlu0 %v1847, 2
  %v1962 = vpop.permute.xlu0 %1961
  %1963 = vrot.lane.b32.xlu0 %v1848, 2
  %v1964 = vpop.permute.xlu0 %1963
  %1965 = vrot.lane.b32.xlu0 %v1849, 2
  %v1966 = vpop.permute.xlu0 %1965
  %1967 = vrot.lane.b32.xlu0 %v1850, 2
  %v1968 = vpop.permute.xlu0 %1967
  %1969 = vrot.lane.b32.xlu0 %v1851, 2
  %v1970 = vpop.permute.xlu0 %1969
  %1971 = vrot.lane.b32.xlu0 %v1852, 2
  %v1972 = vpop.permute.xlu0 %1971
  %1973 = vrot.lane.b32.xlu0 %v1853, 2
  %v1974 = vpop.permute.xlu0 %1973
  %1975 = vrot.lane.b32.xlu0 %v1854, 2
  %v1976 = vpop.permute.xlu0 %1975
  %1977 = vrot.lane.b32.xlu0 %v1855, 2
  %v1978 = vpop.permute.xlu0 %1977
  %1979 = vrot.lane.b32.xlu0 %v1856, 2
  %v1980 = vpop.permute.xlu0 %1979
  %1981 = vrot.lane.b32.xlu0 %v1857, 2
  %v1982 = vpop.permute.xlu0 %1981
  %1983 = vrot.lane.b32.xlu0 %v1858, 2
  %v1984 = vpop.permute.xlu0 %1983
  %1985 = vrot.lane.b32.xlu0 %v1859, 2
  %v1986 = vpop.permute.xlu0 %1985
  %1987 = vrot.lane.b32.xlu0 %v1860, 2
  %v1988 = vpop.permute.xlu0 %1987
  %v1989 = vsel %vm826, %v1862, 129.0
  %v1990 = vsel %vm826, %v1864, 129.0
  %v1991 = vsel %vm826, %v1866, 129.0
  %v1992 = vsel %vm826, %v1868, 129.0
  %v1993 = vsel %vm826, %v1870, 129.0
  %v1994 = vsel %vm826, %v1872, 129.0
  %v1995 = vsel %vm826, %v1874, 129.0
  %v1996 = vsel %vm826, %v1876, 129.0
  %v1997 = vsel %vm826, %v1878, 129.0
  %v1998 = vsel %vm826, %v1880, 129.0
  %v1999 = vsel %vm826, %v1882, 129.0
  %v2000 = vsel %vm826, %v1884, 129.0
  %v2001 = vsel %vm826, %v1886, 129.0
  %v2002 = vsel %vm826, %v1888, 129.0
  %v2003 = vsel %vm826, %v1890, 129.0
  %v2004 = vsel %vm826, %v1892, 129.0
  %v2005 = vsel %vm826, %v1894, 129.0
  %v2006 = vsel %vm826, %v1896, 129.0
  %v2007 = vsel %vm826, %v1898, 129.0
  %v2008 = vsel %vm826, %v1900, 129.0
  %v2009 = vsel %vm826, %v1902, 129.0
  %v2010 = vsel %vm826, %v1904, 129.0
  %v2011 = vsel %vm826, %v1906, 129.0
  %v2012 = vsel %vm826, %v1908, 129.0
  %v2013 = vsel %vm826, %v1910, 129.0
  %v2014 = vsel %vm826, %v1912, 129.0
  %v2015 = vsel %vm826, %v1914, 129.0
  %v2016 = vsel %vm826, %v1916, 129.0
  %v2017 = vsel %vm826, %v1918, 129.0
  %v2018 = vsel %vm826, %v1920, 129.0
  %v2019 = vsel %vm826, %v1922, 129.0
  %v2020 = vsel %vm826, %v1924, 129.0
  %v2021 = vsel %vm826, %v1926, 129.0
  %v2022 = vsel %vm826, %v1928, 129.0
  %v2023 = vsel %vm826, %v1930, 129.0
  %v2024 = vsel %vm826, %v1932, 129.0
  %v2025 = vsel %vm826, %v1934, 129.0
  %v2026 = vsel %vm826, %v1936, 129.0
  %v2027 = vsel %vm826, %v1938, 129.0
  %v2028 = vsel %vm826, %v1940, 129.0
  %v2029 = vsel %vm826, %v1942, 129.0
  %v2030 = vsel %vm826, %v1944, 129.0
  %v2031 = vsel %vm826, %v1946, 129.0
  %v2032 = vsel %vm826, %v1948, 129.0
  %v2033 = vsel %vm826, %v1950, 129.0
  %v2034 = vsel %vm826, %v1952, 129.0
  %v2035 = vsel %vm826, %v1954, 129.0
  %v2036 = vsel %vm826, %v1956, 129.0
  %v2037 = vsel %vm826, %v1958, 129.0
  %v2038 = vsel %vm826, %v1960, 129.0
  %v2039 = vsel %vm826, %v1962, 129.0
  %v2040 = vsel %vm826, %v1964, 129.0
  %v2041 = vsel %vm826, %v1966, 129.0
  %v2042 = vsel %vm826, %v1968, 129.0
  %v2043 = vsel %vm826, %v1970, 129.0
  %v2044 = vsel %vm826, %v1972, 129.0
  %v2045 = vsel %vm826, %v1974, 129.0
  %v2046 = vsel %vm826, %v1976, 129.0
  %v2047 = vsel %vm826, %v1978, 129.0
  %v2048 = vsel %vm826, %v1980, 129.0
  %v2049 = vsel %vm826, %v1982, 129.0
  %v2050 = vsel %vm826, %v1984, 129.0
  %v2051 = vsel %vm826, %v1986, 129.0
  %v2052 = vsel %vm826, %v1988, 129.0
  %v2053 = vmin.f32 %v1797, %v1989
  %v2054 = vmin.f32 %v1798, %v1990
  %v2055 = vmin.f32 %v1799, %v1991
  %v2056 = vmin.f32 %v1800, %v1992
  %v2057 = vmin.f32 %v1801, %v1993
  %v2058 = vmin.f32 %v1802, %v1994
  %v2059 = vmin.f32 %v1803, %v1995
  %v2060 = vmin.f32 %v1804, %v1996
  %v2061 = vmin.f32 %v1805, %v1997
  %v2062 = vmin.f32 %v1806, %v1998
  %v2063 = vmin.f32 %v1807, %v1999
  %v2064 = vmin.f32 %v1808, %v2000
  %v2065 = vmin.f32 %v1809, %v2001
  %v2066 = vmin.f32 %v1810, %v2002
  %v2067 = vmin.f32 %v1811, %v2003
  %v2068 = vmin.f32 %v1812, %v2004
  %v2069 = vmin.f32 %v1813, %v2005
  %v2070 = vmin.f32 %v1814, %v2006
  %v2071 = vmin.f32 %v1815, %v2007
  %v2072 = vmin.f32 %v1816, %v2008
  %v2073 = vmin.f32 %v1817, %v2009
  %v2074 = vmin.f32 %v1818, %v2010
  %v2075 = vmin.f32 %v1819, %v2011
  %v2076 = vmin.f32 %v1820, %v2012
  %v2077 = vmin.f32 %v1821, %v2013
  %v2078 = vmin.f32 %v1822, %v2014
  %v2079 = vmin.f32 %v1823, %v2015
  %v2080 = vmin.f32 %v1824, %v2016
  %v2081 = vmin.f32 %v1825, %v2017
  %v2082 = vmin.f32 %v1826, %v2018
  %v2083 = vmin.f32 %v1827, %v2019
  %v2084 = vmin.f32 %v1828, %v2020
  %v2085 = vmin.f32 %v1829, %v2021
  %v2086 = vmin.f32 %v1830, %v2022
  %v2087 = vmin.f32 %v1831, %v2023
  %v2088 = vmin.f32 %v1832, %v2024
  %v2089 = vmin.f32 %v1833, %v2025
  %v2090 = vmin.f32 %v1834, %v2026
  %v2091 = vmin.f32 %v1835, %v2027
  %v2092 = vmin.f32 %v1836, %v2028
  %v2093 = vmin.f32 %v1837, %v2029
  %v2094 = vmin.f32 %v1838, %v2030
  %v2095 = vmin.f32 %v1839, %v2031
  %v2096 = vmin.f32 %v1840, %v2032
  %v2097 = vmin.f32 %v1841, %v2033
  %v2098 = vmin.f32 %v1842, %v2034
  %v2099 = vmin.f32 %v1843, %v2035
  %v2100 = vmin.f32 %v1844, %v2036
  %v2101 = vmin.f32 %v1845, %v2037
  %v2102 = vmin.f32 %v1846, %v2038
  %v2103 = vmin.f32 %v1847, %v2039
  %v2104 = vmin.f32 %v1848, %v2040
  %v2105 = vmin.f32 %v1849, %v2041
  %v2106 = vmin.f32 %v1850, %v2042
  %v2107 = vmin.f32 %v1851, %v2043
  %v2108 = vmin.f32 %v1852, %v2044
  %v2109 = vmin.f32 %v1853, %v2045
  %v2110 = vmin.f32 %v1854, %v2046
  %v2111 = vmin.f32 %v1855, %v2047
  %v2112 = vmin.f32 %v1856, %v2048
  %v2113 = vmin.f32 %v1857, %v2049
  %v2114 = vmin.f32 %v1858, %v2050
  %v2115 = vmin.f32 %v1859, %v2051
  %v2116 = vmin.f32 %v1860, %v2052
  %2117 = vrot.lane.b32.xlu0 %v2053, 126
  %v2118 = vpop.permute.xlu0 %2117
  %2119 = vrot.lane.b32.xlu0 %v2054, 126
  %v2120 = vpop.permute.xlu0 %2119
  %2121 = vrot.lane.b32.xlu0 %v2055, 126
  %v2122 = vpop.permute.xlu0 %2121
  %2123 = vrot.lane.b32.xlu0 %v2056, 126
  %v2124 = vpop.permute.xlu0 %2123
  %2125 = vrot.lane.b32.xlu0 %v2057, 126
  %v2126 = vpop.permute.xlu0 %2125
  %2127 = vrot.lane.b32.xlu0 %v2058, 126
  %v2128 = vpop.permute.xlu0 %2127
  %2129 = vrot.lane.b32.xlu0 %v2059, 126
  %v2130 = vpop.permute.xlu0 %2129
  %2131 = vrot.lane.b32.xlu0 %v2060, 126
  %v2132 = vpop.permute.xlu0 %2131
  %2133 = vrot.lane.b32.xlu0 %v2061, 126
  %v2134 = vpop.permute.xlu0 %2133
  %2135 = vrot.lane.b32.xlu0 %v2062, 126
  %v2136 = vpop.permute.xlu0 %2135
  %2137 = vrot.lane.b32.xlu0 %v2063, 126
  %v2138 = vpop.permute.xlu0 %2137
  %2139 = vrot.lane.b32.xlu0 %v2064, 126
  %v2140 = vpop.permute.xlu0 %2139
  %2141 = vrot.lane.b32.xlu0 %v2065, 126
  %v2142 = vpop.permute.xlu0 %2141
  %2143 = vrot.lane.b32.xlu0 %v2066, 126
  %v2144 = vpop.permute.xlu0 %2143
  %2145 = vrot.lane.b32.xlu0 %v2067, 126
  %v2146 = vpop.permute.xlu0 %2145
  %2147 = vrot.lane.b32.xlu0 %v2068, 126
  %v2148 = vpop.permute.xlu0 %2147
  %2149 = vrot.lane.b32.xlu0 %v2069, 126
  %v2150 = vpop.permute.xlu0 %2149
  %2151 = vrot.lane.b32.xlu0 %v2070, 126
  %v2152 = vpop.permute.xlu0 %2151
  %2153 = vrot.lane.b32.xlu0 %v2071, 126
  %v2154 = vpop.permute.xlu0 %2153
  %2155 = vrot.lane.b32.xlu0 %v2072, 126
  %v2156 = vpop.permute.xlu0 %2155
  %2157 = vrot.lane.b32.xlu0 %v2073, 126
  %v2158 = vpop.permute.xlu0 %2157
  %2159 = vrot.lane.b32.xlu0 %v2074, 126
  %v2160 = vpop.permute.xlu0 %2159
  %2161 = vrot.lane.b32.xlu0 %v2075, 126
  %v2162 = vpop.permute.xlu0 %2161
  %2163 = vrot.lane.b32.xlu0 %v2076, 126
  %v2164 = vpop.permute.xlu0 %2163
  %2165 = vrot.lane.b32.xlu0 %v2077, 126
  %v2166 = vpop.permute.xlu0 %2165
  %2167 = vrot.lane.b32.xlu0 %v2078, 126
  %v2168 = vpop.permute.xlu0 %2167
  %2169 = vrot.lane.b32.xlu0 %v2079, 126
  %v2170 = vpop.permute.xlu0 %2169
  %2171 = vrot.lane.b32.xlu0 %v2080, 126
  %v2172 = vpop.permute.xlu0 %2171
  %2173 = vrot.lane.b32.xlu0 %v2081, 126
  %v2174 = vpop.permute.xlu0 %2173
  %2175 = vrot.lane.b32.xlu0 %v2082, 126
  %v2176 = vpop.permute.xlu0 %2175
  %2177 = vrot.lane.b32.xlu0 %v2083, 126
  %v2178 = vpop.permute.xlu0 %2177
  %2179 = vrot.lane.b32.xlu0 %v2084, 126
  %v2180 = vpop.permute.xlu0 %2179
  %2181 = vrot.lane.b32.xlu0 %v2085, 126
  %v2182 = vpop.permute.xlu0 %2181
  %2183 = vrot.lane.b32.xlu0 %v2086, 126
  %v2184 = vpop.permute.xlu0 %2183
  %2185 = vrot.lane.b32.xlu0 %v2087, 126
  %v2186 = vpop.permute.xlu0 %2185
  %2187 = vrot.lane.b32.xlu0 %v2088, 126
  %v2188 = vpop.permute.xlu0 %2187
  %2189 = vrot.lane.b32.xlu0 %v2089, 126
  %v2190 = vpop.permute.xlu0 %2189
  %2191 = vrot.lane.b32.xlu0 %v2090, 126
  %v2192 = vpop.permute.xlu0 %2191
  %2193 = vrot.lane.b32.xlu0 %v2091, 126
  %v2194 = vpop.permute.xlu0 %2193
  %2195 = vrot.lane.b32.xlu0 %v2092, 126
  %v2196 = vpop.permute.xlu0 %2195
  %2197 = vrot.lane.b32.xlu0 %v2093, 126
  %v2198 = vpop.permute.xlu0 %2197
  %2199 = vrot.lane.b32.xlu0 %v2094, 126
  %v2200 = vpop.permute.xlu0 %2199
  %2201 = vrot.lane.b32.xlu0 %v2095, 126
  %v2202 = vpop.permute.xlu0 %2201
  %2203 = vrot.lane.b32.xlu0 %v2096, 126
  %v2204 = vpop.permute.xlu0 %2203
  %2205 = vrot.lane.b32.xlu0 %v2097, 126
  %v2206 = vpop.permute.xlu0 %2205
  %2207 = vrot.lane.b32.xlu0 %v2098, 126
  %v2208 = vpop.permute.xlu0 %2207
  %2209 = vrot.lane.b32.xlu0 %v2099, 126
  %v2210 = vpop.permute.xlu0 %2209
  %2211 = vrot.lane.b32.xlu0 %v2100, 126
  %v2212 = vpop.permute.xlu0 %2211
  %2213 = vrot.lane.b32.xlu0 %v2101, 126
  %v2214 = vpop.permute.xlu0 %2213
  %2215 = vrot.lane.b32.xlu0 %v2102, 126
  %v2216 = vpop.permute.xlu0 %2215
  %2217 = vrot.lane.b32.xlu0 %v2103, 126
  %v2218 = vpop.permute.xlu0 %2217
  %2219 = vrot.lane.b32.xlu0 %v2104, 126
  %v2220 = vpop.permute.xlu0 %2219
  %2221 = vrot.lane.b32.xlu0 %v2105, 126
  %v2222 = vpop.permute.xlu0 %2221
  %2223 = vrot.lane.b32.xlu0 %v2106, 126
  %v2224 = vpop.permute.xlu0 %2223
  %2225 = vrot.lane.b32.xlu0 %v2107, 126
  %v2226 = vpop.permute.xlu0 %2225
  %2227 = vrot.lane.b32.xlu0 %v2108, 126
  %v2228 = vpop.permute.xlu0 %2227
  %2229 = vrot.lane.b32.xlu0 %v2109, 126
  %v2230 = vpop.permute.xlu0 %2229
  %2231 = vrot.lane.b32.xlu0 %v2110, 126
  %v2232 = vpop.permute.xlu0 %2231
  %2233 = vrot.lane.b32.xlu0 %v2111, 126
  %v2234 = vpop.permute.xlu0 %2233
  %2235 = vrot.lane.b32.xlu0 %v2112, 126
  %v2236 = vpop.permute.xlu0 %2235
  %2237 = vrot.lane.b32.xlu0 %v2113, 126
  %v2238 = vpop.permute.xlu0 %2237
  %2239 = vrot.lane.b32.xlu0 %v2114, 126
  %v2240 = vpop.permute.xlu0 %2239
  %2241 = vrot.lane.b32.xlu0 %v2115, 126
  %v2242 = vpop.permute.xlu0 %2241
  %2243 = vrot.lane.b32.xlu0 %v2116, 126
  %v2244 = vpop.permute.xlu0 %2243
  %v2245 = vsel %vm1088, %v2118, 129.0
  %v2246 = vsel %vm1088, %v2120, 129.0
  %v2247 = vsel %vm1088, %v2122, 129.0
  %v2248 = vsel %vm1088, %v2124, 129.0
  %v2249 = vsel %vm1088, %v2126, 129.0
  %v2250 = vsel %vm1088, %v2128, 129.0
  %v2251 = vsel %vm1088, %v2130, 129.0
  %v2252 = vsel %vm1088, %v2132, 129.0
  %v2253 = vsel %vm1088, %v2134, 129.0
  %v2254 = vsel %vm1088, %v2136, 129.0
  %v2255 = vsel %vm1088, %v2138, 129.0
  %v2256 = vsel %vm1088, %v2140, 129.0
  %v2257 = vsel %vm1088, %v2142, 129.0
  %v2258 = vsel %vm1088, %v2144, 129.0
  %v2259 = vsel %vm1088, %v2146, 129.0
  %v2260 = vsel %vm1088, %v2148, 129.0
  %v2261 = vsel %vm1088, %v2150, 129.0
  %v2262 = vsel %vm1088, %v2152, 129.0
  %v2263 = vsel %vm1088, %v2154, 129.0
  %v2264 = vsel %vm1088, %v2156, 129.0
  %v2265 = vsel %vm1088, %v2158, 129.0
  %v2266 = vsel %vm1088, %v2160, 129.0
  %v2267 = vsel %vm1088, %v2162, 129.0
  %v2268 = vsel %vm1088, %v2164, 129.0
  %v2269 = vsel %vm1088, %v2166, 129.0
  %v2270 = vsel %vm1088, %v2168, 129.0
  %v2271 = vsel %vm1088, %v2170, 129.0
  %v2272 = vsel %vm1088, %v2172, 129.0
  %v2273 = vsel %vm1088, %v2174, 129.0
  %v2274 = vsel %vm1088, %v2176, 129.0
  %v2275 = vsel %vm1088, %v2178, 129.0
  %v2276 = vsel %vm1088, %v2180, 129.0
  %v2277 = vsel %vm1088, %v2182, 129.0
  %v2278 = vsel %vm1088, %v2184, 129.0
  %v2279 = vsel %vm1088, %v2186, 129.0
  %v2280 = vsel %vm1088, %v2188, 129.0
  %v2281 = vsel %vm1088, %v2190, 129.0
  %v2282 = vsel %vm1088, %v2192, 129.0
  %v2283 = vsel %vm1088, %v2194, 129.0
  %v2284 = vsel %vm1088, %v2196, 129.0
  %v2285 = vsel %vm1088, %v2198, 129.0
  %v2286 = vsel %vm1088, %v2200, 129.0
  %v2287 = vsel %vm1088, %v2202, 129.0
  %v2288 = vsel %vm1088, %v2204, 129.0
  %v2289 = vsel %vm1088, %v2206, 129.0
  %v2290 = vsel %vm1088, %v2208, 129.0
  %v2291 = vsel %vm1088, %v2210, 129.0
  %v2292 = vsel %vm1088, %v2212, 129.0
  %v2293 = vsel %vm1088, %v2214, 129.0
  %v2294 = vsel %vm1088, %v2216, 129.0
  %v2295 = vsel %vm1088, %v2218, 129.0
  %v2296 = vsel %vm1088, %v2220, 129.0
  %v2297 = vsel %vm1088, %v2222, 129.0
  %v2298 = vsel %vm1088, %v2224, 129.0
  %v2299 = vsel %vm1088, %v2226, 129.0
  %v2300 = vsel %vm1088, %v2228, 129.0
  %v2301 = vsel %vm1088, %v2230, 129.0
  %v2302 = vsel %vm1088, %v2232, 129.0
  %v2303 = vsel %vm1088, %v2234, 129.0
  %v2304 = vsel %vm1088, %v2236, 129.0
  %v2305 = vsel %vm1088, %v2238, 129.0
  %v2306 = vsel %vm1088, %v2240, 129.0
  %v2307 = vsel %vm1088, %v2242, 129.0
  %v2308 = vsel %vm1088, %v2244, 129.0
  %v2309 = vmin.f32 %v2053, %v2245
  %v2310 = vmin.f32 %v2054, %v2246
  %v2311 = vmin.f32 %v2055, %v2247
  %v2312 = vmin.f32 %v2056, %v2248
  %v2313 = vmin.f32 %v2057, %v2249
  %v2314 = vmin.f32 %v2058, %v2250
  %v2315 = vmin.f32 %v2059, %v2251
  %v2316 = vmin.f32 %v2060, %v2252
  %v2317 = vmin.f32 %v2061, %v2253
  %v2318 = vmin.f32 %v2062, %v2254
  %v2319 = vmin.f32 %v2063, %v2255
  %v2320 = vmin.f32 %v2064, %v2256
  %v2321 = vmin.f32 %v2065, %v2257
  %v2322 = vmin.f32 %v2066, %v2258
  %v2323 = vmin.f32 %v2067, %v2259
  %v2324 = vmin.f32 %v2068, %v2260
  %v2325 = vmin.f32 %v2069, %v2261
  %v2326 = vmin.f32 %v2070, %v2262
  %v2327 = vmin.f32 %v2071, %v2263
  %v2328 = vmin.f32 %v2072, %v2264
  %v2329 = vmin.f32 %v2073, %v2265
  %v2330 = vmin.f32 %v2074, %v2266
  %v2331 = vmin.f32 %v2075, %v2267
  %v2332 = vmin.f32 %v2076, %v2268
  %v2333 = vmin.f32 %v2077, %v2269
  %v2334 = vmin.f32 %v2078, %v2270
  %v2335 = vmin.f32 %v2079, %v2271
  %v2336 = vmin.f32 %v2080, %v2272
  %v2337 = vmin.f32 %v2081, %v2273
  %v2338 = vmin.f32 %v2082, %v2274
  %v2339 = vmin.f32 %v2083, %v2275
  %v2340 = vmin.f32 %v2084, %v2276
  %v2341 = vmin.f32 %v2085, %v2277
  %v2342 = vmin.f32 %v2086, %v2278
  %v2343 = vmin.f32 %v2087, %v2279
  %v2344 = vmin.f32 %v2088, %v2280
  %v2345 = vmin.f32 %v2089, %v2281
  %v2346 = vmin.f32 %v2090, %v2282
  %v2347 = vmin.f32 %v2091, %v2283
  %v2348 = vmin.f32 %v2092, %v2284
  %v2349 = vmin.f32 %v2093, %v2285
  %v2350 = vmin.f32 %v2094, %v2286
  %v2351 = vmin.f32 %v2095, %v2287
  %v2352 = vmin.f32 %v2096, %v2288
  %v2353 = vmin.f32 %v2097, %v2289
  %v2354 = vmin.f32 %v2098, %v2290
  %v2355 = vmin.f32 %v2099, %v2291
  %v2356 = vmin.f32 %v2100, %v2292
  %v2357 = vmin.f32 %v2101, %v2293
  %v2358 = vmin.f32 %v2102, %v2294
  %v2359 = vmin.f32 %v2103, %v2295
  %v2360 = vmin.f32 %v2104, %v2296
  %v2361 = vmin.f32 %v2105, %v2297
  %v2362 = vmin.f32 %v2106, %v2298
  %v2363 = vmin.f32 %v2107, %v2299
  %v2364 = vmin.f32 %v2108, %v2300
  %v2365 = vmin.f32 %v2109, %v2301
  %v2366 = vmin.f32 %v2110, %v2302
  %v2367 = vmin.f32 %v2111, %v2303
  %v2368 = vmin.f32 %v2112, %v2304
  %v2369 = vmin.f32 %v2113, %v2305
  %v2370 = vmin.f32 %v2114, %v2306
  %v2371 = vmin.f32 %v2115, %v2307
  %v2372 = vmin.f32 %v2116, %v2308
  %vm2373 = vcmp.eq.f32.partialorder %v1284, %v2309
  %vm2374 = vcmp.eq.f32.partialorder %v1284, %v2310
  %vm2375 = vcmp.eq.f32.partialorder %v1284, %v2311
  %vm2376 = vcmp.eq.f32.partialorder %v1284, %v2312
  %vm2377 = vcmp.eq.f32.partialorder %v1284, %v2313
  %vm2378 = vcmp.eq.f32.partialorder %v1284, %v2314
  %vm2379 = vcmp.eq.f32.partialorder %v1284, %v2315
  %vm2380 = vcmp.eq.f32.partialorder %v1284, %v2316
  %vm2381 = vcmp.eq.f32.partialorder %v1284, %v2317
  %vm2382 = vcmp.eq.f32.partialorder %v1284, %v2318
  %vm2383 = vcmp.eq.f32.partialorder %v1284, %v2319
  %vm2384 = vcmp.eq.f32.partialorder %v1284, %v2320
  %vm2385 = vcmp.eq.f32.partialorder %v1284, %v2321
  %vm2386 = vcmp.eq.f32.partialorder %v1284, %v2322
  %vm2387 = vcmp.eq.f32.partialorder %v1284, %v2323
  %vm2388 = vcmp.eq.f32.partialorder %v1284, %v2324
  %vm2389 = vcmp.eq.f32.partialorder %v1284, %v2325
  %vm2390 = vcmp.eq.f32.partialorder %v1284, %v2326
  %vm2391 = vcmp.eq.f32.partialorder %v1284, %v2327
  %vm2392 = vcmp.eq.f32.partialorder %v1284, %v2328
  %vm2393 = vcmp.eq.f32.partialorder %v1284, %v2329
  %vm2394 = vcmp.eq.f32.partialorder %v1284, %v2330
  %vm2395 = vcmp.eq.f32.partialorder %v1284, %v2331
  %vm2396 = vcmp.eq.f32.partialorder %v1284, %v2332
  %vm2397 = vcmp.eq.f32.partialorder %v1284, %v2333
  %vm2398 = vcmp.eq.f32.partialorder %v1284, %v2334
  %vm2399 = vcmp.eq.f32.partialorder %v1284, %v2335
  %vm2400 = vcmp.eq.f32.partialorder %v1284, %v2336
  %vm2401 = vcmp.eq.f32.partialorder %v1284, %v2337
  %vm2402 = vcmp.eq.f32.partialorder %v1284, %v2338
  %vm2403 = vcmp.eq.f32.partialorder %v1284, %v2339
  %vm2404 = vcmp.eq.f32.partialorder %v1284, %v2340
  %vm2405 = vcmp.eq.f32.partialorder %v1284, %v2341
  %vm2406 = vcmp.eq.f32.partialorder %v1284, %v2342
  %vm2407 = vcmp.eq.f32.partialorder %v1284, %v2343
  %vm2408 = vcmp.eq.f32.partialorder %v1284, %v2344
  %vm2409 = vcmp.eq.f32.partialorder %v1284, %v2345
  %vm2410 = vcmp.eq.f32.partialorder %v1284, %v2346
  %vm2411 = vcmp.eq.f32.partialorder %v1284, %v2347
  %vm2412 = vcmp.eq.f32.partialorder %v1284, %v2348
  %vm2413 = vcmp.eq.f32.partialorder %v1284, %v2349
  %vm2414 = vcmp.eq.f32.partialorder %v1284, %v2350
  %vm2415 = vcmp.eq.f32.partialorder %v1284, %v2351
  %vm2416 = vcmp.eq.f32.partialorder %v1284, %v2352
  %vm2417 = vcmp.eq.f32.partialorder %v1284, %v2353
  %vm2418 = vcmp.eq.f32.partialorder %v1284, %v2354
  %vm2419 = vcmp.eq.f32.partialorder %v1284, %v2355
  %vm2420 = vcmp.eq.f32.partialorder %v1284, %v2356
  %vm2421 = vcmp.eq.f32.partialorder %v1284, %v2357
  %vm2422 = vcmp.eq.f32.partialorder %v1284, %v2358
  %vm2423 = vcmp.eq.f32.partialorder %v1284, %v2359
  %vm2424 = vcmp.eq.f32.partialorder %v1284, %v2360
  %vm2425 = vcmp.eq.f32.partialorder %v1284, %v2361
  %vm2426 = vcmp.eq.f32.partialorder %v1284, %v2362
  %vm2427 = vcmp.eq.f32.partialorder %v1284, %v2363
  %vm2428 = vcmp.eq.f32.partialorder %v1284, %v2364
  %vm2429 = vcmp.eq.f32.partialorder %v1284, %v2365
  %vm2430 = vcmp.eq.f32.partialorder %v1284, %v2366
  %vm2431 = vcmp.eq.f32.partialorder %v1284, %v2367
  %vm2432 = vcmp.eq.f32.partialorder %v1284, %v2368
  %vm2433 = vcmp.eq.f32.partialorder %v1284, %v2369
  %vm2434 = vcmp.eq.f32.partialorder %v1284, %v2370
  %vm2435 = vcmp.eq.f32.partialorder %v1284, %v2371
  %vm2436 = vcmp.eq.f32.partialorder %v1284, %v2372
  %v2437 = vsel %vm2373, 1.0, 0.0
  %v2438 = vsel %vm2374, 1.0, 0.0
  %v2439 = vsel %vm2375, 1.0, 0.0
  %v2440 = vsel %vm2376, 1.0, 0.0
  %v2441 = vsel %vm2377, 1.0, 0.0
  %v2442 = vsel %vm2378, 1.0, 0.0
  %v2443 = vsel %vm2379, 1.0, 0.0
  %v2444 = vsel %vm2380, 1.0, 0.0
  %v2445 = vsel %vm2381, 1.0, 0.0
  %v2446 = vsel %vm2382, 1.0, 0.0
  %v2447 = vsel %vm2383, 1.0, 0.0
  %v2448 = vsel %vm2384, 1.0, 0.0
  %v2449 = vsel %vm2385, 1.0, 0.0
  %v2450 = vsel %vm2386, 1.0, 0.0
  %v2451 = vsel %vm2387, 1.0, 0.0
  %v2452 = vsel %vm2388, 1.0, 0.0
  %v2453 = vsel %vm2389, 1.0, 0.0
  %v2454 = vsel %vm2390, 1.0, 0.0
  %v2455 = vsel %vm2391, 1.0, 0.0
  %v2456 = vsel %vm2392, 1.0, 0.0
  %v2457 = vsel %vm2393, 1.0, 0.0
  %v2458 = vsel %vm2394, 1.0, 0.0
  %v2459 = vsel %vm2395, 1.0, 0.0
  %v2460 = vsel %vm2396, 1.0, 0.0
  %v2461 = vsel %vm2397, 1.0, 0.0
  %v2462 = vsel %vm2398, 1.0, 0.0
  %v2463 = vsel %vm2399, 1.0, 0.0
  %v2464 = vsel %vm2400, 1.0, 0.0
  %v2465 = vsel %vm2401, 1.0, 0.0
  %v2466 = vsel %vm2402, 1.0, 0.0
  %v2467 = vsel %vm2403, 1.0, 0.0
  %v2468 = vsel %vm2404, 1.0, 0.0
  %v2469 = vsel %vm2405, 1.0, 0.0
  %v2470 = vsel %vm2406, 1.0, 0.0
  %v2471 = vsel %vm2407, 1.0, 0.0
  %v2472 = vsel %vm2408, 1.0, 0.0
  %v2473 = vsel %vm2409, 1.0, 0.0
  %v2474 = vsel %vm2410, 1.0, 0.0
  %v2475 = vsel %vm2411, 1.0, 0.0
  %v2476 = vsel %vm2412, 1.0, 0.0
  %v2477 = vsel %vm2413, 1.0, 0.0
  %v2478 = vsel %vm2414, 1.0, 0.0
  %v2479 = vsel %vm2415, 1.0, 0.0
  %v2480 = vsel %vm2416, 1.0, 0.0
  %v2481 = vsel %vm2417, 1.0, 0.0
  %v2482 = vsel %vm2418, 1.0, 0.0
  %v2483 = vsel %vm2419, 1.0, 0.0
  %v2484 = vsel %vm2420, 1.0, 0.0
  %v2485 = vsel %vm2421, 1.0, 0.0
  %v2486 = vsel %vm2422, 1.0, 0.0
  %v2487 = vsel %vm2423, 1.0, 0.0
  %v2488 = vsel %vm2424, 1.0, 0.0
  %v2489 = vsel %vm2425, 1.0, 0.0
  %v2490 = vsel %vm2426, 1.0, 0.0
  %v2491 = vsel %vm2427, 1.0, 0.0
  %v2492 = vsel %vm2428, 1.0, 0.0
  %v2493 = vsel %vm2429, 1.0, 0.0
  %v2494 = vsel %vm2430, 1.0, 0.0
  %v2495 = vsel %vm2431, 1.0, 0.0
  %v2496 = vsel %vm2432, 1.0, 0.0
  %v2497 = vsel %vm2433, 1.0, 0.0
  %v2498 = vsel %vm2434, 1.0, 0.0
  %v2499 = vsel %vm2435, 1.0, 0.0
  %v2500 = vsel %vm2436, 1.0, 0.0
  %v2501 = vld [vmem:[%s3] sm:$0xf]
  %v2502 = vld [vmem:[%s3 + $0x4] sm:$0xf]
  %v2503 = vld [vmem:[%s3 + $0x8] sm:$0xf]
  %v2504 = vld [vmem:[%s3 + $0xc] sm:$0xf]
  %v2505 = vld [vmem:[%s3 + $0x10] sm:$0xf]
  %v2506 = vld [vmem:[%s3 + $0x14] sm:$0xf]
  %v2507 = vld [vmem:[%s3 + $0x18] sm:$0xf]
  %v2508 = vld [vmem:[%s3 + $0x1c] sm:$0xf]
  %v2509 = vld [vmem:[%s3 + $0x20] sm:$0xf]
  %v2510 = vld [vmem:[%s3 + $0x24] sm:$0xf]
  %v2511 = vld [vmem:[%s3 + $0x28] sm:$0xf]
  %v2512 = vld [vmem:[%s3 + $0x2c] sm:$0xf]
  %v2513 = vld [vmem:[%s3 + $0x30] sm:$0xf]
  %v2514 = vld [vmem:[%s3 + $0x34] sm:$0xf]
  %v2515 = vld [vmem:[%s3 + $0x38] sm:$0xf]
  %v2516 = vld [vmem:[%s3 + $0x3c] sm:$0xf]
  %v2517 = vld [vmem:[%s5] sm:$0xf]
  %v2518 = vld [vmem:[%s5 + $0x4] sm:$0xf]
  %v2519 = vld [vmem:[%s5 + $0x8] sm:$0xf]
  %v2520 = vld [vmem:[%s5 + $0xc] sm:$0xf]
  %v2521 = vld [vmem:[%s5 + $0x10] sm:$0xf]
  %v2522 = vld [vmem:[%s5 + $0x14] sm:$0xf]
  %v2523 = vld [vmem:[%s5 + $0x18] sm:$0xf]
  %v2524 = vld [vmem:[%s5 + $0x1c] sm:$0xf]
  %v2525 = vld [vmem:[%s5 + $0x20] sm:$0xf]
  %v2526 = vld [vmem:[%s5 + $0x24] sm:$0xf]
  %v2527 = vld [vmem:[%s5 + $0x28] sm:$0xf]
  %v2528 = vld [vmem:[%s5 + $0x2c] sm:$0xf]
  %v2529 = vld [vmem:[%s5 + $0x30] sm:$0xf]
  %v2530 = vld [vmem:[%s5 + $0x34] sm:$0xf]
  %v2531 = vld [vmem:[%s5 + $0x38] sm:$0xf]
  %v2532 = vld [vmem:[%s5 + $0x3c] sm:$0xf]
  %v2533 = vlaneseq
  %v2534 = vshrl.u32 %v2533, 7
  %v2535 = vsub.s32 0, %v2534
  %v2536 = vrot.slane %v155, %v2535
  %2538 = vset.pattern.permute.xlu0 0
  %2539 = vperm.xlu0 %2538, %v88
  %v2540 = vpop.permute.xlu0 %2539
  %2543 = vset.pattern.permute.xlu0 0
  %2544 = vperm.xlu0 %2543, %v89
  %v2545 = vpop.permute.xlu0 %2544
  %2548 = vset.pattern.permute.xlu0 0
  %2549 = vperm.xlu0 %2548, %v90
  %v2550 = vpop.permute.xlu0 %2549
  %2553 = vset.pattern.permute.xlu0 0
  %2554 = vperm.xlu0 %2553, %v91
  %v2555 = vpop.permute.xlu0 %2554
  %2558 = vset.pattern.permute.xlu0 0
  %2559 = vperm.xlu0 %2558, %v92
  %v2560 = vpop.permute.xlu0 %2559
  %2563 = vset.pattern.permute.xlu0 0
  %2564 = vperm.xlu0 %2563, %v93
  %v2565 = vpop.permute.xlu0 %2564
  %2568 = vset.pattern.permute.xlu0 0
  %2569 = vperm.xlu0 %2568, %v94
  %v2570 = vpop.permute.xlu0 %2569
  %2573 = vset.pattern.permute.xlu0 0
  %2574 = vperm.xlu0 %2573, %v95
  %v2575 = vpop.permute.xlu0 %2574
  %2578 = vset.pattern.permute.xlu0 0
  %2579 = vperm.xlu0 %2578, %v96
  %v2580 = vpop.permute.xlu0 %2579
  %2583 = vset.pattern.permute.xlu0 0
  %2584 = vperm.xlu0 %2583, %v97
  %v2585 = vpop.permute.xlu0 %2584
  %2588 = vset.pattern.permute.xlu0 0
  %2589 = vperm.xlu0 %2588, %v98
  %v2590 = vpop.permute.xlu0 %2589
  %2593 = vset.pattern.permute.xlu0 0
  %2594 = vperm.xlu0 %2593, %v99
  %v2595 = vpop.permute.xlu0 %2594
  %2598 = vset.pattern.permute.xlu0 0
  %2599 = vperm.xlu0 %2598, %v100
  %v2600 = vpop.permute.xlu0 %2599
  %2603 = vset.pattern.permute.xlu0 0
  %2604 = vperm.xlu0 %2603, %v101
  %v2605 = vpop.permute.xlu0 %2604
  %2608 = vset.pattern.permute.xlu0 0
  %2609 = vperm.xlu0 %2608, %v102
  %v2610 = vpop.permute.xlu0 %2609
  %2613 = vset.pattern.permute.xlu0 0
  %2614 = vperm.xlu0 %2613, %v103
  %v2615 = vpop.permute.xlu0 %2614
  %2618 = vset.pattern.permute.xlu0 0
  %2619 = vperm.xlu0 %2618, %v104
  %v2620 = vpop.permute.xlu0 %2619
  %2623 = vset.pattern.permute.xlu0 0
  %2624 = vperm.xlu0 %2623, %v105
  %v2625 = vpop.permute.xlu0 %2624
  %2628 = vset.pattern.permute.xlu0 0
  %2629 = vperm.xlu0 %2628, %v106
  %v2630 = vpop.permute.xlu0 %2629
  %2633 = vset.pattern.permute.xlu0 0
  %2634 = vperm.xlu0 %2633, %v107
  %v2635 = vpop.permute.xlu0 %2634
  %2638 = vset.pattern.permute.xlu0 0
  %2639 = vperm.xlu0 %2638, %v108
  %v2640 = vpop.permute.xlu0 %2639
  %2643 = vset.pattern.permute.xlu0 0
  %2644 = vperm.xlu0 %2643, %v109
  %v2645 = vpop.permute.xlu0 %2644
  %2648 = vset.pattern.permute.xlu0 0
  %2649 = vperm.xlu0 %2648, %v110
  %v2650 = vpop.permute.xlu0 %2649
  %2653 = vset.pattern.permute.xlu0 0
  %2654 = vperm.xlu0 %2653, %v111
  %v2655 = vpop.permute.xlu0 %2654
  %2658 = vset.pattern.permute.xlu0 0
  %2659 = vperm.xlu0 %2658, %v112
  %v2660 = vpop.permute.xlu0 %2659
  %2663 = vset.pattern.permute.xlu0 0
  %2664 = vperm.xlu0 %2663, %v113
  %v2665 = vpop.permute.xlu0 %2664
  %2668 = vset.pattern.permute.xlu0 0
  %2669 = vperm.xlu0 %2668, %v114
  %v2670 = vpop.permute.xlu0 %2669
  %2673 = vset.pattern.permute.xlu0 0
  %2674 = vperm.xlu0 %2673, %v115
  %v2675 = vpop.permute.xlu0 %2674
  %2678 = vset.pattern.permute.xlu0 0
  %2679 = vperm.xlu0 %2678, %v116
  %v2680 = vpop.permute.xlu0 %2679
  %2683 = vset.pattern.permute.xlu0 0
  %2684 = vperm.xlu0 %2683, %v117
  %v2685 = vpop.permute.xlu0 %2684
  %2688 = vset.pattern.permute.xlu0 0
  %2689 = vperm.xlu0 %2688, %v118
  %v2690 = vpop.permute.xlu0 %2689
  %2693 = vset.pattern.permute.xlu0 0
  %2694 = vperm.xlu0 %2693, %v119
  %v2695 = vpop.permute.xlu0 %2694
  %2698 = vset.pattern.permute.xlu0 0
  %2699 = vperm.xlu0 %2698, %v120
  %v2700 = vpop.permute.xlu0 %2699
  %2703 = vset.pattern.permute.xlu0 0
  %2704 = vperm.xlu0 %2703, %v121
  %v2705 = vpop.permute.xlu0 %2704
  %2708 = vset.pattern.permute.xlu0 0
  %2709 = vperm.xlu0 %2708, %v122
  %v2710 = vpop.permute.xlu0 %2709
  %2713 = vset.pattern.permute.xlu0 0
  %2714 = vperm.xlu0 %2713, %v123
  %v2715 = vpop.permute.xlu0 %2714
  %2718 = vset.pattern.permute.xlu0 0
  %2719 = vperm.xlu0 %2718, %v124
  %v2720 = vpop.permute.xlu0 %2719
  %2723 = vset.pattern.permute.xlu0 0
  %2724 = vperm.xlu0 %2723, %v125
  %v2725 = vpop.permute.xlu0 %2724
  %2728 = vset.pattern.permute.xlu0 0
  %2729 = vperm.xlu0 %2728, %v126
  %v2730 = vpop.permute.xlu0 %2729
  %2733 = vset.pattern.permute.xlu0 0
  %2734 = vperm.xlu0 %2733, %v127
  %v2735 = vpop.permute.xlu0 %2734
  %2738 = vset.pattern.permute.xlu0 0
  %2739 = vperm.xlu0 %2738, %v128
  %v2740 = vpop.permute.xlu0 %2739
  %2743 = vset.pattern.permute.xlu0 0
  %2744 = vperm.xlu0 %2743, %v129
  %v2745 = vpop.permute.xlu0 %2744
  %2748 = vset.pattern.permute.xlu0 0
  %2749 = vperm.xlu0 %2748, %v130
  %v2750 = vpop.permute.xlu0 %2749
  %2753 = vset.pattern.permute.xlu0 0
  %2754 = vperm.xlu0 %2753, %v131
  %v2755 = vpop.permute.xlu0 %2754
  %2758 = vset.pattern.permute.xlu0 0
  %2759 = vperm.xlu0 %2758, %v132
  %v2760 = vpop.permute.xlu0 %2759
  %2763 = vset.pattern.permute.xlu0 0
  %2764 = vperm.xlu0 %2763, %v133
  %v2765 = vpop.permute.xlu0 %2764
  %2768 = vset.pattern.permute.xlu0 0
  %2769 = vperm.xlu0 %2768, %v134
  %v2770 = vpop.permute.xlu0 %2769
  %2773 = vset.pattern.permute.xlu0 0
  %2774 = vperm.xlu0 %2773, %v135
  %v2775 = vpop.permute.xlu0 %2774
  %2778 = vset.pattern.permute.xlu0 0
  %2779 = vperm.xlu0 %2778, %v136
  %v2780 = vpop.permute.xlu0 %2779
  %2783 = vset.pattern.permute.xlu0 0
  %2784 = vperm.xlu0 %2783, %v137
  %v2785 = vpop.permute.xlu0 %2784
  %2788 = vset.pattern.permute.xlu0 0
  %2789 = vperm.xlu0 %2788, %v138
  %v2790 = vpop.permute.xlu0 %2789
  %2793 = vset.pattern.permute.xlu0 0
  %2794 = vperm.xlu0 %2793, %v139
  %v2795 = vpop.permute.xlu0 %2794
  %2798 = vset.pattern.permute.xlu0 0
  %2799 = vperm.xlu0 %2798, %v140
  %v2800 = vpop.permute.xlu0 %2799
  %2803 = vset.pattern.permute.xlu0 0
  %2804 = vperm.xlu0 %2803, %v141
  %v2805 = vpop.permute.xlu0 %2804
  %2808 = vset.pattern.permute.xlu0 0
  %2809 = vperm.xlu0 %2808, %v142
  %v2810 = vpop.permute.xlu0 %2809
  %2813 = vset.pattern.permute.xlu0 0
  %2814 = vperm.xlu0 %2813, %v143
  %v2815 = vpop.permute.xlu0 %2814
  %2818 = vset.pattern.permute.xlu0 0
  %2819 = vperm.xlu0 %2818, %v144
  %v2820 = vpop.permute.xlu0 %2819
  %2823 = vset.pattern.permute.xlu0 0
  %2824 = vperm.xlu0 %2823, %v145
  %v2825 = vpop.permute.xlu0 %2824
  %2828 = vset.pattern.permute.xlu0 0
  %2829 = vperm.xlu0 %2828, %v146
  %v2830 = vpop.permute.xlu0 %2829
  %2833 = vset.pattern.permute.xlu0 0
  %2834 = vperm.xlu0 %2833, %v147
  %v2835 = vpop.permute.xlu0 %2834
  %2838 = vset.pattern.permute.xlu0 0
  %2839 = vperm.xlu0 %2838, %v148
  %v2840 = vpop.permute.xlu0 %2839
  %2843 = vset.pattern.permute.xlu0 0
  %2844 = vperm.xlu0 %2843, %v149
  %v2845 = vpop.permute.xlu0 %2844
  %2848 = vset.pattern.permute.xlu0 0
  %2849 = vperm.xlu0 %2848, %v150
  %v2850 = vpop.permute.xlu0 %2849
  %2853 = vset.pattern.permute.xlu0 0
  %2854 = vperm.xlu0 %2853, %v151
  %v2855 = vpop.permute.xlu0 %2854
  %v2857 = vmul.f32 %v2536, %v2540
  %v2858 = vmul.f32 %v2536, %v2545
  %v2859 = vmul.f32 %v2536, %v2550
  %v2860 = vmul.f32 %v2536, %v2555
  %v2861 = vmul.f32 %v2536, %v2560
  %v2862 = vmul.f32 %v2536, %v2565
  %v2863 = vmul.f32 %v2536, %v2570
  %v2864 = vmul.f32 %v2536, %v2575
  %v2865 = vmul.f32 %v2536, %v2580
  %v2866 = vmul.f32 %v2536, %v2585
  %v2867 = vmul.f32 %v2536, %v2590
  %v2868 = vmul.f32 %v2536, %v2595
  %v2869 = vmul.f32 %v2536, %v2600
  %v2870 = vmul.f32 %v2536, %v2605
  %v2871 = vmul.f32 %v2536, %v2610
  %v2872 = vmul.f32 %v2536, %v2615
  %v2873 = vmul.f32 %v2536, %v2620
  %v2874 = vmul.f32 %v2536, %v2625
  %v2875 = vmul.f32 %v2536, %v2630
  %v2876 = vmul.f32 %v2536, %v2635
  %v2877 = vmul.f32 %v2536, %v2640
  %v2878 = vmul.f32 %v2536, %v2645
  %v2879 = vmul.f32 %v2536, %v2650
  %v2880 = vmul.f32 %v2536, %v2655
  %v2881 = vmul.f32 %v2536, %v2660
  %v2882 = vmul.f32 %v2536, %v2665
  %v2883 = vmul.f32 %v2536, %v2670
  %v2884 = vmul.f32 %v2536, %v2675
  %v2885 = vmul.f32 %v2536, %v2680
  %v2886 = vmul.f32 %v2536, %v2685
  %v2887 = vmul.f32 %v2536, %v2690
  %v2888 = vmul.f32 %v2536, %v2695
  %v2889 = vmul.f32 %v2536, %v2700
  %v2890 = vmul.f32 %v2536, %v2705
  %v2891 = vmul.f32 %v2536, %v2710
  %v2892 = vmul.f32 %v2536, %v2715
  %v2893 = vmul.f32 %v2536, %v2720
  %v2894 = vmul.f32 %v2536, %v2725
  %v2895 = vmul.f32 %v2536, %v2730
  %v2896 = vmul.f32 %v2536, %v2735
  %v2897 = vmul.f32 %v2536, %v2740
  %v2898 = vmul.f32 %v2536, %v2745
  %v2899 = vmul.f32 %v2536, %v2750
  %v2900 = vmul.f32 %v2536, %v2755
  %v2901 = vmul.f32 %v2536, %v2760
  %v2902 = vmul.f32 %v2536, %v2765
  %v2903 = vmul.f32 %v2536, %v2770
  %v2904 = vmul.f32 %v2536, %v2775
  %v2905 = vmul.f32 %v2536, %v2780
  %v2906 = vmul.f32 %v2536, %v2785
  %v2907 = vmul.f32 %v2536, %v2790
  %v2908 = vmul.f32 %v2536, %v2795
  %v2909 = vmul.f32 %v2536, %v2800
  %v2910 = vmul.f32 %v2536, %v2805
  %v2911 = vmul.f32 %v2536, %v2810
  %v2912 = vmul.f32 %v2536, %v2815
  %v2913 = vmul.f32 %v2536, %v2820
  %v2914 = vmul.f32 %v2536, %v2825
  %v2915 = vmul.f32 %v2536, %v2830
  %v2916 = vmul.f32 %v2536, %v2835
  %v2917 = vmul.f32 %v2536, %v2840
  %v2918 = vmul.f32 %v2536, %v2845
  %v2919 = vmul.f32 %v2536, %v2850
  %v2920 = vmul.f32 %v2536, %v2855
  %v2921 = vsub.f32 1.0, %v155
  %v2922 = vmul.f32 %v24, %v2540
  %v2923 = vmul.f32 %v25, %v2545
  %v2924 = vmul.f32 %v26, %v2550
  %v2925 = vmul.f32 %v27, %v2555
  %v2926 = vmul.f32 %v28, %v2560
  %v2927 = vmul.f32 %v29, %v2565
  %v2928 = vmul.f32 %v30, %v2570
  %v2929 = vmul.f32 %v31, %v2575
  %v2930 = vmul.f32 %v32, %v2580
  %v2931 = vmul.f32 %v33, %v2585
  %v2932 = vmul.f32 %v34, %v2590
  %v2933 = vmul.f32 %v35, %v2595
  %v2934 = vmul.f32 %v36, %v2600
  %v2935 = vmul.f32 %v37, %v2605
  %v2936 = vmul.f32 %v38, %v2610
  %v2937 = vmul.f32 %v39, %v2615
  %v2938 = vmul.f32 %v40, %v2620
  %v2939 = vmul.f32 %v41, %v2625
  %v2940 = vmul.f32 %v42, %v2630
  %v2941 = vmul.f32 %v43, %v2635
  %v2942 = vmul.f32 %v44, %v2640
  %v2943 = vmul.f32 %v45, %v2645
  %v2944 = vmul.f32 %v46, %v2650
  %v2945 = vmul.f32 %v47, %v2655
  %v2946 = vmul.f32 %v48, %v2660
  %v2947 = vmul.f32 %v49, %v2665
  %v2948 = vmul.f32 %v50, %v2670
  %v2949 = vmul.f32 %v51, %v2675
  %v2950 = vmul.f32 %v52, %v2680
  %v2951 = vmul.f32 %v53, %v2685
  %v2952 = vmul.f32 %v54, %v2690
  %v2953 = vmul.f32 %v55, %v2695
  %v2954 = vmul.f32 %v56, %v2700
  %v2955 = vmul.f32 %v57, %v2705
  %v2956 = vmul.f32 %v58, %v2710
  %v2957 = vmul.f32 %v59, %v2715
  %v2958 = vmul.f32 %v60, %v2720
  %v2959 = vmul.f32 %v61, %v2725
  %v2960 = vmul.f32 %v62, %v2730
  %v2961 = vmul.f32 %v63, %v2735
  %v2962 = vmul.f32 %v64, %v2740
  %v2963 = vmul.f32 %v65, %v2745
  %v2964 = vmul.f32 %v66, %v2750
  %v2965 = vmul.f32 %v67, %v2755
  %v2966 = vmul.f32 %v68, %v2760
  %v2967 = vmul.f32 %v69, %v2765
  %v2968 = vmul.f32 %v70, %v2770
  %v2969 = vmul.f32 %v71, %v2775
  %v2970 = vmul.f32 %v72, %v2780
  %v2971 = vmul.f32 %v73, %v2785
  %v2972 = vmul.f32 %v74, %v2790
  %v2973 = vmul.f32 %v75, %v2795
  %v2974 = vmul.f32 %v76, %v2800
  %v2975 = vmul.f32 %v77, %v2805
  %v2976 = vmul.f32 %v78, %v2810
  %v2977 = vmul.f32 %v79, %v2815
  %v2978 = vmul.f32 %v80, %v2820
  %v2979 = vmul.f32 %v81, %v2825
  %v2980 = vmul.f32 %v82, %v2830
  %v2981 = vmul.f32 %v83, %v2835
  %v2982 = vmul.f32 %v84, %v2840
  %v2983 = vmul.f32 %v85, %v2845
  %v2984 = vmul.f32 %v86, %v2850
  %v2985 = vmul.f32 %v87, %v2855
  %v2986 = vpack.c.bf16 %v2923, %v2922
  %v2987 = vpack.c.bf16 %v2925, %v2924
  %v2988 = vpack.c.bf16 %v2927, %v2926
  %v2989 = vpack.c.bf16 %v2929, %v2928
  %v2990 = vpack.c.bf16 %v2931, %v2930
  %v2991 = vpack.c.bf16 %v2933, %v2932
  %v2992 = vpack.c.bf16 %v2935, %v2934
  %v2993 = vpack.c.bf16 %v2937, %v2936
  %v2994 = vpack.c.bf16 %v2939, %v2938
  %v2995 = vpack.c.bf16 %v2941, %v2940
  %v2996 = vpack.c.bf16 %v2943, %v2942
  %v2997 = vpack.c.bf16 %v2945, %v2944
  %v2998 = vpack.c.bf16 %v2947, %v2946
  %v2999 = vpack.c.bf16 %v2949, %v2948
  %v3000 = vpack.c.bf16 %v2951, %v2950
  %v3001 = vpack.c.bf16 %v2953, %v2952
  %v3002 = vpack.c.bf16 %v2955, %v2954
  %v3003 = vpack.c.bf16 %v2957, %v2956
  %v3004 = vpack.c.bf16 %v2959, %v2958
  %v3005 = vpack.c.bf16 %v2961, %v2960
  %v3006 = vpack.c.bf16 %v2963, %v2962
  %v3007 = vpack.c.bf16 %v2965, %v2964
  %v3008 = vpack.c.bf16 %v2967, %v2966
  %v3009 = vpack.c.bf16 %v2969, %v2968
  %v3010 = vpack.c.bf16 %v2971, %v2970
  %v3011 = vpack.c.bf16 %v2973, %v2972
  %v3012 = vpack.c.bf16 %v2975, %v2974
  %v3013 = vpack.c.bf16 %v2977, %v2976
  %v3014 = vpack.c.bf16 %v2979, %v2978
  %v3015 = vpack.c.bf16 %v2981, %v2980
  %v3016 = vpack.c.bf16 %v2983, %v2982
  %v3017 = vpack.c.bf16 %v2985, %v2984
  %v3018 = vunpack.c.l.bf16 %v2986
  %v3019 = vunpack.c.h.bf16 %v2986
  %v3020 = vunpack.c.l.bf16 %v2987
  %v3021 = vunpack.c.h.bf16 %v2987
  %v3022 = vunpack.c.l.bf16 %v2988
  %v3023 = vunpack.c.h.bf16 %v2988
  %v3024 = vunpack.c.l.bf16 %v2989
  %v3025 = vunpack.c.h.bf16 %v2989
  %v3026 = vunpack.c.l.bf16 %v2990
  %v3027 = vunpack.c.h.bf16 %v2990
  %v3028 = vunpack.c.l.bf16 %v2991
  %v3029 = vunpack.c.h.bf16 %v2991
  %v3030 = vunpack.c.l.bf16 %v2992
  %v3031 = vunpack.c.h.bf16 %v2992
  %v3032 = vunpack.c.l.bf16 %v2993
  %v3033 = vunpack.c.h.bf16 %v2993
  %v3034 = vunpack.c.l.bf16 %v2994
  %v3035 = vunpack.c.h.bf16 %v2994
  %v3036 = vunpack.c.l.bf16 %v2995
  %v3037 = vunpack.c.h.bf16 %v2995
  %v3038 = vunpack.c.l.bf16 %v2996
  %v3039 = vunpack.c.h.bf16 %v2996
  %v3040 = vunpack.c.l.bf16 %v2997
  %v3041 = vunpack.c.h.bf16 %v2997
  %v3042 = vunpack.c.l.bf16 %v2998
  %v3043 = vunpack.c.h.bf16 %v2998
  %v3044 = vunpack.c.l.bf16 %v2999
  %v3045 = vunpack.c.h.bf16 %v2999
  %v3046 = vunpack.c.l.bf16 %v3000
  %v3047 = vunpack.c.h.bf16 %v3000
  %v3048 = vunpack.c.l.bf16 %v3001
  %v3049 = vunpack.c.h.bf16 %v3001
  %v3050 = vunpack.c.l.bf16 %v3002
  %v3051 = vunpack.c.h.bf16 %v3002
  %v3052 = vunpack.c.l.bf16 %v3003
  %v3053 = vunpack.c.h.bf16 %v3003
  %v3054 = vunpack.c.l.bf16 %v3004
  %v3055 = vunpack.c.h.bf16 %v3004
  %v3056 = vunpack.c.l.bf16 %v3005
  %v3057 = vunpack.c.h.bf16 %v3005
  %v3058 = vunpack.c.l.bf16 %v3006
  %v3059 = vunpack.c.h.bf16 %v3006
  %v3060 = vunpack.c.l.bf16 %v3007
  %v3061 = vunpack.c.h.bf16 %v3007
  %v3062 = vunpack.c.l.bf16 %v3008
  %v3063 = vunpack.c.h.bf16 %v3008
  %v3064 = vunpack.c.l.bf16 %v3009
  %v3065 = vunpack.c.h.bf16 %v3009
  %v3066 = vunpack.c.l.bf16 %v3010
  %v3067 = vunpack.c.h.bf16 %v3010
  %v3068 = vunpack.c.l.bf16 %v3011
  %v3069 = vunpack.c.h.bf16 %v3011
  %v3070 = vunpack.c.l.bf16 %v3012
  %v3071 = vunpack.c.h.bf16 %v3012
  %v3072 = vunpack.c.l.bf16 %v3013
  %v3073 = vunpack.c.h.bf16 %v3013
  %v3074 = vunpack.c.l.bf16 %v3014
  %v3075 = vunpack.c.h.bf16 %v3014
  %v3076 = vunpack.c.l.bf16 %v3015
  %v3077 = vunpack.c.h.bf16 %v3015
  %v3078 = vunpack.c.l.bf16 %v3016
  %v3079 = vunpack.c.h.bf16 %v3016
  %v3080 = vunpack.c.l.bf16 %v3017
  %v3081 = vunpack.c.h.bf16 %v3017
  %v3082 = vsub.f32 %v2922, %v3018
  %v3083 = vsub.f32 %v2923, %v3019
  %v3084 = vsub.f32 %v2924, %v3020
  %v3085 = vsub.f32 %v2925, %v3021
  %v3086 = vsub.f32 %v2926, %v3022
  %v3087 = vsub.f32 %v2927, %v3023
  %v3088 = vsub.f32 %v2928, %v3024
  %v3089 = vsub.f32 %v2929, %v3025
  %v3090 = vsub.f32 %v2930, %v3026
  %v3091 = vsub.f32 %v2931, %v3027
  %v3092 = vsub.f32 %v2932, %v3028
  %v3093 = vsub.f32 %v2933, %v3029
  %v3094 = vsub.f32 %v2934, %v3030
  %v3095 = vsub.f32 %v2935, %v3031
  %v3096 = vsub.f32 %v2936, %v3032
  %v3097 = vsub.f32 %v2937, %v3033
  %v3098 = vsub.f32 %v2938, %v3034
  %v3099 = vsub.f32 %v2939, %v3035
  %v3100 = vsub.f32 %v2940, %v3036
  %v3101 = vsub.f32 %v2941, %v3037
  %v3102 = vsub.f32 %v2942, %v3038
  %v3103 = vsub.f32 %v2943, %v3039
  %v3104 = vsub.f32 %v2944, %v3040
  %v3105 = vsub.f32 %v2945, %v3041
  %v3106 = vsub.f32 %v2946, %v3042
  %v3107 = vsub.f32 %v2947, %v3043
  %v3108 = vsub.f32 %v2948, %v3044
  %v3109 = vsub.f32 %v2949, %v3045
  %v3110 = vsub.f32 %v2950, %v3046
  %v3111 = vsub.f32 %v2951, %v3047
  %v3112 = vsub.f32 %v2952, %v3048
  %v3113 = vsub.f32 %v2953, %v3049
  %v3114 = vsub.f32 %v2954, %v3050
  %v3115 = vsub.f32 %v2955, %v3051
  %v3116 = vsub.f32 %v2956, %v3052
  %v3117 = vsub.f32 %v2957, %v3053
  %v3118 = vsub.f32 %v2958, %v3054
  %v3119 = vsub.f32 %v2959, %v3055
  %v3120 = vsub.f32 %v2960, %v3056
  %v3121 = vsub.f32 %v2961, %v3057
  %v3122 = vsub.f32 %v2962, %v3058
  %v3123 = vsub.f32 %v2963, %v3059
  %v3124 = vsub.f32 %v2964, %v3060
  %v3125 = vsub.f32 %v2965, %v3061
  %v3126 = vsub.f32 %v2966, %v3062
  %v3127 = vsub.f32 %v2967, %v3063
  %v3128 = vsub.f32 %v2968, %v3064
  %v3129 = vsub.f32 %v2969, %v3065
  %v3130 = vsub.f32 %v2970, %v3066
  %v3131 = vsub.f32 %v2971, %v3067
  %v3132 = vsub.f32 %v2972, %v3068
  %v3133 = vsub.f32 %v2973, %v3069
  %v3134 = vsub.f32 %v2974, %v3070
  %v3135 = vsub.f32 %v2975, %v3071
  %v3136 = vsub.f32 %v2976, %v3072
  %v3137 = vsub.f32 %v2977, %v3073
  %v3138 = vsub.f32 %v2978, %v3074
  %v3139 = vsub.f32 %v2979, %v3075
  %v3140 = vsub.f32 %v2980, %v3076
  %v3141 = vsub.f32 %v2981, %v3077
  %v3142 = vsub.f32 %v2982, %v3078
  %v3143 = vsub.f32 %v2983, %v3079
  %v3144 = vsub.f32 %v2984, %v3080
  %v3145 = vsub.f32 %v2985, %v3081
  %v3146 = vpack.c.bf16 %v3083, %v3082
  %v3147 = vpack.c.bf16 %v3085, %v3084
  %v3148 = vpack.c.bf16 %v3087, %v3086
  %v3149 = vpack.c.bf16 %v3089, %v3088
  %v3150 = vpack.c.bf16 %v3091, %v3090
  %v3151 = vpack.c.bf16 %v3093, %v3092
  %v3152 = vpack.c.bf16 %v3095, %v3094
  %v3153 = vpack.c.bf16 %v3097, %v3096
  %v3154 = vpack.c.bf16 %v3099, %v3098
  %v3155 = vpack.c.bf16 %v3101, %v3100
  %v3156 = vpack.c.bf16 %v3103, %v3102
  %v3157 = vpack.c.bf16 %v3105, %v3104
  %v3158 = vpack.c.bf16 %v3107, %v3106
  %v3159 = vpack.c.bf16 %v3109, %v3108
  %v3160 = vpack.c.bf16 %v3111, %v3110
  %v3161 = vpack.c.bf16 %v3113, %v3112
  %v3162 = vpack.c.bf16 %v3115, %v3114
  %v3163 = vpack.c.bf16 %v3117, %v3116
  %v3164 = vpack.c.bf16 %v3119, %v3118
  %v3165 = vpack.c.bf16 %v3121, %v3120
  %v3166 = vpack.c.bf16 %v3123, %v3122
  %v3167 = vpack.c.bf16 %v3125, %v3124
  %v3168 = vpack.c.bf16 %v3127, %v3126
  %v3169 = vpack.c.bf16 %v3129, %v3128
  %v3170 = vpack.c.bf16 %v3131, %v3130
  %v3171 = vpack.c.bf16 %v3133, %v3132
  %v3172 = vpack.c.bf16 %v3135, %v3134
  %v3173 = vpack.c.bf16 %v3137, %v3136
  %v3174 = vpack.c.bf16 %v3139, %v3138
  %v3175 = vpack.c.bf16 %v3141, %v3140
  %v3176 = vpack.c.bf16 %v3143, %v3142
  %v3177 = vpack.c.bf16 %v3145, %v3144
  %v3178 = vunpack.c.l.bf16 %v3146
  %v3179 = vunpack.c.h.bf16 %v3146
  %v3180 = vunpack.c.l.bf16 %v3147
  %v3181 = vunpack.c.h.bf16 %v3147
  %v3182 = vunpack.c.l.bf16 %v3148
  %v3183 = vunpack.c.h.bf16 %v3148
  %v3184 = vunpack.c.l.bf16 %v3149
  %v3185 = vunpack.c.h.bf16 %v3149
  %v3186 = vunpack.c.l.bf16 %v3150
  %v3187 = vunpack.c.h.bf16 %v3150
  %v3188 = vunpack.c.l.bf16 %v3151
  %v3189 = vunpack.c.h.bf16 %v3151
  %v3190 = vunpack.c.l.bf16 %v3152
  %v3191 = vunpack.c.h.bf16 %v3152
  %v3192 = vunpack.c.l.bf16 %v3153
  %v3193 = vunpack.c.h.bf16 %v3153
  %v3194 = vunpack.c.l.bf16 %v3154
  %v3195 = vunpack.c.h.bf16 %v3154
  %v3196 = vunpack.c.l.bf16 %v3155
  %v3197 = vunpack.c.h.bf16 %v3155
  %v3198 = vunpack.c.l.bf16 %v3156
  %v3199 = vunpack.c.h.bf16 %v3156
  %v3200 = vunpack.c.l.bf16 %v3157
  %v3201 = vunpack.c.h.bf16 %v3157
  %v3202 = vunpack.c.l.bf16 %v3158
  %v3203 = vunpack.c.h.bf16 %v3158
  %v3204 = vunpack.c.l.bf16 %v3159
  %v3205 = vunpack.c.h.bf16 %v3159
  %v3206 = vunpack.c.l.bf16 %v3160
  %v3207 = vunpack.c.h.bf16 %v3160
  %v3208 = vunpack.c.l.bf16 %v3161
  %v3209 = vunpack.c.h.bf16 %v3161
  %v3210 = vunpack.c.l.bf16 %v3162
  %v3211 = vunpack.c.h.bf16 %v3162
  %v3212 = vunpack.c.l.bf16 %v3163
  %v3213 = vunpack.c.h.bf16 %v3163
  %v3214 = vunpack.c.l.bf16 %v3164
  %v3215 = vunpack.c.h.bf16 %v3164
  %v3216 = vunpack.c.l.bf16 %v3165
  %v3217 = vunpack.c.h.bf16 %v3165
  %v3218 = vunpack.c.l.bf16 %v3166
  %v3219 = vunpack.c.h.bf16 %v3166
  %v3220 = vunpack.c.l.bf16 %v3167
  %v3221 = vunpack.c.h.bf16 %v3167
  %v3222 = vunpack.c.l.bf16 %v3168
  %v3223 = vunpack.c.h.bf16 %v3168
  %v3224 = vunpack.c.l.bf16 %v3169
  %v3225 = vunpack.c.h.bf16 %v3169
  %v3226 = vunpack.c.l.bf16 %v3170
  %v3227 = vunpack.c.h.bf16 %v3170
  %v3228 = vunpack.c.l.bf16 %v3171
  %v3229 = vunpack.c.h.bf16 %v3171
  %v3230 = vunpack.c.l.bf16 %v3172
  %v3231 = vunpack.c.h.bf16 %v3172
  %v3232 = vunpack.c.l.bf16 %v3173
  %v3233 = vunpack.c.h.bf16 %v3173
  %v3234 = vunpack.c.l.bf16 %v3174
  %v3235 = vunpack.c.h.bf16 %v3174
  %v3236 = vunpack.c.l.bf16 %v3175
  %v3237 = vunpack.c.h.bf16 %v3175
  %v3238 = vunpack.c.l.bf16 %v3176
  %v3239 = vunpack.c.h.bf16 %v3176
  %v3240 = vunpack.c.l.bf16 %v3177
  %v3241 = vunpack.c.h.bf16 %v3177
  %v3242 = vsub.f32 %v3082, %v3178
  %v3243 = vsub.f32 %v3083, %v3179
  %v3244 = vsub.f32 %v3084, %v3180
  %v3245 = vsub.f32 %v3085, %v3181
  %v3246 = vsub.f32 %v3086, %v3182
  %v3247 = vsub.f32 %v3087, %v3183
  %v3248 = vsub.f32 %v3088, %v3184
  %v3249 = vsub.f32 %v3089, %v3185
  %v3250 = vsub.f32 %v3090, %v3186
  %v3251 = vsub.f32 %v3091, %v3187
  %v3252 = vsub.f32 %v3092, %v3188
  %v3253 = vsub.f32 %v3093, %v3189
  %v3254 = vsub.f32 %v3094, %v3190
  %v3255 = vsub.f32 %v3095, %v3191
  %v3256 = vsub.f32 %v3096, %v3192
  %v3257 = vsub.f32 %v3097, %v3193
  %v3258 = vsub.f32 %v3098, %v3194
  %v3259 = vsub.f32 %v3099, %v3195
  %v3260 = vsub.f32 %v3100, %v3196
  %v3261 = vsub.f32 %v3101, %v3197
  %v3262 = vsub.f32 %v3102, %v3198
  %v3263 = vsub.f32 %v3103, %v3199
  %v3264 = vsub.f32 %v3104, %v3200
  %v3265 = vsub.f32 %v3105, %v3201
  %v3266 = vsub.f32 %v3106, %v3202
  %v3267 = vsub.f32 %v3107, %v3203
  %v3268 = vsub.f32 %v3108, %v3204
  %v3269 = vsub.f32 %v3109, %v3205
  %v3270 = vsub.f32 %v3110, %v3206
  %v3271 = vsub.f32 %v3111, %v3207
  %v3272 = vsub.f32 %v3112, %v3208
  %v3273 = vsub.f32 %v3113, %v3209
  %v3274 = vsub.f32 %v3114, %v3210
  %v3275 = vsub.f32 %v3115, %v3211
  %v3276 = vsub.f32 %v3116, %v3212
  %v3277 = vsub.f32 %v3117, %v3213
  %v3278 = vsub.f32 %v3118, %v3214
  %v3279 = vsub.f32 %v3119, %v3215
  %v3280 = vsub.f32 %v3120, %v3216
  %v3281 = vsub.f32 %v3121, %v3217
  %v3282 = vsub.f32 %v3122, %v3218
  %v3283 = vsub.f32 %v3123, %v3219
  %v3284 = vsub.f32 %v3124, %v3220
  %v3285 = vsub.f32 %v3125, %v3221
  %v3286 = vsub.f32 %v3126, %v3222
  %v3287 = vsub.f32 %v3127, %v3223
  %v3288 = vsub.f32 %v3128, %v3224
  %v3289 = vsub.f32 %v3129, %v3225
  %v3290 = vsub.f32 %v3130, %v3226
  %v3291 = vsub.f32 %v3131, %v3227
  %v3292 = vsub.f32 %v3132, %v3228
  %v3293 = vsub.f32 %v3133, %v3229
  %v3294 = vsub.f32 %v3134, %v3230
  %v3295 = vsub.f32 %v3135, %v3231
  %v3296 = vsub.f32 %v3136, %v3232
  %v3297 = vsub.f32 %v3137, %v3233
  %v3298 = vsub.f32 %v3138, %v3234
  %v3299 = vsub.f32 %v3139, %v3235
  %v3300 = vsub.f32 %v3140, %v3236
  %v3301 = vsub.f32 %v3141, %v3237
  %v3302 = vsub.f32 %v3142, %v3238
  %v3303 = vsub.f32 %v3143, %v3239
  %v3304 = vsub.f32 %v3144, %v3240
  %v3305 = vsub.f32 %v3145, %v3241
  %v3306 = vpack.c.bf16 %v3243, %v3242
  %v3307 = vpack.c.bf16 %v3245, %v3244
  %v3308 = vpack.c.bf16 %v3247, %v3246
  %v3309 = vpack.c.bf16 %v3249, %v3248
  %v3310 = vpack.c.bf16 %v3251, %v3250
  %v3311 = vpack.c.bf16 %v3253, %v3252
  %v3312 = vpack.c.bf16 %v3255, %v3254
  %v3313 = vpack.c.bf16 %v3257, %v3256
  %v3314 = vpack.c.bf16 %v3259, %v3258
  %v3315 = vpack.c.bf16 %v3261, %v3260
  %v3316 = vpack.c.bf16 %v3263, %v3262
  %v3317 = vpack.c.bf16 %v3265, %v3264
  %v3318 = vpack.c.bf16 %v3267, %v3266
  %v3319 = vpack.c.bf16 %v3269, %v3268
  %v3320 = vpack.c.bf16 %v3271, %v3270
  %v3321 = vpack.c.bf16 %v3273, %v3272
  %v3322 = vpack.c.bf16 %v3275, %v3274
  %v3323 = vpack.c.bf16 %v3277, %v3276
  %v3324 = vpack.c.bf16 %v3279, %v3278
  %v3325 = vpack.c.bf16 %v3281, %v3280
  %v3326 = vpack.c.bf16 %v3283, %v3282
  %v3327 = vpack.c.bf16 %v3285, %v3284
  %v3328 = vpack.c.bf16 %v3287, %v3286
  %v3329 = vpack.c.bf16 %v3289, %v3288
  %v3330 = vpack.c.bf16 %v3291, %v3290
  %v3331 = vpack.c.bf16 %v3293, %v3292
  %v3332 = vpack.c.bf16 %v3295, %v3294
  %v3333 = vpack.c.bf16 %v3297, %v3296
  %v3334 = vpack.c.bf16 %v3299, %v3298
  %v3335 = vpack.c.bf16 %v3301, %v3300
  %v3336 = vpack.c.bf16 %v3303, %v3302
  %v3337 = vpack.c.bf16 %v3305, %v3304
  %v3354 = vunpack.c.l.b16 %v2517
  %v3355 = vunpack.c.l.b16 %v2518
  %v3356 = vunpack.c.l.b16 %v2519
  %v3357 = vunpack.c.l.b16 %v2520
  %v3358 = vunpack.c.l.b16 %v2521
  %v3359 = vunpack.c.l.b16 %v2522
  %v3360 = vunpack.c.l.b16 %v2523
  %v3361 = vunpack.c.l.b16 %v2524
  %v3362 = vunpack.c.l.b16 %v2525
  %v3363 = vunpack.c.l.b16 %v2526
  %v3364 = vunpack.c.l.b16 %v2527
  %v3365 = vunpack.c.l.b16 %v2528
  %v3366 = vunpack.c.l.b16 %v2529
  %v3367 = vunpack.c.l.b16 %v2530
  %v3368 = vunpack.c.l.b16 %v2531
  %v3369 = vunpack.c.l.b16 %v2532
  %v3370 = vpack.c.b16 %v3355, %v3354
  %v3371 = vpack.c.b16 %v3357, %v3356
  %v3372 = vpack.c.b16 %v3359, %v3358
  %v3373 = vpack.c.b16 %v3361, %v3360
  %v3374 = vpack.c.b16 %v3363, %v3362
  %v3375 = vpack.c.b16 %v3365, %v3364
  %v3376 = vpack.c.b16 %v3367, %v3366
  %v3377 = vpack.c.b16 %v3369, %v3368
  %3386 = vmatprep.subr.bf16.mxu0 0
  %3387 = vmatpush1.bf16.msra.mxu0 %v3377
  %3388 = vmatprep.subr.bf16.mxu0 0
  %3389 = vmatpush1.bf16.msra.mxu0 %v3376
  %3390 = vmatprep.subr.bf16.mxu0 0
  %3391 = vmatpush1.bf16.msra.mxu0 %v3375
  %3392 = vmatprep.subr.bf16.mxu0 0
  %3393 = vmatpush1.bf16.msra.mxu0 %v3374
  %3394 = vmatprep.subr.bf16.mxu0 0
  %3395 = vmatpush1.bf16.msra.mxu0 %v3373
  %3396 = vmatprep.subr.bf16.mxu0 0
  %3397 = vmatpush1.bf16.msra.mxu0 %v3372
  %3398 = vmatprep.subr.bf16.mxu0 0
  %3399 = vmatpush1.bf16.msra.mxu0 %v3371
  %3400 = vmatprep.subr.bf16.mxu0 0
  %3401 = vmatpush1.bf16.msra.mxu0 %v3370
  %3402 = vmatprep.subr.bf16.mxu0 0
  %3403 = vmatpush2.bf16.msra.mxu0 0
  %3404 = vmatprep.subr.bf16.mxu0 0
  %3405 = vmatpush2.bf16.msra.mxu0 0
  %3406 = vmatprep.subr.bf16.mxu0 0
  %3407 = vmatpush2.bf16.msra.mxu0 0
  %3408 = vmatprep.subr.bf16.mxu0 0
  %3409 = vmatpush2.bf16.msra.mxu0 0
  %3410 = vmatprep.subr.bf16.mxu0 0
  %3411 = vmatpush2.bf16.msra.mxu0 0
  %3412 = vmatprep.subr.bf16.mxu0 0
  %3413 = vmatpush2.bf16.msra.mxu0 0
  %3414 = vmatprep.subr.bf16.mxu0 0
  %3415 = vmatpush2.bf16.msra.mxu0 0
  %3416 = vmatprep.subr.bf16.mxu0 0
  %3417 = vmatpush2.bf16.msra.mxu0 0
  %3418 = vmatprep.mubr.bf16.mxu0 0
  %3419 = vmatmul.mubr.bf16.gmra.mxu0 %v3146
  %v3420 = vpop.f32.mrf.mxu0
  %v3421 = vadd.f32 0.0, %v3420
  %v3422 = vpop.f32.mrf.mxu0
  %v3423 = vpop.f32.mrf.mxu0
  %v3424 = vadd.f32 0.0, %v3423
  %v3425 = vpop.f32.mrf.mxu0
  %3426 = vmatprep.mubr.bf16.mxu0 0
  %3427 = vmatmul.mubr.bf16.gmra.mxu0 %v3147
  %v3428 = vpop.f32.mrf.mxu0
  %v3429 = vadd.f32 0.0, %v3428
  %v3430 = vpop.f32.mrf.mxu0
  %v3431 = vpop.f32.mrf.mxu0
  %v3432 = vadd.f32 0.0, %v3431
  %v3433 = vpop.f32.mrf.mxu0
  %3434 = vmatprep.mubr.bf16.mxu0 0
  %3435 = vmatmul.mubr.bf16.gmra.mxu0 %v3148
  %v3436 = vpop.f32.mrf.mxu0
  %v3437 = vadd.f32 0.0, %v3436
  %v3438 = vpop.f32.mrf.mxu0
  %v3439 = vpop.f32.mrf.mxu0
  %v3440 = vadd.f32 0.0, %v3439
  %v3441 = vpop.f32.mrf.mxu0
  %3442 = vmatprep.mubr.bf16.mxu0 0
  %3443 = vmatmul.mubr.bf16.gmra.mxu0 %v3149
  %v3444 = vpop.f32.mrf.mxu0
  %v3445 = vadd.f32 0.0, %v3444
  %v3446 = vpop.f32.mrf.mxu0
  %v3447 = vpop.f32.mrf.mxu0
  %v3448 = vadd.f32 0.0, %v3447
  %v3449 = vpop.f32.mrf.mxu0
  %3450 = vmatprep.mubr.bf16.mxu0 0
  %3451 = vmatmul.mubr.bf16.gmra.mxu0 %v3150
  %v3452 = vpop.f32.mrf.mxu0
  %v3453 = vadd.f32 0.0, %v3452
  %v3454 = vpop.f32.mrf.mxu0
  %v3455 = vpop.f32.mrf.mxu0
  %v3456 = vadd.f32 0.0, %v3455
  %v3457 = vpop.f32.mrf.mxu0
  %3458 = vmatprep.mubr.bf16.mxu0 0
  %3459 = vmatmul.mubr.bf16.gmra.mxu0 %v3151
  %v3460 = vpop.f32.mrf.mxu0
  %v3461 = vadd.f32 0.0, %v3460
  %v3462 = vpop.f32.mrf.mxu0
  %v3463 = vpop.f32.mrf.mxu0
  %v3464 = vadd.f32 0.0, %v3463
  %v3465 = vpop.f32.mrf.mxu0
  %3466 = vmatprep.mubr.bf16.mxu0 0
  %3467 = vmatmul.mubr.bf16.gmra.mxu0 %v3152
  %v3468 = vpop.f32.mrf.mxu0
  %v3469 = vadd.f32 0.0, %v3468
  %v3470 = vpop.f32.mrf.mxu0
  %v3471 = vpop.f32.mrf.mxu0
  %v3472 = vadd.f32 0.0, %v3471
  %v3473 = vpop.f32.mrf.mxu0
  %3474 = vmatprep.mubr.bf16.mxu0 0
  %3475 = vmatmul.mubr.bf16.gmra.mxu0 %v3153
  %v3476 = vpop.f32.mrf.mxu0
  %v3477 = vadd.f32 0.0, %v3476
  %v3478 = vpop.f32.mrf.mxu0
  %v3479 = vpop.f32.mrf.mxu0
  %v3480 = vadd.f32 0.0, %v3479
  %v3481 = vpop.f32.mrf.mxu0
  %3482 = vmatprep.mubr.bf16.mxu0 0
  %3483 = vmatmul.mubr.bf16.gmra.mxu0 %v3154
  %v3484 = vpop.f32.mrf.mxu0
  %v3485 = vadd.f32 0.0, %v3484
  %v3486 = vpop.f32.mrf.mxu0
  %v3487 = vpop.f32.mrf.mxu0
  %v3488 = vadd.f32 0.0, %v3487
  %v3489 = vpop.f32.mrf.mxu0
  %3490 = vmatprep.mubr.bf16.mxu0 0
  %3491 = vmatmul.mubr.bf16.gmra.mxu0 %v3155
  %v3492 = vpop.f32.mrf.mxu0
  %v3493 = vadd.f32 0.0, %v3492
  %v3494 = vpop.f32.mrf.mxu0
  %v3495 = vpop.f32.mrf.mxu0
  %v3496 = vadd.f32 0.0, %v3495
  %v3497 = vpop.f32.mrf.mxu0
  %3498 = vmatprep.mubr.bf16.mxu0 0
  %3499 = vmatmul.mubr.bf16.gmra.mxu0 %v3156
  %v3500 = vpop.f32.mrf.mxu0
  %v3501 = vadd.f32 0.0, %v3500
  %v3502 = vpop.f32.mrf.mxu0
  %v3503 = vpop.f32.mrf.mxu0
  %v3504 = vadd.f32 0.0, %v3503
  %v3505 = vpop.f32.mrf.mxu0
  %3506 = vmatprep.mubr.bf16.mxu0 0
  %3507 = vmatmul.mubr.bf16.gmra.mxu0 %v3157
  %v3508 = vpop.f32.mrf.mxu0
  %v3509 = vadd.f32 0.0, %v3508
  %v3510 = vpop.f32.mrf.mxu0
  %v3511 = vpop.f32.mrf.mxu0
  %v3512 = vadd.f32 0.0, %v3511
  %v3513 = vpop.f32.mrf.mxu0
  %3514 = vmatprep.mubr.bf16.mxu0 0
  %3515 = vmatmul.mubr.bf16.gmra.mxu0 %v3158
  %v3516 = vpop.f32.mrf.mxu0
  %v3517 = vadd.f32 0.0, %v3516
  %v3518 = vpop.f32.mrf.mxu0
  %v3519 = vpop.f32.mrf.mxu0
  %v3520 = vadd.f32 0.0, %v3519
  %v3521 = vpop.f32.mrf.mxu0
  %3522 = vmatprep.mubr.bf16.mxu0 0
  %3523 = vmatmul.mubr.bf16.gmra.mxu0 %v3159
  %v3524 = vpop.f32.mrf.mxu0
  %v3525 = vadd.f32 0.0, %v3524
  %v3526 = vpop.f32.mrf.mxu0
  %v3527 = vpop.f32.mrf.mxu0
  %v3528 = vadd.f32 0.0, %v3527
  %v3529 = vpop.f32.mrf.mxu0
  %3530 = vmatprep.mubr.bf16.mxu0 0
  %3531 = vmatmul.mubr.bf16.gmra.mxu0 %v3160
  %v3532 = vpop.f32.mrf.mxu0
  %v3533 = vadd.f32 0.0, %v3532
  %v3534 = vpop.f32.mrf.mxu0
  %v3535 = vpop.f32.mrf.mxu0
  %v3536 = vadd.f32 0.0, %v3535
  %v3537 = vpop.f32.mrf.mxu0
  %3538 = vmatprep.mubr.bf16.mxu0 0
  %3539 = vmatmul.mubr.bf16.gmra.mxu0 %v3161
  %v3540 = vpop.f32.mrf.mxu0
  %v3541 = vadd.f32 0.0, %v3540
  %v3542 = vpop.f32.mrf.mxu0
  %v3543 = vpop.f32.mrf.mxu0
  %v3544 = vadd.f32 0.0, %v3543
  %v3545 = vpop.f32.mrf.mxu0
  %3546 = vmatprep.mubr.bf16.mxu0 0
  %3547 = vmatmul.mubr.bf16.gmra.mxu0 %v3162
  %v3548 = vpop.f32.mrf.mxu0
  %v3549 = vadd.f32 0.0, %v3548
  %v3550 = vpop.f32.mrf.mxu0
  %v3551 = vpop.f32.mrf.mxu0
  %v3552 = vadd.f32 0.0, %v3551
  %v3553 = vpop.f32.mrf.mxu0
  %3554 = vmatprep.mubr.bf16.mxu0 0
  %3555 = vmatmul.mubr.bf16.gmra.mxu0 %v3163
  %v3556 = vpop.f32.mrf.mxu0
  %v3557 = vadd.f32 0.0, %v3556
  %v3558 = vpop.f32.mrf.mxu0
  %v3559 = vpop.f32.mrf.mxu0
  %v3560 = vadd.f32 0.0, %v3559
  %v3561 = vpop.f32.mrf.mxu0
  %3562 = vmatprep.mubr.bf16.mxu0 0
  %3563 = vmatmul.mubr.bf16.gmra.mxu0 %v3164
  %v3564 = vpop.f32.mrf.mxu0
  %v3565 = vadd.f32 0.0, %v3564
  %v3566 = vpop.f32.mrf.mxu0
  %v3567 = vpop.f32.mrf.mxu0
  %v3568 = vadd.f32 0.0, %v3567
  %v3569 = vpop.f32.mrf.mxu0
  %3570 = vmatprep.mubr.bf16.mxu0 0
  %3571 = vmatmul.mubr.bf16.gmra.mxu0 %v3165
  %v3572 = vpop.f32.mrf.mxu0
  %v3573 = vadd.f32 0.0, %v3572
  %v3574 = vpop.f32.mrf.mxu0
  %v3575 = vpop.f32.mrf.mxu0
  %v3576 = vadd.f32 0.0, %v3575
  %v3577 = vpop.f32.mrf.mxu0
  %3578 = vmatprep.mubr.bf16.mxu0 0
  %3579 = vmatmul.mubr.bf16.gmra.mxu0 %v3166
  %v3580 = vpop.f32.mrf.mxu0
  %v3581 = vadd.f32 0.0, %v3580
  %v3582 = vpop.f32.mrf.mxu0
  %v3583 = vpop.f32.mrf.mxu0
  %v3584 = vadd.f32 0.0, %v3583
  %v3585 = vpop.f32.mrf.mxu0
  %3586 = vmatprep.mubr.bf16.mxu0 0
  %3587 = vmatmul.mubr.bf16.gmra.mxu0 %v3167
  %v3588 = vpop.f32.mrf.mxu0
  %v3589 = vadd.f32 0.0, %v3588
  %v3590 = vpop.f32.mrf.mxu0
  %v3591 = vpop.f32.mrf.mxu0
  %v3592 = vadd.f32 0.0, %v3591
  %v3593 = vpop.f32.mrf.mxu0
  %3594 = vmatprep.mubr.bf16.mxu0 0
  %3595 = vmatmul.mubr.bf16.gmra.mxu0 %v3168
  %v3596 = vpop.f32.mrf.mxu0
  %v3597 = vadd.f32 0.0, %v3596
  %v3598 = vpop.f32.mrf.mxu0
  %v3599 = vpop.f32.mrf.mxu0
  %v3600 = vadd.f32 0.0, %v3599
  %v3601 = vpop.f32.mrf.mxu0
  %3602 = vmatprep.mubr.bf16.mxu0 0
  %3603 = vmatmul.mubr.bf16.gmra.mxu0 %v3169
  %v3604 = vpop.f32.mrf.mxu0
  %v3605 = vadd.f32 0.0, %v3604
  %v3606 = vpop.f32.mrf.mxu0
  %v3607 = vpop.f32.mrf.mxu0
  %v3608 = vadd.f32 0.0, %v3607
  %v3609 = vpop.f32.mrf.mxu0
  %3610 = vmatprep.mubr.bf16.mxu0 0
  %3611 = vmatmul.mubr.bf16.gmra.mxu0 %v3170
  %v3612 = vpop.f32.mrf.mxu0
  %v3613 = vadd.f32 0.0, %v3612
  %v3614 = vpop.f32.mrf.mxu0
  %v3615 = vpop.f32.mrf.mxu0
  %v3616 = vadd.f32 0.0, %v3615
  %v3617 = vpop.f32.mrf.mxu0
  %3618 = vmatprep.mubr.bf16.mxu0 0
  %3619 = vmatmul.mubr.bf16.gmra.mxu0 %v3171
  %v3620 = vpop.f32.mrf.mxu0
  %v3621 = vadd.f32 0.0, %v3620
  %v3622 = vpop.f32.mrf.mxu0
  %v3623 = vpop.f32.mrf.mxu0
  %v3624 = vadd.f32 0.0, %v3623
  %v3625 = vpop.f32.mrf.mxu0
  %3626 = vmatprep.mubr.bf16.mxu0 0
  %3627 = vmatmul.mubr.bf16.gmra.mxu0 %v3172
  %v3628 = vpop.f32.mrf.mxu0
  %v3629 = vadd.f32 0.0, %v3628
  %v3630 = vpop.f32.mrf.mxu0
  %v3631 = vpop.f32.mrf.mxu0
  %v3632 = vadd.f32 0.0, %v3631
  %v3633 = vpop.f32.mrf.mxu0
  %3634 = vmatprep.mubr.bf16.mxu0 0
  %3635 = vmatmul.mubr.bf16.gmra.mxu0 %v3173
  %v3636 = vpop.f32.mrf.mxu0
  %v3637 = vadd.f32 0.0, %v3636
  %v3638 = vpop.f32.mrf.mxu0
  %v3639 = vpop.f32.mrf.mxu0
  %v3640 = vadd.f32 0.0, %v3639
  %v3641 = vpop.f32.mrf.mxu0
  %3642 = vmatprep.mubr.bf16.mxu0 0
  %3643 = vmatmul.mubr.bf16.gmra.mxu0 %v3174
  %v3644 = vpop.f32.mrf.mxu0
  %v3645 = vadd.f32 0.0, %v3644
  %v3646 = vpop.f32.mrf.mxu0
  %v3647 = vpop.f32.mrf.mxu0
  %v3648 = vadd.f32 0.0, %v3647
  %v3649 = vpop.f32.mrf.mxu0
  %3650 = vmatprep.mubr.bf16.mxu0 0
  %3651 = vmatmul.mubr.bf16.gmra.mxu0 %v3175
  %v3652 = vpop.f32.mrf.mxu0
  %v3653 = vadd.f32 0.0, %v3652
  %v3654 = vpop.f32.mrf.mxu0
  %v3655 = vpop.f32.mrf.mxu0
  %v3656 = vadd.f32 0.0, %v3655
  %v3657 = vpop.f32.mrf.mxu0
  %3658 = vmatprep.mubr.bf16.mxu0 0
  %3659 = vmatmul.mubr.bf16.gmra.mxu0 %v3176
  %v3660 = vpop.f32.mrf.mxu0
  %v3661 = vadd.f32 0.0, %v3660
  %v3662 = vpop.f32.mrf.mxu0
  %v3663 = vpop.f32.mrf.mxu0
  %v3664 = vadd.f32 0.0, %v3663
  %v3665 = vpop.f32.mrf.mxu0
  %3666 = vmatprep.mubr.bf16.mxu0 0
  %3667 = vmatmul.mubr.bf16.gmra.mxu0 %v3177
  %v3668 = vpop.f32.mrf.mxu0
  %v3669 = vadd.f32 0.0, %v3668
  %v3670 = vpop.f32.mrf.mxu0
  %v3671 = vpop.f32.mrf.mxu0
  %v3672 = vadd.f32 0.0, %v3671
  %v3673 = vpop.f32.mrf.mxu0
  %3674 = vdwg.mxu0
  %3675 = vmatprep.subr.bf16.mxu0 0
  %3676 = vmatpush1.bf16.msra.mxu0 %v3377
  %3677 = vmatprep.subr.bf16.mxu0 0
  %3678 = vmatpush1.bf16.msra.mxu0 %v3376
  %3679 = vmatprep.subr.bf16.mxu0 0
  %3680 = vmatpush1.bf16.msra.mxu0 %v3375
  %3681 = vmatprep.subr.bf16.mxu0 0
  %3682 = vmatpush1.bf16.msra.mxu0 %v3374
  %3683 = vmatprep.subr.bf16.mxu0 0
  %3684 = vmatpush1.bf16.msra.mxu0 %v3373
  %3685 = vmatprep.subr.bf16.mxu0 0
  %3686 = vmatpush1.bf16.msra.mxu0 %v3372
  %3687 = vmatprep.subr.bf16.mxu0 0
  %3688 = vmatpush1.bf16.msra.mxu0 %v3371
  %3689 = vmatprep.subr.bf16.mxu0 0
  %3690 = vmatpush1.bf16.msra.mxu0 %v3370
  %3691 = vmatprep.subr.bf16.mxu0 0
  %3692 = vmatpush2.bf16.msra.mxu0 0
  %3693 = vmatprep.subr.bf16.mxu0 0
  %3694 = vmatpush2.bf16.msra.mxu0 0
  %3695 = vmatprep.subr.bf16.mxu0 0
  %3696 = vmatpush2.bf16.msra.mxu0 0
  %3697 = vmatprep.subr.bf16.mxu0 0
  %3698 = vmatpush2.bf16.msra.mxu0 0
  %3699 = vmatprep.subr.bf16.mxu0 0
  %3700 = vmatpush2.bf16.msra.mxu0 0
  %3701 = vmatprep.subr.bf16.mxu0 0
  %3702 = vmatpush2.bf16.msra.mxu0 0
  %3703 = vmatprep.subr.bf16.mxu0 0
  %3704 = vmatpush2.bf16.msra.mxu0 0
  %3705 = vmatprep.subr.bf16.mxu0 0
  %3706 = vmatpush2.bf16.msra.mxu0 0
  %3707 = vmatprep.mubr.bf16.mxu0 0
  %3708 = vmatmul.mubr.bf16.gmra.mxu0 %v2986
  %v3709 = vpop.f32.mrf.mxu0
  %v3710 = vadd.f32 %v3421, %v3709
  %v3711 = vpop.f32.mrf.mxu0
  %v3712 = vpop.f32.mrf.mxu0
  %v3713 = vadd.f32 %v3424, %v3712
  %v3714 = vpop.f32.mrf.mxu0
  %3715 = vmatprep.mubr.bf16.mxu0 0
  %3716 = vmatmul.mubr.bf16.gmra.mxu0 %v2987
  %v3717 = vpop.f32.mrf.mxu0
  %v3718 = vadd.f32 %v3429, %v3717
  %v3719 = vpop.f32.mrf.mxu0
  %v3720 = vpop.f32.mrf.mxu0
  %v3721 = vadd.f32 %v3432, %v3720
  %v3722 = vpop.f32.mrf.mxu0
  %3723 = vmatprep.mubr.bf16.mxu0 0
  %3724 = vmatmul.mubr.bf16.gmra.mxu0 %v2988
  %v3725 = vpop.f32.mrf.mxu0
  %v3726 = vadd.f32 %v3437, %v3725
  %v3727 = vpop.f32.mrf.mxu0
  %v3728 = vpop.f32.mrf.mxu0
  %v3729 = vadd.f32 %v3440, %v3728
  %v3730 = vpop.f32.mrf.mxu0
  %3731 = vmatprep.mubr.bf16.mxu0 0
  %3732 = vmatmul.mubr.bf16.gmra.mxu0 %v2989
  %v3733 = vpop.f32.mrf.mxu0
  %v3734 = vadd.f32 %v3445, %v3733
  %v3735 = vpop.f32.mrf.mxu0
  %v3736 = vpop.f32.mrf.mxu0
  %v3737 = vadd.f32 %v3448, %v3736
  %v3738 = vpop.f32.mrf.mxu0
  %3739 = vmatprep.mubr.bf16.mxu0 0
  %3740 = vmatmul.mubr.bf16.gmra.mxu0 %v2990
  %v3741 = vpop.f32.mrf.mxu0
  %v3742 = vadd.f32 %v3453, %v3741
  %v3743 = vpop.f32.mrf.mxu0
  %v3744 = vpop.f32.mrf.mxu0
  %v3745 = vadd.f32 %v3456, %v3744
  %v3746 = vpop.f32.mrf.mxu0
  %3747 = vmatprep.mubr.bf16.mxu0 0
  %3748 = vmatmul.mubr.bf16.gmra.mxu0 %v2991
  %v3749 = vpop.f32.mrf.mxu0
  %v3750 = vadd.f32 %v3461, %v3749
  %v3751 = vpop.f32.mrf.mxu0
  %v3752 = vpop.f32.mrf.mxu0
  %v3753 = vadd.f32 %v3464, %v3752
  %v3754 = vpop.f32.mrf.mxu0
  %3755 = vmatprep.mubr.bf16.mxu0 0
  %3756 = vmatmul.mubr.bf16.gmra.mxu0 %v2992
  %v3757 = vpop.f32.mrf.mxu0
  %v3758 = vadd.f32 %v3469, %v3757
  %v3759 = vpop.f32.mrf.mxu0
  %v3760 = vpop.f32.mrf.mxu0
  %v3761 = vadd.f32 %v3472, %v3760
  %v3762 = vpop.f32.mrf.mxu0
  %3763 = vmatprep.mubr.bf16.mxu0 0
  %3764 = vmatmul.mubr.bf16.gmra.mxu0 %v2993
  %v3765 = vpop.f32.mrf.mxu0
  %v3766 = vadd.f32 %v3477, %v3765
  %v3767 = vpop.f32.mrf.mxu0
  %v3768 = vpop.f32.mrf.mxu0
  %v3769 = vadd.f32 %v3480, %v3768
  %v3770 = vpop.f32.mrf.mxu0
  %3771 = vmatprep.mubr.bf16.mxu0 0
  %3772 = vmatmul.mubr.bf16.gmra.mxu0 %v2994
  %v3773 = vpop.f32.mrf.mxu0
  %v3774 = vadd.f32 %v3485, %v3773
  %v3775 = vpop.f32.mrf.mxu0
  %v3776 = vpop.f32.mrf.mxu0
  %v3777 = vadd.f32 %v3488, %v3776
  %v3778 = vpop.f32.mrf.mxu0
  %3779 = vmatprep.mubr.bf16.mxu0 0
  %3780 = vmatmul.mubr.bf16.gmra.mxu0 %v2995
  %v3781 = vpop.f32.mrf.mxu0
  %v3782 = vadd.f32 %v3493, %v3781
  %v3783 = vpop.f32.mrf.mxu0
  %v3784 = vpop.f32.mrf.mxu0
  %v3785 = vadd.f32 %v3496, %v3784
  %v3786 = vpop.f32.mrf.mxu0
  %3787 = vmatprep.mubr.bf16.mxu0 0
  %3788 = vmatmul.mubr.bf16.gmra.mxu0 %v2996
  %v3789 = vpop.f32.mrf.mxu0
  %v3790 = vadd.f32 %v3501, %v3789
  %v3791 = vpop.f32.mrf.mxu0
  %v3792 = vpop.f32.mrf.mxu0
  %v3793 = vadd.f32 %v3504, %v3792
  %v3794 = vpop.f32.mrf.mxu0
  %3795 = vmatprep.mubr.bf16.mxu0 0
  %3796 = vmatmul.mubr.bf16.gmra.mxu0 %v2997
  %v3797 = vpop.f32.mrf.mxu0
  %v3798 = vadd.f32 %v3509, %v3797
  %v3799 = vpop.f32.mrf.mxu0
  %v3800 = vpop.f32.mrf.mxu0
  %v3801 = vadd.f32 %v3512, %v3800
  %v3802 = vpop.f32.mrf.mxu0
  %3803 = vmatprep.mubr.bf16.mxu0 0
  %3804 = vmatmul.mubr.bf16.gmra.mxu0 %v2998
  %v3805 = vpop.f32.mrf.mxu0
  %v3806 = vadd.f32 %v3517, %v3805
  %v3807 = vpop.f32.mrf.mxu0
  %v3808 = vpop.f32.mrf.mxu0
  %v3809 = vadd.f32 %v3520, %v3808
  %v3810 = vpop.f32.mrf.mxu0
  %3811 = vmatprep.mubr.bf16.mxu0 0
  %3812 = vmatmul.mubr.bf16.gmra.mxu0 %v2999
  %v3813 = vpop.f32.mrf.mxu0
  %v3814 = vadd.f32 %v3525, %v3813
  %v3815 = vpop.f32.mrf.mxu0
  %v3816 = vpop.f32.mrf.mxu0
  %v3817 = vadd.f32 %v3528, %v3816
  %v3818 = vpop.f32.mrf.mxu0
  %3819 = vmatprep.mubr.bf16.mxu0 0
  %3820 = vmatmul.mubr.bf16.gmra.mxu0 %v3000
  %v3821 = vpop.f32.mrf.mxu0
  %v3822 = vadd.f32 %v3533, %v3821
  %v3823 = vpop.f32.mrf.mxu0
  %v3824 = vpop.f32.mrf.mxu0
  %v3825 = vadd.f32 %v3536, %v3824
  %v3826 = vpop.f32.mrf.mxu0
  %3827 = vmatprep.mubr.bf16.mxu0 0
  %3828 = vmatmul.mubr.bf16.gmra.mxu0 %v3001
  %v3829 = vpop.f32.mrf.mxu0
  %v3830 = vadd.f32 %v3541, %v3829
  %v3831 = vpop.f32.mrf.mxu0
  %v3832 = vpop.f32.mrf.mxu0
  %v3833 = vadd.f32 %v3544, %v3832
  %v3834 = vpop.f32.mrf.mxu0
  %3835 = vmatprep.mubr.bf16.mxu0 0
  %3836 = vmatmul.mubr.bf16.gmra.mxu0 %v3002
  %v3837 = vpop.f32.mrf.mxu0
  %v3838 = vadd.f32 %v3549, %v3837
  %v3839 = vpop.f32.mrf.mxu0
  %v3840 = vpop.f32.mrf.mxu0
  %v3841 = vadd.f32 %v3552, %v3840
  %v3842 = vpop.f32.mrf.mxu0
  %3843 = vmatprep.mubr.bf16.mxu0 0
  %3844 = vmatmul.mubr.bf16.gmra.mxu0 %v3003
  %v3845 = vpop.f32.mrf.mxu0
  %v3846 = vadd.f32 %v3557, %v3845
  %v3847 = vpop.f32.mrf.mxu0
  %v3848 = vpop.f32.mrf.mxu0
  %v3849 = vadd.f32 %v3560, %v3848
  %v3850 = vpop.f32.mrf.mxu0
  %3851 = vmatprep.mubr.bf16.mxu0 0
  %3852 = vmatmul.mubr.bf16.gmra.mxu0 %v3004
  %v3853 = vpop.f32.mrf.mxu0
  %v3854 = vadd.f32 %v3565, %v3853
  %v3855 = vpop.f32.mrf.mxu0
  %v3856 = vpop.f32.mrf.mxu0
  %v3857 = vadd.f32 %v3568, %v3856
  %v3858 = vpop.f32.mrf.mxu0
  %3859 = vmatprep.mubr.bf16.mxu0 0
  %3860 = vmatmul.mubr.bf16.gmra.mxu0 %v3005
  %v3861 = vpop.f32.mrf.mxu0
  %v3862 = vadd.f32 %v3573, %v3861
  %v3863 = vpop.f32.mrf.mxu0
  %v3864 = vpop.f32.mrf.mxu0
  %v3865 = vadd.f32 %v3576, %v3864
  %v3866 = vpop.f32.mrf.mxu0
  %3867 = vmatprep.mubr.bf16.mxu0 0
  %3868 = vmatmul.mubr.bf16.gmra.mxu0 %v3006
  %v3869 = vpop.f32.mrf.mxu0
  %v3870 = vadd.f32 %v3581, %v3869
  %v3871 = vpop.f32.mrf.mxu0
  %v3872 = vpop.f32.mrf.mxu0
  %v3873 = vadd.f32 %v3584, %v3872
  %v3874 = vpop.f32.mrf.mxu0
  %3875 = vmatprep.mubr.bf16.mxu0 0
  %3876 = vmatmul.mubr.bf16.gmra.mxu0 %v3007
  %v3877 = vpop.f32.mrf.mxu0
  %v3878 = vadd.f32 %v3589, %v3877
  %v3879 = vpop.f32.mrf.mxu0
  %v3880 = vpop.f32.mrf.mxu0
  %v3881 = vadd.f32 %v3592, %v3880
  %v3882 = vpop.f32.mrf.mxu0
  %3883 = vmatprep.mubr.bf16.mxu0 0
  %3884 = vmatmul.mubr.bf16.gmra.mxu0 %v3008
  %v3885 = vpop.f32.mrf.mxu0
  %v3886 = vadd.f32 %v3597, %v3885
  %v3887 = vpop.f32.mrf.mxu0
  %v3888 = vpop.f32.mrf.mxu0
  %v3889 = vadd.f32 %v3600, %v3888
  %v3890 = vpop.f32.mrf.mxu0
  %3891 = vmatprep.mubr.bf16.mxu0 0
  %3892 = vmatmul.mubr.bf16.gmra.mxu0 %v3009
  %v3893 = vpop.f32.mrf.mxu0
  %v3894 = vadd.f32 %v3605, %v3893
  %v3895 = vpop.f32.mrf.mxu0
  %v3896 = vpop.f32.mrf.mxu0
  %v3897 = vadd.f32 %v3608, %v3896
  %v3898 = vpop.f32.mrf.mxu0
  %3899 = vmatprep.mubr.bf16.mxu0 0
  %3900 = vmatmul.mubr.bf16.gmra.mxu0 %v3010
  %v3901 = vpop.f32.mrf.mxu0
  %v3902 = vadd.f32 %v3613, %v3901
  %v3903 = vpop.f32.mrf.mxu0
  %v3904 = vpop.f32.mrf.mxu0
  %v3905 = vadd.f32 %v3616, %v3904
  %v3906 = vpop.f32.mrf.mxu0
  %3907 = vmatprep.mubr.bf16.mxu0 0
  %3908 = vmatmul.mubr.bf16.gmra.mxu0 %v3011
  %v3909 = vpop.f32.mrf.mxu0
  %v3910 = vadd.f32 %v3621, %v3909
  %v3911 = vpop.f32.mrf.mxu0
  %v3912 = vpop.f32.mrf.mxu0
  %v3913 = vadd.f32 %v3624, %v3912
  %v3914 = vpop.f32.mrf.mxu0
  %3915 = vmatprep.mubr.bf16.mxu0 0
  %3916 = vmatmul.mubr.bf16.gmra.mxu0 %v3012
  %v3917 = vpop.f32.mrf.mxu0
  %v3918 = vadd.f32 %v3629, %v3917
  %v3919 = vpop.f32.mrf.mxu0
  %v3920 = vpop.f32.mrf.mxu0
  %v3921 = vadd.f32 %v3632, %v3920
  %v3922 = vpop.f32.mrf.mxu0
  %3923 = vmatprep.mubr.bf16.mxu0 0
  %3924 = vmatmul.mubr.bf16.gmra.mxu0 %v3013
  %v3925 = vpop.f32.mrf.mxu0
  %v3926 = vadd.f32 %v3637, %v3925
  %v3927 = vpop.f32.mrf.mxu0
  %v3928 = vpop.f32.mrf.mxu0
  %v3929 = vadd.f32 %v3640, %v3928
  %v3930 = vpop.f32.mrf.mxu0
  %3931 = vmatprep.mubr.bf16.mxu0 0
  %3932 = vmatmul.mubr.bf16.gmra.mxu0 %v3014
  %v3933 = vpop.f32.mrf.mxu0
  %v3934 = vadd.f32 %v3645, %v3933
  %v3935 = vpop.f32.mrf.mxu0
  %v3936 = vpop.f32.mrf.mxu0
  %v3937 = vadd.f32 %v3648, %v3936
  %v3938 = vpop.f32.mrf.mxu0
  %3939 = vmatprep.mubr.bf16.mxu0 0
  %3940 = vmatmul.mubr.bf16.gmra.mxu0 %v3015
  %v3941 = vpop.f32.mrf.mxu0
  %v3942 = vadd.f32 %v3653, %v3941
  %v3943 = vpop.f32.mrf.mxu0
  %v3944 = vpop.f32.mrf.mxu0
  %v3945 = vadd.f32 %v3656, %v3944
  %v3946 = vpop.f32.mrf.mxu0
  %3947 = vmatprep.mubr.bf16.mxu0 0
  %3948 = vmatmul.mubr.bf16.gmra.mxu0 %v3016
  %v3949 = vpop.f32.mrf.mxu0
  %v3950 = vadd.f32 %v3661, %v3949
  %v3951 = vpop.f32.mrf.mxu0
  %v3952 = vpop.f32.mrf.mxu0
  %v3953 = vadd.f32 %v3664, %v3952
  %v3954 = vpop.f32.mrf.mxu0
  %3955 = vmatprep.mubr.bf16.mxu0 0
  %3956 = vmatmul.mubr.bf16.gmra.mxu0 %v3017
  %v3957 = vpop.f32.mrf.mxu0
  %v3958 = vadd.f32 %v3669, %v3957
  %v3959 = vpop.f32.mrf.mxu0
  %v3960 = vpop.f32.mrf.mxu0
  %v3961 = vadd.f32 %v3672, %v3960
  %v3962 = vpop.f32.mrf.mxu0
  %3963 = vdwg.mxu0
  %3964 = vmatprep.subr.bf16.mxu0 0
  %3965 = vmatpush1.bf16.msra.mxu0 %v3377
  %3966 = vmatprep.subr.bf16.mxu0 0
  %3967 = vmatpush1.bf16.msra.mxu0 %v3376
  %3968 = vmatprep.subr.bf16.mxu0 0
  %3969 = vmatpush1.bf16.msra.mxu0 %v3375
  %3970 = vmatprep.subr.bf16.mxu0 0
  %3971 = vmatpush1.bf16.msra.mxu0 %v3374
  %3972 = vmatprep.subr.bf16.mxu0 0
  %3973 = vmatpush1.bf16.msra.mxu0 %v3373
  %3974 = vmatprep.subr.bf16.mxu0 0
  %3975 = vmatpush1.bf16.msra.mxu0 %v3372
  %3976 = vmatprep.subr.bf16.mxu0 0
  %3977 = vmatpush1.bf16.msra.mxu0 %v3371
  %3978 = vmatprep.subr.bf16.mxu0 0
  %3979 = vmatpush1.bf16.msra.mxu0 %v3370
  %3980 = vmatprep.subr.bf16.mxu0 0
  %3981 = vmatpush2.bf16.msra.mxu0 0
  %3982 = vmatprep.subr.bf16.mxu0 0
  %3983 = vmatpush2.bf16.msra.mxu0 0
  %3984 = vmatprep.subr.bf16.mxu0 0
  %3985 = vmatpush2.bf16.msra.mxu0 0
  %3986 = vmatprep.subr.bf16.mxu0 0
  %3987 = vmatpush2.bf16.msra.mxu0 0
  %3988 = vmatprep.subr.bf16.mxu0 0
  %3989 = vmatpush2.bf16.msra.mxu0 0
  %3990 = vmatprep.subr.bf16.mxu0 0
  %3991 = vmatpush2.bf16.msra.mxu0 0
  %3992 = vmatprep.subr.bf16.mxu0 0
  %3993 = vmatpush2.bf16.msra.mxu0 0
  %3994 = vmatprep.subr.bf16.mxu0 0
  %3995 = vmatpush2.bf16.msra.mxu0 0
  %3996 = vmatprep.mubr.bf16.mxu0 0
  %3997 = vmatmul.mubr.bf16.gmra.mxu0 %v3306
  %v3998 = vpop.f32.mrf.mxu0
  %v3999 = vadd.f32 0.0, %v3998
  %v4000 = vpop.f32.mrf.mxu0
  %v4001 = vpop.f32.mrf.mxu0
  %v4002 = vadd.f32 0.0, %v4001
  %v4003 = vpop.f32.mrf.mxu0
  %4004 = vmatprep.mubr.bf16.mxu0 0
  %4005 = vmatmul.mubr.bf16.gmra.mxu0 %v3307
  %v4006 = vpop.f32.mrf.mxu0
  %v4007 = vadd.f32 0.0, %v4006
  %v4008 = vpop.f32.mrf.mxu0
  %v4009 = vpop.f32.mrf.mxu0
  %v4010 = vadd.f32 0.0, %v4009
  %v4011 = vpop.f32.mrf.mxu0
  %4012 = vmatprep.mubr.bf16.mxu0 0
  %4013 = vmatmul.mubr.bf16.gmra.mxu0 %v3308
  %v4014 = vpop.f32.mrf.mxu0
  %v4015 = vadd.f32 0.0, %v4014
  %v4016 = vpop.f32.mrf.mxu0
  %v4017 = vpop.f32.mrf.mxu0
  %v4018 = vadd.f32 0.0, %v4017
  %v4019 = vpop.f32.mrf.mxu0
  %4020 = vmatprep.mubr.bf16.mxu0 0
  %4021 = vmatmul.mubr.bf16.gmra.mxu0 %v3309
  %v4022 = vpop.f32.mrf.mxu0
  %v4023 = vadd.f32 0.0, %v4022
  %v4024 = vpop.f32.mrf.mxu0
  %v4025 = vpop.f32.mrf.mxu0
  %v4026 = vadd.f32 0.0, %v4025
  %v4027 = vpop.f32.mrf.mxu0
  %4028 = vmatprep.mubr.bf16.mxu0 0
  %4029 = vmatmul.mubr.bf16.gmra.mxu0 %v3310
  %v4030 = vpop.f32.mrf.mxu0
  %v4031 = vadd.f32 0.0, %v4030
  %v4032 = vpop.f32.mrf.mxu0
  %v4033 = vpop.f32.mrf.mxu0
  %v4034 = vadd.f32 0.0, %v4033
  %v4035 = vpop.f32.mrf.mxu0
  %4036 = vmatprep.mubr.bf16.mxu0 0
  %4037 = vmatmul.mubr.bf16.gmra.mxu0 %v3311
  %v4038 = vpop.f32.mrf.mxu0
  %v4039 = vadd.f32 0.0, %v4038
  %v4040 = vpop.f32.mrf.mxu0
  %v4041 = vpop.f32.mrf.mxu0
  %v4042 = vadd.f32 0.0, %v4041
  %v4043 = vpop.f32.mrf.mxu0
  %4044 = vmatprep.mubr.bf16.mxu0 0
  %4045 = vmatmul.mubr.bf16.gmra.mxu0 %v3312
  %v4046 = vpop.f32.mrf.mxu0
  %v4047 = vadd.f32 0.0, %v4046
  %v4048 = vpop.f32.mrf.mxu0
  %v4049 = vpop.f32.mrf.mxu0
  %v4050 = vadd.f32 0.0, %v4049
  %v4051 = vpop.f32.mrf.mxu0
  %4052 = vmatprep.mubr.bf16.mxu0 0
  %4053 = vmatmul.mubr.bf16.gmra.mxu0 %v3313
  %v4054 = vpop.f32.mrf.mxu0
  %v4055 = vadd.f32 0.0, %v4054
  %v4056 = vpop.f32.mrf.mxu0
  %v4057 = vpop.f32.mrf.mxu0
  %v4058 = vadd.f32 0.0, %v4057
  %v4059 = vpop.f32.mrf.mxu0
  %4060 = vmatprep.mubr.bf16.mxu0 0
  %4061 = vmatmul.mubr.bf16.gmra.mxu0 %v3314
  %v4062 = vpop.f32.mrf.mxu0
  %v4063 = vadd.f32 0.0, %v4062
  %v4064 = vpop.f32.mrf.mxu0
  %v4065 = vpop.f32.mrf.mxu0
  %v4066 = vadd.f32 0.0, %v4065
  %v4067 = vpop.f32.mrf.mxu0
  %4068 = vmatprep.mubr.bf16.mxu0 0
  %4069 = vmatmul.mubr.bf16.gmra.mxu0 %v3315
  %v4070 = vpop.f32.mrf.mxu0
  %v4071 = vadd.f32 0.0, %v4070
  %v4072 = vpop.f32.mrf.mxu0
  %v4073 = vpop.f32.mrf.mxu0
  %v4074 = vadd.f32 0.0, %v4073
  %v4075 = vpop.f32.mrf.mxu0
  %4076 = vmatprep.mubr.bf16.mxu0 0
  %4077 = vmatmul.mubr.bf16.gmra.mxu0 %v3316
  %v4078 = vpop.f32.mrf.mxu0
  %v4079 = vadd.f32 0.0, %v4078
  %v4080 = vpop.f32.mrf.mxu0
  %v4081 = vpop.f32.mrf.mxu0
  %v4082 = vadd.f32 0.0, %v4081
  %v4083 = vpop.f32.mrf.mxu0
  %4084 = vmatprep.mubr.bf16.mxu0 0
  %4085 = vmatmul.mubr.bf16.gmra.mxu0 %v3317
  %v4086 = vpop.f32.mrf.mxu0
  %v4087 = vadd.f32 0.0, %v4086
  %v4088 = vpop.f32.mrf.mxu0
  %v4089 = vpop.f32.mrf.mxu0
  %v4090 = vadd.f32 0.0, %v4089
  %v4091 = vpop.f32.mrf.mxu0
  %4092 = vmatprep.mubr.bf16.mxu0 0
  %4093 = vmatmul.mubr.bf16.gmra.mxu0 %v3318
  %v4094 = vpop.f32.mrf.mxu0
  %v4095 = vadd.f32 0.0, %v4094
  %v4096 = vpop.f32.mrf.mxu0
  %v4097 = vpop.f32.mrf.mxu0
  %v4098 = vadd.f32 0.0, %v4097
  %v4099 = vpop.f32.mrf.mxu0
  %4100 = vmatprep.mubr.bf16.mxu0 0
  %4101 = vmatmul.mubr.bf16.gmra.mxu0 %v3319
  %v4102 = vpop.f32.mrf.mxu0
  %v4103 = vadd.f32 0.0, %v4102
  %v4104 = vpop.f32.mrf.mxu0
  %v4105 = vpop.f32.mrf.mxu0
  %v4106 = vadd.f32 0.0, %v4105
  %v4107 = vpop.f32.mrf.mxu0
  %4108 = vmatprep.mubr.bf16.mxu0 0
  %4109 = vmatmul.mubr.bf16.gmra.mxu0 %v3320
  %v4110 = vpop.f32.mrf.mxu0
  %v4111 = vadd.f32 0.0, %v4110
  %v4112 = vpop.f32.mrf.mxu0
  %v4113 = vpop.f32.mrf.mxu0
  %v4114 = vadd.f32 0.0, %v4113
  %v4115 = vpop.f32.mrf.mxu0
  %4116 = vmatprep.mubr.bf16.mxu0 0
  %4117 = vmatmul.mubr.bf16.gmra.mxu0 %v3321
  %v4118 = vpop.f32.mrf.mxu0
  %v4119 = vadd.f32 0.0, %v4118
  %v4120 = vpop.f32.mrf.mxu0
  %v4121 = vpop.f32.mrf.mxu0
  %v4122 = vadd.f32 0.0, %v4121
  %v4123 = vpop.f32.mrf.mxu0
  %4124 = vmatprep.mubr.bf16.mxu0 0
  %4125 = vmatmul.mubr.bf16.gmra.mxu0 %v3322
  %v4126 = vpop.f32.mrf.mxu0
  %v4127 = vadd.f32 0.0, %v4126
  %v4128 = vpop.f32.mrf.mxu0
  %v4129 = vpop.f32.mrf.mxu0
  %v4130 = vadd.f32 0.0, %v4129
  %v4131 = vpop.f32.mrf.mxu0
  %4132 = vmatprep.mubr.bf16.mxu0 0
  %4133 = vmatmul.mubr.bf16.gmra.mxu0 %v3323
  %v4134 = vpop.f32.mrf.mxu0
  %v4135 = vadd.f32 0.0, %v4134
  %v4136 = vpop.f32.mrf.mxu0
  %v4137 = vpop.f32.mrf.mxu0
  %v4138 = vadd.f32 0.0, %v4137
  %v4139 = vpop.f32.mrf.mxu0
  %4140 = vmatprep.mubr.bf16.mxu0 0
  %4141 = vmatmul.mubr.bf16.gmra.mxu0 %v3324
  %v4142 = vpop.f32.mrf.mxu0
  %v4143 = vadd.f32 0.0, %v4142
  %v4144 = vpop.f32.mrf.mxu0
  %v4145 = vpop.f32.mrf.mxu0
  %v4146 = vadd.f32 0.0, %v4145
  %v4147 = vpop.f32.mrf.mxu0
  %4148 = vmatprep.mubr.bf16.mxu0 0
  %4149 = vmatmul.mubr.bf16.gmra.mxu0 %v3325
  %v4150 = vpop.f32.mrf.mxu0
  %v4151 = vadd.f32 0.0, %v4150
  %v4152 = vpop.f32.mrf.mxu0
  %v4153 = vpop.f32.mrf.mxu0
  %v4154 = vadd.f32 0.0, %v4153
  %v4155 = vpop.f32.mrf.mxu0
  %4156 = vmatprep.mubr.bf16.mxu0 0
  %4157 = vmatmul.mubr.bf16.gmra.mxu0 %v3326
  %v4158 = vpop.f32.mrf.mxu0
  %v4159 = vadd.f32 0.0, %v4158
  %v4160 = vpop.f32.mrf.mxu0
  %v4161 = vpop.f32.mrf.mxu0
  %v4162 = vadd.f32 0.0, %v4161
  %v4163 = vpop.f32.mrf.mxu0
  %4164 = vmatprep.mubr.bf16.mxu0 0
  %4165 = vmatmul.mubr.bf16.gmra.mxu0 %v3327
  %v4166 = vpop.f32.mrf.mxu0
  %v4167 = vadd.f32 0.0, %v4166
  %v4168 = vpop.f32.mrf.mxu0
  %v4169 = vpop.f32.mrf.mxu0
  %v4170 = vadd.f32 0.0, %v4169
  %v4171 = vpop.f32.mrf.mxu0
  %4172 = vmatprep.mubr.bf16.mxu0 0
  %4173 = vmatmul.mubr.bf16.gmra.mxu0 %v3328
  %v4174 = vpop.f32.mrf.mxu0
  %v4175 = vadd.f32 0.0, %v4174
  %v4176 = vpop.f32.mrf.mxu0
  %v4177 = vpop.f32.mrf.mxu0
  %v4178 = vadd.f32 0.0, %v4177
  %v4179 = vpop.f32.mrf.mxu0
  %4180 = vmatprep.mubr.bf16.mxu0 0
  %4181 = vmatmul.mubr.bf16.gmra.mxu0 %v3329
  %v4182 = vpop.f32.mrf.mxu0
  %v4183 = vadd.f32 0.0, %v4182
  %v4184 = vpop.f32.mrf.mxu0
  %v4185 = vpop.f32.mrf.mxu0
  %v4186 = vadd.f32 0.0, %v4185
  %v4187 = vpop.f32.mrf.mxu0
  %4188 = vmatprep.mubr.bf16.mxu0 0
  %4189 = vmatmul.mubr.bf16.gmra.mxu0 %v3330
  %v4190 = vpop.f32.mrf.mxu0
  %v4191 = vadd.f32 0.0, %v4190
  %v4192 = vpop.f32.mrf.mxu0
  %v4193 = vpop.f32.mrf.mxu0
  %v4194 = vadd.f32 0.0, %v4193
  %v4195 = vpop.f32.mrf.mxu0
  %4196 = vmatprep.mubr.bf16.mxu0 0
  %4197 = vmatmul.mubr.bf16.gmra.mxu0 %v3331
  %v4198 = vpop.f32.mrf.mxu0
  %v4199 = vadd.f32 0.0, %v4198
  %v4200 = vpop.f32.mrf.mxu0
  %v4201 = vpop.f32.mrf.mxu0
  %v4202 = vadd.f32 0.0, %v4201
  %v4203 = vpop.f32.mrf.mxu0
  %4204 = vmatprep.mubr.bf16.mxu0 0
  %4205 = vmatmul.mubr.bf16.gmra.mxu0 %v3332
  %v4206 = vpop.f32.mrf.mxu0
  %v4207 = vadd.f32 0.0, %v4206
  %v4208 = vpop.f32.mrf.mxu0
  %v4209 = vpop.f32.mrf.mxu0
  %v4210 = vadd.f32 0.0, %v4209
  %v4211 = vpop.f32.mrf.mxu0
  %4212 = vmatprep.mubr.bf16.mxu0 0
  %4213 = vmatmul.mubr.bf16.gmra.mxu0 %v3333
  %v4214 = vpop.f32.mrf.mxu0
  %v4215 = vadd.f32 0.0, %v4214
  %v4216 = vpop.f32.mrf.mxu0
  %v4217 = vpop.f32.mrf.mxu0
  %v4218 = vadd.f32 0.0, %v4217
  %v4219 = vpop.f32.mrf.mxu0
  %4220 = vmatprep.mubr.bf16.mxu0 0
  %4221 = vmatmul.mubr.bf16.gmra.mxu0 %v3334
  %v4222 = vpop.f32.mrf.mxu0
  %v4223 = vadd.f32 0.0, %v4222
  %v4224 = vpop.f32.mrf.mxu0
  %v4225 = vpop.f32.mrf.mxu0
  %v4226 = vadd.f32 0.0, %v4225
  %v4227 = vpop.f32.mrf.mxu0
  %4228 = vmatprep.mubr.bf16.mxu0 0
  %4229 = vmatmul.mubr.bf16.gmra.mxu0 %v3335
  %v4230 = vpop.f32.mrf.mxu0
  %v4231 = vadd.f32 0.0, %v4230
  %v4232 = vpop.f32.mrf.mxu0
  %v4233 = vpop.f32.mrf.mxu0
  %v4234 = vadd.f32 0.0, %v4233
  %v4235 = vpop.f32.mrf.mxu0
  %4236 = vmatprep.mubr.bf16.mxu0 0
  %4237 = vmatmul.mubr.bf16.gmra.mxu0 %v3336
  %v4238 = vpop.f32.mrf.mxu0
  %v4239 = vadd.f32 0.0, %v4238
  %v4240 = vpop.f32.mrf.mxu0
  %v4241 = vpop.f32.mrf.mxu0
  %v4242 = vadd.f32 0.0, %v4241
  %v4243 = vpop.f32.mrf.mxu0
  %4244 = vmatprep.mubr.bf16.mxu0 0
  %4245 = vmatmul.mubr.bf16.gmra.mxu0 %v3337
  %v4246 = vpop.f32.mrf.mxu0
  %v4247 = vadd.f32 0.0, %v4246
  %v4248 = vpop.f32.mrf.mxu0
  %v4249 = vpop.f32.mrf.mxu0
  %v4250 = vadd.f32 0.0, %v4249
  %v4251 = vpop.f32.mrf.mxu0
  %4252 = vdwg.mxu0
  %v4253 = vadd.f32 %v3710, %v3999
  %v4254 = vadd.f32 %v3713, %v4002
  %v4255 = vadd.f32 %v3718, %v4007
  %v4256 = vadd.f32 %v3721, %v4010
  %v4257 = vadd.f32 %v3726, %v4015
  %v4258 = vadd.f32 %v3729, %v4018
  %v4259 = vadd.f32 %v3734, %v4023
  %v4260 = vadd.f32 %v3737, %v4026
  %v4261 = vadd.f32 %v3742, %v4031
  %v4262 = vadd.f32 %v3745, %v4034
  %v4263 = vadd.f32 %v3750, %v4039
  %v4264 = vadd.f32 %v3753, %v4042
  %v4265 = vadd.f32 %v3758, %v4047
  %v4266 = vadd.f32 %v3761, %v4050
  %v4267 = vadd.f32 %v3766, %v4055
  %v4268 = vadd.f32 %v3769, %v4058
  %v4269 = vadd.f32 %v3774, %v4063
  %v4270 = vadd.f32 %v3777, %v4066
  %v4271 = vadd.f32 %v3782, %v4071
  %v4272 = vadd.f32 %v3785, %v4074
  %v4273 = vadd.f32 %v3790, %v4079
  %v4274 = vadd.f32 %v3793, %v4082
  %v4275 = vadd.f32 %v3798, %v4087
  %v4276 = vadd.f32 %v3801, %v4090
  %v4277 = vadd.f32 %v3806, %v4095
  %v4278 = vadd.f32 %v3809, %v4098
  %v4279 = vadd.f32 %v3814, %v4103
  %v4280 = vadd.f32 %v3817, %v4106
  %v4281 = vadd.f32 %v3822, %v4111
  %v4282 = vadd.f32 %v3825, %v4114
  %v4283 = vadd.f32 %v3830, %v4119
  %v4284 = vadd.f32 %v3833, %v4122
  %v4285 = vadd.f32 %v3838, %v4127
  %v4286 = vadd.f32 %v3841, %v4130
  %v4287 = vadd.f32 %v3846, %v4135
  %v4288 = vadd.f32 %v3849, %v4138
  %v4289 = vadd.f32 %v3854, %v4143
  %v4290 = vadd.f32 %v3857, %v4146
  %v4291 = vadd.f32 %v3862, %v4151
  %v4292 = vadd.f32 %v3865, %v4154
  %v4293 = vadd.f32 %v3870, %v4159
  %v4294 = vadd.f32 %v3873, %v4162
  %v4295 = vadd.f32 %v3878, %v4167
  %v4296 = vadd.f32 %v3881, %v4170
  %v4297 = vadd.f32 %v3886, %v4175
  %v4298 = vadd.f32 %v3889, %v4178
  %v4299 = vadd.f32 %v3894, %v4183
  %v4300 = vadd.f32 %v3897, %v4186
  %v4301 = vadd.f32 %v3902, %v4191
  %v4302 = vadd.f32 %v3905, %v4194
  %v4303 = vadd.f32 %v3910, %v4199
  %v4304 = vadd.f32 %v3913, %v4202
  %v4305 = vadd.f32 %v3918, %v4207
  %v4306 = vadd.f32 %v3921, %v4210
  %v4307 = vadd.f32 %v3926, %v4215
  %v4308 = vadd.f32 %v3929, %v4218
  %v4309 = vadd.f32 %v3934, %v4223
  %v4310 = vadd.f32 %v3937, %v4226
  %v4311 = vadd.f32 %v3942, %v4231
  %v4312 = vadd.f32 %v3945, %v4234
  %v4313 = vadd.f32 %v3950, %v4239
  %v4314 = vadd.f32 %v3953, %v4242
  %v4315 = vadd.f32 %v3958, %v4247
  %v4316 = vadd.f32 %v3961, %v4250
  %v4317 = vlaneseq
  %v4318 = vshrl.u32 %v4317, 7
  %v4319 = vsub.s32 0, %v4318
  %v4320 = vrot.slane %v2921, %v4319
  %v4321 = vmul.f32 %v4320, %v4253
  %v4322 = vmul.f32 %v4320, %v4254
  %v4323 = vmul.f32 %v4320, %v4255
  %v4324 = vmul.f32 %v4320, %v4256
  %v4325 = vmul.f32 %v4320, %v4257
  %v4326 = vmul.f32 %v4320, %v4258
  %v4327 = vmul.f32 %v4320, %v4259
  %v4328 = vmul.f32 %v4320, %v4260
  %v4329 = vmul.f32 %v4320, %v4261
  %v4330 = vmul.f32 %v4320, %v4262
  %v4331 = vmul.f32 %v4320, %v4263
  %v4332 = vmul.f32 %v4320, %v4264
  %v4333 = vmul.f32 %v4320, %v4265
  %v4334 = vmul.f32 %v4320, %v4266
  %v4335 = vmul.f32 %v4320, %v4267
  %v4336 = vmul.f32 %v4320, %v4268
  %v4337 = vmul.f32 %v4320, %v4269
  %v4338 = vmul.f32 %v4320, %v4270
  %v4339 = vmul.f32 %v4320, %v4271
  %v4340 = vmul.f32 %v4320, %v4272
  %v4341 = vmul.f32 %v4320, %v4273
  %v4342 = vmul.f32 %v4320, %v4274
  %v4343 = vmul.f32 %v4320, %v4275
  %v4344 = vmul.f32 %v4320, %v4276
  %v4345 = vmul.f32 %v4320, %v4277
  %v4346 = vmul.f32 %v4320, %v4278
  %v4347 = vmul.f32 %v4320, %v4279
  %v4348 = vmul.f32 %v4320, %v4280
  %v4349 = vmul.f32 %v4320, %v4281
  %v4350 = vmul.f32 %v4320, %v4282
  %v4351 = vmul.f32 %v4320, %v4283
  %v4352 = vmul.f32 %v4320, %v4284
  %v4353 = vmul.f32 %v4320, %v4285
  %v4354 = vmul.f32 %v4320, %v4286
  %v4355 = vmul.f32 %v4320, %v4287
  %v4356 = vmul.f32 %v4320, %v4288
  %v4357 = vmul.f32 %v4320, %v4289
  %v4358 = vmul.f32 %v4320, %v4290
  %v4359 = vmul.f32 %v4320, %v4291
  %v4360 = vmul.f32 %v4320, %v4292
  %v4361 = vmul.f32 %v4320, %v4293
  %v4362 = vmul.f32 %v4320, %v4294
  %v4363 = vmul.f32 %v4320, %v4295
  %v4364 = vmul.f32 %v4320, %v4296
  %v4365 = vmul.f32 %v4320, %v4297
  %v4366 = vmul.f32 %v4320, %v4298
  %v4367 = vmul.f32 %v4320, %v4299
  %v4368 = vmul.f32 %v4320, %v4300
  %v4369 = vmul.f32 %v4320, %v4301
  %v4370 = vmul.f32 %v4320, %v4302
  %v4371 = vmul.f32 %v4320, %v4303
  %v4372 = vmul.f32 %v4320, %v4304
  %v4373 = vmul.f32 %v4320, %v4305
  %v4374 = vmul.f32 %v4320, %v4306
  %v4375 = vmul.f32 %v4320, %v4307
  %v4376 = vmul.f32 %v4320, %v4308
  %v4377 = vmul.f32 %v4320, %v4309
  %v4378 = vmul.f32 %v4320, %v4310
  %v4379 = vmul.f32 %v4320, %v4311
  %v4380 = vmul.f32 %v4320, %v4312
  %v4381 = vmul.f32 %v4320, %v4313
  %v4382 = vmul.f32 %v4320, %v4314
  %v4383 = vmul.f32 %v4320, %v4315
  %v4384 = vmul.f32 %v4320, %v4316
  %v4385 = vadd.f32 %v2857, %v4321
  %v4386 = vadd.f32 %v2858, %v4322
  %v4387 = vadd.f32 %v2859, %v4323
  %v4388 = vadd.f32 %v2860, %v4324
  %v4389 = vadd.f32 %v2861, %v4325
  %v4390 = vadd.f32 %v2862, %v4326
  %v4391 = vadd.f32 %v2863, %v4327
  %v4392 = vadd.f32 %v2864, %v4328
  %v4393 = vadd.f32 %v2865, %v4329
  %v4394 = vadd.f32 %v2866, %v4330
  %v4395 = vadd.f32 %v2867, %v4331
  %v4396 = vadd.f32 %v2868, %v4332
  %v4397 = vadd.f32 %v2869, %v4333
  %v4398 = vadd.f32 %v2870, %v4334
  %v4399 = vadd.f32 %v2871, %v4335
  %v4400 = vadd.f32 %v2872, %v4336
  %v4401 = vadd.f32 %v2873, %v4337
  %v4402 = vadd.f32 %v2874, %v4338
  %v4403 = vadd.f32 %v2875, %v4339
  %v4404 = vadd.f32 %v2876, %v4340
  %v4405 = vadd.f32 %v2877, %v4341
  %v4406 = vadd.f32 %v2878, %v4342
  %v4407 = vadd.f32 %v2879, %v4343
  %v4408 = vadd.f32 %v2880, %v4344
  %v4409 = vadd.f32 %v2881, %v4345
  %v4410 = vadd.f32 %v2882, %v4346
  %v4411 = vadd.f32 %v2883, %v4347
  %v4412 = vadd.f32 %v2884, %v4348
  %v4413 = vadd.f32 %v2885, %v4349
  %v4414 = vadd.f32 %v2886, %v4350
  %v4415 = vadd.f32 %v2887, %v4351
  %v4416 = vadd.f32 %v2888, %v4352
  %v4417 = vadd.f32 %v2889, %v4353
  %v4418 = vadd.f32 %v2890, %v4354
  %v4419 = vadd.f32 %v2891, %v4355
  %v4420 = vadd.f32 %v2892, %v4356
  %v4421 = vadd.f32 %v2893, %v4357
  %v4422 = vadd.f32 %v2894, %v4358
  %v4423 = vadd.f32 %v2895, %v4359
  %v4424 = vadd.f32 %v2896, %v4360
  %v4425 = vadd.f32 %v2897, %v4361
  %v4426 = vadd.f32 %v2898, %v4362
  %v4427 = vadd.f32 %v2899, %v4363
  %v4428 = vadd.f32 %v2900, %v4364
  %v4429 = vadd.f32 %v2901, %v4365
  %v4430 = vadd.f32 %v2902, %v4366
  %v4431 = vadd.f32 %v2903, %v4367
  %v4432 = vadd.f32 %v2904, %v4368
  %v4433 = vadd.f32 %v2905, %v4369
  %v4434 = vadd.f32 %v2906, %v4370
  %v4435 = vadd.f32 %v2907, %v4371
  %v4436 = vadd.f32 %v2908, %v4372
  %v4437 = vadd.f32 %v2909, %v4373
  %v4438 = vadd.f32 %v2910, %v4374
  %v4439 = vadd.f32 %v2911, %v4375
  %v4440 = vadd.f32 %v2912, %v4376
  %v4441 = vadd.f32 %v2913, %v4377
  %v4442 = vadd.f32 %v2914, %v4378
  %v4443 = vadd.f32 %v2915, %v4379
  %v4444 = vadd.f32 %v2916, %v4380
  %v4445 = vadd.f32 %v2917, %v4381
  %v4446 = vadd.f32 %v2918, %v4382
  %v4447 = vadd.f32 %v2919, %v4383
  %v4448 = vadd.f32 %v2920, %v4384
  %v4449 = vmul.f32 %v24, %v4385
  %v4450 = vmul.f32 %v25, %v4386
  %v4451 = vmul.f32 %v26, %v4387
  %v4452 = vmul.f32 %v27, %v4388
  %v4453 = vmul.f32 %v28, %v4389
  %v4454 = vmul.f32 %v29, %v4390
  %v4455 = vmul.f32 %v30, %v4391
  %v4456 = vmul.f32 %v31, %v4392
  %v4457 = vmul.f32 %v32, %v4393
  %v4458 = vmul.f32 %v33, %v4394
  %v4459 = vmul.f32 %v34, %v4395
  %v4460 = vmul.f32 %v35, %v4396
  %v4461 = vmul.f32 %v36, %v4397
  %v4462 = vmul.f32 %v37, %v4398
  %v4463 = vmul.f32 %v38, %v4399
  %v4464 = vmul.f32 %v39, %v4400
  %v4465 = vmul.f32 %v40, %v4401
  %v4466 = vmul.f32 %v41, %v4402
  %v4467 = vmul.f32 %v42, %v4403
  %v4468 = vmul.f32 %v43, %v4404
  %v4469 = vmul.f32 %v44, %v4405
  %v4470 = vmul.f32 %v45, %v4406
  %v4471 = vmul.f32 %v46, %v4407
  %v4472 = vmul.f32 %v47, %v4408
  %v4473 = vmul.f32 %v48, %v4409
  %v4474 = vmul.f32 %v49, %v4410
  %v4475 = vmul.f32 %v50, %v4411
  %v4476 = vmul.f32 %v51, %v4412
  %v4477 = vmul.f32 %v52, %v4413
  %v4478 = vmul.f32 %v53, %v4414
  %v4479 = vmul.f32 %v54, %v4415
  %v4480 = vmul.f32 %v55, %v4416
  %v4481 = vmul.f32 %v56, %v4417
  %v4482 = vmul.f32 %v57, %v4418
  %v4483 = vmul.f32 %v58, %v4419
  %v4484 = vmul.f32 %v59, %v4420
  %v4485 = vmul.f32 %v60, %v4421
  %v4486 = vmul.f32 %v61, %v4422
  %v4487 = vmul.f32 %v62, %v4423
  %v4488 = vmul.f32 %v63, %v4424
  %v4489 = vmul.f32 %v64, %v4425
  %v4490 = vmul.f32 %v65, %v4426
  %v4491 = vmul.f32 %v66, %v4427
  %v4492 = vmul.f32 %v67, %v4428
  %v4493 = vmul.f32 %v68, %v4429
  %v4494 = vmul.f32 %v69, %v4430
  %v4495 = vmul.f32 %v70, %v4431
  %v4496 = vmul.f32 %v71, %v4432
  %v4497 = vmul.f32 %v72, %v4433
  %v4498 = vmul.f32 %v73, %v4434
  %v4499 = vmul.f32 %v74, %v4435
  %v4500 = vmul.f32 %v75, %v4436
  %v4501 = vmul.f32 %v76, %v4437
  %v4502 = vmul.f32 %v77, %v4438
  %v4503 = vmul.f32 %v78, %v4439
  %v4504 = vmul.f32 %v79, %v4440
  %v4505 = vmul.f32 %v80, %v4441
  %v4506 = vmul.f32 %v81, %v4442
  %v4507 = vmul.f32 %v82, %v4443
  %v4508 = vmul.f32 %v83, %v4444
  %v4509 = vmul.f32 %v84, %v4445
  %v4510 = vmul.f32 %v85, %v4446
  %v4511 = vmul.f32 %v86, %v4447
  %v4512 = vmul.f32 %v87, %v4448
  %v4513 = vpack.c.bf16 %v4450, %v4449
  %v4514 = vpack.c.bf16 %v4452, %v4451
  %v4515 = vpack.c.bf16 %v4454, %v4453
  %v4516 = vpack.c.bf16 %v4456, %v4455
  %v4517 = vpack.c.bf16 %v4458, %v4457
  %v4518 = vpack.c.bf16 %v4460, %v4459
  %v4519 = vpack.c.bf16 %v4462, %v4461
  %v4520 = vpack.c.bf16 %v4464, %v4463
  %v4521 = vpack.c.bf16 %v4466, %v4465
  %v4522 = vpack.c.bf16 %v4468, %v4467
  %v4523 = vpack.c.bf16 %v4470, %v4469
  %v4524 = vpack.c.bf16 %v4472, %v4471
  %v4525 = vpack.c.bf16 %v4474, %v4473
  %v4526 = vpack.c.bf16 %v4476, %v4475
  %v4527 = vpack.c.bf16 %v4478, %v4477
  %v4528 = vpack.c.bf16 %v4480, %v4479
  %v4529 = vpack.c.bf16 %v4482, %v4481
  %v4530 = vpack.c.bf16 %v4484, %v4483
  %v4531 = vpack.c.bf16 %v4486, %v4485
  %v4532 = vpack.c.bf16 %v4488, %v4487
  %v4533 = vpack.c.bf16 %v4490, %v4489
  %v4534 = vpack.c.bf16 %v4492, %v4491
  %v4535 = vpack.c.bf16 %v4494, %v4493
  %v4536 = vpack.c.bf16 %v4496, %v4495
  %v4537 = vpack.c.bf16 %v4498, %v4497
  %v4538 = vpack.c.bf16 %v4500, %v4499
  %v4539 = vpack.c.bf16 %v4502, %v4501
  %v4540 = vpack.c.bf16 %v4504, %v4503
  %v4541 = vpack.c.bf16 %v4506, %v4505
  %v4542 = vpack.c.bf16 %v4508, %v4507
  %v4543 = vpack.c.bf16 %v4510, %v4509
  %v4544 = vpack.c.bf16 %v4512, %v4511
  %v4545 = vunpack.c.l.bf16 %v4513
  %v4546 = vunpack.c.h.bf16 %v4513
  %v4547 = vunpack.c.l.bf16 %v4514
  %v4548 = vunpack.c.h.bf16 %v4514
  %v4549 = vunpack.c.l.bf16 %v4515
  %v4550 = vunpack.c.h.bf16 %v4515
  %v4551 = vunpack.c.l.bf16 %v4516
  %v4552 = vunpack.c.h.bf16 %v4516
  %v4553 = vunpack.c.l.bf16 %v4517
  %v4554 = vunpack.c.h.bf16 %v4517
  %v4555 = vunpack.c.l.bf16 %v4518
  %v4556 = vunpack.c.h.bf16 %v4518
  %v4557 = vunpack.c.l.bf16 %v4519
  %v4558 = vunpack.c.h.bf16 %v4519
  %v4559 = vunpack.c.l.bf16 %v4520
  %v4560 = vunpack.c.h.bf16 %v4520
  %v4561 = vunpack.c.l.bf16 %v4521
  %v4562 = vunpack.c.h.bf16 %v4521
  %v4563 = vunpack.c.l.bf16 %v4522
  %v4564 = vunpack.c.h.bf16 %v4522
  %v4565 = vunpack.c.l.bf16 %v4523
  %v4566 = vunpack.c.h.bf16 %v4523
  %v4567 = vunpack.c.l.bf16 %v4524
  %v4568 = vunpack.c.h.bf16 %v4524
  %v4569 = vunpack.c.l.bf16 %v4525
  %v4570 = vunpack.c.h.bf16 %v4525
  %v4571 = vunpack.c.l.bf16 %v4526
  %v4572 = vunpack.c.h.bf16 %v4526
  %v4573 = vunpack.c.l.bf16 %v4527
  %v4574 = vunpack.c.h.bf16 %v4527
  %v4575 = vunpack.c.l.bf16 %v4528
  %v4576 = vunpack.c.h.bf16 %v4528
  %v4577 = vunpack.c.l.bf16 %v4529
  %v4578 = vunpack.c.h.bf16 %v4529
  %v4579 = vunpack.c.l.bf16 %v4530
  %v4580 = vunpack.c.h.bf16 %v4530
  %v4581 = vunpack.c.l.bf16 %v4531
  %v4582 = vunpack.c.h.bf16 %v4531
  %v4583 = vunpack.c.l.bf16 %v4532
  %v4584 = vunpack.c.h.bf16 %v4532
  %v4585 = vunpack.c.l.bf16 %v4533
  %v4586 = vunpack.c.h.bf16 %v4533
  %v4587 = vunpack.c.l.bf16 %v4534
  %v4588 = vunpack.c.h.bf16 %v4534
  %v4589 = vunpack.c.l.bf16 %v4535
  %v4590 = vunpack.c.h.bf16 %v4535
  %v4591 = vunpack.c.l.bf16 %v4536
  %v4592 = vunpack.c.h.bf16 %v4536
  %v4593 = vunpack.c.l.bf16 %v4537
  %v4594 = vunpack.c.h.bf16 %v4537
  %v4595 = vunpack.c.l.bf16 %v4538
  %v4596 = vunpack.c.h.bf16 %v4538
  %v4597 = vunpack.c.l.bf16 %v4539
  %v4598 = vunpack.c.h.bf16 %v4539
  %v4599 = vunpack.c.l.bf16 %v4540
  %v4600 = vunpack.c.h.bf16 %v4540
  %v4601 = vunpack.c.l.bf16 %v4541
  %v4602 = vunpack.c.h.bf16 %v4541
  %v4603 = vunpack.c.l.bf16 %v4542
  %v4604 = vunpack.c.h.bf16 %v4542
  %v4605 = vunpack.c.l.bf16 %v4543
  %v4606 = vunpack.c.h.bf16 %v4543
  %v4607 = vunpack.c.l.bf16 %v4544
  %v4608 = vunpack.c.h.bf16 %v4544
  %v4609 = vsub.f32 %v4449, %v4545
  %v4610 = vsub.f32 %v4450, %v4546
  %v4611 = vsub.f32 %v4451, %v4547
  %v4612 = vsub.f32 %v4452, %v4548
  %v4613 = vsub.f32 %v4453, %v4549
  %v4614 = vsub.f32 %v4454, %v4550
  %v4615 = vsub.f32 %v4455, %v4551
  %v4616 = vsub.f32 %v4456, %v4552
  %v4617 = vsub.f32 %v4457, %v4553
  %v4618 = vsub.f32 %v4458, %v4554
  %v4619 = vsub.f32 %v4459, %v4555
  %v4620 = vsub.f32 %v4460, %v4556
  %v4621 = vsub.f32 %v4461, %v4557
  %v4622 = vsub.f32 %v4462, %v4558
  %v4623 = vsub.f32 %v4463, %v4559
  %v4624 = vsub.f32 %v4464, %v4560
  %v4625 = vsub.f32 %v4465, %v4561
  %v4626 = vsub.f32 %v4466, %v4562
  %v4627 = vsub.f32 %v4467, %v4563
  %v4628 = vsub.f32 %v4468, %v4564
  %v4629 = vsub.f32 %v4469, %v4565
  %v4630 = vsub.f32 %v4470, %v4566
  %v4631 = vsub.f32 %v4471, %v4567
  %v4632 = vsub.f32 %v4472, %v4568
  %v4633 = vsub.f32 %v4473, %v4569
  %v4634 = vsub.f32 %v4474, %v4570
  %v4635 = vsub.f32 %v4475, %v4571
  %v4636 = vsub.f32 %v4476, %v4572
  %v4637 = vsub.f32 %v4477, %v4573
  %v4638 = vsub.f32 %v4478, %v4574
  %v4639 = vsub.f32 %v4479, %v4575
  %v4640 = vsub.f32 %v4480, %v4576
  %v4641 = vsub.f32 %v4481, %v4577
  %v4642 = vsub.f32 %v4482, %v4578
  %v4643 = vsub.f32 %v4483, %v4579
  %v4644 = vsub.f32 %v4484, %v4580
  %v4645 = vsub.f32 %v4485, %v4581
  %v4646 = vsub.f32 %v4486, %v4582
  %v4647 = vsub.f32 %v4487, %v4583
  %v4648 = vsub.f32 %v4488, %v4584
  %v4649 = vsub.f32 %v4489, %v4585
  %v4650 = vsub.f32 %v4490, %v4586
  %v4651 = vsub.f32 %v4491, %v4587
  %v4652 = vsub.f32 %v4492, %v4588
  %v4653 = vsub.f32 %v4493, %v4589
  %v4654 = vsub.f32 %v4494, %v4590
  %v4655 = vsub.f32 %v4495, %v4591
  %v4656 = vsub.f32 %v4496, %v4592
  %v4657 = vsub.f32 %v4497, %v4593
  %v4658 = vsub.f32 %v4498, %v4594
  %v4659 = vsub.f32 %v4499, %v4595
  %v4660 = vsub.f32 %v4500, %v4596
  %v4661 = vsub.f32 %v4501, %v4597
  %v4662 = vsub.f32 %v4502, %v4598
  %v4663 = vsub.f32 %v4503, %v4599
  %v4664 = vsub.f32 %v4504, %v4600
  %v4665 = vsub.f32 %v4505, %v4601
  %v4666 = vsub.f32 %v4506, %v4602
  %v4667 = vsub.f32 %v4507, %v4603
  %v4668 = vsub.f32 %v4508, %v4604
  %v4669 = vsub.f32 %v4509, %v4605
  %v4670 = vsub.f32 %v4510, %v4606
  %v4671 = vsub.f32 %v4511, %v4607
  %v4672 = vsub.f32 %v4512, %v4608
  %v4673 = vpack.c.bf16 %v4610, %v4609
  %v4674 = vpack.c.bf16 %v4612, %v4611
  %v4675 = vpack.c.bf16 %v4614, %v4613
  %v4676 = vpack.c.bf16 %v4616, %v4615
  %v4677 = vpack.c.bf16 %v4618, %v4617
  %v4678 = vpack.c.bf16 %v4620, %v4619
  %v4679 = vpack.c.bf16 %v4622, %v4621
  %v4680 = vpack.c.bf16 %v4624, %v4623
  %v4681 = vpack.c.bf16 %v4626, %v4625
  %v4682 = vpack.c.bf16 %v4628, %v4627
  %v4683 = vpack.c.bf16 %v4630, %v4629
  %v4684 = vpack.c.bf16 %v4632, %v4631
  %v4685 = vpack.c.bf16 %v4634, %v4633
  %v4686 = vpack.c.bf16 %v4636, %v4635
  %v4687 = vpack.c.bf16 %v4638, %v4637
  %v4688 = vpack.c.bf16 %v4640, %v4639
  %v4689 = vpack.c.bf16 %v4642, %v4641
  %v4690 = vpack.c.bf16 %v4644, %v4643
  %v4691 = vpack.c.bf16 %v4646, %v4645
  %v4692 = vpack.c.bf16 %v4648, %v4647
  %v4693 = vpack.c.bf16 %v4650, %v4649
  %v4694 = vpack.c.bf16 %v4652, %v4651
  %v4695 = vpack.c.bf16 %v4654, %v4653
  %v4696 = vpack.c.bf16 %v4656, %v4655
  %v4697 = vpack.c.bf16 %v4658, %v4657
  %v4698 = vpack.c.bf16 %v4660, %v4659
  %v4699 = vpack.c.bf16 %v4662, %v4661
  %v4700 = vpack.c.bf16 %v4664, %v4663
  %v4701 = vpack.c.bf16 %v4666, %v4665
  %v4702 = vpack.c.bf16 %v4668, %v4667
  %v4703 = vpack.c.bf16 %v4670, %v4669
  %v4704 = vpack.c.bf16 %v4672, %v4671
  %v4705 = vunpack.c.l.bf16 %v4673
  %v4706 = vunpack.c.h.bf16 %v4673
  %v4707 = vunpack.c.l.bf16 %v4674
  %v4708 = vunpack.c.h.bf16 %v4674
  %v4709 = vunpack.c.l.bf16 %v4675
  %v4710 = vunpack.c.h.bf16 %v4675
  %v4711 = vunpack.c.l.bf16 %v4676
  %v4712 = vunpack.c.h.bf16 %v4676
  %v4713 = vunpack.c.l.bf16 %v4677
  %v4714 = vunpack.c.h.bf16 %v4677
  %v4715 = vunpack.c.l.bf16 %v4678
  %v4716 = vunpack.c.h.bf16 %v4678
  %v4717 = vunpack.c.l.bf16 %v4679
  %v4718 = vunpack.c.h.bf16 %v4679
  %v4719 = vunpack.c.l.bf16 %v4680
  %v4720 = vunpack.c.h.bf16 %v4680
  %v4721 = vunpack.c.l.bf16 %v4681
  %v4722 = vunpack.c.h.bf16 %v4681
  %v4723 = vunpack.c.l.bf16 %v4682
  %v4724 = vunpack.c.h.bf16 %v4682
  %v4725 = vunpack.c.l.bf16 %v4683
  %v4726 = vunpack.c.h.bf16 %v4683
  %v4727 = vunpack.c.l.bf16 %v4684
  %v4728 = vunpack.c.h.bf16 %v4684
  %v4729 = vunpack.c.l.bf16 %v4685
  %v4730 = vunpack.c.h.bf16 %v4685
  %v4731 = vunpack.c.l.bf16 %v4686
  %v4732 = vunpack.c.h.bf16 %v4686
  %v4733 = vunpack.c.l.bf16 %v4687
  %v4734 = vunpack.c.h.bf16 %v4687
  %v4735 = vunpack.c.l.bf16 %v4688
  %v4736 = vunpack.c.h.bf16 %v4688
  %v4737 = vunpack.c.l.bf16 %v4689
  %v4738 = vunpack.c.h.bf16 %v4689
  %v4739 = vunpack.c.l.bf16 %v4690
  %v4740 = vunpack.c.h.bf16 %v4690
  %v4741 = vunpack.c.l.bf16 %v4691
  %v4742 = vunpack.c.h.bf16 %v4691
  %v4743 = vunpack.c.l.bf16 %v4692
  %v4744 = vunpack.c.h.bf16 %v4692
  %v4745 = vunpack.c.l.bf16 %v4693
  %v4746 = vunpack.c.h.bf16 %v4693
  %v4747 = vunpack.c.l.bf16 %v4694
  %v4748 = vunpack.c.h.bf16 %v4694
  %v4749 = vunpack.c.l.bf16 %v4695
  %v4750 = vunpack.c.h.bf16 %v4695
  %v4751 = vunpack.c.l.bf16 %v4696
  %v4752 = vunpack.c.h.bf16 %v4696
  %v4753 = vunpack.c.l.bf16 %v4697
  %v4754 = vunpack.c.h.bf16 %v4697
  %v4755 = vunpack.c.l.bf16 %v4698
  %v4756 = vunpack.c.h.bf16 %v4698
  %v4757 = vunpack.c.l.bf16 %v4699
  %v4758 = vunpack.c.h.bf16 %v4699
  %v4759 = vunpack.c.l.bf16 %v4700
  %v4760 = vunpack.c.h.bf16 %v4700
  %v4761 = vunpack.c.l.bf16 %v4701
  %v4762 = vunpack.c.h.bf16 %v4701
  %v4763 = vunpack.c.l.bf16 %v4702
  %v4764 = vunpack.c.h.bf16 %v4702
  %v4765 = vunpack.c.l.bf16 %v4703
  %v4766 = vunpack.c.h.bf16 %v4703
  %v4767 = vunpack.c.l.bf16 %v4704
  %v4768 = vunpack.c.h.bf16 %v4704
  %v4769 = vsub.f32 %v4609, %v4705
  %v4770 = vsub.f32 %v4610, %v4706
  %v4771 = vsub.f32 %v4611, %v4707
  %v4772 = vsub.f32 %v4612, %v4708
  %v4773 = vsub.f32 %v4613, %v4709
  %v4774 = vsub.f32 %v4614, %v4710
  %v4775 = vsub.f32 %v4615, %v4711
  %v4776 = vsub.f32 %v4616, %v4712
  %v4777 = vsub.f32 %v4617, %v4713
  %v4778 = vsub.f32 %v4618, %v4714
  %v4779 = vsub.f32 %v4619, %v4715
  %v4780 = vsub.f32 %v4620, %v4716
  %v4781 = vsub.f32 %v4621, %v4717
  %v4782 = vsub.f32 %v4622, %v4718
  %v4783 = vsub.f32 %v4623, %v4719
  %v4784 = vsub.f32 %v4624, %v4720
  %v4785 = vsub.f32 %v4625, %v4721
  %v4786 = vsub.f32 %v4626, %v4722
  %v4787 = vsub.f32 %v4627, %v4723
  %v4788 = vsub.f32 %v4628, %v4724
  %v4789 = vsub.f32 %v4629, %v4725
  %v4790 = vsub.f32 %v4630, %v4726
  %v4791 = vsub.f32 %v4631, %v4727
  %v4792 = vsub.f32 %v4632, %v4728
  %v4793 = vsub.f32 %v4633, %v4729
  %v4794 = vsub.f32 %v4634, %v4730
  %v4795 = vsub.f32 %v4635, %v4731
  %v4796 = vsub.f32 %v4636, %v4732
  %v4797 = vsub.f32 %v4637, %v4733
  %v4798 = vsub.f32 %v4638, %v4734
  %v4799 = vsub.f32 %v4639, %v4735
  %v4800 = vsub.f32 %v4640, %v4736
  %v4801 = vsub.f32 %v4641, %v4737
  %v4802 = vsub.f32 %v4642, %v4738
  %v4803 = vsub.f32 %v4643, %v4739
  %v4804 = vsub.f32 %v4644, %v4740
  %v4805 = vsub.f32 %v4645, %v4741
  %v4806 = vsub.f32 %v4646, %v4742
  %v4807 = vsub.f32 %v4647, %v4743
  %v4808 = vsub.f32 %v4648, %v4744
  %v4809 = vsub.f32 %v4649, %v4745
  %v4810 = vsub.f32 %v4650, %v4746
  %v4811 = vsub.f32 %v4651, %v4747
  %v4812 = vsub.f32 %v4652, %v4748
  %v4813 = vsub.f32 %v4653, %v4749
  %v4814 = vsub.f32 %v4654, %v4750
  %v4815 = vsub.f32 %v4655, %v4751
  %v4816 = vsub.f32 %v4656, %v4752
  %v4817 = vsub.f32 %v4657, %v4753
  %v4818 = vsub.f32 %v4658, %v4754
  %v4819 = vsub.f32 %v4659, %v4755
  %v4820 = vsub.f32 %v4660, %v4756
  %v4821 = vsub.f32 %v4661, %v4757
  %v4822 = vsub.f32 %v4662, %v4758
  %v4823 = vsub.f32 %v4663, %v4759
  %v4824 = vsub.f32 %v4664, %v4760
  %v4825 = vsub.f32 %v4665, %v4761
  %v4826 = vsub.f32 %v4666, %v4762
  %v4827 = vsub.f32 %v4667, %v4763
  %v4828 = vsub.f32 %v4668, %v4764
  %v4829 = vsub.f32 %v4669, %v4765
  %v4830 = vsub.f32 %v4670, %v4766
  %v4831 = vsub.f32 %v4671, %v4767
  %v4832 = vsub.f32 %v4672, %v4768
  %v4833 = vpack.c.bf16 %v4770, %v4769
  %v4834 = vpack.c.bf16 %v4772, %v4771
  %v4835 = vpack.c.bf16 %v4774, %v4773
  %v4836 = vpack.c.bf16 %v4776, %v4775
  %v4837 = vpack.c.bf16 %v4778, %v4777
  %v4838 = vpack.c.bf16 %v4780, %v4779
  %v4839 = vpack.c.bf16 %v4782, %v4781
  %v4840 = vpack.c.bf16 %v4784, %v4783
  %v4841 = vpack.c.bf16 %v4786, %v4785
  %v4842 = vpack.c.bf16 %v4788, %v4787
  %v4843 = vpack.c.bf16 %v4790, %v4789
  %v4844 = vpack.c.bf16 %v4792, %v4791
  %v4845 = vpack.c.bf16 %v4794, %v4793
  %v4846 = vpack.c.bf16 %v4796, %v4795
  %v4847 = vpack.c.bf16 %v4798, %v4797
  %v4848 = vpack.c.bf16 %v4800, %v4799
  %v4849 = vpack.c.bf16 %v4802, %v4801
  %v4850 = vpack.c.bf16 %v4804, %v4803
  %v4851 = vpack.c.bf16 %v4806, %v4805
  %v4852 = vpack.c.bf16 %v4808, %v4807
  %v4853 = vpack.c.bf16 %v4810, %v4809
  %v4854 = vpack.c.bf16 %v4812, %v4811
  %v4855 = vpack.c.bf16 %v4814, %v4813
  %v4856 = vpack.c.bf16 %v4816, %v4815
  %v4857 = vpack.c.bf16 %v4818, %v4817
  %v4858 = vpack.c.bf16 %v4820, %v4819
  %v4859 = vpack.c.bf16 %v4822, %v4821
  %v4860 = vpack.c.bf16 %v4824, %v4823
  %v4861 = vpack.c.bf16 %v4826, %v4825
  %v4862 = vpack.c.bf16 %v4828, %v4827
  %v4863 = vpack.c.bf16 %v4830, %v4829
  %v4864 = vpack.c.bf16 %v4832, %v4831
  %4865 = vmatprep.subr.bf16.mxu0 0
  %4866 = vmatpush1.bf16.msra.mxu0 %v3377
  %4867 = vmatprep.subr.bf16.mxu0 0
  %4868 = vmatpush1.bf16.msra.mxu0 %v3376
  %4869 = vmatprep.subr.bf16.mxu0 0
  %4870 = vmatpush1.bf16.msra.mxu0 %v3375
  %4871 = vmatprep.subr.bf16.mxu0 0
  %4872 = vmatpush1.bf16.msra.mxu0 %v3374
  %4873 = vmatprep.subr.bf16.mxu0 0
  %4874 = vmatpush1.bf16.msra.mxu0 %v3373
  %4875 = vmatprep.subr.bf16.mxu0 0
  %4876 = vmatpush1.bf16.msra.mxu0 %v3372
  %4877 = vmatprep.subr.bf16.mxu0 0
  %4878 = vmatpush1.bf16.msra.mxu0 %v3371
  %4879 = vmatprep.subr.bf16.mxu0 0
  %4880 = vmatpush1.bf16.msra.mxu0 %v3370
  %4881 = vmatprep.subr.bf16.mxu0 0
  %4882 = vmatpush2.bf16.msra.mxu0 0
  %4883 = vmatprep.subr.bf16.mxu0 0
  %4884 = vmatpush2.bf16.msra.mxu0 0
  %4885 = vmatprep.subr.bf16.mxu0 0
  %4886 = vmatpush2.bf16.msra.mxu0 0
  %4887 = vmatprep.subr.bf16.mxu0 0
  %4888 = vmatpush2.bf16.msra.mxu0 0
  %4889 = vmatprep.subr.bf16.mxu0 0
  %4890 = vmatpush2.bf16.msra.mxu0 0
  %4891 = vmatprep.subr.bf16.mxu0 0
  %4892 = vmatpush2.bf16.msra.mxu0 0
  %4893 = vmatprep.subr.bf16.mxu0 0
  %4894 = vmatpush2.bf16.msra.mxu0 0
  %4895 = vmatprep.subr.bf16.mxu0 0
  %4896 = vmatpush2.bf16.msra.mxu0 0
  %4897 = vmatprep.mubr.bf16.mxu0 0
  %4898 = vmatmul.mubr.bf16.gmra.mxu0 %v4673
  %v4899 = vpop.f32.mrf.mxu0
  %v4900 = vadd.f32 0.0, %v4899
  %v4901 = vpop.f32.mrf.mxu0
  %v4902 = vpop.f32.mrf.mxu0
  %v4903 = vadd.f32 0.0, %v4902
  %v4904 = vpop.f32.mrf.mxu0
  %4905 = vmatprep.mubr.bf16.mxu0 0
  %4906 = vmatmul.mubr.bf16.gmra.mxu0 %v4674
  %v4907 = vpop.f32.mrf.mxu0
  %v4908 = vadd.f32 0.0, %v4907
  %v4909 = vpop.f32.mrf.mxu0
  %v4910 = vpop.f32.mrf.mxu0
  %v4911 = vadd.f32 0.0, %v4910
  %v4912 = vpop.f32.mrf.mxu0
  %4913 = vmatprep.mubr.bf16.mxu0 0
  %4914 = vmatmul.mubr.bf16.gmra.mxu0 %v4675
  %v4915 = vpop.f32.mrf.mxu0
  %v4916 = vadd.f32 0.0, %v4915
  %v4917 = vpop.f32.mrf.mxu0
  %v4918 = vpop.f32.mrf.mxu0
  %v4919 = vadd.f32 0.0, %v4918
  %v4920 = vpop.f32.mrf.mxu0
  %4921 = vmatprep.mubr.bf16.mxu0 0
  %4922 = vmatmul.mubr.bf16.gmra.mxu0 %v4676
  %v4923 = vpop.f32.mrf.mxu0
  %v4924 = vadd.f32 0.0, %v4923
  %v4925 = vpop.f32.mrf.mxu0
  %v4926 = vpop.f32.mrf.mxu0
  %v4927 = vadd.f32 0.0, %v4926
  %v4928 = vpop.f32.mrf.mxu0
  %4929 = vmatprep.mubr.bf16.mxu0 0
  %4930 = vmatmul.mubr.bf16.gmra.mxu0 %v4677
  %v4931 = vpop.f32.mrf.mxu0
  %v4932 = vadd.f32 0.0, %v4931
  %v4933 = vpop.f32.mrf.mxu0
  %v4934 = vpop.f32.mrf.mxu0
  %v4935 = vadd.f32 0.0, %v4934
  %v4936 = vpop.f32.mrf.mxu0
  %4937 = vmatprep.mubr.bf16.mxu0 0
  %4938 = vmatmul.mubr.bf16.gmra.mxu0 %v4678
  %v4939 = vpop.f32.mrf.mxu0
  %v4940 = vadd.f32 0.0, %v4939
  %v4941 = vpop.f32.mrf.mxu0
  %v4942 = vpop.f32.mrf.mxu0
  %v4943 = vadd.f32 0.0, %v4942
  %v4944 = vpop.f32.mrf.mxu0
  %4945 = vmatprep.mubr.bf16.mxu0 0
  %4946 = vmatmul.mubr.bf16.gmra.mxu0 %v4679
  %v4947 = vpop.f32.mrf.mxu0
  %v4948 = vadd.f32 0.0, %v4947
  %v4949 = vpop.f32.mrf.mxu0
  %v4950 = vpop.f32.mrf.mxu0
  %v4951 = vadd.f32 0.0, %v4950
  %v4952 = vpop.f32.mrf.mxu0
  %4953 = vmatprep.mubr.bf16.mxu0 0
  %4954 = vmatmul.mubr.bf16.gmra.mxu0 %v4680
  %v4955 = vpop.f32.mrf.mxu0
  %v4956 = vadd.f32 0.0, %v4955
  %v4957 = vpop.f32.mrf.mxu0
  %v4958 = vpop.f32.mrf.mxu0
  %v4959 = vadd.f32 0.0, %v4958
  %v4960 = vpop.f32.mrf.mxu0
  %4961 = vmatprep.mubr.bf16.mxu0 0
  %4962 = vmatmul.mubr.bf16.gmra.mxu0 %v4681
  %v4963 = vpop.f32.mrf.mxu0
  %v4964 = vadd.f32 0.0, %v4963
  %v4965 = vpop.f32.mrf.mxu0
  %v4966 = vpop.f32.mrf.mxu0
  %v4967 = vadd.f32 0.0, %v4966
  %v4968 = vpop.f32.mrf.mxu0
  %4969 = vmatprep.mubr.bf16.mxu0 0
  %4970 = vmatmul.mubr.bf16.gmra.mxu0 %v4682
  %v4971 = vpop.f32.mrf.mxu0
  %v4972 = vadd.f32 0.0, %v4971
  %v4973 = vpop.f32.mrf.mxu0
  %v4974 = vpop.f32.mrf.mxu0
  %v4975 = vadd.f32 0.0, %v4974
  %v4976 = vpop.f32.mrf.mxu0
  %4977 = vmatprep.mubr.bf16.mxu0 0
  %4978 = vmatmul.mubr.bf16.gmra.mxu0 %v4683
  %v4979 = vpop.f32.mrf.mxu0
  %v4980 = vadd.f32 0.0, %v4979
  %v4981 = vpop.f32.mrf.mxu0
  %v4982 = vpop.f32.mrf.mxu0
  %v4983 = vadd.f32 0.0, %v4982
  %v4984 = vpop.f32.mrf.mxu0
  %4985 = vmatprep.mubr.bf16.mxu0 0
  %4986 = vmatmul.mubr.bf16.gmra.mxu0 %v4684
  %v4987 = vpop.f32.mrf.mxu0
  %v4988 = vadd.f32 0.0, %v4987
  %v4989 = vpop.f32.mrf.mxu0
  %v4990 = vpop.f32.mrf.mxu0
  %v4991 = vadd.f32 0.0, %v4990
  %v4992 = vpop.f32.mrf.mxu0
  %4993 = vmatprep.mubr.bf16.mxu0 0
  %4994 = vmatmul.mubr.bf16.gmra.mxu0 %v4685
  %v4995 = vpop.f32.mrf.mxu0
  %v4996 = vadd.f32 0.0, %v4995
  %v4997 = vpop.f32.mrf.mxu0
  %v4998 = vpop.f32.mrf.mxu0
  %v4999 = vadd.f32 0.0, %v4998
  %v5000 = vpop.f32.mrf.mxu0
  %5001 = vmatprep.mubr.bf16.mxu0 0
  %5002 = vmatmul.mubr.bf16.gmra.mxu0 %v4686
  %v5003 = vpop.f32.mrf.mxu0
  %v5004 = vadd.f32 0.0, %v5003
  %v5005 = vpop.f32.mrf.mxu0
  %v5006 = vpop.f32.mrf.mxu0
  %v5007 = vadd.f32 0.0, %v5006
  %v5008 = vpop.f32.mrf.mxu0
  %5009 = vmatprep.mubr.bf16.mxu0 0
  %5010 = vmatmul.mubr.bf16.gmra.mxu0 %v4687
  %v5011 = vpop.f32.mrf.mxu0
  %v5012 = vadd.f32 0.0, %v5011
  %v5013 = vpop.f32.mrf.mxu0
  %v5014 = vpop.f32.mrf.mxu0
  %v5015 = vadd.f32 0.0, %v5014
  %v5016 = vpop.f32.mrf.mxu0
  %5017 = vmatprep.mubr.bf16.mxu0 0
  %5018 = vmatmul.mubr.bf16.gmra.mxu0 %v4688
  %v5019 = vpop.f32.mrf.mxu0
  %v5020 = vadd.f32 0.0, %v5019
  %v5021 = vpop.f32.mrf.mxu0
  %v5022 = vpop.f32.mrf.mxu0
  %v5023 = vadd.f32 0.0, %v5022
  %v5024 = vpop.f32.mrf.mxu0
  %5025 = vmatprep.mubr.bf16.mxu0 0
  %5026 = vmatmul.mubr.bf16.gmra.mxu0 %v4689
  %v5027 = vpop.f32.mrf.mxu0
  %v5028 = vadd.f32 0.0, %v5027
  %v5029 = vpop.f32.mrf.mxu0
  %v5030 = vpop.f32.mrf.mxu0
  %v5031 = vadd.f32 0.0, %v5030
  %v5032 = vpop.f32.mrf.mxu0
  %5033 = vmatprep.mubr.bf16.mxu0 0
  %5034 = vmatmul.mubr.bf16.gmra.mxu0 %v4690
  %v5035 = vpop.f32.mrf.mxu0
  %v5036 = vadd.f32 0.0, %v5035
  %v5037 = vpop.f32.mrf.mxu0
  %v5038 = vpop.f32.mrf.mxu0
  %v5039 = vadd.f32 0.0, %v5038
  %v5040 = vpop.f32.mrf.mxu0
  %5041 = vmatprep.mubr.bf16.mxu0 0
  %5042 = vmatmul.mubr.bf16.gmra.mxu0 %v4691
  %v5043 = vpop.f32.mrf.mxu0
  %v5044 = vadd.f32 0.0, %v5043
  %v5045 = vpop.f32.mrf.mxu0
  %v5046 = vpop.f32.mrf.mxu0
  %v5047 = vadd.f32 0.0, %v5046
  %v5048 = vpop.f32.mrf.mxu0
  %5049 = vmatprep.mubr.bf16.mxu0 0
  %5050 = vmatmul.mubr.bf16.gmra.mxu0 %v4692
  %v5051 = vpop.f32.mrf.mxu0
  %v5052 = vadd.f32 0.0, %v5051
  %v5053 = vpop.f32.mrf.mxu0
  %v5054 = vpop.f32.mrf.mxu0
  %v5055 = vadd.f32 0.0, %v5054
  %v5056 = vpop.f32.mrf.mxu0
  %5057 = vmatprep.mubr.bf16.mxu0 0
  %5058 = vmatmul.mubr.bf16.gmra.mxu0 %v4693
  %v5059 = vpop.f32.mrf.mxu0
  %v5060 = vadd.f32 0.0, %v5059
  %v5061 = vpop.f32.mrf.mxu0
  %v5062 = vpop.f32.mrf.mxu0
  %v5063 = vadd.f32 0.0, %v5062
  %v5064 = vpop.f32.mrf.mxu0
  %5065 = vmatprep.mubr.bf16.mxu0 0
  %5066 = vmatmul.mubr.bf16.gmra.mxu0 %v4694
  %v5067 = vpop.f32.mrf.mxu0
  %v5068 = vadd.f32 0.0, %v5067
  %v5069 = vpop.f32.mrf.mxu0
  %v5070 = vpop.f32.mrf.mxu0
  %v5071 = vadd.f32 0.0, %v5070
  %v5072 = vpop.f32.mrf.mxu0
  %5073 = vmatprep.mubr.bf16.mxu0 0
  %5074 = vmatmul.mubr.bf16.gmra.mxu0 %v4695
  %v5075 = vpop.f32.mrf.mxu0
  %v5076 = vadd.f32 0.0, %v5075
  %v5077 = vpop.f32.mrf.mxu0
  %v5078 = vpop.f32.mrf.mxu0
  %v5079 = vadd.f32 0.0, %v5078
  %v5080 = vpop.f32.mrf.mxu0
  %5081 = vmatprep.mubr.bf16.mxu0 0
  %5082 = vmatmul.mubr.bf16.gmra.mxu0 %v4696
  %v5083 = vpop.f32.mrf.mxu0
  %v5084 = vadd.f32 0.0, %v5083
  %v5085 = vpop.f32.mrf.mxu0
  %v5086 = vpop.f32.mrf.mxu0
  %v5087 = vadd.f32 0.0, %v5086
  %v5088 = vpop.f32.mrf.mxu0
  %5089 = vmatprep.mubr.bf16.mxu0 0
  %5090 = vmatmul.mubr.bf16.gmra.mxu0 %v4697
  %v5091 = vpop.f32.mrf.mxu0
  %v5092 = vadd.f32 0.0, %v5091
  %v5093 = vpop.f32.mrf.mxu0
  %v5094 = vpop.f32.mrf.mxu0
  %v5095 = vadd.f32 0.0, %v5094
  %v5096 = vpop.f32.mrf.mxu0
  %5097 = vmatprep.mubr.bf16.mxu0 0
  %5098 = vmatmul.mubr.bf16.gmra.mxu0 %v4698
  %v5099 = vpop.f32.mrf.mxu0
  %v5100 = vadd.f32 0.0, %v5099
  %v5101 = vpop.f32.mrf.mxu0
  %v5102 = vpop.f32.mrf.mxu0
  %v5103 = vadd.f32 0.0, %v5102
  %v5104 = vpop.f32.mrf.mxu0
  %5105 = vmatprep.mubr.bf16.mxu0 0
  %5106 = vmatmul.mubr.bf16.gmra.mxu0 %v4699
  %v5107 = vpop.f32.mrf.mxu0
  %v5108 = vadd.f32 0.0, %v5107
  %v5109 = vpop.f32.mrf.mxu0
  %v5110 = vpop.f32.mrf.mxu0
  %v5111 = vadd.f32 0.0, %v5110
  %v5112 = vpop.f32.mrf.mxu0
  %5113 = vmatprep.mubr.bf16.mxu0 0
  %5114 = vmatmul.mubr.bf16.gmra.mxu0 %v4700
  %v5115 = vpop.f32.mrf.mxu0
  %v5116 = vadd.f32 0.0, %v5115
  %v5117 = vpop.f32.mrf.mxu0
  %v5118 = vpop.f32.mrf.mxu0
  %v5119 = vadd.f32 0.0, %v5118
  %v5120 = vpop.f32.mrf.mxu0
  %5121 = vmatprep.mubr.bf16.mxu0 0
  %5122 = vmatmul.mubr.bf16.gmra.mxu0 %v4701
  %v5123 = vpop.f32.mrf.mxu0
  %v5124 = vadd.f32 0.0, %v5123
  %v5125 = vpop.f32.mrf.mxu0
  %v5126 = vpop.f32.mrf.mxu0
  %v5127 = vadd.f32 0.0, %v5126
  %v5128 = vpop.f32.mrf.mxu0
  %5129 = vmatprep.mubr.bf16.mxu0 0
  %5130 = vmatmul.mubr.bf16.gmra.mxu0 %v4702
  %v5131 = vpop.f32.mrf.mxu0
  %v5132 = vadd.f32 0.0, %v5131
  %v5133 = vpop.f32.mrf.mxu0
  %v5134 = vpop.f32.mrf.mxu0
  %v5135 = vadd.f32 0.0, %v5134
  %v5136 = vpop.f32.mrf.mxu0
  %5137 = vmatprep.mubr.bf16.mxu0 0
  %5138 = vmatmul.mubr.bf16.gmra.mxu0 %v4703
  %v5139 = vpop.f32.mrf.mxu0
  %v5140 = vadd.f32 0.0, %v5139
  %v5141 = vpop.f32.mrf.mxu0
  %v5142 = vpop.f32.mrf.mxu0
  %v5143 = vadd.f32 0.0, %v5142
  %v5144 = vpop.f32.mrf.mxu0
  %5145 = vmatprep.mubr.bf16.mxu0 0
  %5146 = vmatmul.mubr.bf16.gmra.mxu0 %v4704
  %v5147 = vpop.f32.mrf.mxu0
  %v5148 = vadd.f32 0.0, %v5147
  %v5149 = vpop.f32.mrf.mxu0
  %v5150 = vpop.f32.mrf.mxu0
  %v5151 = vadd.f32 0.0, %v5150
  %v5152 = vpop.f32.mrf.mxu0
  %5153 = vdwg.mxu0
  %5154 = vmatprep.subr.bf16.mxu0 0
  %5155 = vmatpush1.bf16.msra.mxu0 %v3377
  %5156 = vmatprep.subr.bf16.mxu0 0
  %5157 = vmatpush1.bf16.msra.mxu0 %v3376
  %5158 = vmatprep.subr.bf16.mxu0 0
  %5159 = vmatpush1.bf16.msra.mxu0 %v3375
  %5160 = vmatprep.subr.bf16.mxu0 0
  %5161 = vmatpush1.bf16.msra.mxu0 %v3374
  %5162 = vmatprep.subr.bf16.mxu0 0
  %5163 = vmatpush1.bf16.msra.mxu0 %v3373
  %5164 = vmatprep.subr.bf16.mxu0 0
  %5165 = vmatpush1.bf16.msra.mxu0 %v3372
  %5166 = vmatprep.subr.bf16.mxu0 0
  %5167 = vmatpush1.bf16.msra.mxu0 %v3371
  %5168 = vmatprep.subr.bf16.mxu0 0
  %5169 = vmatpush1.bf16.msra.mxu0 %v3370
  %5170 = vmatprep.subr.bf16.mxu0 0
  %5171 = vmatpush2.bf16.msra.mxu0 0
  %5172 = vmatprep.subr.bf16.mxu0 0
  %5173 = vmatpush2.bf16.msra.mxu0 0
  %5174 = vmatprep.subr.bf16.mxu0 0
  %5175 = vmatpush2.bf16.msra.mxu0 0
  %5176 = vmatprep.subr.bf16.mxu0 0
  %5177 = vmatpush2.bf16.msra.mxu0 0
  %5178 = vmatprep.subr.bf16.mxu0 0
  %5179 = vmatpush2.bf16.msra.mxu0 0
  %5180 = vmatprep.subr.bf16.mxu0 0
  %5181 = vmatpush2.bf16.msra.mxu0 0
  %5182 = vmatprep.subr.bf16.mxu0 0
  %5183 = vmatpush2.bf16.msra.mxu0 0
  %5184 = vmatprep.subr.bf16.mxu0 0
  %5185 = vmatpush2.bf16.msra.mxu0 0
  %5186 = vmatprep.mubr.bf16.mxu0 0
  %5187 = vmatmul.mubr.bf16.gmra.mxu0 %v4513
  %v5188 = vpop.f32.mrf.mxu0
  %v5189 = vadd.f32 %v4900, %v5188
  %v5190 = vpop.f32.mrf.mxu0
  %v5191 = vpop.f32.mrf.mxu0
  %v5192 = vadd.f32 %v4903, %v5191
  %v5193 = vpop.f32.mrf.mxu0
  %5194 = vmatprep.mubr.bf16.mxu0 0
  %5195 = vmatmul.mubr.bf16.gmra.mxu0 %v4514
  %v5196 = vpop.f32.mrf.mxu0
  %v5197 = vadd.f32 %v4908, %v5196
  %v5198 = vpop.f32.mrf.mxu0
  %v5199 = vpop.f32.mrf.mxu0
  %v5200 = vadd.f32 %v4911, %v5199
  %v5201 = vpop.f32.mrf.mxu0
  %5202 = vmatprep.mubr.bf16.mxu0 0
  %5203 = vmatmul.mubr.bf16.gmra.mxu0 %v4515
  %v5204 = vpop.f32.mrf.mxu0
  %v5205 = vadd.f32 %v4916, %v5204
  %v5206 = vpop.f32.mrf.mxu0
  %v5207 = vpop.f32.mrf.mxu0
  %v5208 = vadd.f32 %v4919, %v5207
  %v5209 = vpop.f32.mrf.mxu0
  %5210 = vmatprep.mubr.bf16.mxu0 0
  %5211 = vmatmul.mubr.bf16.gmra.mxu0 %v4516
  %v5212 = vpop.f32.mrf.mxu0
  %v5213 = vadd.f32 %v4924, %v5212
  %v5214 = vpop.f32.mrf.mxu0
  %v5215 = vpop.f32.mrf.mxu0
  %v5216 = vadd.f32 %v4927, %v5215
  %v5217 = vpop.f32.mrf.mxu0
  %5218 = vmatprep.mubr.bf16.mxu0 0
  %5219 = vmatmul.mubr.bf16.gmra.mxu0 %v4517
  %v5220 = vpop.f32.mrf.mxu0
  %v5221 = vadd.f32 %v4932, %v5220
  %v5222 = vpop.f32.mrf.mxu0
  %v5223 = vpop.f32.mrf.mxu0
  %v5224 = vadd.f32 %v4935, %v5223
  %v5225 = vpop.f32.mrf.mxu0
  %5226 = vmatprep.mubr.bf16.mxu0 0
  %5227 = vmatmul.mubr.bf16.gmra.mxu0 %v4518
  %v5228 = vpop.f32.mrf.mxu0
  %v5229 = vadd.f32 %v4940, %v5228
  %v5230 = vpop.f32.mrf.mxu0
  %v5231 = vpop.f32.mrf.mxu0
  %v5232 = vadd.f32 %v4943, %v5231
  %v5233 = vpop.f32.mrf.mxu0
  %5234 = vmatprep.mubr.bf16.mxu0 0
  %5235 = vmatmul.mubr.bf16.gmra.mxu0 %v4519
  %v5236 = vpop.f32.mrf.mxu0
  %v5237 = vadd.f32 %v4948, %v5236
  %v5238 = vpop.f32.mrf.mxu0
  %v5239 = vpop.f32.mrf.mxu0
  %v5240 = vadd.f32 %v4951, %v5239
  %v5241 = vpop.f32.mrf.mxu0
  %5242 = vmatprep.mubr.bf16.mxu0 0
  %5243 = vmatmul.mubr.bf16.gmra.mxu0 %v4520
  %v5244 = vpop.f32.mrf.mxu0
  %v5245 = vadd.f32 %v4956, %v5244
  %v5246 = vpop.f32.mrf.mxu0
  %v5247 = vpop.f32.mrf.mxu0
  %v5248 = vadd.f32 %v4959, %v5247
  %v5249 = vpop.f32.mrf.mxu0
  %5250 = vmatprep.mubr.bf16.mxu0 0
  %5251 = vmatmul.mubr.bf16.gmra.mxu0 %v4521
  %v5252 = vpop.f32.mrf.mxu0
  %v5253 = vadd.f32 %v4964, %v5252
  %v5254 = vpop.f32.mrf.mxu0
  %v5255 = vpop.f32.mrf.mxu0
  %v5256 = vadd.f32 %v4967, %v5255
  %v5257 = vpop.f32.mrf.mxu0
  %5258 = vmatprep.mubr.bf16.mxu0 0
  %5259 = vmatmul.mubr.bf16.gmra.mxu0 %v4522
  %v5260 = vpop.f32.mrf.mxu0
  %v5261 = vadd.f32 %v4972, %v5260
  %v5262 = vpop.f32.mrf.mxu0
  %v5263 = vpop.f32.mrf.mxu0
  %v5264 = vadd.f32 %v4975, %v5263
  %v5265 = vpop.f32.mrf.mxu0
  %5266 = vmatprep.mubr.bf16.mxu0 0
  %5267 = vmatmul.mubr.bf16.gmra.mxu0 %v4523
  %v5268 = vpop.f32.mrf.mxu0
  %v5269 = vadd.f32 %v4980, %v5268
  %v5270 = vpop.f32.mrf.mxu0
  %v5271 = vpop.f32.mrf.mxu0
  %v5272 = vadd.f32 %v4983, %v5271
  %v5273 = vpop.f32.mrf.mxu0
  %5274 = vmatprep.mubr.bf16.mxu0 0
  %5275 = vmatmul.mubr.bf16.gmra.mxu0 %v4524
  %v5276 = vpop.f32.mrf.mxu0
  %v5277 = vadd.f32 %v4988, %v5276
  %v5278 = vpop.f32.mrf.mxu0
  %v5279 = vpop.f32.mrf.mxu0
  %v5280 = vadd.f32 %v4991, %v5279
  %v5281 = vpop.f32.mrf.mxu0
  %5282 = vmatprep.mubr.bf16.mxu0 0
  %5283 = vmatmul.mubr.bf16.gmra.mxu0 %v4525
  %v5284 = vpop.f32.mrf.mxu0
  %v5285 = vadd.f32 %v4996, %v5284
  %v5286 = vpop.f32.mrf.mxu0
  %v5287 = vpop.f32.mrf.mxu0
  %v5288 = vadd.f32 %v4999, %v5287
  %v5289 = vpop.f32.mrf.mxu0
  %5290 = vmatprep.mubr.bf16.mxu0 0
  %5291 = vmatmul.mubr.bf16.gmra.mxu0 %v4526
  %v5292 = vpop.f32.mrf.mxu0
  %v5293 = vadd.f32 %v5004, %v5292
  %v5294 = vpop.f32.mrf.mxu0
  %v5295 = vpop.f32.mrf.mxu0
  %v5296 = vadd.f32 %v5007, %v5295
  %v5297 = vpop.f32.mrf.mxu0
  %5298 = vmatprep.mubr.bf16.mxu0 0
  %5299 = vmatmul.mubr.bf16.gmra.mxu0 %v4527
  %v5300 = vpop.f32.mrf.mxu0
  %v5301 = vadd.f32 %v5012, %v5300
  %v5302 = vpop.f32.mrf.mxu0
  %v5303 = vpop.f32.mrf.mxu0
  %v5304 = vadd.f32 %v5015, %v5303
  %v5305 = vpop.f32.mrf.mxu0
  %5306 = vmatprep.mubr.bf16.mxu0 0
  %5307 = vmatmul.mubr.bf16.gmra.mxu0 %v4528
  %v5308 = vpop.f32.mrf.mxu0
  %v5309 = vadd.f32 %v5020, %v5308
  %v5310 = vpop.f32.mrf.mxu0
  %v5311 = vpop.f32.mrf.mxu0
  %v5312 = vadd.f32 %v5023, %v5311
  %v5313 = vpop.f32.mrf.mxu0
  %5314 = vmatprep.mubr.bf16.mxu0 0
  %5315 = vmatmul.mubr.bf16.gmra.mxu0 %v4529
  %v5316 = vpop.f32.mrf.mxu0
  %v5317 = vadd.f32 %v5028, %v5316
  %v5318 = vpop.f32.mrf.mxu0
  %v5319 = vpop.f32.mrf.mxu0
  %v5320 = vadd.f32 %v5031, %v5319
  %v5321 = vpop.f32.mrf.mxu0
  %5322 = vmatprep.mubr.bf16.mxu0 0
  %5323 = vmatmul.mubr.bf16.gmra.mxu0 %v4530
  %v5324 = vpop.f32.mrf.mxu0
  %v5325 = vadd.f32 %v5036, %v5324
  %v5326 = vpop.f32.mrf.mxu0
  %v5327 = vpop.f32.mrf.mxu0
  %v5328 = vadd.f32 %v5039, %v5327
  %v5329 = vpop.f32.mrf.mxu0
  %5330 = vmatprep.mubr.bf16.mxu0 0
  %5331 = vmatmul.mubr.bf16.gmra.mxu0 %v4531
  %v5332 = vpop.f32.mrf.mxu0
  %v5333 = vadd.f32 %v5044, %v5332
  %v5334 = vpop.f32.mrf.mxu0
  %v5335 = vpop.f32.mrf.mxu0
  %v5336 = vadd.f32 %v5047, %v5335
  %v5337 = vpop.f32.mrf.mxu0
  %5338 = vmatprep.mubr.bf16.mxu0 0
  %5339 = vmatmul.mubr.bf16.gmra.mxu0 %v4532
  %v5340 = vpop.f32.mrf.mxu0
  %v5341 = vadd.f32 %v5052, %v5340
  %v5342 = vpop.f32.mrf.mxu0
  %v5343 = vpop.f32.mrf.mxu0
  %v5344 = vadd.f32 %v5055, %v5343
  %v5345 = vpop.f32.mrf.mxu0
  %5346 = vmatprep.mubr.bf16.mxu0 0
  %5347 = vmatmul.mubr.bf16.gmra.mxu0 %v4533
  %v5348 = vpop.f32.mrf.mxu0
  %v5349 = vadd.f32 %v5060, %v5348
  %v5350 = vpop.f32.mrf.mxu0
  %v5351 = vpop.f32.mrf.mxu0
  %v5352 = vadd.f32 %v5063, %v5351
  %v5353 = vpop.f32.mrf.mxu0
  %5354 = vmatprep.mubr.bf16.mxu0 0
  %5355 = vmatmul.mubr.bf16.gmra.mxu0 %v4534
  %v5356 = vpop.f32.mrf.mxu0
  %v5357 = vadd.f32 %v5068, %v5356
  %v5358 = vpop.f32.mrf.mxu0
  %v5359 = vpop.f32.mrf.mxu0
  %v5360 = vadd.f32 %v5071, %v5359
  %v5361 = vpop.f32.mrf.mxu0
  %5362 = vmatprep.mubr.bf16.mxu0 0
  %5363 = vmatmul.mubr.bf16.gmra.mxu0 %v4535
  %v5364 = vpop.f32.mrf.mxu0
  %v5365 = vadd.f32 %v5076, %v5364
  %v5366 = vpop.f32.mrf.mxu0
  %v5367 = vpop.f32.mrf.mxu0
  %v5368 = vadd.f32 %v5079, %v5367
  %v5369 = vpop.f32.mrf.mxu0
  %5370 = vmatprep.mubr.bf16.mxu0 0
  %5371 = vmatmul.mubr.bf16.gmra.mxu0 %v4536
  %v5372 = vpop.f32.mrf.mxu0
  %v5373 = vadd.f32 %v5084, %v5372
  %v5374 = vpop.f32.mrf.mxu0
  %v5375 = vpop.f32.mrf.mxu0
  %v5376 = vadd.f32 %v5087, %v5375
  %v5377 = vpop.f32.mrf.mxu0
  %5378 = vmatprep.mubr.bf16.mxu0 0
  %5379 = vmatmul.mubr.bf16.gmra.mxu0 %v4537
  %v5380 = vpop.f32.mrf.mxu0
  %v5381 = vadd.f32 %v5092, %v5380
  %v5382 = vpop.f32.mrf.mxu0
  %v5383 = vpop.f32.mrf.mxu0
  %v5384 = vadd.f32 %v5095, %v5383
  %v5385 = vpop.f32.mrf.mxu0
  %5386 = vmatprep.mubr.bf16.mxu0 0
  %5387 = vmatmul.mubr.bf16.gmra.mxu0 %v4538
  %v5388 = vpop.f32.mrf.mxu0
  %v5389 = vadd.f32 %v5100, %v5388
  %v5390 = vpop.f32.mrf.mxu0
  %v5391 = vpop.f32.mrf.mxu0
  %v5392 = vadd.f32 %v5103, %v5391
  %v5393 = vpop.f32.mrf.mxu0
  %5394 = vmatprep.mubr.bf16.mxu0 0
  %5395 = vmatmul.mubr.bf16.gmra.mxu0 %v4539
  %v5396 = vpop.f32.mrf.mxu0
  %v5397 = vadd.f32 %v5108, %v5396
  %v5398 = vpop.f32.mrf.mxu0
  %v5399 = vpop.f32.mrf.mxu0
  %v5400 = vadd.f32 %v5111, %v5399
  %v5401 = vpop.f32.mrf.mxu0
  %5402 = vmatprep.mubr.bf16.mxu0 0
  %5403 = vmatmul.mubr.bf16.gmra.mxu0 %v4540
  %v5404 = vpop.f32.mrf.mxu0
  %v5405 = vadd.f32 %v5116, %v5404
  %v5406 = vpop.f32.mrf.mxu0
  %v5407 = vpop.f32.mrf.mxu0
  %v5408 = vadd.f32 %v5119, %v5407
  %v5409 = vpop.f32.mrf.mxu0
  %5410 = vmatprep.mubr.bf16.mxu0 0
  %5411 = vmatmul.mubr.bf16.gmra.mxu0 %v4541
  %v5412 = vpop.f32.mrf.mxu0
  %v5413 = vadd.f32 %v5124, %v5412
  %v5414 = vpop.f32.mrf.mxu0
  %v5415 = vpop.f32.mrf.mxu0
  %v5416 = vadd.f32 %v5127, %v5415
  %v5417 = vpop.f32.mrf.mxu0
  %5418 = vmatprep.mubr.bf16.mxu0 0
  %5419 = vmatmul.mubr.bf16.gmra.mxu0 %v4542
  %v5420 = vpop.f32.mrf.mxu0
  %v5421 = vadd.f32 %v5132, %v5420
  %v5422 = vpop.f32.mrf.mxu0
  %v5423 = vpop.f32.mrf.mxu0
  %v5424 = vadd.f32 %v5135, %v5423
  %v5425 = vpop.f32.mrf.mxu0
  %5426 = vmatprep.mubr.bf16.mxu0 0
  %5427 = vmatmul.mubr.bf16.gmra.mxu0 %v4543
  %v5428 = vpop.f32.mrf.mxu0
  %v5429 = vadd.f32 %v5140, %v5428
  %v5430 = vpop.f32.mrf.mxu0
  %v5431 = vpop.f32.mrf.mxu0
  %v5432 = vadd.f32 %v5143, %v5431
  %v5433 = vpop.f32.mrf.mxu0
  %5434 = vmatprep.mubr.bf16.mxu0 0
  %5435 = vmatmul.mubr.bf16.gmra.mxu0 %v4544
  %v5436 = vpop.f32.mrf.mxu0
  %v5437 = vadd.f32 %v5148, %v5436
  %v5438 = vpop.f32.mrf.mxu0
  %v5439 = vpop.f32.mrf.mxu0
  %v5440 = vadd.f32 %v5151, %v5439
  %v5441 = vpop.f32.mrf.mxu0
  %5442 = vdwg.mxu0
  %5443 = vmatprep.subr.bf16.mxu0 0
  %5444 = vmatpush1.bf16.msra.mxu0 %v3377
  %5445 = vmatprep.subr.bf16.mxu0 0
  %5446 = vmatpush1.bf16.msra.mxu0 %v3376
  %5447 = vmatprep.subr.bf16.mxu0 0
  %5448 = vmatpush1.bf16.msra.mxu0 %v3375
  %5449 = vmatprep.subr.bf16.mxu0 0
  %5450 = vmatpush1.bf16.msra.mxu0 %v3374
  %5451 = vmatprep.subr.bf16.mxu0 0
  %5452 = vmatpush1.bf16.msra.mxu0 %v3373
  %5453 = vmatprep.subr.bf16.mxu0 0
  %5454 = vmatpush1.bf16.msra.mxu0 %v3372
  %5455 = vmatprep.subr.bf16.mxu0 0
  %5456 = vmatpush1.bf16.msra.mxu0 %v3371
  %5457 = vmatprep.subr.bf16.mxu0 0
  %5458 = vmatpush1.bf16.msra.mxu0 %v3370
  %5459 = vmatprep.subr.bf16.mxu0 0
  %5460 = vmatpush2.bf16.msra.mxu0 0
  %5461 = vmatprep.subr.bf16.mxu0 0
  %5462 = vmatpush2.bf16.msra.mxu0 0
  %5463 = vmatprep.subr.bf16.mxu0 0
  %5464 = vmatpush2.bf16.msra.mxu0 0
  %5465 = vmatprep.subr.bf16.mxu0 0
  %5466 = vmatpush2.bf16.msra.mxu0 0
  %5467 = vmatprep.subr.bf16.mxu0 0
  %5468 = vmatpush2.bf16.msra.mxu0 0
  %5469 = vmatprep.subr.bf16.mxu0 0
  %5470 = vmatpush2.bf16.msra.mxu0 0
  %5471 = vmatprep.subr.bf16.mxu0 0
  %5472 = vmatpush2.bf16.msra.mxu0 0
  %5473 = vmatprep.subr.bf16.mxu0 0
  %5474 = vmatpush2.bf16.msra.mxu0 0
  %5475 = vmatprep.mubr.bf16.mxu0 0
  %5476 = vmatmul.mubr.bf16.gmra.mxu0 %v4833
  %v5477 = vpop.f32.mrf.mxu0
  %v5478 = vadd.f32 0.0, %v5477
  %v5479 = vpop.f32.mrf.mxu0
  %v5480 = vpop.f32.mrf.mxu0
  %v5481 = vadd.f32 0.0, %v5480
  %v5482 = vpop.f32.mrf.mxu0
  %5483 = vmatprep.mubr.bf16.mxu0 0
  %5484 = vmatmul.mubr.bf16.gmra.mxu0 %v4834
  %v5485 = vpop.f32.mrf.mxu0
  %v5486 = vadd.f32 0.0, %v5485
  %v5487 = vpop.f32.mrf.mxu0
  %v5488 = vpop.f32.mrf.mxu0
  %v5489 = vadd.f32 0.0, %v5488
  %v5490 = vpop.f32.mrf.mxu0
  %5491 = vmatprep.mubr.bf16.mxu0 0
  %5492 = vmatmul.mubr.bf16.gmra.mxu0 %v4835
  %v5493 = vpop.f32.mrf.mxu0
  %v5494 = vadd.f32 0.0, %v5493
  %v5495 = vpop.f32.mrf.mxu0
  %v5496 = vpop.f32.mrf.mxu0
  %v5497 = vadd.f32 0.0, %v5496
  %v5498 = vpop.f32.mrf.mxu0
  %5499 = vmatprep.mubr.bf16.mxu0 0
  %5500 = vmatmul.mubr.bf16.gmra.mxu0 %v4836
  %v5501 = vpop.f32.mrf.mxu0
  %v5502 = vadd.f32 0.0, %v5501
  %v5503 = vpop.f32.mrf.mxu0
  %v5504 = vpop.f32.mrf.mxu0
  %v5505 = vadd.f32 0.0, %v5504
  %v5506 = vpop.f32.mrf.mxu0
  %5507 = vmatprep.mubr.bf16.mxu0 0
  %5508 = vmatmul.mubr.bf16.gmra.mxu0 %v4837
  %v5509 = vpop.f32.mrf.mxu0
  %v5510 = vadd.f32 0.0, %v5509
  %v5511 = vpop.f32.mrf.mxu0
  %v5512 = vpop.f32.mrf.mxu0
  %v5513 = vadd.f32 0.0, %v5512
  %v5514 = vpop.f32.mrf.mxu0
  %5515 = vmatprep.mubr.bf16.mxu0 0
  %5516 = vmatmul.mubr.bf16.gmra.mxu0 %v4838
  %v5517 = vpop.f32.mrf.mxu0
  %v5518 = vadd.f32 0.0, %v5517
  %v5519 = vpop.f32.mrf.mxu0
  %v5520 = vpop.f32.mrf.mxu0
  %v5521 = vadd.f32 0.0, %v5520
  %v5522 = vpop.f32.mrf.mxu0
  %5523 = vmatprep.mubr.bf16.mxu0 0
  %5524 = vmatmul.mubr.bf16.gmra.mxu0 %v4839
  %v5525 = vpop.f32.mrf.mxu0
  %v5526 = vadd.f32 0.0, %v5525
  %v5527 = vpop.f32.mrf.mxu0
  %v5528 = vpop.f32.mrf.mxu0
  %v5529 = vadd.f32 0.0, %v5528
  %v5530 = vpop.f32.mrf.mxu0
  %5531 = vmatprep.mubr.bf16.mxu0 0
  %5532 = vmatmul.mubr.bf16.gmra.mxu0 %v4840
  %v5533 = vpop.f32.mrf.mxu0
  %v5534 = vadd.f32 0.0, %v5533
  %v5535 = vpop.f32.mrf.mxu0
  %v5536 = vpop.f32.mrf.mxu0
  %v5537 = vadd.f32 0.0, %v5536
  %v5538 = vpop.f32.mrf.mxu0
  %5539 = vmatprep.mubr.bf16.mxu0 0
  %5540 = vmatmul.mubr.bf16.gmra.mxu0 %v4841
  %v5541 = vpop.f32.mrf.mxu0
  %v5542 = vadd.f32 0.0, %v5541
  %v5543 = vpop.f32.mrf.mxu0
  %v5544 = vpop.f32.mrf.mxu0
  %v5545 = vadd.f32 0.0, %v5544
  %v5546 = vpop.f32.mrf.mxu0
  %5547 = vmatprep.mubr.bf16.mxu0 0
  %5548 = vmatmul.mubr.bf16.gmra.mxu0 %v4842
  %v5549 = vpop.f32.mrf.mxu0
  %v5550 = vadd.f32 0.0, %v5549
  %v5551 = vpop.f32.mrf.mxu0
  %v5552 = vpop.f32.mrf.mxu0
  %v5553 = vadd.f32 0.0, %v5552
  %v5554 = vpop.f32.mrf.mxu0
  %5555 = vmatprep.mubr.bf16.mxu0 0
  %5556 = vmatmul.mubr.bf16.gmra.mxu0 %v4843
  %v5557 = vpop.f32.mrf.mxu0
  %v5558 = vadd.f32 0.0, %v5557
  %v5559 = vpop.f32.mrf.mxu0
  %v5560 = vpop.f32.mrf.mxu0
  %v5561 = vadd.f32 0.0, %v5560
  %v5562 = vpop.f32.mrf.mxu0
  %5563 = vmatprep.mubr.bf16.mxu0 0
  %5564 = vmatmul.mubr.bf16.gmra.mxu0 %v4844
  %v5565 = vpop.f32.mrf.mxu0
  %v5566 = vadd.f32 0.0, %v5565
  %v5567 = vpop.f32.mrf.mxu0
  %v5568 = vpop.f32.mrf.mxu0
  %v5569 = vadd.f32 0.0, %v5568
  %v5570 = vpop.f32.mrf.mxu0
  %5571 = vmatprep.mubr.bf16.mxu0 0
  %5572 = vmatmul.mubr.bf16.gmra.mxu0 %v4845
  %v5573 = vpop.f32.mrf.mxu0
  %v5574 = vadd.f32 0.0, %v5573
  %v5575 = vpop.f32.mrf.mxu0
  %v5576 = vpop.f32.mrf.mxu0
  %v5577 = vadd.f32 0.0, %v5576
  %v5578 = vpop.f32.mrf.mxu0
  %5579 = vmatprep.mubr.bf16.mxu0 0
  %5580 = vmatmul.mubr.bf16.gmra.mxu0 %v4846
  %v5581 = vpop.f32.mrf.mxu0
  %v5582 = vadd.f32 0.0, %v5581
  %v5583 = vpop.f32.mrf.mxu0
  %v5584 = vpop.f32.mrf.mxu0
  %v5585 = vadd.f32 0.0, %v5584
  %v5586 = vpop.f32.mrf.mxu0
  %5587 = vmatprep.mubr.bf16.mxu0 0
  %5588 = vmatmul.mubr.bf16.gmra.mxu0 %v4847
  %v5589 = vpop.f32.mrf.mxu0
  %v5590 = vadd.f32 0.0, %v5589
  %v5591 = vpop.f32.mrf.mxu0
  %v5592 = vpop.f32.mrf.mxu0
  %v5593 = vadd.f32 0.0, %v5592
  %v5594 = vpop.f32.mrf.mxu0
  %5595 = vmatprep.mubr.bf16.mxu0 0
  %5596 = vmatmul.mubr.bf16.gmra.mxu0 %v4848
  %v5597 = vpop.f32.mrf.mxu0
  %v5598 = vadd.f32 0.0, %v5597
  %v5599 = vpop.f32.mrf.mxu0
  %v5600 = vpop.f32.mrf.mxu0
  %v5601 = vadd.f32 0.0, %v5600
  %v5602 = vpop.f32.mrf.mxu0
  %5603 = vmatprep.mubr.bf16.mxu0 0
  %5604 = vmatmul.mubr.bf16.gmra.mxu0 %v4849
  %v5605 = vpop.f32.mrf.mxu0
  %v5606 = vadd.f32 0.0, %v5605
  %v5607 = vpop.f32.mrf.mxu0
  %v5608 = vpop.f32.mrf.mxu0
  %v5609 = vadd.f32 0.0, %v5608
  %v5610 = vpop.f32.mrf.mxu0
  %5611 = vmatprep.mubr.bf16.mxu0 0
  %5612 = vmatmul.mubr.bf16.gmra.mxu0 %v4850
  %v5613 = vpop.f32.mrf.mxu0
  %v5614 = vadd.f32 0.0, %v5613
  %v5615 = vpop.f32.mrf.mxu0
  %v5616 = vpop.f32.mrf.mxu0
  %v5617 = vadd.f32 0.0, %v5616
  %v5618 = vpop.f32.mrf.mxu0
  %5619 = vmatprep.mubr.bf16.mxu0 0
  %5620 = vmatmul.mubr.bf16.gmra.mxu0 %v4851
  %v5621 = vpop.f32.mrf.mxu0
  %v5622 = vadd.f32 0.0, %v5621
  %v5623 = vpop.f32.mrf.mxu0
  %v5624 = vpop.f32.mrf.mxu0
  %v5625 = vadd.f32 0.0, %v5624
  %v5626 = vpop.f32.mrf.mxu0
  %5627 = vmatprep.mubr.bf16.mxu0 0
  %5628 = vmatmul.mubr.bf16.gmra.mxu0 %v4852
  %v5629 = vpop.f32.mrf.mxu0
  %v5630 = vadd.f32 0.0, %v5629
  %v5631 = vpop.f32.mrf.mxu0
  %v5632 = vpop.f32.mrf.mxu0
  %v5633 = vadd.f32 0.0, %v5632
  %v5634 = vpop.f32.mrf.mxu0
  %5635 = vmatprep.mubr.bf16.mxu0 0
  %5636 = vmatmul.mubr.bf16.gmra.mxu0 %v4853
  %v5637 = vpop.f32.mrf.mxu0
  %v5638 = vadd.f32 0.0, %v5637
  %v5639 = vpop.f32.mrf.mxu0
  %v5640 = vpop.f32.mrf.mxu0
  %v5641 = vadd.f32 0.0, %v5640
  %v5642 = vpop.f32.mrf.mxu0
  %5643 = vmatprep.mubr.bf16.mxu0 0
  %5644 = vmatmul.mubr.bf16.gmra.mxu0 %v4854
  %v5645 = vpop.f32.mrf.mxu0
  %v5646 = vadd.f32 0.0, %v5645
  %v5647 = vpop.f32.mrf.mxu0
  %v5648 = vpop.f32.mrf.mxu0
  %v5649 = vadd.f32 0.0, %v5648
  %v5650 = vpop.f32.mrf.mxu0
  %5651 = vmatprep.mubr.bf16.mxu0 0
  %5652 = vmatmul.mubr.bf16.gmra.mxu0 %v4855
  %v5653 = vpop.f32.mrf.mxu0
  %v5654 = vadd.f32 0.0, %v5653
  %v5655 = vpop.f32.mrf.mxu0
  %v5656 = vpop.f32.mrf.mxu0
  %v5657 = vadd.f32 0.0, %v5656
  %v5658 = vpop.f32.mrf.mxu0
  %5659 = vmatprep.mubr.bf16.mxu0 0
  %5660 = vmatmul.mubr.bf16.gmra.mxu0 %v4856
  %v5661 = vpop.f32.mrf.mxu0
  %v5662 = vadd.f32 0.0, %v5661
  %v5663 = vpop.f32.mrf.mxu0
  %v5664 = vpop.f32.mrf.mxu0
  %v5665 = vadd.f32 0.0, %v5664
  %v5666 = vpop.f32.mrf.mxu0
  %5667 = vmatprep.mubr.bf16.mxu0 0
  %5668 = vmatmul.mubr.bf16.gmra.mxu0 %v4857
  %v5669 = vpop.f32.mrf.mxu0
  %v5670 = vadd.f32 0.0, %v5669
  %v5671 = vpop.f32.mrf.mxu0
  %v5672 = vpop.f32.mrf.mxu0
  %v5673 = vadd.f32 0.0, %v5672
  %v5674 = vpop.f32.mrf.mxu0
  %5675 = vmatprep.mubr.bf16.mxu0 0
  %5676 = vmatmul.mubr.bf16.gmra.mxu0 %v4858
  %v5677 = vpop.f32.mrf.mxu0
  %v5678 = vadd.f32 0.0, %v5677
  %v5679 = vpop.f32.mrf.mxu0
  %v5680 = vpop.f32.mrf.mxu0
  %v5681 = vadd.f32 0.0, %v5680
  %v5682 = vpop.f32.mrf.mxu0
  %5683 = vmatprep.mubr.bf16.mxu0 0
  %5684 = vmatmul.mubr.bf16.gmra.mxu0 %v4859
  %v5685 = vpop.f32.mrf.mxu0
  %v5686 = vadd.f32 0.0, %v5685
  %v5687 = vpop.f32.mrf.mxu0
  %v5688 = vpop.f32.mrf.mxu0
  %v5689 = vadd.f32 0.0, %v5688
  %v5690 = vpop.f32.mrf.mxu0
  %5691 = vmatprep.mubr.bf16.mxu0 0
  %5692 = vmatmul.mubr.bf16.gmra.mxu0 %v4860
  %v5693 = vpop.f32.mrf.mxu0
  %v5694 = vadd.f32 0.0, %v5693
  %v5695 = vpop.f32.mrf.mxu0
  %v5696 = vpop.f32.mrf.mxu0
  %v5697 = vadd.f32 0.0, %v5696
  %v5698 = vpop.f32.mrf.mxu0
  %5699 = vmatprep.mubr.bf16.mxu0 0
  %5700 = vmatmul.mubr.bf16.gmra.mxu0 %v4861
  %v5701 = vpop.f32.mrf.mxu0
  %v5702 = vadd.f32 0.0, %v5701
  %v5703 = vpop.f32.mrf.mxu0
  %v5704 = vpop.f32.mrf.mxu0
  %v5705 = vadd.f32 0.0, %v5704
  %v5706 = vpop.f32.mrf.mxu0
  %5707 = vmatprep.mubr.bf16.mxu0 0
  %5708 = vmatmul.mubr.bf16.gmra.mxu0 %v4862
  %v5709 = vpop.f32.mrf.mxu0
  %v5710 = vadd.f32 0.0, %v5709
  %v5711 = vpop.f32.mrf.mxu0
  %v5712 = vpop.f32.mrf.mxu0
  %v5713 = vadd.f32 0.0, %v5712
  %v5714 = vpop.f32.mrf.mxu0
  %5715 = vmatprep.mubr.bf16.mxu0 0
  %5716 = vmatmul.mubr.bf16.gmra.mxu0 %v4863
  %v5717 = vpop.f32.mrf.mxu0
  %v5718 = vadd.f32 0.0, %v5717
  %v5719 = vpop.f32.mrf.mxu0
  %v5720 = vpop.f32.mrf.mxu0
  %v5721 = vadd.f32 0.0, %v5720
  %v5722 = vpop.f32.mrf.mxu0
  %5723 = vmatprep.mubr.bf16.mxu0 0
  %5724 = vmatmul.mubr.bf16.gmra.mxu0 %v4864
  %v5725 = vpop.f32.mrf.mxu0
  %v5726 = vadd.f32 0.0, %v5725
  %v5727 = vpop.f32.mrf.mxu0
  %v5728 = vpop.f32.mrf.mxu0
  %v5729 = vadd.f32 0.0, %v5728
  %v5730 = vpop.f32.mrf.mxu0
  %5731 = vdwg.mxu0
  %v5732 = vadd.f32 %v5189, %v5478
  %v5733 = vadd.f32 %v5192, %v5481
  %v5734 = vadd.f32 %v5197, %v5486
  %v5735 = vadd.f32 %v5200, %v5489
  %v5736 = vadd.f32 %v5205, %v5494
  %v5737 = vadd.f32 %v5208, %v5497
  %v5738 = vadd.f32 %v5213, %v5502
  %v5739 = vadd.f32 %v5216, %v5505
  %v5740 = vadd.f32 %v5221, %v5510
  %v5741 = vadd.f32 %v5224, %v5513
  %v5742 = vadd.f32 %v5229, %v5518
  %v5743 = vadd.f32 %v5232, %v5521
  %v5744 = vadd.f32 %v5237, %v5526
  %v5745 = vadd.f32 %v5240, %v5529
  %v5746 = vadd.f32 %v5245, %v5534
  %v5747 = vadd.f32 %v5248, %v5537
  %v5748 = vadd.f32 %v5253, %v5542
  %v5749 = vadd.f32 %v5256, %v5545
  %v5750 = vadd.f32 %v5261, %v5550
  %v5751 = vadd.f32 %v5264, %v5553
  %v5752 = vadd.f32 %v5269, %v5558
  %v5753 = vadd.f32 %v5272, %v5561
  %v5754 = vadd.f32 %v5277, %v5566
  %v5755 = vadd.f32 %v5280, %v5569
  %v5756 = vadd.f32 %v5285, %v5574
  %v5757 = vadd.f32 %v5288, %v5577
  %v5758 = vadd.f32 %v5293, %v5582
  %v5759 = vadd.f32 %v5296, %v5585
  %v5760 = vadd.f32 %v5301, %v5590
  %v5761 = vadd.f32 %v5304, %v5593
  %v5762 = vadd.f32 %v5309, %v5598
  %v5763 = vadd.f32 %v5312, %v5601
  %v5764 = vadd.f32 %v5317, %v5606
  %v5765 = vadd.f32 %v5320, %v5609
  %v5766 = vadd.f32 %v5325, %v5614
  %v5767 = vadd.f32 %v5328, %v5617
  %v5768 = vadd.f32 %v5333, %v5622
  %v5769 = vadd.f32 %v5336, %v5625
  %v5770 = vadd.f32 %v5341, %v5630
  %v5771 = vadd.f32 %v5344, %v5633
  %v5772 = vadd.f32 %v5349, %v5638
  %v5773 = vadd.f32 %v5352, %v5641
  %v5774 = vadd.f32 %v5357, %v5646
  %v5775 = vadd.f32 %v5360, %v5649
  %v5776 = vadd.f32 %v5365, %v5654
  %v5777 = vadd.f32 %v5368, %v5657
  %v5778 = vadd.f32 %v5373, %v5662
  %v5779 = vadd.f32 %v5376, %v5665
  %v5780 = vadd.f32 %v5381, %v5670
  %v5781 = vadd.f32 %v5384, %v5673
  %v5782 = vadd.f32 %v5389, %v5678
  %v5783 = vadd.f32 %v5392, %v5681
  %v5784 = vadd.f32 %v5397, %v5686
  %v5785 = vadd.f32 %v5400, %v5689
  %v5786 = vadd.f32 %v5405, %v5694
  %v5787 = vadd.f32 %v5408, %v5697
  %v5788 = vadd.f32 %v5413, %v5702
  %v5789 = vadd.f32 %v5416, %v5705
  %v5790 = vadd.f32 %v5421, %v5710
  %v5791 = vadd.f32 %v5424, %v5713
  %v5792 = vadd.f32 %v5429, %v5718
  %v5793 = vadd.f32 %v5432, %v5721
  %v5794 = vadd.f32 %v5437, %v5726
  %v5795 = vadd.f32 %v5440, %v5729
  %v5796 = vmul.f32 %v4320, %v5732
  %v5797 = vmul.f32 %v4320, %v5733
  %v5798 = vmul.f32 %v4320, %v5734
  %v5799 = vmul.f32 %v4320, %v5735
  %v5800 = vmul.f32 %v4320, %v5736
  %v5801 = vmul.f32 %v4320, %v5737
  %v5802 = vmul.f32 %v4320, %v5738
  %v5803 = vmul.f32 %v4320, %v5739
  %v5804 = vmul.f32 %v4320, %v5740
  %v5805 = vmul.f32 %v4320, %v5741
  %v5806 = vmul.f32 %v4320, %v5742
  %v5807 = vmul.f32 %v4320, %v5743
  %v5808 = vmul.f32 %v4320, %v5744
  %v5809 = vmul.f32 %v4320, %v5745
  %v5810 = vmul.f32 %v4320, %v5746
  %v5811 = vmul.f32 %v4320, %v5747
  %v5812 = vmul.f32 %v4320, %v5748
  %v5813 = vmul.f32 %v4320, %v5749
  %v5814 = vmul.f32 %v4320, %v5750
  %v5815 = vmul.f32 %v4320, %v5751
  %v5816 = vmul.f32 %v4320, %v5752
  %v5817 = vmul.f32 %v4320, %v5753
  %v5818 = vmul.f32 %v4320, %v5754
  %v5819 = vmul.f32 %v4320, %v5755
  %v5820 = vmul.f32 %v4320, %v5756
  %v5821 = vmul.f32 %v4320, %v5757
  %v5822 = vmul.f32 %v4320, %v5758
  %v5823 = vmul.f32 %v4320, %v5759
  %v5824 = vmul.f32 %v4320, %v5760
  %v5825 = vmul.f32 %v4320, %v5761
  %v5826 = vmul.f32 %v4320, %v5762
  %v5827 = vmul.f32 %v4320, %v5763
  %v5828 = vmul.f32 %v4320, %v5764
  %v5829 = vmul.f32 %v4320, %v5765
  %v5830 = vmul.f32 %v4320, %v5766
  %v5831 = vmul.f32 %v4320, %v5767
  %v5832 = vmul.f32 %v4320, %v5768
  %v5833 = vmul.f32 %v4320, %v5769
  %v5834 = vmul.f32 %v4320, %v5770
  %v5835 = vmul.f32 %v4320, %v5771
  %v5836 = vmul.f32 %v4320, %v5772
  %v5837 = vmul.f32 %v4320, %v5773
  %v5838 = vmul.f32 %v4320, %v5774
  %v5839 = vmul.f32 %v4320, %v5775
  %v5840 = vmul.f32 %v4320, %v5776
  %v5841 = vmul.f32 %v4320, %v5777
  %v5842 = vmul.f32 %v4320, %v5778
  %v5843 = vmul.f32 %v4320, %v5779
  %v5844 = vmul.f32 %v4320, %v5780
  %v5845 = vmul.f32 %v4320, %v5781
  %v5846 = vmul.f32 %v4320, %v5782
  %v5847 = vmul.f32 %v4320, %v5783
  %v5848 = vmul.f32 %v4320, %v5784
  %v5849 = vmul.f32 %v4320, %v5785
  %v5850 = vmul.f32 %v4320, %v5786
  %v5851 = vmul.f32 %v4320, %v5787
  %v5852 = vmul.f32 %v4320, %v5788
  %v5853 = vmul.f32 %v4320, %v5789
  %v5854 = vmul.f32 %v4320, %v5790
  %v5855 = vmul.f32 %v4320, %v5791
  %v5856 = vmul.f32 %v4320, %v5792
  %v5857 = vmul.f32 %v4320, %v5793
  %v5858 = vmul.f32 %v4320, %v5794
  %v5859 = vmul.f32 %v4320, %v5795
  %v5860 = vadd.f32 %v2857, %v5796
  %v5861 = vadd.f32 %v2858, %v5797
  %v5862 = vadd.f32 %v2859, %v5798
  %v5863 = vadd.f32 %v2860, %v5799
  %v5864 = vadd.f32 %v2861, %v5800
  %v5865 = vadd.f32 %v2862, %v5801
  %v5866 = vadd.f32 %v2863, %v5802
  %v5867 = vadd.f32 %v2864, %v5803
  %v5868 = vadd.f32 %v2865, %v5804
  %v5869 = vadd.f32 %v2866, %v5805
  %v5870 = vadd.f32 %v2867, %v5806
  %v5871 = vadd.f32 %v2868, %v5807
  %v5872 = vadd.f32 %v2869, %v5808
  %v5873 = vadd.f32 %v2870, %v5809
  %v5874 = vadd.f32 %v2871, %v5810
  %v5875 = vadd.f32 %v2872, %v5811
  %v5876 = vadd.f32 %v2873, %v5812
  %v5877 = vadd.f32 %v2874, %v5813
  %v5878 = vadd.f32 %v2875, %v5814
  %v5879 = vadd.f32 %v2876, %v5815
  %v5880 = vadd.f32 %v2877, %v5816
  %v5881 = vadd.f32 %v2878, %v5817
  %v5882 = vadd.f32 %v2879, %v5818
  %v5883 = vadd.f32 %v2880, %v5819
  %v5884 = vadd.f32 %v2881, %v5820
  %v5885 = vadd.f32 %v2882, %v5821
  %v5886 = vadd.f32 %v2883, %v5822
  %v5887 = vadd.f32 %v2884, %v5823
  %v5888 = vadd.f32 %v2885, %v5824
  %v5889 = vadd.f32 %v2886, %v5825
  %v5890 = vadd.f32 %v2887, %v5826
  %v5891 = vadd.f32 %v2888, %v5827
  %v5892 = vadd.f32 %v2889, %v5828
  %v5893 = vadd.f32 %v2890, %v5829
  %v5894 = vadd.f32 %v2891, %v5830
  %v5895 = vadd.f32 %v2892, %v5831
  %v5896 = vadd.f32 %v2893, %v5832
  %v5897 = vadd.f32 %v2894, %v5833
  %v5898 = vadd.f32 %v2895, %v5834
  %v5899 = vadd.f32 %v2896, %v5835
  %v5900 = vadd.f32 %v2897, %v5836
  %v5901 = vadd.f32 %v2898, %v5837
  %v5902 = vadd.f32 %v2899, %v5838
  %v5903 = vadd.f32 %v2900, %v5839
  %v5904 = vadd.f32 %v2901, %v5840
  %v5905 = vadd.f32 %v2902, %v5841
  %v5906 = vadd.f32 %v2903, %v5842
  %v5907 = vadd.f32 %v2904, %v5843
  %v5908 = vadd.f32 %v2905, %v5844
  %v5909 = vadd.f32 %v2906, %v5845
  %v5910 = vadd.f32 %v2907, %v5846
  %v5911 = vadd.f32 %v2908, %v5847
  %v5912 = vadd.f32 %v2909, %v5848
  %v5913 = vadd.f32 %v2910, %v5849
  %v5914 = vadd.f32 %v2911, %v5850
  %v5915 = vadd.f32 %v2912, %v5851
  %v5916 = vadd.f32 %v2913, %v5852
  %v5917 = vadd.f32 %v2914, %v5853
  %v5918 = vadd.f32 %v2915, %v5854
  %v5919 = vadd.f32 %v2916, %v5855
  %v5920 = vadd.f32 %v2917, %v5856
  %v5921 = vadd.f32 %v2918, %v5857
  %v5922 = vadd.f32 %v2919, %v5858
  %v5923 = vadd.f32 %v2920, %v5859
  %v5924 = vmul.f32 %v24, %v5860
  %v5925 = vmul.f32 %v25, %v5861
  %v5926 = vmul.f32 %v26, %v5862
  %v5927 = vmul.f32 %v27, %v5863
  %v5928 = vmul.f32 %v28, %v5864
  %v5929 = vmul.f32 %v29, %v5865
  %v5930 = vmul.f32 %v30, %v5866
  %v5931 = vmul.f32 %v31, %v5867
  %v5932 = vmul.f32 %v32, %v5868
  %v5933 = vmul.f32 %v33, %v5869
  %v5934 = vmul.f32 %v34, %v5870
  %v5935 = vmul.f32 %v35, %v5871
  %v5936 = vmul.f32 %v36, %v5872
  %v5937 = vmul.f32 %v37, %v5873
  %v5938 = vmul.f32 %v38, %v5874
  %v5939 = vmul.f32 %v39, %v5875
  %v5940 = vmul.f32 %v40, %v5876
  %v5941 = vmul.f32 %v41, %v5877
  %v5942 = vmul.f32 %v42, %v5878
  %v5943 = vmul.f32 %v43, %v5879
  %v5944 = vmul.f32 %v44, %v5880
  %v5945 = vmul.f32 %v45, %v5881
  %v5946 = vmul.f32 %v46, %v5882
  %v5947 = vmul.f32 %v47, %v5883
  %v5948 = vmul.f32 %v48, %v5884
  %v5949 = vmul.f32 %v49, %v5885
  %v5950 = vmul.f32 %v50, %v5886
  %v5951 = vmul.f32 %v51, %v5887
  %v5952 = vmul.f32 %v52, %v5888
  %v5953 = vmul.f32 %v53, %v5889
  %v5954 = vmul.f32 %v54, %v5890
  %v5955 = vmul.f32 %v55, %v5891
  %v5956 = vmul.f32 %v56, %v5892
  %v5957 = vmul.f32 %v57, %v5893
  %v5958 = vmul.f32 %v58, %v5894
  %v5959 = vmul.f32 %v59, %v5895
  %v5960 = vmul.f32 %v60, %v5896
  %v5961 = vmul.f32 %v61, %v5897
  %v5962 = vmul.f32 %v62, %v5898
  %v5963 = vmul.f32 %v63, %v5899
  %v5964 = vmul.f32 %v64, %v5900
  %v5965 = vmul.f32 %v65, %v5901
  %v5966 = vmul.f32 %v66, %v5902
  %v5967 = vmul.f32 %v67, %v5903
  %v5968 = vmul.f32 %v68, %v5904
  %v5969 = vmul.f32 %v69, %v5905
  %v5970 = vmul.f32 %v70, %v5906
  %v5971 = vmul.f32 %v71, %v5907
  %v5972 = vmul.f32 %v72, %v5908
  %v5973 = vmul.f32 %v73, %v5909
  %v5974 = vmul.f32 %v74, %v5910
  %v5975 = vmul.f32 %v75, %v5911
  %v5976 = vmul.f32 %v76, %v5912
  %v5977 = vmul.f32 %v77, %v5913
  %v5978 = vmul.f32 %v78, %v5914
  %v5979 = vmul.f32 %v79, %v5915
  %v5980 = vmul.f32 %v80, %v5916
  %v5981 = vmul.f32 %v81, %v5917
  %v5982 = vmul.f32 %v82, %v5918
  %v5983 = vmul.f32 %v83, %v5919
  %v5984 = vmul.f32 %v84, %v5920
  %v5985 = vmul.f32 %v85, %v5921
  %v5986 = vmul.f32 %v86, %v5922
  %v5987 = vmul.f32 %v87, %v5923
  %vm5988 = vcmp.gt.f32.partialorder %v5924, 0.5
  %vm5989 = vcmp.gt.f32.partialorder %v5925, 0.5
  %vm5990 = vcmp.gt.f32.partialorder %v5926, 0.5
  %vm5991 = vcmp.gt.f32.partialorder %v5927, 0.5
  %vm5992 = vcmp.gt.f32.partialorder %v5928, 0.5
  %vm5993 = vcmp.gt.f32.partialorder %v5929, 0.5
  %vm5994 = vcmp.gt.f32.partialorder %v5930, 0.5
  %vm5995 = vcmp.gt.f32.partialorder %v5931, 0.5
  %vm5996 = vcmp.gt.f32.partialorder %v5932, 0.5
  %vm5997 = vcmp.gt.f32.partialorder %v5933, 0.5
  %vm5998 = vcmp.gt.f32.partialorder %v5934, 0.5
  %vm5999 = vcmp.gt.f32.partialorder %v5935, 0.5
  %vm6000 = vcmp.gt.f32.partialorder %v5936, 0.5
  %vm6001 = vcmp.gt.f32.partialorder %v5937, 0.5
  %vm6002 = vcmp.gt.f32.partialorder %v5938, 0.5
  %vm6003 = vcmp.gt.f32.partialorder %v5939, 0.5
  %vm6004 = vcmp.gt.f32.partialorder %v5940, 0.5
  %vm6005 = vcmp.gt.f32.partialorder %v5941, 0.5
  %vm6006 = vcmp.gt.f32.partialorder %v5942, 0.5
  %vm6007 = vcmp.gt.f32.partialorder %v5943, 0.5
  %vm6008 = vcmp.gt.f32.partialorder %v5944, 0.5
  %vm6009 = vcmp.gt.f32.partialorder %v5945, 0.5
  %vm6010 = vcmp.gt.f32.partialorder %v5946, 0.5
  %vm6011 = vcmp.gt.f32.partialorder %v5947, 0.5
  %vm6012 = vcmp.gt.f32.partialorder %v5948, 0.5
  %vm6013 = vcmp.gt.f32.partialorder %v5949, 0.5
  %vm6014 = vcmp.gt.f32.partialorder %v5950, 0.5
  %vm6015 = vcmp.gt.f32.partialorder %v5951, 0.5
  %vm6016 = vcmp.gt.f32.partialorder %v5952, 0.5
  %vm6017 = vcmp.gt.f32.partialorder %v5953, 0.5
  %vm6018 = vcmp.gt.f32.partialorder %v5954, 0.5
  %vm6019 = vcmp.gt.f32.partialorder %v5955, 0.5
  %vm6020 = vcmp.gt.f32.partialorder %v5956, 0.5
  %vm6021 = vcmp.gt.f32.partialorder %v5957, 0.5
  %vm6022 = vcmp.gt.f32.partialorder %v5958, 0.5
  %vm6023 = vcmp.gt.f32.partialorder %v5959, 0.5
  %vm6024 = vcmp.gt.f32.partialorder %v5960, 0.5
  %vm6025 = vcmp.gt.f32.partialorder %v5961, 0.5
  %vm6026 = vcmp.gt.f32.partialorder %v5962, 0.5
  %vm6027 = vcmp.gt.f32.partialorder %v5963, 0.5
  %vm6028 = vcmp.gt.f32.partialorder %v5964, 0.5
  %vm6029 = vcmp.gt.f32.partialorder %v5965, 0.5
  %vm6030 = vcmp.gt.f32.partialorder %v5966, 0.5
  %vm6031 = vcmp.gt.f32.partialorder %v5967, 0.5
  %vm6032 = vcmp.gt.f32.partialorder %v5968, 0.5
  %vm6033 = vcmp.gt.f32.partialorder %v5969, 0.5
  %vm6034 = vcmp.gt.f32.partialorder %v5970, 0.5
  %vm6035 = vcmp.gt.f32.partialorder %v5971, 0.5
  %vm6036 = vcmp.gt.f32.partialorder %v5972, 0.5
  %vm6037 = vcmp.gt.f32.partialorder %v5973, 0.5
  %vm6038 = vcmp.gt.f32.partialorder %v5974, 0.5
  %vm6039 = vcmp.gt.f32.partialorder %v5975, 0.5
  %vm6040 = vcmp.gt.f32.partialorder %v5976, 0.5
  %vm6041 = vcmp.gt.f32.partialorder %v5977, 0.5
  %vm6042 = vcmp.gt.f32.partialorder %v5978, 0.5
  %vm6043 = vcmp.gt.f32.partialorder %v5979, 0.5
  %vm6044 = vcmp.gt.f32.partialorder %v5980, 0.5
  %vm6045 = vcmp.gt.f32.partialorder %v5981, 0.5
  %vm6046 = vcmp.gt.f32.partialorder %v5982, 0.5
  %vm6047 = vcmp.gt.f32.partialorder %v5983, 0.5
  %vm6048 = vcmp.gt.f32.partialorder %v5984, 0.5
  %vm6049 = vcmp.gt.f32.partialorder %v5985, 0.5
  %vm6050 = vcmp.gt.f32.partialorder %v5986, 0.5
  %vm6051 = vcmp.gt.f32.partialorder %v5987, 0.5
  %v6052 = vsel %vm5988, 1.0, 0.0
  %v6053 = vsel %vm5989, 1.0, 0.0
  %v6054 = vsel %vm5990, 1.0, 0.0
  %v6055 = vsel %vm5991, 1.0, 0.0
  %v6056 = vsel %vm5992, 1.0, 0.0
  %v6057 = vsel %vm5993, 1.0, 0.0
  %v6058 = vsel %vm5994, 1.0, 0.0
  %v6059 = vsel %vm5995, 1.0, 0.0
  %v6060 = vsel %vm5996, 1.0, 0.0
  %v6061 = vsel %vm5997, 1.0, 0.0
  %v6062 = vsel %vm5998, 1.0, 0.0
  %v6063 = vsel %vm5999, 1.0, 0.0
  %v6064 = vsel %vm6000, 1.0, 0.0
  %v6065 = vsel %vm6001, 1.0, 0.0
  %v6066 = vsel %vm6002, 1.0, 0.0
  %v6067 = vsel %vm6003, 1.0, 0.0
  %v6068 = vsel %vm6004, 1.0, 0.0
  %v6069 = vsel %vm6005, 1.0, 0.0
  %v6070 = vsel %vm6006, 1.0, 0.0
  %v6071 = vsel %vm6007, 1.0, 0.0
  %v6072 = vsel %vm6008, 1.0, 0.0
  %v6073 = vsel %vm6009, 1.0, 0.0
  %v6074 = vsel %vm6010, 1.0, 0.0
  %v6075 = vsel %vm6011, 1.0, 0.0
  %v6076 = vsel %vm6012, 1.0, 0.0
  %v6077 = vsel %vm6013, 1.0, 0.0
  %v6078 = vsel %vm6014, 1.0, 0.0
  %v6079 = vsel %vm6015, 1.0, 0.0
  %v6080 = vsel %vm6016, 1.0, 0.0
  %v6081 = vsel %vm6017, 1.0, 0.0
  %v6082 = vsel %vm6018, 1.0, 0.0
  %v6083 = vsel %vm6019, 1.0, 0.0
  %v6084 = vsel %vm6020, 1.0, 0.0
  %v6085 = vsel %vm6021, 1.0, 0.0
  %v6086 = vsel %vm6022, 1.0, 0.0
  %v6087 = vsel %vm6023, 1.0, 0.0
  %v6088 = vsel %vm6024, 1.0, 0.0
  %v6089 = vsel %vm6025, 1.0, 0.0
  %v6090 = vsel %vm6026, 1.0, 0.0
  %v6091 = vsel %vm6027, 1.0, 0.0
  %v6092 = vsel %vm6028, 1.0, 0.0
  %v6093 = vsel %vm6029, 1.0, 0.0
  %v6094 = vsel %vm6030, 1.0, 0.0
  %v6095 = vsel %vm6031, 1.0, 0.0
  %v6096 = vsel %vm6032, 1.0, 0.0
  %v6097 = vsel %vm6033, 1.0, 0.0
  %v6098 = vsel %vm6034, 1.0, 0.0
  %v6099 = vsel %vm6035, 1.0, 0.0
  %v6100 = vsel %vm6036, 1.0, 0.0
  %v6101 = vsel %vm6037, 1.0, 0.0
  %v6102 = vsel %vm6038, 1.0, 0.0
  %v6103 = vsel %vm6039, 1.0, 0.0
  %v6104 = vsel %vm6040, 1.0, 0.0
  %v6105 = vsel %vm6041, 1.0, 0.0
  %v6106 = vsel %vm6042, 1.0, 0.0
  %v6107 = vsel %vm6043, 1.0, 0.0
  %v6108 = vsel %vm6044, 1.0, 0.0
  %v6109 = vsel %vm6045, 1.0, 0.0
  %v6110 = vsel %vm6046, 1.0, 0.0
  %v6111 = vsel %vm6047, 1.0, 0.0
  %v6112 = vsel %vm6048, 1.0, 0.0
  %v6113 = vsel %vm6049, 1.0, 0.0
  %v6114 = vsel %vm6050, 1.0, 0.0
  %v6115 = vsel %vm6051, 1.0, 0.0
  %v6116 = vmul.f32 %v2437, %v6052
  %v6117 = vmul.f32 %v2438, %v6053
  %v6118 = vmul.f32 %v2439, %v6054
  %v6119 = vmul.f32 %v2440, %v6055
  %v6120 = vmul.f32 %v2441, %v6056
  %v6121 = vmul.f32 %v2442, %v6057
  %v6122 = vmul.f32 %v2443, %v6058
  %v6123 = vmul.f32 %v2444, %v6059
  %v6124 = vmul.f32 %v2445, %v6060
  %v6125 = vmul.f32 %v2446, %v6061
  %v6126 = vmul.f32 %v2447, %v6062
  %v6127 = vmul.f32 %v2448, %v6063
  %v6128 = vmul.f32 %v2449, %v6064
  %v6129 = vmul.f32 %v2450, %v6065
  %v6130 = vmul.f32 %v2451, %v6066
  %v6131 = vmul.f32 %v2452, %v6067
  %v6132 = vmul.f32 %v2453, %v6068
  %v6133 = vmul.f32 %v2454, %v6069
  %v6134 = vmul.f32 %v2455, %v6070
  %v6135 = vmul.f32 %v2456, %v6071
  %v6136 = vmul.f32 %v2457, %v6072
  %v6137 = vmul.f32 %v2458, %v6073
  %v6138 = vmul.f32 %v2459, %v6074
  %v6139 = vmul.f32 %v2460, %v6075
  %v6140 = vmul.f32 %v2461, %v6076
  %v6141 = vmul.f32 %v2462, %v6077
  %v6142 = vmul.f32 %v2463, %v6078
  %v6143 = vmul.f32 %v2464, %v6079
  %v6144 = vmul.f32 %v2465, %v6080
  %v6145 = vmul.f32 %v2466, %v6081
  %v6146 = vmul.f32 %v2467, %v6082
  %v6147 = vmul.f32 %v2468, %v6083
  %v6148 = vmul.f32 %v2469, %v6084
  %v6149 = vmul.f32 %v2470, %v6085
  %v6150 = vmul.f32 %v2471, %v6086
  %v6151 = vmul.f32 %v2472, %v6087
  %v6152 = vmul.f32 %v2473, %v6088
  %v6153 = vmul.f32 %v2474, %v6089
  %v6154 = vmul.f32 %v2475, %v6090
  %v6155 = vmul.f32 %v2476, %v6091
  %v6156 = vmul.f32 %v2477, %v6092
  %v6157 = vmul.f32 %v2478, %v6093
  %v6158 = vmul.f32 %v2479, %v6094
  %v6159 = vmul.f32 %v2480, %v6095
  %v6160 = vmul.f32 %v2481, %v6096
  %v6161 = vmul.f32 %v2482, %v6097
  %v6162 = vmul.f32 %v2483, %v6098
  %v6163 = vmul.f32 %v2484, %v6099
  %v6164 = vmul.f32 %v2485, %v6100
  %v6165 = vmul.f32 %v2486, %v6101
  %v6166 = vmul.f32 %v2487, %v6102
  %v6167 = vmul.f32 %v2488, %v6103
  %v6168 = vmul.f32 %v2489, %v6104
  %v6169 = vmul.f32 %v2490, %v6105
  %v6170 = vmul.f32 %v2491, %v6106
  %v6171 = vmul.f32 %v2492, %v6107
  %v6172 = vmul.f32 %v2493, %v6108
  %v6173 = vmul.f32 %v2494, %v6109
  %v6174 = vmul.f32 %v2495, %v6110
  %v6175 = vmul.f32 %v2496, %v6111
  %v6176 = vmul.f32 %v2497, %v6112
  %v6177 = vmul.f32 %v2498, %v6113
  %v6178 = vmul.f32 %v2499, %v6114
  %v6179 = vmul.f32 %v2500, %v6115
  %v6180 = vpack.c.bf16 %v6117, %v6116
  %v6181 = vpack.c.bf16 %v6119, %v6118
  %v6182 = vpack.c.bf16 %v6121, %v6120
  %v6183 = vpack.c.bf16 %v6123, %v6122
  %v6184 = vpack.c.bf16 %v6125, %v6124
  %v6185 = vpack.c.bf16 %v6127, %v6126
  %v6186 = vpack.c.bf16 %v6129, %v6128
  %v6187 = vpack.c.bf16 %v6131, %v6130
  %v6188 = vpack.c.bf16 %v6133, %v6132
  %v6189 = vpack.c.bf16 %v6135, %v6134
  %v6190 = vpack.c.bf16 %v6137, %v6136
  %v6191 = vpack.c.bf16 %v6139, %v6138
  %v6192 = vpack.c.bf16 %v6141, %v6140
  %v6193 = vpack.c.bf16 %v6143, %v6142
  %v6194 = vpack.c.bf16 %v6145, %v6144
  %v6195 = vpack.c.bf16 %v6147, %v6146
  %v6196 = vpack.c.bf16 %v6149, %v6148
  %v6197 = vpack.c.bf16 %v6151, %v6150
  %v6198 = vpack.c.bf16 %v6153, %v6152
  %v6199 = vpack.c.bf16 %v6155, %v6154
  %v6200 = vpack.c.bf16 %v6157, %v6156
  %v6201 = vpack.c.bf16 %v6159, %v6158
  %v6202 = vpack.c.bf16 %v6161, %v6160
  %v6203 = vpack.c.bf16 %v6163, %v6162
  %v6204 = vpack.c.bf16 %v6165, %v6164
  %v6205 = vpack.c.bf16 %v6167, %v6166
  %v6206 = vpack.c.bf16 %v6169, %v6168
  %v6207 = vpack.c.bf16 %v6171, %v6170
  %v6208 = vpack.c.bf16 %v6173, %v6172
  %v6209 = vpack.c.bf16 %v6175, %v6174
  %v6210 = vpack.c.bf16 %v6177, %v6176
  %v6211 = vpack.c.bf16 %v6179, %v6178
  %v6228 = vunpack.c.l.b16 %v2501
  %v6229 = vunpack.c.l.b16 %v2502
  %v6230 = vunpack.c.l.b16 %v2503
  %v6231 = vunpack.c.l.b16 %v2504
  %v6232 = vunpack.c.l.b16 %v2505
  %v6233 = vunpack.c.l.b16 %v2506
  %v6234 = vunpack.c.l.b16 %v2507
  %v6235 = vunpack.c.l.b16 %v2508
  %v6236 = vunpack.c.l.b16 %v2509
  %v6237 = vunpack.c.l.b16 %v2510
  %v6238 = vunpack.c.l.b16 %v2511
  %v6239 = vunpack.c.l.b16 %v2512
  %v6240 = vunpack.c.l.b16 %v2513
  %v6241 = vunpack.c.l.b16 %v2514
  %v6242 = vunpack.c.l.b16 %v2515
  %v6243 = vunpack.c.l.b16 %v2516
  %v6244 = vpack.c.b16 %v6229, %v6228
  %v6245 = vpack.c.b16 %v6231, %v6230
  %v6246 = vpack.c.b16 %v6233, %v6232
  %v6247 = vpack.c.b16 %v6235, %v6234
  %v6248 = vpack.c.b16 %v6237, %v6236
  %v6249 = vpack.c.b16 %v6239, %v6238
  %v6250 = vpack.c.b16 %v6241, %v6240
  %v6251 = vpack.c.b16 %v6243, %v6242
  %6260 = vmatprep.subr.bf16.mxu0 0
  %6261 = vmatpush1.bf16.msra.mxu0 %v6251
  %6262 = vmatprep.subr.bf16.mxu0 0
  %6263 = vmatpush1.bf16.msra.mxu0 %v6250
  %6264 = vmatprep.subr.bf16.mxu0 0
  %6265 = vmatpush1.bf16.msra.mxu0 %v6249
  %6266 = vmatprep.subr.bf16.mxu0 0
  %6267 = vmatpush1.bf16.msra.mxu0 %v6248
  %6268 = vmatprep.subr.bf16.mxu0 0
  %6269 = vmatpush1.bf16.msra.mxu0 %v6247
  %6270 = vmatprep.subr.bf16.mxu0 0
  %6271 = vmatpush1.bf16.msra.mxu0 %v6246
  %6272 = vmatprep.subr.bf16.mxu0 0
  %6273 = vmatpush1.bf16.msra.mxu0 %v6245
  %6274 = vmatprep.subr.bf16.mxu0 0
  %6275 = vmatpush1.bf16.msra.mxu0 %v6244
  %6276 = vmatprep.subr.bf16.mxu0 0
  %6277 = vmatpush2.bf16.msra.mxu0 0
  %6278 = vmatprep.subr.bf16.mxu0 0
  %6279 = vmatpush2.bf16.msra.mxu0 0
  %6280 = vmatprep.subr.bf16.mxu0 0
  %6281 = vmatpush2.bf16.msra.mxu0 0
  %6282 = vmatprep.subr.bf16.mxu0 0
  %6283 = vmatpush2.bf16.msra.mxu0 0
  %6284 = vmatprep.subr.bf16.mxu0 0
  %6285 = vmatpush2.bf16.msra.mxu0 0
  %6286 = vmatprep.subr.bf16.mxu0 0
  %6287 = vmatpush2.bf16.msra.mxu0 0
  %6288 = vmatprep.subr.bf16.mxu0 0
  %6289 = vmatpush2.bf16.msra.mxu0 0
  %6290 = vmatprep.subr.bf16.mxu0 0
  %6291 = vmatpush2.bf16.msra.mxu0 0
  %6292 = vmatprep.mubr.bf16.mxu0 0
  %6293 = vmatmul.mubr.bf16.gmra.mxu0 %v6180
  %v6294 = vpop.f32.mrf.mxu0
  %v6295 = vadd.f32 0.0, %v6294
  %v6296 = vpop.f32.mrf.mxu0
  %v6297 = vpop.f32.mrf.mxu0
  %v6298 = vadd.f32 0.0, %v6297
  %v6299 = vpop.f32.mrf.mxu0
  %6300 = vmatprep.mubr.bf16.mxu0 0
  %6301 = vmatmul.mubr.bf16.gmra.mxu0 %v6181
  %v6302 = vpop.f32.mrf.mxu0
  %v6303 = vadd.f32 0.0, %v6302
  %v6304 = vpop.f32.mrf.mxu0
  %v6305 = vpop.f32.mrf.mxu0
  %v6306 = vadd.f32 0.0, %v6305
  %v6307 = vpop.f32.mrf.mxu0
  %6308 = vmatprep.mubr.bf16.mxu0 0
  %6309 = vmatmul.mubr.bf16.gmra.mxu0 %v6182
  %v6310 = vpop.f32.mrf.mxu0
  %v6311 = vadd.f32 0.0, %v6310
  %v6312 = vpop.f32.mrf.mxu0
  %v6313 = vpop.f32.mrf.mxu0
  %v6314 = vadd.f32 0.0, %v6313
  %v6315 = vpop.f32.mrf.mxu0
  %6316 = vmatprep.mubr.bf16.mxu0 0
  %6317 = vmatmul.mubr.bf16.gmra.mxu0 %v6183
  %v6318 = vpop.f32.mrf.mxu0
  %v6319 = vadd.f32 0.0, %v6318
  %v6320 = vpop.f32.mrf.mxu0
  %v6321 = vpop.f32.mrf.mxu0
  %v6322 = vadd.f32 0.0, %v6321
  %v6323 = vpop.f32.mrf.mxu0
  %6324 = vmatprep.mubr.bf16.mxu0 0
  %6325 = vmatmul.mubr.bf16.gmra.mxu0 %v6184
  %v6326 = vpop.f32.mrf.mxu0
  %v6327 = vadd.f32 0.0, %v6326
  %v6328 = vpop.f32.mrf.mxu0
  %v6329 = vpop.f32.mrf.mxu0
  %v6330 = vadd.f32 0.0, %v6329
  %v6331 = vpop.f32.mrf.mxu0
  %6332 = vmatprep.mubr.bf16.mxu0 0
  %6333 = vmatmul.mubr.bf16.gmra.mxu0 %v6185
  %v6334 = vpop.f32.mrf.mxu0
  %v6335 = vadd.f32 0.0, %v6334
  %v6336 = vpop.f32.mrf.mxu0
  %v6337 = vpop.f32.mrf.mxu0
  %v6338 = vadd.f32 0.0, %v6337
  %v6339 = vpop.f32.mrf.mxu0
  %6340 = vmatprep.mubr.bf16.mxu0 0
  %6341 = vmatmul.mubr.bf16.gmra.mxu0 %v6186
  %v6342 = vpop.f32.mrf.mxu0
  %v6343 = vadd.f32 0.0, %v6342
  %v6344 = vpop.f32.mrf.mxu0
  %v6345 = vpop.f32.mrf.mxu0
  %v6346 = vadd.f32 0.0, %v6345
  %v6347 = vpop.f32.mrf.mxu0
  %6348 = vmatprep.mubr.bf16.mxu0 0
  %6349 = vmatmul.mubr.bf16.gmra.mxu0 %v6187
  %v6350 = vpop.f32.mrf.mxu0
  %v6351 = vadd.f32 0.0, %v6350
  %v6352 = vpop.f32.mrf.mxu0
  %v6353 = vpop.f32.mrf.mxu0
  %v6354 = vadd.f32 0.0, %v6353
  %v6355 = vpop.f32.mrf.mxu0
  %6356 = vmatprep.mubr.bf16.mxu0 0
  %6357 = vmatmul.mubr.bf16.gmra.mxu0 %v6188
  %v6358 = vpop.f32.mrf.mxu0
  %v6359 = vadd.f32 0.0, %v6358
  %v6360 = vpop.f32.mrf.mxu0
  %v6361 = vpop.f32.mrf.mxu0
  %v6362 = vadd.f32 0.0, %v6361
  %v6363 = vpop.f32.mrf.mxu0
  %6364 = vmatprep.mubr.bf16.mxu0 0
  %6365 = vmatmul.mubr.bf16.gmra.mxu0 %v6189
  %v6366 = vpop.f32.mrf.mxu0
  %v6367 = vadd.f32 0.0, %v6366
  %v6368 = vpop.f32.mrf.mxu0
  %v6369 = vpop.f32.mrf.mxu0
  %v6370 = vadd.f32 0.0, %v6369
  %v6371 = vpop.f32.mrf.mxu0
  %6372 = vmatprep.mubr.bf16.mxu0 0
  %6373 = vmatmul.mubr.bf16.gmra.mxu0 %v6190
  %v6374 = vpop.f32.mrf.mxu0
  %v6375 = vadd.f32 0.0, %v6374
  %v6376 = vpop.f32.mrf.mxu0
  %v6377 = vpop.f32.mrf.mxu0
  %v6378 = vadd.f32 0.0, %v6377
  %v6379 = vpop.f32.mrf.mxu0
  %6380 = vmatprep.mubr.bf16.mxu0 0
  %6381 = vmatmul.mubr.bf16.gmra.mxu0 %v6191
  %v6382 = vpop.f32.mrf.mxu0
  %v6383 = vadd.f32 0.0, %v6382
  %v6384 = vpop.f32.mrf.mxu0
  %v6385 = vpop.f32.mrf.mxu0
  %v6386 = vadd.f32 0.0, %v6385
  %v6387 = vpop.f32.mrf.mxu0
  %6388 = vmatprep.mubr.bf16.mxu0 0
  %6389 = vmatmul.mubr.bf16.gmra.mxu0 %v6192
  %v6390 = vpop.f32.mrf.mxu0
  %v6391 = vadd.f32 0.0, %v6390
  %v6392 = vpop.f32.mrf.mxu0
  %v6393 = vpop.f32.mrf.mxu0
  %v6394 = vadd.f32 0.0, %v6393
  %v6395 = vpop.f32.mrf.mxu0
  %6396 = vmatprep.mubr.bf16.mxu0 0
  %6397 = vmatmul.mubr.bf16.gmra.mxu0 %v6193
  %v6398 = vpop.f32.mrf.mxu0
  %v6399 = vadd.f32 0.0, %v6398
  %v6400 = vpop.f32.mrf.mxu0
  %v6401 = vpop.f32.mrf.mxu0
  %v6402 = vadd.f32 0.0, %v6401
  %v6403 = vpop.f32.mrf.mxu0
  %6404 = vmatprep.mubr.bf16.mxu0 0
  %6405 = vmatmul.mubr.bf16.gmra.mxu0 %v6194
  %v6406 = vpop.f32.mrf.mxu0
  %v6407 = vadd.f32 0.0, %v6406
  %v6408 = vpop.f32.mrf.mxu0
  %v6409 = vpop.f32.mrf.mxu0
  %v6410 = vadd.f32 0.0, %v6409
  %v6411 = vpop.f32.mrf.mxu0
  %6412 = vmatprep.mubr.bf16.mxu0 0
  %6413 = vmatmul.mubr.bf16.gmra.mxu0 %v6195
  %v6414 = vpop.f32.mrf.mxu0
  %v6415 = vadd.f32 0.0, %v6414
  %v6416 = vpop.f32.mrf.mxu0
  %v6417 = vpop.f32.mrf.mxu0
  %v6418 = vadd.f32 0.0, %v6417
  %v6419 = vpop.f32.mrf.mxu0
  %6420 = vmatprep.mubr.bf16.mxu0 0
  %6421 = vmatmul.mubr.bf16.gmra.mxu0 %v6196
  %v6422 = vpop.f32.mrf.mxu0
  %v6423 = vadd.f32 0.0, %v6422
  %v6424 = vpop.f32.mrf.mxu0
  %v6425 = vpop.f32.mrf.mxu0
  %v6426 = vadd.f32 0.0, %v6425
  %v6427 = vpop.f32.mrf.mxu0
  %6428 = vmatprep.mubr.bf16.mxu0 0
  %6429 = vmatmul.mubr.bf16.gmra.mxu0 %v6197
  %v6430 = vpop.f32.mrf.mxu0
  %v6431 = vadd.f32 0.0, %v6430
  %v6432 = vpop.f32.mrf.mxu0
  %v6433 = vpop.f32.mrf.mxu0
  %v6434 = vadd.f32 0.0, %v6433
  %v6435 = vpop.f32.mrf.mxu0
  %6436 = vmatprep.mubr.bf16.mxu0 0
  %6437 = vmatmul.mubr.bf16.gmra.mxu0 %v6198
  %v6438 = vpop.f32.mrf.mxu0
  %v6439 = vadd.f32 0.0, %v6438
  %v6440 = vpop.f32.mrf.mxu0
  %v6441 = vpop.f32.mrf.mxu0
  %v6442 = vadd.f32 0.0, %v6441
  %v6443 = vpop.f32.mrf.mxu0
  %6444 = vmatprep.mubr.bf16.mxu0 0
  %6445 = vmatmul.mubr.bf16.gmra.mxu0 %v6199
  %v6446 = vpop.f32.mrf.mxu0
  %v6447 = vadd.f32 0.0, %v6446
  %v6448 = vpop.f32.mrf.mxu0
  %v6449 = vpop.f32.mrf.mxu0
  %v6450 = vadd.f32 0.0, %v6449
  %v6451 = vpop.f32.mrf.mxu0
  %6452 = vmatprep.mubr.bf16.mxu0 0
  %6453 = vmatmul.mubr.bf16.gmra.mxu0 %v6200
  %v6454 = vpop.f32.mrf.mxu0
  %v6455 = vadd.f32 0.0, %v6454
  %v6456 = vpop.f32.mrf.mxu0
  %v6457 = vpop.f32.mrf.mxu0
  %v6458 = vadd.f32 0.0, %v6457
  %v6459 = vpop.f32.mrf.mxu0
  %6460 = vmatprep.mubr.bf16.mxu0 0
  %6461 = vmatmul.mubr.bf16.gmra.mxu0 %v6201
  %v6462 = vpop.f32.mrf.mxu0
  %v6463 = vadd.f32 0.0, %v6462
  %v6464 = vpop.f32.mrf.mxu0
  %v6465 = vpop.f32.mrf.mxu0
  %v6466 = vadd.f32 0.0, %v6465
  %v6467 = vpop.f32.mrf.mxu0
  %6468 = vmatprep.mubr.bf16.mxu0 0
  %6469 = vmatmul.mubr.bf16.gmra.mxu0 %v6202
  %v6470 = vpop.f32.mrf.mxu0
  %v6471 = vadd.f32 0.0, %v6470
  %v6472 = vpop.f32.mrf.mxu0
  %v6473 = vpop.f32.mrf.mxu0
  %v6474 = vadd.f32 0.0, %v6473
  %v6475 = vpop.f32.mrf.mxu0
  %6476 = vmatprep.mubr.bf16.mxu0 0
  %6477 = vmatmul.mubr.bf16.gmra.mxu0 %v6203
  %v6478 = vpop.f32.mrf.mxu0
  %v6479 = vadd.f32 0.0, %v6478
  %v6480 = vpop.f32.mrf.mxu0
  %v6481 = vpop.f32.mrf.mxu0
  %v6482 = vadd.f32 0.0, %v6481
  %v6483 = vpop.f32.mrf.mxu0
  %6484 = vmatprep.mubr.bf16.mxu0 0
  %6485 = vmatmul.mubr.bf16.gmra.mxu0 %v6204
  %v6486 = vpop.f32.mrf.mxu0
  %v6487 = vadd.f32 0.0, %v6486
  %v6488 = vpop.f32.mrf.mxu0
  %v6489 = vpop.f32.mrf.mxu0
  %v6490 = vadd.f32 0.0, %v6489
  %v6491 = vpop.f32.mrf.mxu0
  %6492 = vmatprep.mubr.bf16.mxu0 0
  %6493 = vmatmul.mubr.bf16.gmra.mxu0 %v6205
  %v6494 = vpop.f32.mrf.mxu0
  %v6495 = vadd.f32 0.0, %v6494
  %v6496 = vpop.f32.mrf.mxu0
  %v6497 = vpop.f32.mrf.mxu0
  %v6498 = vadd.f32 0.0, %v6497
  %v6499 = vpop.f32.mrf.mxu0
  %6500 = vmatprep.mubr.bf16.mxu0 0
  %6501 = vmatmul.mubr.bf16.gmra.mxu0 %v6206
  %v6502 = vpop.f32.mrf.mxu0
  %v6503 = vadd.f32 0.0, %v6502
  %v6504 = vpop.f32.mrf.mxu0
  %v6505 = vpop.f32.mrf.mxu0
  %v6506 = vadd.f32 0.0, %v6505
  %v6507 = vpop.f32.mrf.mxu0
  %6508 = vmatprep.mubr.bf16.mxu0 0
  %6509 = vmatmul.mubr.bf16.gmra.mxu0 %v6207
  %v6510 = vpop.f32.mrf.mxu0
  %v6511 = vadd.f32 0.0, %v6510
  %v6512 = vpop.f32.mrf.mxu0
  %v6513 = vpop.f32.mrf.mxu0
  %v6514 = vadd.f32 0.0, %v6513
  %v6515 = vpop.f32.mrf.mxu0
  %6516 = vmatprep.mubr.bf16.mxu0 0
  %6517 = vmatmul.mubr.bf16.gmra.mxu0 %v6208
  %v6518 = vpop.f32.mrf.mxu0
  %v6519 = vadd.f32 0.0, %v6518
  %v6520 = vpop.f32.mrf.mxu0
  %v6521 = vpop.f32.mrf.mxu0
  %v6522 = vadd.f32 0.0, %v6521
  %v6523 = vpop.f32.mrf.mxu0
  %6524 = vmatprep.mubr.bf16.mxu0 0
  %6525 = vmatmul.mubr.bf16.gmra.mxu0 %v6209
  %v6526 = vpop.f32.mrf.mxu0
  %v6527 = vadd.f32 0.0, %v6526
  %v6528 = vpop.f32.mrf.mxu0
  %v6529 = vpop.f32.mrf.mxu0
  %v6530 = vadd.f32 0.0, %v6529
  %v6531 = vpop.f32.mrf.mxu0
  %6532 = vmatprep.mubr.bf16.mxu0 0
  %6533 = vmatmul.mubr.bf16.gmra.mxu0 %v6210
  %v6534 = vpop.f32.mrf.mxu0
  %v6535 = vadd.f32 0.0, %v6534
  %v6536 = vpop.f32.mrf.mxu0
  %v6537 = vpop.f32.mrf.mxu0
  %v6538 = vadd.f32 0.0, %v6537
  %v6539 = vpop.f32.mrf.mxu0
  %6540 = vmatprep.mubr.bf16.mxu0 0
  %6541 = vmatmul.mubr.bf16.gmra.mxu0 %v6211
  %v6542 = vpop.f32.mrf.mxu0
  %v6543 = vadd.f32 0.0, %v6542
  %v6544 = vpop.f32.mrf.mxu0
  %v6545 = vpop.f32.mrf.mxu0
  %v6546 = vadd.f32 0.0, %v6545
  %v6547 = vpop.f32.mrf.mxu0
  %6548 = vdwg.mxu0
  %v6549 = vsub.f32 %v154, 0.5
  %v6550 = vlaneseq
  %v6551 = vshrl.u32 %v6550, 7
  %v6552 = vsub.s32 0, %v6551
  %v6553 = vrot.slane %v6549, %v6552
  %vm6554 = vcmp.ge.f32.partialorder %v6295, %v6553
  %vm6555 = vcmp.ge.f32.partialorder %v6298, %v6553
  %vm6556 = vcmp.ge.f32.partialorder %v6303, %v6553
  %vm6557 = vcmp.ge.f32.partialorder %v6306, %v6553
  %vm6558 = vcmp.ge.f32.partialorder %v6311, %v6553
  %vm6559 = vcmp.ge.f32.partialorder %v6314, %v6553
  %vm6560 = vcmp.ge.f32.partialorder %v6319, %v6553
  %vm6561 = vcmp.ge.f32.partialorder %v6322, %v6553
  %vm6562 = vcmp.ge.f32.partialorder %v6327, %v6553
  %vm6563 = vcmp.ge.f32.partialorder %v6330, %v6553
  %vm6564 = vcmp.ge.f32.partialorder %v6335, %v6553
  %vm6565 = vcmp.ge.f32.partialorder %v6338, %v6553
  %vm6566 = vcmp.ge.f32.partialorder %v6343, %v6553
  %vm6567 = vcmp.ge.f32.partialorder %v6346, %v6553
  %vm6568 = vcmp.ge.f32.partialorder %v6351, %v6553
  %vm6569 = vcmp.ge.f32.partialorder %v6354, %v6553
  %vm6570 = vcmp.ge.f32.partialorder %v6359, %v6553
  %vm6571 = vcmp.ge.f32.partialorder %v6362, %v6553
  %vm6572 = vcmp.ge.f32.partialorder %v6367, %v6553
  %vm6573 = vcmp.ge.f32.partialorder %v6370, %v6553
  %vm6574 = vcmp.ge.f32.partialorder %v6375, %v6553
  %vm6575 = vcmp.ge.f32.partialorder %v6378, %v6553
  %vm6576 = vcmp.ge.f32.partialorder %v6383, %v6553
  %vm6577 = vcmp.ge.f32.partialorder %v6386, %v6553
  %vm6578 = vcmp.ge.f32.partialorder %v6391, %v6553
  %vm6579 = vcmp.ge.f32.partialorder %v6394, %v6553
  %vm6580 = vcmp.ge.f32.partialorder %v6399, %v6553
  %vm6581 = vcmp.ge.f32.partialorder %v6402, %v6553
  %vm6582 = vcmp.ge.f32.partialorder %v6407, %v6553
  %vm6583 = vcmp.ge.f32.partialorder %v6410, %v6553
  %vm6584 = vcmp.ge.f32.partialorder %v6415, %v6553
  %vm6585 = vcmp.ge.f32.partialorder %v6418, %v6553
  %vm6586 = vcmp.ge.f32.partialorder %v6423, %v6553
  %vm6587 = vcmp.ge.f32.partialorder %v6426, %v6553
  %vm6588 = vcmp.ge.f32.partialorder %v6431, %v6553
  %vm6589 = vcmp.ge.f32.partialorder %v6434, %v6553
  %vm6590 = vcmp.ge.f32.partialorder %v6439, %v6553
  %vm6591 = vcmp.ge.f32.partialorder %v6442, %v6553
  %vm6592 = vcmp.ge.f32.partialorder %v6447, %v6553
  %vm6593 = vcmp.ge.f32.partialorder %v6450, %v6553
  %vm6594 = vcmp.ge.f32.partialorder %v6455, %v6553
  %vm6595 = vcmp.ge.f32.partialorder %v6458, %v6553
  %vm6596 = vcmp.ge.f32.partialorder %v6463, %v6553
  %vm6597 = vcmp.ge.f32.partialorder %v6466, %v6553
  %vm6598 = vcmp.ge.f32.partialorder %v6471, %v6553
  %vm6599 = vcmp.ge.f32.partialorder %v6474, %v6553
  %vm6600 = vcmp.ge.f32.partialorder %v6479, %v6553
  %vm6601 = vcmp.ge.f32.partialorder %v6482, %v6553
  %vm6602 = vcmp.ge.f32.partialorder %v6487, %v6553
  %vm6603 = vcmp.ge.f32.partialorder %v6490, %v6553
  %vm6604 = vcmp.ge.f32.partialorder %v6495, %v6553
  %vm6605 = vcmp.ge.f32.partialorder %v6498, %v6553
  %vm6606 = vcmp.ge.f32.partialorder %v6503, %v6553
  %vm6607 = vcmp.ge.f32.partialorder %v6506, %v6553
  %vm6608 = vcmp.ge.f32.partialorder %v6511, %v6553
  %vm6609 = vcmp.ge.f32.partialorder %v6514, %v6553
  %vm6610 = vcmp.ge.f32.partialorder %v6519, %v6553
  %vm6611 = vcmp.ge.f32.partialorder %v6522, %v6553
  %vm6612 = vcmp.ge.f32.partialorder %v6527, %v6553
  %vm6613 = vcmp.ge.f32.partialorder %v6530, %v6553
  %vm6614 = vcmp.ge.f32.partialorder %v6535, %v6553
  %vm6615 = vcmp.ge.f32.partialorder %v6538, %v6553
  %vm6616 = vcmp.ge.f32.partialorder %v6543, %v6553
  %vm6617 = vcmp.ge.f32.partialorder %v6546, %v6553
  %v6618 = vsel %vm6554, 1.0, 0.0
  %v6619 = vsel %vm6555, 1.0, 0.0
  %v6620 = vsel %vm6556, 1.0, 0.0
  %v6621 = vsel %vm6557, 1.0, 0.0
  %v6622 = vsel %vm6558, 1.0, 0.0
  %v6623 = vsel %vm6559, 1.0, 0.0
  %v6624 = vsel %vm6560, 1.0, 0.0
  %v6625 = vsel %vm6561, 1.0, 0.0
  %v6626 = vsel %vm6562, 1.0, 0.0
  %v6627 = vsel %vm6563, 1.0, 0.0
  %v6628 = vsel %vm6564, 1.0, 0.0
  %v6629 = vsel %vm6565, 1.0, 0.0
  %v6630 = vsel %vm6566, 1.0, 0.0
  %v6631 = vsel %vm6567, 1.0, 0.0
  %v6632 = vsel %vm6568, 1.0, 0.0
  %v6633 = vsel %vm6569, 1.0, 0.0
  %v6634 = vsel %vm6570, 1.0, 0.0
  %v6635 = vsel %vm6571, 1.0, 0.0
  %v6636 = vsel %vm6572, 1.0, 0.0
  %v6637 = vsel %vm6573, 1.0, 0.0
  %v6638 = vsel %vm6574, 1.0, 0.0
  %v6639 = vsel %vm6575, 1.0, 0.0
  %v6640 = vsel %vm6576, 1.0, 0.0
  %v6641 = vsel %vm6577, 1.0, 0.0
  %v6642 = vsel %vm6578, 1.0, 0.0
  %v6643 = vsel %vm6579, 1.0, 0.0
  %v6644 = vsel %vm6580, 1.0, 0.0
  %v6645 = vsel %vm6581, 1.0, 0.0
  %v6646 = vsel %vm6582, 1.0, 0.0
  %v6647 = vsel %vm6583, 1.0, 0.0
  %v6648 = vsel %vm6584, 1.0, 0.0
  %v6649 = vsel %vm6585, 1.0, 0.0
  %v6650 = vsel %vm6586, 1.0, 0.0
  %v6651 = vsel %vm6587, 1.0, 0.0
  %v6652 = vsel %vm6588, 1.0, 0.0
  %v6653 = vsel %vm6589, 1.0, 0.0
  %v6654 = vsel %vm6590, 1.0, 0.0
  %v6655 = vsel %vm6591, 1.0, 0.0
  %v6656 = vsel %vm6592, 1.0, 0.0
  %v6657 = vsel %vm6593, 1.0, 0.0
  %v6658 = vsel %vm6594, 1.0, 0.0
  %v6659 = vsel %vm6595, 1.0, 0.0
  %v6660 = vsel %vm6596, 1.0, 0.0
  %v6661 = vsel %vm6597, 1.0, 0.0
  %v6662 = vsel %vm6598, 1.0, 0.0
  %v6663 = vsel %vm6599, 1.0, 0.0
  %v6664 = vsel %vm6600, 1.0, 0.0
  %v6665 = vsel %vm6601, 1.0, 0.0
  %v6666 = vsel %vm6602, 1.0, 0.0
  %v6667 = vsel %vm6603, 1.0, 0.0
  %v6668 = vsel %vm6604, 1.0, 0.0
  %v6669 = vsel %vm6605, 1.0, 0.0
  %v6670 = vsel %vm6606, 1.0, 0.0
  %v6671 = vsel %vm6607, 1.0, 0.0
  %v6672 = vsel %vm6608, 1.0, 0.0
  %v6673 = vsel %vm6609, 1.0, 0.0
  %v6674 = vsel %vm6610, 1.0, 0.0
  %v6675 = vsel %vm6611, 1.0, 0.0
  %v6676 = vsel %vm6612, 1.0, 0.0
  %v6677 = vsel %vm6613, 1.0, 0.0
  %v6678 = vsel %vm6614, 1.0, 0.0
  %v6679 = vsel %vm6615, 1.0, 0.0
  %v6680 = vsel %vm6616, 1.0, 0.0
  %v6681 = vsel %vm6617, 1.0, 0.0
  %v6682 = vsub.f32 %v2437, %v6116
  %v6683 = vsub.f32 %v2438, %v6117
  %v6684 = vsub.f32 %v2439, %v6118
  %v6685 = vsub.f32 %v2440, %v6119
  %v6686 = vsub.f32 %v2441, %v6120
  %v6687 = vsub.f32 %v2442, %v6121
  %v6688 = vsub.f32 %v2443, %v6122
  %v6689 = vsub.f32 %v2444, %v6123
  %v6690 = vsub.f32 %v2445, %v6124
  %v6691 = vsub.f32 %v2446, %v6125
  %v6692 = vsub.f32 %v2447, %v6126
  %v6693 = vsub.f32 %v2448, %v6127
  %v6694 = vsub.f32 %v2449, %v6128
  %v6695 = vsub.f32 %v2450, %v6129
  %v6696 = vsub.f32 %v2451, %v6130
  %v6697 = vsub.f32 %v2452, %v6131
  %v6698 = vsub.f32 %v2453, %v6132
  %v6699 = vsub.f32 %v2454, %v6133
  %v6700 = vsub.f32 %v2455, %v6134
  %v6701 = vsub.f32 %v2456, %v6135
  %v6702 = vsub.f32 %v2457, %v6136
  %v6703 = vsub.f32 %v2458, %v6137
  %v6704 = vsub.f32 %v2459, %v6138
  %v6705 = vsub.f32 %v2460, %v6139
  %v6706 = vsub.f32 %v2461, %v6140
  %v6707 = vsub.f32 %v2462, %v6141
  %v6708 = vsub.f32 %v2463, %v6142
  %v6709 = vsub.f32 %v2464, %v6143
  %v6710 = vsub.f32 %v2465, %v6144
  %v6711 = vsub.f32 %v2466, %v6145
  %v6712 = vsub.f32 %v2467, %v6146
  %v6713 = vsub.f32 %v2468, %v6147
  %v6714 = vsub.f32 %v2469, %v6148
  %v6715 = vsub.f32 %v2470, %v6149
  %v6716 = vsub.f32 %v2471, %v6150
  %v6717 = vsub.f32 %v2472, %v6151
  %v6718 = vsub.f32 %v2473, %v6152
  %v6719 = vsub.f32 %v2474, %v6153
  %v6720 = vsub.f32 %v2475, %v6154
  %v6721 = vsub.f32 %v2476, %v6155
  %v6722 = vsub.f32 %v2477, %v6156
  %v6723 = vsub.f32 %v2478, %v6157
  %v6724 = vsub.f32 %v2479, %v6158
  %v6725 = vsub.f32 %v2480, %v6159
  %v6726 = vsub.f32 %v2481, %v6160
  %v6727 = vsub.f32 %v2482, %v6161
  %v6728 = vsub.f32 %v2483, %v6162
  %v6729 = vsub.f32 %v2484, %v6163
  %v6730 = vsub.f32 %v2485, %v6164
  %v6731 = vsub.f32 %v2486, %v6165
  %v6732 = vsub.f32 %v2487, %v6166
  %v6733 = vsub.f32 %v2488, %v6167
  %v6734 = vsub.f32 %v2489, %v6168
  %v6735 = vsub.f32 %v2490, %v6169
  %v6736 = vsub.f32 %v2491, %v6170
  %v6737 = vsub.f32 %v2492, %v6171
  %v6738 = vsub.f32 %v2493, %v6172
  %v6739 = vsub.f32 %v2494, %v6173
  %v6740 = vsub.f32 %v2495, %v6174
  %v6741 = vsub.f32 %v2496, %v6175
  %v6742 = vsub.f32 %v2497, %v6176
  %v6743 = vsub.f32 %v2498, %v6177
  %v6744 = vsub.f32 %v2499, %v6178
  %v6745 = vsub.f32 %v2500, %v6179
  %v6746 = vpack.c.bf16 %v6683, %v6682
  %v6747 = vpack.c.bf16 %v6685, %v6684
  %v6748 = vpack.c.bf16 %v6687, %v6686
  %v6749 = vpack.c.bf16 %v6689, %v6688
  %v6750 = vpack.c.bf16 %v6691, %v6690
  %v6751 = vpack.c.bf16 %v6693, %v6692
  %v6752 = vpack.c.bf16 %v6695, %v6694
  %v6753 = vpack.c.bf16 %v6697, %v6696
  %v6754 = vpack.c.bf16 %v6699, %v6698
  %v6755 = vpack.c.bf16 %v6701, %v6700
  %v6756 = vpack.c.bf16 %v6703, %v6702
  %v6757 = vpack.c.bf16 %v6705, %v6704
  %v6758 = vpack.c.bf16 %v6707, %v6706
  %v6759 = vpack.c.bf16 %v6709, %v6708
  %v6760 = vpack.c.bf16 %v6711, %v6710
  %v6761 = vpack.c.bf16 %v6713, %v6712
  %v6762 = vpack.c.bf16 %v6715, %v6714
  %v6763 = vpack.c.bf16 %v6717, %v6716
  %v6764 = vpack.c.bf16 %v6719, %v6718
  %v6765 = vpack.c.bf16 %v6721, %v6720
  %v6766 = vpack.c.bf16 %v6723, %v6722
  %v6767 = vpack.c.bf16 %v6725, %v6724
  %v6768 = vpack.c.bf16 %v6727, %v6726
  %v6769 = vpack.c.bf16 %v6729, %v6728
  %v6770 = vpack.c.bf16 %v6731, %v6730
  %v6771 = vpack.c.bf16 %v6733, %v6732
  %v6772 = vpack.c.bf16 %v6735, %v6734
  %v6773 = vpack.c.bf16 %v6737, %v6736
  %v6774 = vpack.c.bf16 %v6739, %v6738
  %v6775 = vpack.c.bf16 %v6741, %v6740
  %v6776 = vpack.c.bf16 %v6743, %v6742
  %v6777 = vpack.c.bf16 %v6745, %v6744
  %v6778 = vld [vmem:[%s4] sm:$0xf]
  %v6779 = vld [vmem:[%s4 + $0x4] sm:$0xf]
  %v6780 = vld [vmem:[%s4 + $0x8] sm:$0xf]
  %v6781 = vld [vmem:[%s4 + $0xc] sm:$0xf]
  %v6782 = vld [vmem:[%s4 + $0x10] sm:$0xf]
  %v6783 = vld [vmem:[%s4 + $0x14] sm:$0xf]
  %v6784 = vld [vmem:[%s4 + $0x18] sm:$0xf]
  %v6785 = vld [vmem:[%s4 + $0x1c] sm:$0xf]
  %v6786 = vld [vmem:[%s4 + $0x20] sm:$0xf]
  %v6787 = vld [vmem:[%s4 + $0x24] sm:$0xf]
  %v6788 = vld [vmem:[%s4 + $0x28] sm:$0xf]
  %v6789 = vld [vmem:[%s4 + $0x2c] sm:$0xf]
  %v6790 = vld [vmem:[%s4 + $0x30] sm:$0xf]
  %v6791 = vld [vmem:[%s4 + $0x34] sm:$0xf]
  %v6792 = vld [vmem:[%s4 + $0x38] sm:$0xf]
  %v6793 = vld [vmem:[%s4 + $0x3c] sm:$0xf]
  %v6810 = vunpack.c.l.b16 %v6778
  %v6811 = vunpack.c.l.b16 %v6779
  %v6812 = vunpack.c.l.b16 %v6780
  %v6813 = vunpack.c.l.b16 %v6781
  %v6814 = vunpack.c.l.b16 %v6782
  %v6815 = vunpack.c.l.b16 %v6783
  %v6816 = vunpack.c.l.b16 %v6784
  %v6817 = vunpack.c.l.b16 %v6785
  %v6818 = vunpack.c.l.b16 %v6786
  %v6819 = vunpack.c.l.b16 %v6787
  %v6820 = vunpack.c.l.b16 %v6788
  %v6821 = vunpack.c.l.b16 %v6789
  %v6822 = vunpack.c.l.b16 %v6790
  %v6823 = vunpack.c.l.b16 %v6791
  %v6824 = vunpack.c.l.b16 %v6792
  %v6825 = vunpack.c.l.b16 %v6793
  %v6826 = vpack.c.b16 %v6811, %v6810
  %v6827 = vpack.c.b16 %v6813, %v6812
  %v6828 = vpack.c.b16 %v6815, %v6814
  %v6829 = vpack.c.b16 %v6817, %v6816
  %v6830 = vpack.c.b16 %v6819, %v6818
  %v6831 = vpack.c.b16 %v6821, %v6820
  %v6832 = vpack.c.b16 %v6823, %v6822
  %v6833 = vpack.c.b16 %v6825, %v6824
  %6842 = vmatprep.subr.bf16.mxu0 0
  %6843 = vmatpush1.bf16.msra.mxu0 %v6833
  %6844 = vmatprep.subr.bf16.mxu0 0
  %6845 = vmatpush1.bf16.msra.mxu0 %v6832
  %6846 = vmatprep.subr.bf16.mxu0 0
  %6847 = vmatpush1.bf16.msra.mxu0 %v6831
  %6848 = vmatprep.subr.bf16.mxu0 0
  %6849 = vmatpush1.bf16.msra.mxu0 %v6830
  %6850 = vmatprep.subr.bf16.mxu0 0
  %6851 = vmatpush1.bf16.msra.mxu0 %v6829
  %6852 = vmatprep.subr.bf16.mxu0 0
  %6853 = vmatpush1.bf16.msra.mxu0 %v6828
  %6854 = vmatprep.subr.bf16.mxu0 0
  %6855 = vmatpush1.bf16.msra.mxu0 %v6827
  %6856 = vmatprep.subr.bf16.mxu0 0
  %6857 = vmatpush1.bf16.msra.mxu0 %v6826
  %6858 = vmatprep.subr.bf16.mxu0 0
  %6859 = vmatpush2.bf16.msra.mxu0 0
  %6860 = vmatprep.subr.bf16.mxu0 0
  %6861 = vmatpush2.bf16.msra.mxu0 0
  %6862 = vmatprep.subr.bf16.mxu0 0
  %6863 = vmatpush2.bf16.msra.mxu0 0
  %6864 = vmatprep.subr.bf16.mxu0 0
  %6865 = vmatpush2.bf16.msra.mxu0 0
  %6866 = vmatprep.subr.bf16.mxu0 0
  %6867 = vmatpush2.bf16.msra.mxu0 0
  %6868 = vmatprep.subr.bf16.mxu0 0
  %6869 = vmatpush2.bf16.msra.mxu0 0
  %6870 = vmatprep.subr.bf16.mxu0 0
  %6871 = vmatpush2.bf16.msra.mxu0 0
  %6872 = vmatprep.subr.bf16.mxu0 0
  %6873 = vmatpush2.bf16.msra.mxu0 0
  %6874 = vmatprep.mubr.bf16.mxu0 0
  %6875 = vmatmul.mubr.bf16.gmra.mxu0 %v6746
  %v6876 = vpop.f32.mrf.mxu0
  %v6877 = vadd.f32 0.0, %v6876
  %v6878 = vpop.f32.mrf.mxu0
  %v6879 = vpop.f32.mrf.mxu0
  %v6880 = vadd.f32 0.0, %v6879
  %v6881 = vpop.f32.mrf.mxu0
  %6882 = vmatprep.mubr.bf16.mxu0 0
  %6883 = vmatmul.mubr.bf16.gmra.mxu0 %v6747
  %v6884 = vpop.f32.mrf.mxu0
  %v6885 = vadd.f32 0.0, %v6884
  %v6886 = vpop.f32.mrf.mxu0
  %v6887 = vpop.f32.mrf.mxu0
  %v6888 = vadd.f32 0.0, %v6887
  %v6889 = vpop.f32.mrf.mxu0
  %6890 = vmatprep.mubr.bf16.mxu0 0
  %6891 = vmatmul.mubr.bf16.gmra.mxu0 %v6748
  %v6892 = vpop.f32.mrf.mxu0
  %v6893 = vadd.f32 0.0, %v6892
  %v6894 = vpop.f32.mrf.mxu0
  %v6895 = vpop.f32.mrf.mxu0
  %v6896 = vadd.f32 0.0, %v6895
  %v6897 = vpop.f32.mrf.mxu0
  %6898 = vmatprep.mubr.bf16.mxu0 0
  %6899 = vmatmul.mubr.bf16.gmra.mxu0 %v6749
  %v6900 = vpop.f32.mrf.mxu0
  %v6901 = vadd.f32 0.0, %v6900
  %v6902 = vpop.f32.mrf.mxu0
  %v6903 = vpop.f32.mrf.mxu0
  %v6904 = vadd.f32 0.0, %v6903
  %v6905 = vpop.f32.mrf.mxu0
  %6906 = vmatprep.mubr.bf16.mxu0 0
  %6907 = vmatmul.mubr.bf16.gmra.mxu0 %v6750
  %v6908 = vpop.f32.mrf.mxu0
  %v6909 = vadd.f32 0.0, %v6908
  %v6910 = vpop.f32.mrf.mxu0
  %v6911 = vpop.f32.mrf.mxu0
  %v6912 = vadd.f32 0.0, %v6911
  %v6913 = vpop.f32.mrf.mxu0
  %6914 = vmatprep.mubr.bf16.mxu0 0
  %6915 = vmatmul.mubr.bf16.gmra.mxu0 %v6751
  %v6916 = vpop.f32.mrf.mxu0
  %v6917 = vadd.f32 0.0, %v6916
  %v6918 = vpop.f32.mrf.mxu0
  %v6919 = vpop.f32.mrf.mxu0
  %v6920 = vadd.f32 0.0, %v6919
  %v6921 = vpop.f32.mrf.mxu0
  %6922 = vmatprep.mubr.bf16.mxu0 0
  %6923 = vmatmul.mubr.bf16.gmra.mxu0 %v6752
  %v6924 = vpop.f32.mrf.mxu0
  %v6925 = vadd.f32 0.0, %v6924
  %v6926 = vpop.f32.mrf.mxu0
  %v6927 = vpop.f32.mrf.mxu0
  %v6928 = vadd.f32 0.0, %v6927
  %v6929 = vpop.f32.mrf.mxu0
  %6930 = vmatprep.mubr.bf16.mxu0 0
  %6931 = vmatmul.mubr.bf16.gmra.mxu0 %v6753
  %v6932 = vpop.f32.mrf.mxu0
  %v6933 = vadd.f32 0.0, %v6932
  %v6934 = vpop.f32.mrf.mxu0
  %v6935 = vpop.f32.mrf.mxu0
  %v6936 = vadd.f32 0.0, %v6935
  %v6937 = vpop.f32.mrf.mxu0
  %6938 = vmatprep.mubr.bf16.mxu0 0
  %6939 = vmatmul.mubr.bf16.gmra.mxu0 %v6754
  %v6940 = vpop.f32.mrf.mxu0
  %v6941 = vadd.f32 0.0, %v6940
  %v6942 = vpop.f32.mrf.mxu0
  %v6943 = vpop.f32.mrf.mxu0
  %v6944 = vadd.f32 0.0, %v6943
  %v6945 = vpop.f32.mrf.mxu0
  %6946 = vmatprep.mubr.bf16.mxu0 0
  %6947 = vmatmul.mubr.bf16.gmra.mxu0 %v6755
  %v6948 = vpop.f32.mrf.mxu0
  %v6949 = vadd.f32 0.0, %v6948
  %v6950 = vpop.f32.mrf.mxu0
  %v6951 = vpop.f32.mrf.mxu0
  %v6952 = vadd.f32 0.0, %v6951
  %v6953 = vpop.f32.mrf.mxu0
  %6954 = vmatprep.mubr.bf16.mxu0 0
  %6955 = vmatmul.mubr.bf16.gmra.mxu0 %v6756
  %v6956 = vpop.f32.mrf.mxu0
  %v6957 = vadd.f32 0.0, %v6956
  %v6958 = vpop.f32.mrf.mxu0
  %v6959 = vpop.f32.mrf.mxu0
  %v6960 = vadd.f32 0.0, %v6959
  %v6961 = vpop.f32.mrf.mxu0
  %6962 = vmatprep.mubr.bf16.mxu0 0
  %6963 = vmatmul.mubr.bf16.gmra.mxu0 %v6757
  %v6964 = vpop.f32.mrf.mxu0
  %v6965 = vadd.f32 0.0, %v6964
  %v6966 = vpop.f32.mrf.mxu0
  %v6967 = vpop.f32.mrf.mxu0
  %v6968 = vadd.f32 0.0, %v6967
  %v6969 = vpop.f32.mrf.mxu0
  %6970 = vmatprep.mubr.bf16.mxu0 0
  %6971 = vmatmul.mubr.bf16.gmra.mxu0 %v6758
  %v6972 = vpop.f32.mrf.mxu0
  %v6973 = vadd.f32 0.0, %v6972
  %v6974 = vpop.f32.mrf.mxu0
  %v6975 = vpop.f32.mrf.mxu0
  %v6976 = vadd.f32 0.0, %v6975
  %v6977 = vpop.f32.mrf.mxu0
  %6978 = vmatprep.mubr.bf16.mxu0 0
  %6979 = vmatmul.mubr.bf16.gmra.mxu0 %v6759
  %v6980 = vpop.f32.mrf.mxu0
  %v6981 = vadd.f32 0.0, %v6980
  %v6982 = vpop.f32.mrf.mxu0
  %v6983 = vpop.f32.mrf.mxu0
  %v6984 = vadd.f32 0.0, %v6983
  %v6985 = vpop.f32.mrf.mxu0
  %6986 = vmatprep.mubr.bf16.mxu0 0
  %6987 = vmatmul.mubr.bf16.gmra.mxu0 %v6760
  %v6988 = vpop.f32.mrf.mxu0
  %v6989 = vadd.f32 0.0, %v6988
  %v6990 = vpop.f32.mrf.mxu0
  %v6991 = vpop.f32.mrf.mxu0
  %v6992 = vadd.f32 0.0, %v6991
  %v6993 = vpop.f32.mrf.mxu0
  %6994 = vmatprep.mubr.bf16.mxu0 0
  %6995 = vmatmul.mubr.bf16.gmra.mxu0 %v6761
  %v6996 = vpop.f32.mrf.mxu0
  %v6997 = vadd.f32 0.0, %v6996
  %v6998 = vpop.f32.mrf.mxu0
  %v6999 = vpop.f32.mrf.mxu0
  %v7000 = vadd.f32 0.0, %v6999
  %v7001 = vpop.f32.mrf.mxu0
  %7002 = vmatprep.mubr.bf16.mxu0 0
  %7003 = vmatmul.mubr.bf16.gmra.mxu0 %v6762
  %v7004 = vpop.f32.mrf.mxu0
  %v7005 = vadd.f32 0.0, %v7004
  %v7006 = vpop.f32.mrf.mxu0
  %v7007 = vpop.f32.mrf.mxu0
  %v7008 = vadd.f32 0.0, %v7007
  %v7009 = vpop.f32.mrf.mxu0
  %7010 = vmatprep.mubr.bf16.mxu0 0
  %7011 = vmatmul.mubr.bf16.gmra.mxu0 %v6763
  %v7012 = vpop.f32.mrf.mxu0
  %v7013 = vadd.f32 0.0, %v7012
  %v7014 = vpop.f32.mrf.mxu0
  %v7015 = vpop.f32.mrf.mxu0
  %v7016 = vadd.f32 0.0, %v7015
  %v7017 = vpop.f32.mrf.mxu0
  %7018 = vmatprep.mubr.bf16.mxu0 0
  %7019 = vmatmul.mubr.bf16.gmra.mxu0 %v6764
  %v7020 = vpop.f32.mrf.mxu0
  %v7021 = vadd.f32 0.0, %v7020
  %v7022 = vpop.f32.mrf.mxu0
  %v7023 = vpop.f32.mrf.mxu0
  %v7024 = vadd.f32 0.0, %v7023
  %v7025 = vpop.f32.mrf.mxu0
  %7026 = vmatprep.mubr.bf16.mxu0 0
  %7027 = vmatmul.mubr.bf16.gmra.mxu0 %v6765
  %v7028 = vpop.f32.mrf.mxu0
  %v7029 = vadd.f32 0.0, %v7028
  %v7030 = vpop.f32.mrf.mxu0
  %v7031 = vpop.f32.mrf.mxu0
  %v7032 = vadd.f32 0.0, %v7031
  %v7033 = vpop.f32.mrf.mxu0
  %7034 = vmatprep.mubr.bf16.mxu0 0
  %7035 = vmatmul.mubr.bf16.gmra.mxu0 %v6766
  %v7036 = vpop.f32.mrf.mxu0
  %v7037 = vadd.f32 0.0, %v7036
  %v7038 = vpop.f32.mrf.mxu0
  %v7039 = vpop.f32.mrf.mxu0
  %v7040 = vadd.f32 0.0, %v7039
  %v7041 = vpop.f32.mrf.mxu0
  %7042 = vmatprep.mubr.bf16.mxu0 0
  %7043 = vmatmul.mubr.bf16.gmra.mxu0 %v6767
  %v7044 = vpop.f32.mrf.mxu0
  %v7045 = vadd.f32 0.0, %v7044
  %v7046 = vpop.f32.mrf.mxu0
  %v7047 = vpop.f32.mrf.mxu0
  %v7048 = vadd.f32 0.0, %v7047
  %v7049 = vpop.f32.mrf.mxu0
  %7050 = vmatprep.mubr.bf16.mxu0 0
  %7051 = vmatmul.mubr.bf16.gmra.mxu0 %v6768
  %v7052 = vpop.f32.mrf.mxu0
  %v7053 = vadd.f32 0.0, %v7052
  %v7054 = vpop.f32.mrf.mxu0
  %v7055 = vpop.f32.mrf.mxu0
  %v7056 = vadd.f32 0.0, %v7055
  %v7057 = vpop.f32.mrf.mxu0
  %7058 = vmatprep.mubr.bf16.mxu0 0
  %7059 = vmatmul.mubr.bf16.gmra.mxu0 %v6769
  %v7060 = vpop.f32.mrf.mxu0
  %v7061 = vadd.f32 0.0, %v7060
  %v7062 = vpop.f32.mrf.mxu0
  %v7063 = vpop.f32.mrf.mxu0
  %v7064 = vadd.f32 0.0, %v7063
  %v7065 = vpop.f32.mrf.mxu0
  %7066 = vmatprep.mubr.bf16.mxu0 0
  %7067 = vmatmul.mubr.bf16.gmra.mxu0 %v6770
  %v7068 = vpop.f32.mrf.mxu0
  %v7069 = vadd.f32 0.0, %v7068
  %v7070 = vpop.f32.mrf.mxu0
  %v7071 = vpop.f32.mrf.mxu0
  %v7072 = vadd.f32 0.0, %v7071
  %v7073 = vpop.f32.mrf.mxu0
  %7074 = vmatprep.mubr.bf16.mxu0 0
  %7075 = vmatmul.mubr.bf16.gmra.mxu0 %v6771
  %v7076 = vpop.f32.mrf.mxu0
  %v7077 = vadd.f32 0.0, %v7076
  %v7078 = vpop.f32.mrf.mxu0
  %v7079 = vpop.f32.mrf.mxu0
  %v7080 = vadd.f32 0.0, %v7079
  %v7081 = vpop.f32.mrf.mxu0
  %7082 = vmatprep.mubr.bf16.mxu0 0
  %7083 = vmatmul.mubr.bf16.gmra.mxu0 %v6772
  %v7084 = vpop.f32.mrf.mxu0
  %v7085 = vadd.f32 0.0, %v7084
  %v7086 = vpop.f32.mrf.mxu0
  %v7087 = vpop.f32.mrf.mxu0
  %v7088 = vadd.f32 0.0, %v7087
  %v7089 = vpop.f32.mrf.mxu0
  %7090 = vmatprep.mubr.bf16.mxu0 0
  %7091 = vmatmul.mubr.bf16.gmra.mxu0 %v6773
  %v7092 = vpop.f32.mrf.mxu0
  %v7093 = vadd.f32 0.0, %v7092
  %v7094 = vpop.f32.mrf.mxu0
  %v7095 = vpop.f32.mrf.mxu0
  %v7096 = vadd.f32 0.0, %v7095
  %v7097 = vpop.f32.mrf.mxu0
  %7098 = vmatprep.mubr.bf16.mxu0 0
  %7099 = vmatmul.mubr.bf16.gmra.mxu0 %v6774
  %v7100 = vpop.f32.mrf.mxu0
  %v7101 = vadd.f32 0.0, %v7100
  %v7102 = vpop.f32.mrf.mxu0
  %v7103 = vpop.f32.mrf.mxu0
  %v7104 = vadd.f32 0.0, %v7103
  %v7105 = vpop.f32.mrf.mxu0
  %7106 = vmatprep.mubr.bf16.mxu0 0
  %7107 = vmatmul.mubr.bf16.gmra.mxu0 %v6775
  %v7108 = vpop.f32.mrf.mxu0
  %v7109 = vadd.f32 0.0, %v7108
  %v7110 = vpop.f32.mrf.mxu0
  %v7111 = vpop.f32.mrf.mxu0
  %v7112 = vadd.f32 0.0, %v7111
  %v7113 = vpop.f32.mrf.mxu0
  %7114 = vmatprep.mubr.bf16.mxu0 0
  %7115 = vmatmul.mubr.bf16.gmra.mxu0 %v6776
  %v7116 = vpop.f32.mrf.mxu0
  %v7117 = vadd.f32 0.0, %v7116
  %v7118 = vpop.f32.mrf.mxu0
  %v7119 = vpop.f32.mrf.mxu0
  %v7120 = vadd.f32 0.0, %v7119
  %v7121 = vpop.f32.mrf.mxu0
  %7122 = vmatprep.mubr.bf16.mxu0 0
  %7123 = vmatmul.mubr.bf16.gmra.mxu0 %v6777
  %v7124 = vpop.f32.mrf.mxu0
  %v7125 = vadd.f32 0.0, %v7124
  %v7126 = vpop.f32.mrf.mxu0
  %v7127 = vpop.f32.mrf.mxu0
  %v7128 = vadd.f32 0.0, %v7127
  %v7129 = vpop.f32.mrf.mxu0
  %7130 = vdwg.mxu0
  %v7131 = vlaneseq
  %v7132 = vshrl.u32 %v7131, 7
  %v7133 = vsub.s32 0, %v7132
  %v7134 = vrot.slane %v153, %v7133
  %v7135 = vadd.f32 %v7134, %v6877
  %v7136 = vadd.f32 %v7134, %v6880
  %v7137 = vadd.f32 %v7134, %v6885
  %v7138 = vadd.f32 %v7134, %v6888
  %v7139 = vadd.f32 %v7134, %v6893
  %v7140 = vadd.f32 %v7134, %v6896
  %v7141 = vadd.f32 %v7134, %v6901
  %v7142 = vadd.f32 %v7134, %v6904
  %v7143 = vadd.f32 %v7134, %v6909
  %v7144 = vadd.f32 %v7134, %v6912
  %v7145 = vadd.f32 %v7134, %v6917
  %v7146 = vadd.f32 %v7134, %v6920
  %v7147 = vadd.f32 %v7134, %v6925
  %v7148 = vadd.f32 %v7134, %v6928
  %v7149 = vadd.f32 %v7134, %v6933
  %v7150 = vadd.f32 %v7134, %v6936
  %v7151 = vadd.f32 %v7134, %v6941
  %v7152 = vadd.f32 %v7134, %v6944
  %v7153 = vadd.f32 %v7134, %v6949
  %v7154 = vadd.f32 %v7134, %v6952
  %v7155 = vadd.f32 %v7134, %v6957
  %v7156 = vadd.f32 %v7134, %v6960
  %v7157 = vadd.f32 %v7134, %v6965
  %v7158 = vadd.f32 %v7134, %v6968
  %v7159 = vadd.f32 %v7134, %v6973
  %v7160 = vadd.f32 %v7134, %v6976
  %v7161 = vadd.f32 %v7134, %v6981
  %v7162 = vadd.f32 %v7134, %v6984
  %v7163 = vadd.f32 %v7134, %v6989
  %v7164 = vadd.f32 %v7134, %v6992
  %v7165 = vadd.f32 %v7134, %v6997
  %v7166 = vadd.f32 %v7134, %v7000
  %v7167 = vadd.f32 %v7134, %v7005
  %v7168 = vadd.f32 %v7134, %v7008
  %v7169 = vadd.f32 %v7134, %v7013
  %v7170 = vadd.f32 %v7134, %v7016
  %v7171 = vadd.f32 %v7134, %v7021
  %v7172 = vadd.f32 %v7134, %v7024
  %v7173 = vadd.f32 %v7134, %v7029
  %v7174 = vadd.f32 %v7134, %v7032
  %v7175 = vadd.f32 %v7134, %v7037
  %v7176 = vadd.f32 %v7134, %v7040
  %v7177 = vadd.f32 %v7134, %v7045
  %v7178 = vadd.f32 %v7134, %v7048
  %v7179 = vadd.f32 %v7134, %v7053
  %v7180 = vadd.f32 %v7134, %v7056
  %v7181 = vadd.f32 %v7134, %v7061
  %v7182 = vadd.f32 %v7134, %v7064
  %v7183 = vadd.f32 %v7134, %v7069
  %v7184 = vadd.f32 %v7134, %v7072
  %v7185 = vadd.f32 %v7134, %v7077
  %v7186 = vadd.f32 %v7134, %v7080
  %v7187 = vadd.f32 %v7134, %v7085
  %v7188 = vadd.f32 %v7134, %v7088
  %v7189 = vadd.f32 %v7134, %v7093
  %v7190 = vadd.f32 %v7134, %v7096
  %v7191 = vadd.f32 %v7134, %v7101
  %v7192 = vadd.f32 %v7134, %v7104
  %v7193 = vadd.f32 %v7134, %v7109
  %v7194 = vadd.f32 %v7134, %v7112
  %v7195 = vadd.f32 %v7134, %v7117
  %v7196 = vadd.f32 %v7134, %v7120
  %v7197 = vadd.f32 %v7134, %v7125
  %v7198 = vadd.f32 %v7134, %v7128
  %vm7199 = vcmp.gt.f32.partialorder %v7135, 0.5
  %vm7200 = vcmp.gt.f32.partialorder %v7136, 0.5
  %vm7201 = vcmp.gt.f32.partialorder %v7137, 0.5
  %vm7202 = vcmp.gt.f32.partialorder %v7138, 0.5
  %vm7203 = vcmp.gt.f32.partialorder %v7139, 0.5
  %vm7204 = vcmp.gt.f32.partialorder %v7140, 0.5
  %vm7205 = vcmp.gt.f32.partialorder %v7141, 0.5
  %vm7206 = vcmp.gt.f32.partialorder %v7142, 0.5
  %vm7207 = vcmp.gt.f32.partialorder %v7143, 0.5
  %vm7208 = vcmp.gt.f32.partialorder %v7144, 0.5
  %vm7209 = vcmp.gt.f32.partialorder %v7145, 0.5
  %vm7210 = vcmp.gt.f32.partialorder %v7146, 0.5
  %vm7211 = vcmp.gt.f32.partialorder %v7147, 0.5
  %vm7212 = vcmp.gt.f32.partialorder %v7148, 0.5
  %vm7213 = vcmp.gt.f32.partialorder %v7149, 0.5
  %vm7214 = vcmp.gt.f32.partialorder %v7150, 0.5
  %vm7215 = vcmp.gt.f32.partialorder %v7151, 0.5
  %vm7216 = vcmp.gt.f32.partialorder %v7152, 0.5
  %vm7217 = vcmp.gt.f32.partialorder %v7153, 0.5
  %vm7218 = vcmp.gt.f32.partialorder %v7154, 0.5
  %vm7219 = vcmp.gt.f32.partialorder %v7155, 0.5
  %vm7220 = vcmp.gt.f32.partialorder %v7156, 0.5
  %vm7221 = vcmp.gt.f32.partialorder %v7157, 0.5
  %vm7222 = vcmp.gt.f32.partialorder %v7158, 0.5
  %vm7223 = vcmp.gt.f32.partialorder %v7159, 0.5
  %vm7224 = vcmp.gt.f32.partialorder %v7160, 0.5
  %vm7225 = vcmp.gt.f32.partialorder %v7161, 0.5
  %vm7226 = vcmp.gt.f32.partialorder %v7162, 0.5
  %vm7227 = vcmp.gt.f32.partialorder %v7163, 0.5
  %vm7228 = vcmp.gt.f32.partialorder %v7164, 0.5
  %vm7229 = vcmp.gt.f32.partialorder %v7165, 0.5
  %vm7230 = vcmp.gt.f32.partialorder %v7166, 0.5
  %vm7231 = vcmp.gt.f32.partialorder %v7167, 0.5
  %vm7232 = vcmp.gt.f32.partialorder %v7168, 0.5
  %vm7233 = vcmp.gt.f32.partialorder %v7169, 0.5
  %vm7234 = vcmp.gt.f32.partialorder %v7170, 0.5
  %vm7235 = vcmp.gt.f32.partialorder %v7171, 0.5
  %vm7236 = vcmp.gt.f32.partialorder %v7172, 0.5
  %vm7237 = vcmp.gt.f32.partialorder %v7173, 0.5
  %vm7238 = vcmp.gt.f32.partialorder %v7174, 0.5
  %vm7239 = vcmp.gt.f32.partialorder %v7175, 0.5
  %vm7240 = vcmp.gt.f32.partialorder %v7176, 0.5
  %vm7241 = vcmp.gt.f32.partialorder %v7177, 0.5
  %vm7242 = vcmp.gt.f32.partialorder %v7178, 0.5
  %vm7243 = vcmp.gt.f32.partialorder %v7179, 0.5
  %vm7244 = vcmp.gt.f32.partialorder %v7180, 0.5
  %vm7245 = vcmp.gt.f32.partialorder %v7181, 0.5
  %vm7246 = vcmp.gt.f32.partialorder %v7182, 0.5
  %vm7247 = vcmp.gt.f32.partialorder %v7183, 0.5
  %vm7248 = vcmp.gt.f32.partialorder %v7184, 0.5
  %vm7249 = vcmp.gt.f32.partialorder %v7185, 0.5
  %vm7250 = vcmp.gt.f32.partialorder %v7186, 0.5
  %vm7251 = vcmp.gt.f32.partialorder %v7187, 0.5
  %vm7252 = vcmp.gt.f32.partialorder %v7188, 0.5
  %vm7253 = vcmp.gt.f32.partialorder %v7189, 0.5
  %vm7254 = vcmp.gt.f32.partialorder %v7190, 0.5
  %vm7255 = vcmp.gt.f32.partialorder %v7191, 0.5
  %vm7256 = vcmp.gt.f32.partialorder %v7192, 0.5
  %vm7257 = vcmp.gt.f32.partialorder %v7193, 0.5
  %vm7258 = vcmp.gt.f32.partialorder %v7194, 0.5
  %vm7259 = vcmp.gt.f32.partialorder %v7195, 0.5
  %vm7260 = vcmp.gt.f32.partialorder %v7196, 0.5
  %vm7261 = vcmp.gt.f32.partialorder %v7197, 0.5
  %vm7262 = vcmp.gt.f32.partialorder %v7198, 0.5
  %v7263 = vsel %vm7199, 1.0, 0.0
  %v7264 = vsel %vm7200, 1.0, 0.0
  %v7265 = vsel %vm7201, 1.0, 0.0
  %v7266 = vsel %vm7202, 1.0, 0.0
  %v7267 = vsel %vm7203, 1.0, 0.0
  %v7268 = vsel %vm7204, 1.0, 0.0
  %v7269 = vsel %vm7205, 1.0, 0.0
  %v7270 = vsel %vm7206, 1.0, 0.0
  %v7271 = vsel %vm7207, 1.0, 0.0
  %v7272 = vsel %vm7208, 1.0, 0.0
  %v7273 = vsel %vm7209, 1.0, 0.0
  %v7274 = vsel %vm7210, 1.0, 0.0
  %v7275 = vsel %vm7211, 1.0, 0.0
  %v7276 = vsel %vm7212, 1.0, 0.0
  %v7277 = vsel %vm7213, 1.0, 0.0
  %v7278 = vsel %vm7214, 1.0, 0.0
  %v7279 = vsel %vm7215, 1.0, 0.0
  %v7280 = vsel %vm7216, 1.0, 0.0
  %v7281 = vsel %vm7217, 1.0, 0.0
  %v7282 = vsel %vm7218, 1.0, 0.0
  %v7283 = vsel %vm7219, 1.0, 0.0
  %v7284 = vsel %vm7220, 1.0, 0.0
  %v7285 = vsel %vm7221, 1.0, 0.0
  %v7286 = vsel %vm7222, 1.0, 0.0
  %v7287 = vsel %vm7223, 1.0, 0.0
  %v7288 = vsel %vm7224, 1.0, 0.0
  %v7289 = vsel %vm7225, 1.0, 0.0
  %v7290 = vsel %vm7226, 1.0, 0.0
  %v7291 = vsel %vm7227, 1.0, 0.0
  %v7292 = vsel %vm7228, 1.0, 0.0
  %v7293 = vsel %vm7229, 1.0, 0.0
  %v7294 = vsel %vm7230, 1.0, 0.0
  %v7295 = vsel %vm7231, 1.0, 0.0
  %v7296 = vsel %vm7232, 1.0, 0.0
  %v7297 = vsel %vm7233, 1.0, 0.0
  %v7298 = vsel %vm7234, 1.0, 0.0
  %v7299 = vsel %vm7235, 1.0, 0.0
  %v7300 = vsel %vm7236, 1.0, 0.0
  %v7301 = vsel %vm7237, 1.0, 0.0
  %v7302 = vsel %vm7238, 1.0, 0.0
  %v7303 = vsel %vm7239, 1.0, 0.0
  %v7304 = vsel %vm7240, 1.0, 0.0
  %v7305 = vsel %vm7241, 1.0, 0.0
  %v7306 = vsel %vm7242, 1.0, 0.0
  %v7307 = vsel %vm7243, 1.0, 0.0
  %v7308 = vsel %vm7244, 1.0, 0.0
  %v7309 = vsel %vm7245, 1.0, 0.0
  %v7310 = vsel %vm7246, 1.0, 0.0
  %v7311 = vsel %vm7247, 1.0, 0.0
  %v7312 = vsel %vm7248, 1.0, 0.0
  %v7313 = vsel %vm7249, 1.0, 0.0
  %v7314 = vsel %vm7250, 1.0, 0.0
  %v7315 = vsel %vm7251, 1.0, 0.0
  %v7316 = vsel %vm7252, 1.0, 0.0
  %v7317 = vsel %vm7253, 1.0, 0.0
  %v7318 = vsel %vm7254, 1.0, 0.0
  %v7319 = vsel %vm7255, 1.0, 0.0
  %v7320 = vsel %vm7256, 1.0, 0.0
  %v7321 = vsel %vm7257, 1.0, 0.0
  %v7322 = vsel %vm7258, 1.0, 0.0
  %v7323 = vsel %vm7259, 1.0, 0.0
  %v7324 = vsel %vm7260, 1.0, 0.0
  %v7325 = vsel %vm7261, 1.0, 0.0
  %v7326 = vsel %vm7262, 1.0, 0.0
  %v7327 = vmul.f32 %v6618, %v7263
  %v7328 = vmul.f32 %v6619, %v7264
  %v7329 = vmul.f32 %v6620, %v7265
  %v7330 = vmul.f32 %v6621, %v7266
  %v7331 = vmul.f32 %v6622, %v7267
  %v7332 = vmul.f32 %v6623, %v7268
  %v7333 = vmul.f32 %v6624, %v7269
  %v7334 = vmul.f32 %v6625, %v7270
  %v7335 = vmul.f32 %v6626, %v7271
  %v7336 = vmul.f32 %v6627, %v7272
  %v7337 = vmul.f32 %v6628, %v7273
  %v7338 = vmul.f32 %v6629, %v7274
  %v7339 = vmul.f32 %v6630, %v7275
  %v7340 = vmul.f32 %v6631, %v7276
  %v7341 = vmul.f32 %v6632, %v7277
  %v7342 = vmul.f32 %v6633, %v7278
  %v7343 = vmul.f32 %v6634, %v7279
  %v7344 = vmul.f32 %v6635, %v7280
  %v7345 = vmul.f32 %v6636, %v7281
  %v7346 = vmul.f32 %v6637, %v7282
  %v7347 = vmul.f32 %v6638, %v7283
  %v7348 = vmul.f32 %v6639, %v7284
  %v7349 = vmul.f32 %v6640, %v7285
  %v7350 = vmul.f32 %v6641, %v7286
  %v7351 = vmul.f32 %v6642, %v7287
  %v7352 = vmul.f32 %v6643, %v7288
  %v7353 = vmul.f32 %v6644, %v7289
  %v7354 = vmul.f32 %v6645, %v7290
  %v7355 = vmul.f32 %v6646, %v7291
  %v7356 = vmul.f32 %v6647, %v7292
  %v7357 = vmul.f32 %v6648, %v7293
  %v7358 = vmul.f32 %v6649, %v7294
  %v7359 = vmul.f32 %v6650, %v7295
  %v7360 = vmul.f32 %v6651, %v7296
  %v7361 = vmul.f32 %v6652, %v7297
  %v7362 = vmul.f32 %v6653, %v7298
  %v7363 = vmul.f32 %v6654, %v7299
  %v7364 = vmul.f32 %v6655, %v7300
  %v7365 = vmul.f32 %v6656, %v7301
  %v7366 = vmul.f32 %v6657, %v7302
  %v7367 = vmul.f32 %v6658, %v7303
  %v7368 = vmul.f32 %v6659, %v7304
  %v7369 = vmul.f32 %v6660, %v7305
  %v7370 = vmul.f32 %v6661, %v7306
  %v7371 = vmul.f32 %v6662, %v7307
  %v7372 = vmul.f32 %v6663, %v7308
  %v7373 = vmul.f32 %v6664, %v7309
  %v7374 = vmul.f32 %v6665, %v7310
  %v7375 = vmul.f32 %v6666, %v7311
  %v7376 = vmul.f32 %v6667, %v7312
  %v7377 = vmul.f32 %v6668, %v7313
  %v7378 = vmul.f32 %v6669, %v7314
  %v7379 = vmul.f32 %v6670, %v7315
  %v7380 = vmul.f32 %v6671, %v7316
  %v7381 = vmul.f32 %v6672, %v7317
  %v7382 = vmul.f32 %v6673, %v7318
  %v7383 = vmul.f32 %v6674, %v7319
  %v7384 = vmul.f32 %v6675, %v7320
  %v7385 = vmul.f32 %v6676, %v7321
  %v7386 = vmul.f32 %v6677, %v7322
  %v7387 = vmul.f32 %v6678, %v7323
  %v7388 = vmul.f32 %v6679, %v7324
  %v7389 = vmul.f32 %v6680, %v7325
  %v7390 = vmul.f32 %v6681, %v7326
  %v7391 = vmul.f32 %v5924, %v7327
  %v7392 = vmul.f32 %v5925, %v7328
  %v7393 = vmul.f32 %v5926, %v7329
  %v7394 = vmul.f32 %v5927, %v7330
  %v7395 = vmul.f32 %v5928, %v7331
  %v7396 = vmul.f32 %v5929, %v7332
  %v7397 = vmul.f32 %v5930, %v7333
  %v7398 = vmul.f32 %v5931, %v7334
  %v7399 = vmul.f32 %v5932, %v7335
  %v7400 = vmul.f32 %v5933, %v7336
  %v7401 = vmul.f32 %v5934, %v7337
  %v7402 = vmul.f32 %v5935, %v7338
  %v7403 = vmul.f32 %v5936, %v7339
  %v7404 = vmul.f32 %v5937, %v7340
  %v7405 = vmul.f32 %v5938, %v7341
  %v7406 = vmul.f32 %v5939, %v7342
  %v7407 = vmul.f32 %v5940, %v7343
  %v7408 = vmul.f32 %v5941, %v7344
  %v7409 = vmul.f32 %v5942, %v7345
  %v7410 = vmul.f32 %v5943, %v7346
  %v7411 = vmul.f32 %v5944, %v7347
  %v7412 = vmul.f32 %v5945, %v7348
  %v7413 = vmul.f32 %v5946, %v7349
  %v7414 = vmul.f32 %v5947, %v7350
  %v7415 = vmul.f32 %v5948, %v7351
  %v7416 = vmul.f32 %v5949, %v7352
  %v7417 = vmul.f32 %v5950, %v7353
  %v7418 = vmul.f32 %v5951, %v7354
  %v7419 = vmul.f32 %v5952, %v7355
  %v7420 = vmul.f32 %v5953, %v7356
  %v7421 = vmul.f32 %v5954, %v7357
  %v7422 = vmul.f32 %v5955, %v7358
  %v7423 = vmul.f32 %v5956, %v7359
  %v7424 = vmul.f32 %v5957, %v7360
  %v7425 = vmul.f32 %v5958, %v7361
  %v7426 = vmul.f32 %v5959, %v7362
  %v7427 = vmul.f32 %v5960, %v7363
  %v7428 = vmul.f32 %v5961, %v7364
  %v7429 = vmul.f32 %v5962, %v7365
  %v7430 = vmul.f32 %v5963, %v7366
  %v7431 = vmul.f32 %v5964, %v7367
  %v7432 = vmul.f32 %v5965, %v7368
  %v7433 = vmul.f32 %v5966, %v7369
  %v7434 = vmul.f32 %v5967, %v7370
  %v7435 = vmul.f32 %v5968, %v7371
  %v7436 = vmul.f32 %v5969, %v7372
  %v7437 = vmul.f32 %v5970, %v7373
  %v7438 = vmul.f32 %v5971, %v7374
  %v7439 = vmul.f32 %v5972, %v7375
  %v7440 = vmul.f32 %v5973, %v7376
  %v7441 = vmul.f32 %v5974, %v7377
  %v7442 = vmul.f32 %v5975, %v7378
  %v7443 = vmul.f32 %v5976, %v7379
  %v7444 = vmul.f32 %v5977, %v7380
  %v7445 = vmul.f32 %v5978, %v7381
  %v7446 = vmul.f32 %v5979, %v7382
  %v7447 = vmul.f32 %v5980, %v7383
  %v7448 = vmul.f32 %v5981, %v7384
  %v7449 = vmul.f32 %v5982, %v7385
  %v7450 = vmul.f32 %v5983, %v7386
  %v7451 = vmul.f32 %v5984, %v7387
  %v7452 = vmul.f32 %v5985, %v7388
  %v7453 = vmul.f32 %v5986, %v7389
  %v7454 = vmul.f32 %v5987, %v7390
  %7455 = vmax.xlane.f32.xlu0 %v7391
  %v7456 = vpop.xlane.xlu0 %7455
  %7457 = vmax.xlane.f32.xlu0 %v7392
  %v7458 = vpop.xlane.xlu0 %7457
  %7459 = vmax.xlane.f32.xlu0 %v7393
  %v7460 = vpop.xlane.xlu0 %7459
  %7461 = vmax.xlane.f32.xlu0 %v7394
  %v7462 = vpop.xlane.xlu0 %7461
  %7463 = vmax.xlane.f32.xlu0 %v7395
  %v7464 = vpop.xlane.xlu0 %7463
  %7465 = vmax.xlane.f32.xlu0 %v7396
  %v7466 = vpop.xlane.xlu0 %7465
  %7467 = vmax.xlane.f32.xlu0 %v7397
  %v7468 = vpop.xlane.xlu0 %7467
  %7469 = vmax.xlane.f32.xlu0 %v7398
  %v7470 = vpop.xlane.xlu0 %7469
  %7471 = vmax.xlane.f32.xlu0 %v7399
  %v7472 = vpop.xlane.xlu0 %7471
  %7473 = vmax.xlane.f32.xlu0 %v7400
  %v7474 = vpop.xlane.xlu0 %7473
  %7475 = vmax.xlane.f32.xlu0 %v7401
  %v7476 = vpop.xlane.xlu0 %7475
  %7477 = vmax.xlane.f32.xlu0 %v7402
  %v7478 = vpop.xlane.xlu0 %7477
  %7479 = vmax.xlane.f32.xlu0 %v7403
  %v7480 = vpop.xlane.xlu0 %7479
  %7481 = vmax.xlane.f32.xlu0 %v7404
  %v7482 = vpop.xlane.xlu0 %7481
  %7483 = vmax.xlane.f32.xlu0 %v7405
  %v7484 = vpop.xlane.xlu0 %7483
  %7485 = vmax.xlane.f32.xlu0 %v7406
  %v7486 = vpop.xlane.xlu0 %7485
  %7487 = vmax.xlane.f32.xlu0 %v7407
  %v7488 = vpop.xlane.xlu0 %7487
  %7489 = vmax.xlane.f32.xlu0 %v7408
  %v7490 = vpop.xlane.xlu0 %7489
  %7491 = vmax.xlane.f32.xlu0 %v7409
  %v7492 = vpop.xlane.xlu0 %7491
  %7493 = vmax.xlane.f32.xlu0 %v7410
  %v7494 = vpop.xlane.xlu0 %7493
  %7495 = vmax.xlane.f32.xlu0 %v7411
  %v7496 = vpop.xlane.xlu0 %7495
  %7497 = vmax.xlane.f32.xlu0 %v7412
  %v7498 = vpop.xlane.xlu0 %7497
  %7499 = vmax.xlane.f32.xlu0 %v7413
  %v7500 = vpop.xlane.xlu0 %7499
  %7501 = vmax.xlane.f32.xlu0 %v7414
  %v7502 = vpop.xlane.xlu0 %7501
  %7503 = vmax.xlane.f32.xlu0 %v7415
  %v7504 = vpop.xlane.xlu0 %7503
  %7505 = vmax.xlane.f32.xlu0 %v7416
  %v7506 = vpop.xlane.xlu0 %7505
  %7507 = vmax.xlane.f32.xlu0 %v7417
  %v7508 = vpop.xlane.xlu0 %7507
  %7509 = vmax.xlane.f32.xlu0 %v7418
  %v7510 = vpop.xlane.xlu0 %7509
  %7511 = vmax.xlane.f32.xlu0 %v7419
  %v7512 = vpop.xlane.xlu0 %7511
  %7513 = vmax.xlane.f32.xlu0 %v7420
  %v7514 = vpop.xlane.xlu0 %7513
  %7515 = vmax.xlane.f32.xlu0 %v7421
  %v7516 = vpop.xlane.xlu0 %7515
  %7517 = vmax.xlane.f32.xlu0 %v7422
  %v7518 = vpop.xlane.xlu0 %7517
  %7519 = vmax.xlane.f32.xlu0 %v7423
  %v7520 = vpop.xlane.xlu0 %7519
  %7521 = vmax.xlane.f32.xlu0 %v7424
  %v7522 = vpop.xlane.xlu0 %7521
  %7523 = vmax.xlane.f32.xlu0 %v7425
  %v7524 = vpop.xlane.xlu0 %7523
  %7525 = vmax.xlane.f32.xlu0 %v7426
  %v7526 = vpop.xlane.xlu0 %7525
  %7527 = vmax.xlane.f32.xlu0 %v7427
  %v7528 = vpop.xlane.xlu0 %7527
  %7529 = vmax.xlane.f32.xlu0 %v7428
  %v7530 = vpop.xlane.xlu0 %7529
  %7531 = vmax.xlane.f32.xlu0 %v7429
  %v7532 = vpop.xlane.xlu0 %7531
  %7533 = vmax.xlane.f32.xlu0 %v7430
  %v7534 = vpop.xlane.xlu0 %7533
  %7535 = vmax.xlane.f32.xlu0 %v7431
  %v7536 = vpop.xlane.xlu0 %7535
  %7537 = vmax.xlane.f32.xlu0 %v7432
  %v7538 = vpop.xlane.xlu0 %7537
  %7539 = vmax.xlane.f32.xlu0 %v7433
  %v7540 = vpop.xlane.xlu0 %7539
  %7541 = vmax.xlane.f32.xlu0 %v7434
  %v7542 = vpop.xlane.xlu0 %7541
  %7543 = vmax.xlane.f32.xlu0 %v7435
  %v7544 = vpop.xlane.xlu0 %7543
  %7545 = vmax.xlane.f32.xlu0 %v7436
  %v7546 = vpop.xlane.xlu0 %7545
  %7547 = vmax.xlane.f32.xlu0 %v7437
  %v7548 = vpop.xlane.xlu0 %7547
  %7549 = vmax.xlane.f32.xlu0 %v7438
  %v7550 = vpop.xlane.xlu0 %7549
  %7551 = vmax.xlane.f32.xlu0 %v7439
  %v7552 = vpop.xlane.xlu0 %7551
  %7553 = vmax.xlane.f32.xlu0 %v7440
  %v7554 = vpop.xlane.xlu0 %7553
  %7555 = vmax.xlane.f32.xlu0 %v7441
  %v7556 = vpop.xlane.xlu0 %7555
  %7557 = vmax.xlane.f32.xlu0 %v7442
  %v7558 = vpop.xlane.xlu0 %7557
  %7559 = vmax.xlane.f32.xlu0 %v7443
  %v7560 = vpop.xlane.xlu0 %7559
  %7561 = vmax.xlane.f32.xlu0 %v7444
  %v7562 = vpop.xlane.xlu0 %7561
  %7563 = vmax.xlane.f32.xlu0 %v7445
  %v7564 = vpop.xlane.xlu0 %7563
  %7565 = vmax.xlane.f32.xlu0 %v7446
  %v7566 = vpop.xlane.xlu0 %7565
  %7567 = vmax.xlane.f32.xlu0 %v7447
  %v7568 = vpop.xlane.xlu0 %7567
  %7569 = vmax.xlane.f32.xlu0 %v7448
  %v7570 = vpop.xlane.xlu0 %7569
  %7571 = vmax.xlane.f32.xlu0 %v7449
  %v7572 = vpop.xlane.xlu0 %7571
  %7573 = vmax.xlane.f32.xlu0 %v7450
  %v7574 = vpop.xlane.xlu0 %7573
  %7575 = vmax.xlane.f32.xlu0 %v7451
  %v7576 = vpop.xlane.xlu0 %7575
  %7577 = vmax.xlane.f32.xlu0 %v7452
  %v7578 = vpop.xlane.xlu0 %7577
  %7579 = vmax.xlane.f32.xlu0 %v7453
  %v7580 = vpop.xlane.xlu0 %7579
  %7581 = vmax.xlane.f32.xlu0 %v7454
  %v7582 = vpop.xlane.xlu0 %7581
  %vm7583 = vcmp.eq.f32.partialorder %v156, 13.0
  %v7584 = vsel %vm7583, 1, 0
  %v7585 = vlaneseq
  %v7586 = vshrl.u32 %v7585, 7
  %v7587 = vsub.s32 0, %v7586
  %v7588 = vrot.slane %v7584, %v7587
  %vm7589 = vcmp.eq.s32.totalorder %v7588, 1
  %v7590 = vsel %vm7589, %v7456, %v7391
  %v7591 = vsel %vm7589, %v7458, %v7392
  %v7592 = vsel %vm7589, %v7460, %v7393
  %v7593 = vsel %vm7589, %v7462, %v7394
  %v7594 = vsel %vm7589, %v7464, %v7395
  %v7595 = vsel %vm7589, %v7466, %v7396
  %v7596 = vsel %vm7589, %v7468, %v7397
  %v7597 = vsel %vm7589, %v7470, %v7398
  %v7598 = vsel %vm7589, %v7472, %v7399
  %v7599 = vsel %vm7589, %v7474, %v7400
  %v7600 = vsel %vm7589, %v7476, %v7401
  %v7601 = vsel %vm7589, %v7478, %v7402
  %v7602 = vsel %vm7589, %v7480, %v7403
  %v7603 = vsel %vm7589, %v7482, %v7404
  %v7604 = vsel %vm7589, %v7484, %v7405
  %v7605 = vsel %vm7589, %v7486, %v7406
  %v7606 = vsel %vm7589, %v7488, %v7407
  %v7607 = vsel %vm7589, %v7490, %v7408
  %v7608 = vsel %vm7589, %v7492, %v7409
  %v7609 = vsel %vm7589, %v7494, %v7410
  %v7610 = vsel %vm7589, %v7496, %v7411
  %v7611 = vsel %vm7589, %v7498, %v7412
  %v7612 = vsel %vm7589, %v7500, %v7413
  %v7613 = vsel %vm7589, %v7502, %v7414
  %v7614 = vsel %vm7589, %v7504, %v7415
  %v7615 = vsel %vm7589, %v7506, %v7416
  %v7616 = vsel %vm7589, %v7508, %v7417
  %v7617 = vsel %vm7589, %v7510, %v7418
  %v7618 = vsel %vm7589, %v7512, %v7419
  %v7619 = vsel %vm7589, %v7514, %v7420
  %v7620 = vsel %vm7589, %v7516, %v7421
  %v7621 = vsel %vm7589, %v7518, %v7422
  %v7622 = vsel %vm7589, %v7520, %v7423
  %v7623 = vsel %vm7589, %v7522, %v7424
  %v7624 = vsel %vm7589, %v7524, %v7425
  %v7625 = vsel %vm7589, %v7526, %v7426
  %v7626 = vsel %vm7589, %v7528, %v7427
  %v7627 = vsel %vm7589, %v7530, %v7428
  %v7628 = vsel %vm7589, %v7532, %v7429
  %v7629 = vsel %vm7589, %v7534, %v7430
  %v7630 = vsel %vm7589, %v7536, %v7431
  %v7631 = vsel %vm7589, %v7538, %v7432
  %v7632 = vsel %vm7589, %v7540, %v7433
  %v7633 = vsel %vm7589, %v7542, %v7434
  %v7634 = vsel %vm7589, %v7544, %v7435
  %v7635 = vsel %vm7589, %v7546, %v7436
  %v7636 = vsel %vm7589, %v7548, %v7437
  %v7637 = vsel %vm7589, %v7550, %v7438
  %v7638 = vsel %vm7589, %v7552, %v7439
  %v7639 = vsel %vm7589, %v7554, %v7440
  %v7640 = vsel %vm7589, %v7556, %v7441
  %v7641 = vsel %vm7589, %v7558, %v7442
  %v7642 = vsel %vm7589, %v7560, %v7443
  %v7643 = vsel %vm7589, %v7562, %v7444
  %v7644 = vsel %vm7589, %v7564, %v7445
  %v7645 = vsel %vm7589, %v7566, %v7446
  %v7646 = vsel %vm7589, %v7568, %v7447
  %v7647 = vsel %vm7589, %v7570, %v7448
  %v7648 = vsel %vm7589, %v7572, %v7449
  %v7649 = vsel %vm7589, %v7574, %v7450
  %v7650 = vsel %vm7589, %v7576, %v7451
  %v7651 = vsel %vm7589, %v7578, %v7452
  %v7652 = vsel %vm7589, %v7580, %v7453
  %v7653 = vsel %vm7589, %v7582, %v7454
  %7654 = vst [vmem:[%s6] sm:$0xff] %v7590
  %7655 = vst [vmem:[%s6 + $0x8] sm:$0xff] %v7591
  %7656 = vst [vmem:[%s6 + $0x10] sm:$0xff] %v7592
  %7657 = vst [vmem:[%s6 + $0x18] sm:$0xff] %v7593
  %7658 = vst [vmem:[%s6 + $0x20] sm:$0xff] %v7594
  %7659 = vst [vmem:[%s6 + $0x28] sm:$0xff] %v7595
  %7660 = vst [vmem:[%s6 + $0x30] sm:$0xff] %v7596
  %7661 = vst [vmem:[%s6 + $0x38] sm:$0xff] %v7597
  %7662 = vst [vmem:[%s6 + $0x40] sm:$0xff] %v7598
  %7663 = vst [vmem:[%s6 + $0x48] sm:$0xff] %v7599
  %7664 = vst [vmem:[%s6 + $0x50] sm:$0xff] %v7600
  %7665 = vst [vmem:[%s6 + $0x58] sm:$0xff] %v7601
  %7666 = vst [vmem:[%s6 + $0x60] sm:$0xff] %v7602
  %7667 = vst [vmem:[%s6 + $0x68] sm:$0xff] %v7603
  %7668 = vst [vmem:[%s6 + $0x70] sm:$0xff] %v7604
  %7669 = vst [vmem:[%s6 + $0x78] sm:$0xff] %v7605
  %7670 = vst [vmem:[%s6 + $0x80] sm:$0xff] %v7606
  %7671 = vst [vmem:[%s6 + $0x88] sm:$0xff] %v7607
  %7672 = vst [vmem:[%s6 + $0x90] sm:$0xff] %v7608
  %7673 = vst [vmem:[%s6 + $0x98] sm:$0xff] %v7609
  %7674 = vst [vmem:[%s6 + $0xa0] sm:$0xff] %v7610
  %7675 = vst [vmem:[%s6 + $0xa8] sm:$0xff] %v7611
  %7676 = vst [vmem:[%s6 + $0xb0] sm:$0xff] %v7612
  %7677 = vst [vmem:[%s6 + $0xb8] sm:$0xff] %v7613
  %7678 = vst [vmem:[%s6 + $0xc0] sm:$0xff] %v7614
  %7679 = vst [vmem:[%s6 + $0xc8] sm:$0xff] %v7615
  %7680 = vst [vmem:[%s6 + $0xd0] sm:$0xff] %v7616
  %7681 = vst [vmem:[%s6 + $0xd8] sm:$0xff] %v7617
  %7682 = vst [vmem:[%s6 + $0xe0] sm:$0xff] %v7618
  %7683 = vst [vmem:[%s6 + $0xe8] sm:$0xff] %v7619
  %7684 = vst [vmem:[%s6 + $0xf0] sm:$0xff] %v7620
  %7685 = vst [vmem:[%s6 + $0xf8] sm:$0xff] %v7621
  %7686 = vst [vmem:[%s6 + $0x100] sm:$0xff] %v7622
  %7687 = vst [vmem:[%s6 + $0x108] sm:$0xff] %v7623
  %7688 = vst [vmem:[%s6 + $0x110] sm:$0xff] %v7624
  %7689 = vst [vmem:[%s6 + $0x118] sm:$0xff] %v7625
  %7690 = vst [vmem:[%s6 + $0x120] sm:$0xff] %v7626
  %7691 = vst [vmem:[%s6 + $0x128] sm:$0xff] %v7627
  %7692 = vst [vmem:[%s6 + $0x130] sm:$0xff] %v7628
  %7693 = vst [vmem:[%s6 + $0x138] sm:$0xff] %v7629
  %7694 = vst [vmem:[%s6 + $0x140] sm:$0xff] %v7630
  %7695 = vst [vmem:[%s6 + $0x148] sm:$0xff] %v7631
  %7696 = vst [vmem:[%s6 + $0x150] sm:$0xff] %v7632
  %7697 = vst [vmem:[%s6 + $0x158] sm:$0xff] %v7633
  %7698 = vst [vmem:[%s6 + $0x160] sm:$0xff] %v7634
  %7699 = vst [vmem:[%s6 + $0x168] sm:$0xff] %v7635
  %7700 = vst [vmem:[%s6 + $0x170] sm:$0xff] %v7636
  %7701 = vst [vmem:[%s6 + $0x178] sm:$0xff] %v7637
  %7702 = vst [vmem:[%s6 + $0x180] sm:$0xff] %v7638
  %7703 = vst [vmem:[%s6 + $0x188] sm:$0xff] %v7639
  %7704 = vst [vmem:[%s6 + $0x190] sm:$0xff] %v7640
  %7705 = vst [vmem:[%s6 + $0x198] sm:$0xff] %v7641
  %7706 = vst [vmem:[%s6 + $0x1a0] sm:$0xff] %v7642
  %7707 = vst [vmem:[%s6 + $0x1a8] sm:$0xff] %v7643
  %7708 = vst [vmem:[%s6 + $0x1b0] sm:$0xff] %v7644
  %7709 = vst [vmem:[%s6 + $0x1b8] sm:$0xff] %v7645
  %7710 = vst [vmem:[%s6 + $0x1c0] sm:$0xff] %v7646
  %7711 = vst [vmem:[%s6 + $0x1c8] sm:$0xff] %v7647
  %7712 = vst [vmem:[%s6 + $0x1d0] sm:$0xff] %v7648
  %7713 = vst [vmem:[%s6 + $0x1d8] sm:$0xff] %v7649
  %7714 = vst [vmem:[%s6 + $0x1e0] sm:$0xff] %v7650
  %7715 = vst [vmem:[%s6 + $0x1e8] sm:$0xff] %v7651
  %7716 = vst [vmem:[%s6 + $0x1f0] sm:$0xff] %v7652
  %7717 = vst [vmem:[%s6 + $0x1f8] sm:$0xff] %v7653
  // Predicated region
  $region26: #{run.1} parent=0 // pred_check
    _
  $region27: #{run.1} parent=0 // pred_check_branch
    %7719 = sbr.rel (0) target = $region29
  $region28: #{run.1} parent=0 // pred_region
    _
  $region29: #{run.1} parent=0 // pred_fallthru
    _
  // Predicated region
  $region30: #{run.1} parent=0 // pred_check
    _
  $region31: #{run.1} parent=0 // pred_check_branch
    %7721 = sbr.rel (0) target = $region33
  $region32: #{run.1} parent=0 // pred_region
    _
  $region33: #{run.1} parent=0 // pred_fallthru
    _

</llo_original>
